<compile_context>
chip_gen: v5e
topology: v5e:2x2
jax: 0.10.0
libtpu: 0.0.40
codegen_flags: <defaults>
</compile_context>

<pallas_src>
import functools

import jax
import jax.numpy as jnp
from jax import lax
from jax.experimental import pallas as pl
from jax.experimental.pallas import tpu as pltpu

EPS = 1e-5    # PyTorch BatchNorm2d default eps
K = 3         # kernel_size
LANES = 128


def _round_up(v, m):
    return (v + m - 1) // m * m


def _fill_im2col(dst_ref, center, N, H, W, C, CP):
    """Fill the (N, H+2, W, 3*CP) bf16 im2col scratch so that

        dst[n, r, w, kw*CP + c] == pad1(center)[n, r, w + kw, c]   (c <  C)
        dst[n, r, w, kw*CP + c] == 0                               (c >= C)

    where pad1() zero-pads the (H, W) dims of `center` by 1 on each side.

    `center` is an (N, H, W, C) bf16 *value* (already in vregs): the shifted
    kw=0 / kw=2 taps are sliced from it directly (no scratch read-back), and
    every channel block starts at a 128-lane-aligned offset and is written
    full-CP wide, so interior stores are unmasked.
    """
    if CP > C:
        pad = jnp.zeros(center.shape[:-1] + (CP - C,), jnp.bfloat16)
        center = jnp.concatenate([center, pad], axis=-1)          # (N, H, W, CP)
    zrow = jnp.zeros((N, 1, W, 3 * CP), jnp.bfloat16)
    zcol = jnp.zeros((N, H, 1, CP), jnp.bfloat16)
    # top / bottom halo rows
    dst_ref[:, 0:1, :, :] = zrow
    dst_ref[:, H + 1:H + 2, :, :] = zrow
    # kw = 1 (center) tap
    dst_ref[:, 1:H + 1, :, CP:2 * CP] = center
    # kw = 0 tap: shifted right by one column; left edge is zero padding
    dst_ref[:, 1:H + 1, 0:1, 0:CP] = zcol
    dst_ref[:, 1:H + 1, 1:W, 0:CP] = center[:, :, 0:W - 1, :]
    # kw = 2 tap: shifted left by one column; right edge is zero padding
    dst_ref[:, 1:H + 1, 0:W - 1, 2 * CP:3 * CP] = center[:, :, 1:W, :]
    dst_ref[:, 1:H + 1, W - 1:W, 2 * CP:3 * CP] = zcol


def _conv3x3(cat_ref, w_ref, M, H, Kc, Cout):
    """3 kh-taps x one fused (M, 3*CP) @ (3*CP, Cout) bf16 matmul, f32 accum."""
    acc = jnp.zeros((M, Cout), jnp.float32)
    for kh in range(K):
        lhs = cat_ref[:, kh:kh + H, :, :].reshape(M, Kc)
        acc = acc + jnp.dot(lhs, w_ref[kh], preferred_element_type=jnp.float32)
    return acc


def _bn_train(acc, g, b, inv_m):
    """BatchNorm2d (training mode, biased per-batch stats), one-pass stats."""
    s = jnp.sum(acc, axis=0, keepdims=True)
    ss = jnp.sum(acc * acc, axis=0, keepdims=True)
    mean = s * inv_m
    # One-pass E[x^2]-E[x]^2 can cancel slightly negative; clamp before rsqrt.
    var = jnp.maximum(ss * inv_m - mean * mean, 0.0)
    scale = g * lax.rsqrt(var + EPS)
    return acc * scale + (b - mean * scale)


def _residual_block_kernel(x_ref, w1_ref, w2_ref, g1_ref, b1_ref, g2_ref,
                           b2_ref, alpha_ref, out_ref, cat_ref):
    """Whole-block kernel (everything resident in VMEM).

    x_ref   : (N, H, W, Cin)    f32 input (also the residual branch)
    w1/w2   : (3, 3*CP, Cout)   bf16 conv weights, kw folded into K, lane-padded
    g*/b*   : (1, Cout)         f32 BN affine params
    alpha   : (1,) SMEM         PReLU slope
    cat_ref : (N, H+2, W, 3*CP) bf16 VMEM im2col scratch, shared by both convs
    """
    N, H, W, Cin = x_ref.shape
    Cout = w1_ref.shape[-1]
    CP = cat_ref.shape[-1] // K
    M = N * H * W
    inv_m = 1.0 / M

    # ---------------- conv1 (bf16 MXU, f32 accumulate) ------------------------
    _fill_im2col(cat_ref, x_ref[...].astype(jnp.bfloat16), N, H, W, Cin, CP)
    acc1 = _conv3x3(cat_ref, w1_ref, M, H, K * CP, Cout)

    # ---------------- BN1 (training stats) + PReLU ----------------------------
    y = _bn_train(acc1, g1_ref[...], b1_ref[...], inv_m)
    alpha = alpha_ref[0]
    y = jnp.where(y >= 0.0, y, alpha * y)

    # ---------------- conv2 (im2col scratch reused: conv1's copy is dead) -----
    _fill_im2col(cat_ref, y.astype(jnp.bfloat16).reshape(N, H, W, Cout),
                 N, H, W, Cout, CP)
    acc2 = _conv3x3(cat_ref, w2_ref, M, H, K * CP, Cout)

    # ---------------- BN2 + residual add ---------------------------------------
    y2 = _bn_train(acc2, g2_ref[...], b2_ref[...], inv_m)
    res = x_ref[...].reshape(M, Cin)
    out_ref[...] = (y2 + res).reshape(N, H, W, Cout).astype(out_ref.dtype)


def _pad_weight_hwio(w, CP):
    """(3, 3, Ci, Co) HWIO -> (3, 3*CP, Co) bf16: kw folded into the K axis,
    each kw tap zero-padded to CP rows to match the lane-aligned im2col layout."""
    kh, kw, ci, co = w.shape
    wp = jnp.zeros((kh, kw, CP, co), jnp.float32).at[:, :, :ci, :].set(
        w.astype(jnp.float32))
    return wp.reshape(kh, kw * CP, co).astype(jnp.bfloat16)


def residual_block_nhwc(x_nhwc, params):
    """NHWC-native entry point (preferred: a stack of ResidualBlocks should stay
    in NHWC end-to-end and never pay per-block layout transposes)."""
    w1, w2, g1, b1, g2, b2, alpha = params
    N, H, W, Cin = x_nhwc.shape
    Cout = w1.shape[-1]
    assert Cin == Cout, "residual add requires input_c == output_c"
    CP = _round_up(Cout, LANES)

    w1p = _pad_weight_hwio(w1, CP)
    w2p = _pad_weight_hwio(w2, CP)

    vmem = functools.partial(pl.BlockSpec, memory_space=pltpu.MemorySpace.VMEM)
    smem = functools.partial(pl.BlockSpec, memory_space=pltpu.MemorySpace.SMEM)

    flops = int(2 * 2 * N * H * W * (K * K * Cin) * Cout)          # two convs
    bytes_accessed = int(N * H * W * (Cin + Cout) * 4              # x in, out
                         + (w1p.size + w2p.size) * 2               # bf16 weights
                         + (4 * Cout + 1) * 4)                     # BN/PReLU params

    return pl.pallas_call(
        _residual_block_kernel,
        out_shape=jax.ShapeDtypeStruct((N, H, W, Cout), jnp.float32),
        in_specs=[vmem()] * 7 + [smem()],
        out_specs=vmem(),
        scratch_shapes=[
            pltpu.VMEM((N, H + 2, W, K * CP), jnp.bfloat16),   # shared im2col
        ],
        cost_estimate=pl.CostEstimate(flops=flops,
                                      transcendentals=2 * Cout,
                                      bytes_accessed=bytes_accessed),
    )(x_nhwc.astype(jnp.float32), w1p, w2p,
      g1.reshape(1, -1).astype(jnp.float32), b1.reshape(1, -1).astype(jnp.float32),
      g2.reshape(1, -1).astype(jnp.float32), b2.reshape(1, -1).astype(jnp.float32),
      alpha.reshape(1).astype(jnp.float32))


def residual_block(x_nchw, params):
    """PyTorch-compatible entry point: x is NCHW, returns NCHW.

    Prefer `residual_block_nhwc` when stacking blocks: the transposes here are
    only for drop-in parity with the nn.Module interface.
    """
    x = jnp.transpose(x_nchw, (0, 2, 3, 1))
    out = residual_block_nhwc(x, params)
    return jnp.transpose(out, (0, 3, 1, 2))


def _reference(x_nchw, params):
    """Pure-JAX reference (same math as the PyTorch module in training mode,
    with the convs evaluated at the kernel's bf16 input precision)."""
    w1, w2, g1, b1, g2, b2, alpha = params
    x = jnp.transpose(x_nchw, (0, 2, 3, 1)).astype(jnp.float32)

    def conv(inp, w):
        return lax.conv_general_dilated(
            inp.astype(jnp.bfloat16), w.astype(jnp.bfloat16),
            window_strides=(1, 1), padding="SAME",
            dimension_numbers=("NHWC", "HWIO", "NHWC"),
            preferred_element_type=jnp.float32)

    def bn(inp, g, b):
        mean = jnp.mean(inp, axis=(0, 1, 2), keepdims=True)
        var = jnp.mean((inp - mean) ** 2, axis=(0, 1, 2), keepdims=True)
        return (inp - mean) * lax.rsqrt(var + EPS) * g + b

    y = bn(conv(x, w1), g1, b1)
    y = jnp.where(y >= 0.0, y, alpha * y)
    y = bn(conv(y, w2), g2, b2)
    y = y + x
    return jnp.transpose(y, (0, 3, 1, 2))


if __name__ == "__main__":
    # Module defaults: input_c = output_c = 64, 3x3 convs.
    N, C, H, W = 2, 64, 16, 16
    key = jax.random.PRNGKey(0)
    k = jax.random.split(key, 7)

    x = jax.random.normal(k[0], (N, C, H, W), jnp.float32)

    fan_in = C * K * K
    # Conv weights in HWIO layout (kh, kw, Cin, Cout); deterministic synthetic init.
    w1 = jax.random.normal(k[1], (K, K, C, C), jnp.float32) / jnp.sqrt(fan_in)
    w2 = jax.random.normal(k[2], (K, K, C, C), jnp.float32) / jnp.sqrt(fan_in)
    g1 = 1.0 + 0.1 * jax.random.normal(k[3], (C,), jnp.float32)
    b1 = 0.1 * jax.random.normal(k[4], (C,), jnp.float32)
    g2 = 1.0 + 0.1 * jax.random.normal(k[5], (C,), jnp.float32)
    b2 = 0.1 * jax.random.normal(k[6], (C,), jnp.float32)
    alpha = jnp.array(0.25, jnp.float32)   # nn.PReLU() default init
    params = (w1, w2, g1, b1, g2, b2, alpha)

    out = jax.block_until_ready(residual_block(x, params))
    ref = jax.block_until_ready(_reference(x, params))

    assert out.shape == x.shape, (out.shape, x.shape)
    max_err = float(jnp.max(jnp.abs(out - ref)))
    assert jnp.allclose(out, ref, atol=2e-3, rtol=2e-3), f"max_err={max_err}"
    print("KERNEL_OK")
</pallas_src>

<mosaic_0001>
module attributes {stable_mosaic.version = 11 : i64} {
  func.func @_residual_block_kernel(%arg0: memref<2x16x16x64xf32, #tpu.memory_space<vmem>>, %arg1: memref<3x384x64xbf16, #tpu.memory_space<vmem>>, %arg2: memref<3x384x64xbf16, #tpu.memory_space<vmem>>, %arg3: memref<1x64xf32, #tpu.memory_space<vmem>>, %arg4: memref<1x64xf32, #tpu.memory_space<vmem>>, %arg5: memref<1x64xf32, #tpu.memory_space<vmem>>, %arg6: memref<1x64xf32, #tpu.memory_space<vmem>>, %arg7: memref<1xf32, #tpu.memory_space<smem>>, %arg8: memref<2x16x16x64xf32, #tpu.memory_space<vmem>>, %arg9: memref<2x18x16x384xbf16, #tpu.memory_space<vmem>>) attributes {dimension_semantics = [], scalar_prefetch = 0 : i64, scratch_operands = 1 : i64, tpu.core_type = #tpu.core_type<tc>} {
    %c0 = arith.constant 0 : index
    %c0_0 = arith.constant 0 : index
    %c0_1 = arith.constant 0 : index
    %c0_2 = arith.constant 0 : index
    %0 = vector.load %arg0[%c0, %c0_0, %c0_1, %c0_2] : memref<2x16x16x64xf32, #tpu.memory_space<vmem>>, vector<2x16x16x64xf32>
    %1 = arith.truncf %0 : vector<2x16x16x64xf32> to vector<2x16x16x64xbf16>
    %cst = arith.constant 0.000000e+00 : bf16
    %2 = vector.broadcast %cst : bf16 to vector<2x16x16x64xbf16>
    %3 = tpu.concatenate %1, %2 in 3 : vector<2x16x16x64xbf16>, vector<2x16x16x64xbf16> -> vector<2x16x16x128xbf16>
    %cst_3 = arith.constant 0.000000e+00 : bf16
    %4 = vector.broadcast %cst_3 : bf16 to vector<2x1x16x384xbf16>
    %cst_4 = arith.constant 0.000000e+00 : bf16
    %5 = vector.broadcast %cst_4 : bf16 to vector<2x16x1x128xbf16>
    %c0_5 = arith.constant 0 : index
    %c0_6 = arith.constant 0 : index
    %c0_7 = arith.constant 0 : index
    %c0_8 = arith.constant 0 : index
    %6 = vector.load %arg9[%c0_5, %c0_6, %c0_7, %c0_8] : memref<2x18x16x384xbf16, #tpu.memory_space<vmem>>, vector<2x1x16x384xbf16>
    tpu.vector_store %arg9[%c0_5, %c0_6, %c0_7, %c0_8], %4 {strides = array<i32>} : memref<2x18x16x384xbf16, #tpu.memory_space<vmem>>, vector<2x1x16x384xbf16>,
    %c0_9 = arith.constant 0 : index
    %c17 = arith.constant 17 : index
    %c0_10 = arith.constant 0 : index
    %c0_11 = arith.constant 0 : index
    %7 = vector.load %arg9[%c0_9, %c17, %c0_10, %c0_11] : memref<2x18x16x384xbf16, #tpu.memory_space<vmem>>, vector<2x1x16x384xbf16>
    tpu.vector_store %arg9[%c0_9, %c17, %c0_10, %c0_11], %4 {strides = array<i32>} : memref<2x18x16x384xbf16, #tpu.memory_space<vmem>>, vector<2x1x16x384xbf16>,
    %c0_12 = arith.constant 0 : index
    %c1 = arith.constant 1 : index
    %c0_13 = arith.constant 0 : index
    %c128 = arith.constant 128 : index
    %8 = vector.load %arg9[%c0_12, %c1, %c0_13, %c128] : memref<2x18x16x384xbf16, #tpu.memory_space<vmem>>, vector<2x16x16x128xbf16>
    tpu.vector_store %arg9[%c0_12, %c1, %c0_13, %c128], %3 {strides = array<i32>} : memref<2x18x16x384xbf16, #tpu.memory_space<vmem>>, vector<2x16x16x128xbf16>,
    %c0_14 = arith.constant 0 : index
    %c1_15 = arith.constant 1 : index
    %c0_16 = arith.constant 0 : index
    %c0_17 = arith.constant 0 : index
    %9 = vector.load %arg9[%c0_14, %c1_15, %c0_16, %c0_17] : memref<2x18x16x384xbf16, #tpu.memory_space<vmem>>, vector<2x16x1x128xbf16>
    tpu.vector_store %arg9[%c0_14, %c1_15, %c0_16, %c0_17], %5 {strides = array<i32>} : memref<2x18x16x384xbf16, #tpu.memory_space<vmem>>, vector<2x16x1x128xbf16>,
    %10 = vector.extract_strided_slice %3 {offsets = [0, 0, 0, 0], sizes = [2, 16, 15, 128], strides = [1, 1, 1, 1]} : vector<2x16x16x128xbf16> to vector<2x16x15x128xbf16>
    %c0_18 = arith.constant 0 : index
    %c1_19 = arith.constant 1 : index
    %c1_20 = arith.constant 1 : index
    %c0_21 = arith.constant 0 : index
    %11 = vector.load %arg9[%c0_18, %c1_19, %c1_20, %c0_21] : memref<2x18x16x384xbf16, #tpu.memory_space<vmem>>, vector<2x16x15x128xbf16>
    tpu.vector_store %arg9[%c0_18, %c1_19, %c1_20, %c0_21], %10 {strides = array<i32>} : memref<2x18x16x384xbf16, #tpu.memory_space<vmem>>, vector<2x16x15x128xbf16>,
    %12 = vector.extract_strided_slice %3 {offsets = [0, 0, 1, 0], sizes = [2, 16, 15, 128], strides = [1, 1, 1, 1]} : vector<2x16x16x128xbf16> to vector<2x16x15x128xbf16>
    %c0_22 = arith.constant 0 : index
    %c1_23 = arith.constant 1 : index
    %c0_24 = arith.constant 0 : index
    %c256 = arith.constant 256 : index
    %13 = vector.load %arg9[%c0_22, %c1_23, %c0_24, %c256] : memref<2x18x16x384xbf16, #tpu.memory_space<vmem>>, vector<2x16x15x128xbf16>
    tpu.vector_store %arg9[%c0_22, %c1_23, %c0_24, %c256], %12 {strides = array<i32>} : memref<2x18x16x384xbf16, #tpu.memory_space<vmem>>, vector<2x16x15x128xbf16>,
    %c0_25 = arith.constant 0 : index
    %c1_26 = arith.constant 1 : index
    %c15 = arith.constant 15 : index
    %c256_27 = arith.constant 256 : index
    %14 = vector.load %arg9[%c0_25, %c1_26, %c15, %c256_27] : memref<2x18x16x384xbf16, #tpu.memory_space<vmem>>, vector<2x16x1x128xbf16>
    tpu.vector_store %arg9[%c0_25, %c1_26, %c15, %c256_27], %5 {strides = array<i32>} : memref<2x18x16x384xbf16, #tpu.memory_space<vmem>>, vector<2x16x1x128xbf16>,
    %cst_28 = arith.constant 0.000000e+00 : f32
    %15 = vector.broadcast %cst_28 : f32 to vector<512x64xf32>
    %c0_29 = arith.constant 0 : index
    %c0_30 = arith.constant 0 : index
    %c0_31 = arith.constant 0 : index
    %c0_32 = arith.constant 0 : index
    %16 = vector.load %arg9[%c0_29, %c0_30, %c0_31, %c0_32] : memref<2x18x16x384xbf16, #tpu.memory_space<vmem>>, vector<2x16x16x384xbf16>
    %17 = vector.shape_cast %16 : vector<2x16x16x384xbf16> to vector<512x384xbf16>
    %c0_33 = arith.constant 0 : index
    %c0_34 = arith.constant 0 : index
    %c0_35 = arith.constant 0 : index
    %18 = vector.load %arg1[%c0_33, %c0_34, %c0_35] : memref<3x384x64xbf16, #tpu.memory_space<vmem>>, vector<1x384x64xbf16>
    %19 = vector.shape_cast %18 : vector<1x384x64xbf16> to vector<384x64xbf16>
    %cst_36 = arith.constant dense<0.000000e+00> : vector<512x64xf32>
    %20 = tpu.matmul %17, %19, %cst_36 {dimension_numbers = #tpu.dot_dimension_numbers<[1], [0], [0], [1], [0, 0, 1, 1], [], []>} : vector<512x384xbf16>, vector<384x64xbf16>, vector<512x64xf32> -> vector<512x64xf32>
    %21 = arith.addf %15, %20 : vector<512x64xf32>
    %c0_37 = arith.constant 0 : index
    %c1_38 = arith.constant 1 : index
    %c0_39 = arith.constant 0 : index
    %c0_40 = arith.constant 0 : index
    %22 = vector.load %arg9[%c0_37, %c1_38, %c0_39, %c0_40] : memref<2x18x16x384xbf16, #tpu.memory_space<vmem>>, vector<2x16x16x384xbf16>
    %23 = vector.shape_cast %22 : vector<2x16x16x384xbf16> to vector<512x384xbf16>
    %c1_41 = arith.constant 1 : index
    %c0_42 = arith.constant 0 : index
    %c0_43 = arith.constant 0 : index
    %24 = vector.load %arg1[%c1_41, %c0_42, %c0_43] : memref<3x384x64xbf16, #tpu.memory_space<vmem>>, vector<1x384x64xbf16>
    %25 = vector.shape_cast %24 : vector<1x384x64xbf16> to vector<384x64xbf16>
    %cst_44 = arith.constant dense<0.000000e+00> : vector<512x64xf32>
    %26 = tpu.matmul %23, %25, %cst_44 {dimension_numbers = #tpu.dot_dimension_numbers<[1], [0], [0], [1], [0, 0, 1, 1], [], []>} : vector<512x384xbf16>, vector<384x64xbf16>, vector<512x64xf32> -> vector<512x64xf32>
    %27 = arith.addf %21, %26 : vector<512x64xf32>
    %c0_45 = arith.constant 0 : index
    %c2 = arith.constant 2 : index
    %c0_46 = arith.constant 0 : index
    %c0_47 = arith.constant 0 : index
    %28 = vector.load %arg9[%c0_45, %c2, %c0_46, %c0_47] : memref<2x18x16x384xbf16, #tpu.memory_space<vmem>>, vector<2x16x16x384xbf16>
    %29 = vector.shape_cast %28 : vector<2x16x16x384xbf16> to vector<512x384xbf16>
    %c2_48 = arith.constant 2 : index
    %c0_49 = arith.constant 0 : index
    %c0_50 = arith.constant 0 : index
    %30 = vector.load %arg1[%c2_48, %c0_49, %c0_50] : memref<3x384x64xbf16, #tpu.memory_space<vmem>>, vector<1x384x64xbf16>
    %31 = vector.shape_cast %30 : vector<1x384x64xbf16> to vector<384x64xbf16>
    %cst_51 = arith.constant dense<0.000000e+00> : vector<512x64xf32>
    %32 = tpu.matmul %29, %31, %cst_51 {dimension_numbers = #tpu.dot_dimension_numbers<[1], [0], [0], [1], [0, 0, 1, 1], [], []>} : vector<512x384xbf16>, vector<384x64xbf16>, vector<512x64xf32> -> vector<512x64xf32>
    %33 = arith.addf %27, %32 : vector<512x64xf32>
    %c0_52 = arith.constant 0 : index
    %c0_53 = arith.constant 0 : index
    %34 = vector.load %arg3[%c0_52, %c0_53] : memref<1x64xf32, #tpu.memory_space<vmem>>, vector<1x64xf32>
    %c0_54 = arith.constant 0 : index
    %c0_55 = arith.constant 0 : index
    %35 = vector.load %arg4[%c0_54, %c0_55] : memref<1x64xf32, #tpu.memory_space<vmem>>, vector<1x64xf32>
    %cst_56 = arith.constant dense<0.000000e+00> : vector<64xf32>
    %36 = vector.multi_reduction <add>, %33, %cst_56 [0] : vector<512x64xf32> to vector<64xf32>
    %37 = vector.shape_cast %36 : vector<64xf32> to vector<1x64xf32>
    %38 = arith.mulf %33, %33 : vector<512x64xf32>
    %cst_57 = arith.constant dense<0.000000e+00> : vector<64xf32>
    %39 = vector.multi_reduction <add>, %38, %cst_57 [0] : vector<512x64xf32> to vector<64xf32>
    %40 = vector.shape_cast %39 : vector<64xf32> to vector<1x64xf32>
    %cst_58 = arith.constant 0.001953125 : f32
    %41 = vector.broadcast %cst_58 : f32 to vector<1x64xf32>
    %42 = arith.mulf %37, %41 : vector<1x64xf32>
    %cst_59 = arith.constant 0.001953125 : f32
    %43 = vector.broadcast %cst_59 : f32 to vector<1x64xf32>
    %44 = arith.mulf %40, %43 : vector<1x64xf32>
    %45 = arith.mulf %42, %42 : vector<1x64xf32>
    %46 = arith.subf %44, %45 : vector<1x64xf32>
    %cst_60 = arith.constant 0.000000e+00 : f32
    %47 = vector.broadcast %cst_60 : f32 to vector<1x64xf32>
    %48 = arith.maximumf %46, %47 : vector<1x64xf32>
    %cst_61 = arith.constant 9.99999974E-6 : f32
    %49 = vector.broadcast %cst_61 : f32 to vector<1x64xf32>
    %50 = arith.addf %48, %49 : vector<1x64xf32>
    %51 = math.rsqrt %50 : vector<1x64xf32>
    %52 = arith.mulf %34, %51 : vector<1x64xf32>
    %53 = vector.broadcast %52 : vector<1x64xf32> to vector<512x64xf32>
    %54 = arith.mulf %33, %53 : vector<512x64xf32>
    %55 = arith.mulf %42, %52 : vector<1x64xf32>
    %56 = arith.subf %35, %55 : vector<1x64xf32>
    %57 = vector.broadcast %56 : vector<1x64xf32> to vector<512x64xf32>
    %58 = arith.addf %54, %57 : vector<512x64xf32>
    %c0_62 = arith.constant 0 : index
    %59 = memref.load %arg7[%c0_62] : memref<1xf32, #tpu.memory_space<smem>>
    %cst_63 = arith.constant 0.000000e+00 : f32
    %60 = vector.broadcast %cst_63 : f32 to vector<512x64xf32>
    %61 = arith.cmpf oge, %58, %60 : vector<512x64xf32>
    %62 = vector.broadcast %59 : f32 to vector<512x64xf32>
    %63 = arith.mulf %62, %58 : vector<512x64xf32>
    %64 = arith.select %61, %58, %63 : vector<512x64xi1>, vector<512x64xf32>
    %65 = arith.truncf %64 : vector<512x64xf32> to vector<512x64xbf16>
    %66 = vector.shape_cast %65 : vector<512x64xbf16> to vector<2x16x16x64xbf16>
    %cst_64 = arith.constant 0.000000e+00 : bf16
    %67 = vector.broadcast %cst_64 : bf16 to vector<2x16x16x64xbf16>
    %68 = tpu.concatenate %66, %67 in 3 : vector<2x16x16x64xbf16>, vector<2x16x16x64xbf16> -> vector<2x16x16x128xbf16>
    %cst_65 = arith.constant 0.000000e+00 : bf16
    %69 = vector.broadcast %cst_65 : bf16 to vector<2x1x16x384xbf16>
    %cst_66 = arith.constant 0.000000e+00 : bf16
    %70 = vector.broadcast %cst_66 : bf16 to vector<2x16x1x128xbf16>
    %c0_67 = arith.constant 0 : index
    %c0_68 = arith.constant 0 : index
    %c0_69 = arith.constant 0 : index
    %c0_70 = arith.constant 0 : index
    %71 = vector.load %arg9[%c0_67, %c0_68, %c0_69, %c0_70] : memref<2x18x16x384xbf16, #tpu.memory_space<vmem>>, vector<2x1x16x384xbf16>
    tpu.vector_store %arg9[%c0_67, %c0_68, %c0_69, %c0_70], %69 {strides = array<i32>} : memref<2x18x16x384xbf16, #tpu.memory_space<vmem>>, vector<2x1x16x384xbf16>,
    %c0_71 = arith.constant 0 : index
    %c17_72 = arith.constant 17 : index
    %c0_73 = arith.constant 0 : index
    %c0_74 = arith.constant 0 : index
    %72 = vector.load %arg9[%c0_71, %c17_72, %c0_73, %c0_74] : memref<2x18x16x384xbf16, #tpu.memory_space<vmem>>, vector<2x1x16x384xbf16>
    tpu.vector_store %arg9[%c0_71, %c17_72, %c0_73, %c0_74], %69 {strides = array<i32>} : memref<2x18x16x384xbf16, #tpu.memory_space<vmem>>, vector<2x1x16x384xbf16>,
    %c0_75 = arith.constant 0 : index
    %c1_76 = arith.constant 1 : index
    %c0_77 = arith.constant 0 : index
    %c128_78 = arith.constant 128 : index
    %73 = vector.load %arg9[%c0_75, %c1_76, %c0_77, %c128_78] : memref<2x18x16x384xbf16, #tpu.memory_space<vmem>>, vector<2x16x16x128xbf16>
    tpu.vector_store %arg9[%c0_75, %c1_76, %c0_77, %c128_78], %68 {strides = array<i32>} : memref<2x18x16x384xbf16, #tpu.memory_space<vmem>>, vector<2x16x16x128xbf16>,
    %c0_79 = arith.constant 0 : index
    %c1_80 = arith.constant 1 : index
    %c0_81 = arith.constant 0 : index
    %c0_82 = arith.constant 0 : index
    %74 = vector.load %arg9[%c0_79, %c1_80, %c0_81, %c0_82] : memref<2x18x16x384xbf16, #tpu.memory_space<vmem>>, vector<2x16x1x128xbf16>
    tpu.vector_store %arg9[%c0_79, %c1_80, %c0_81, %c0_82], %70 {strides = array<i32>} : memref<2x18x16x384xbf16, #tpu.memory_space<vmem>>, vector<2x16x1x128xbf16>,
    %75 = vector.extract_strided_slice %68 {offsets = [0, 0, 0, 0], sizes = [2, 16, 15, 128], strides = [1, 1, 1, 1]} : vector<2x16x16x128xbf16> to vector<2x16x15x128xbf16>
    %c0_83 = arith.constant 0 : index
    %c1_84 = arith.constant 1 : index
    %c1_85 = arith.constant 1 : index
    %c0_86 = arith.constant 0 : index
    %76 = vector.load %arg9[%c0_83, %c1_84, %c1_85, %c0_86] : memref<2x18x16x384xbf16, #tpu.memory_space<vmem>>, vector<2x16x15x128xbf16>
    tpu.vector_store %arg9[%c0_83, %c1_84, %c1_85, %c0_86], %75 {strides = array<i32>} : memref<2x18x16x384xbf16, #tpu.memory_space<vmem>>, vector<2x16x15x128xbf16>,
    %77 = vector.extract_strided_slice %68 {offsets = [0, 0, 1, 0], sizes = [2, 16, 15, 128], strides = [1, 1, 1, 1]} : vector<2x16x16x128xbf16> to vector<2x16x15x128xbf16>
    %c0_87 = arith.constant 0 : index
    %c1_88 = arith.constant 1 : index
    %c0_89 = arith.constant 0 : index
    %c256_90 = arith.constant 256 : index
    %78 = vector.load %arg9[%c0_87, %c1_88, %c0_89, %c256_90] : memref<2x18x16x384xbf16, #tpu.memory_space<vmem>>, vector<2x16x15x128xbf16>
    tpu.vector_store %arg9[%c0_87, %c1_88, %c0_89, %c256_90], %77 {strides = array<i32>} : memref<2x18x16x384xbf16, #tpu.memory_space<vmem>>, vector<2x16x15x128xbf16>,
    %c0_91 = arith.constant 0 : index
    %c1_92 = arith.constant 1 : index
    %c15_93 = arith.constant 15 : index
    %c256_94 = arith.constant 256 : index
    %79 = vector.load %arg9[%c0_91, %c1_92, %c15_93, %c256_94] : memref<2x18x16x384xbf16, #tpu.memory_space<vmem>>, vector<2x16x1x128xbf16>
    tpu.vector_store %arg9[%c0_91, %c1_92, %c15_93, %c256_94], %70 {strides = array<i32>} : memref<2x18x16x384xbf16, #tpu.memory_space<vmem>>, vector<2x16x1x128xbf16>,
    %cst_95 = arith.constant 0.000000e+00 : f32
    %80 = vector.broadcast %cst_95 : f32 to vector<512x64xf32>
    %c0_96 = arith.constant 0 : index
    %c0_97 = arith.constant 0 : index
    %c0_98 = arith.constant 0 : index
    %c0_99 = arith.constant 0 : index
    %81 = vector.load %arg9[%c0_96, %c0_97, %c0_98, %c0_99] : memref<2x18x16x384xbf16, #tpu.memory_space<vmem>>, vector<2x16x16x384xbf16>
    %82 = vector.shape_cast %81 : vector<2x16x16x384xbf16> to vector<512x384xbf16>
    %c0_100 = arith.constant 0 : index
    %c0_101 = arith.constant 0 : index
    %c0_102 = arith.constant 0 : index
    %83 = vector.load %arg2[%c0_100, %c0_101, %c0_102] : memref<3x384x64xbf16, #tpu.memory_space<vmem>>, vector<1x384x64xbf16>
    %84 = vector.shape_cast %83 : vector<1x384x64xbf16> to vector<384x64xbf16>
    %cst_103 = arith.constant dense<0.000000e+00> : vector<512x64xf32>
    %85 = tpu.matmul %82, %84, %cst_103 {dimension_numbers = #tpu.dot_dimension_numbers<[1], [0], [0], [1], [0, 0, 1, 1], [], []>} : vector<512x384xbf16>, vector<384x64xbf16>, vector<512x64xf32> -> vector<512x64xf32>
    %86 = arith.addf %80, %85 : vector<512x64xf32>
    %c0_104 = arith.constant 0 : index
    %c1_105 = arith.constant 1 : index
    %c0_106 = arith.constant 0 : index
    %c0_107 = arith.constant 0 : index
    %87 = vector.load %arg9[%c0_104, %c1_105, %c0_106, %c0_107] : memref<2x18x16x384xbf16, #tpu.memory_space<vmem>>, vector<2x16x16x384xbf16>
    %88 = vector.shape_cast %87 : vector<2x16x16x384xbf16> to vector<512x384xbf16>
    %c1_108 = arith.constant 1 : index
    %c0_109 = arith.constant 0 : index
    %c0_110 = arith.constant 0 : index
    %89 = vector.load %arg2[%c1_108, %c0_109, %c0_110] : memref<3x384x64xbf16, #tpu.memory_space<vmem>>, vector<1x384x64xbf16>
    %90 = vector.shape_cast %89 : vector<1x384x64xbf16> to vector<384x64xbf16>
    %cst_111 = arith.constant dense<0.000000e+00> : vector<512x64xf32>
    %91 = tpu.matmul %88, %90, %cst_111 {dimension_numbers = #tpu.dot_dimension_numbers<[1], [0], [0], [1], [0, 0, 1, 1], [], []>} : vector<512x384xbf16>, vector<384x64xbf16>, vector<512x64xf32> -> vector<512x64xf32>
    %92 = arith.addf %86, %91 : vector<512x64xf32>
    %c0_112 = arith.constant 0 : index
    %c2_113 = arith.constant 2 : index
    %c0_114 = arith.constant 0 : index
    %c0_115 = arith.constant 0 : index
    %93 = vector.load %arg9[%c0_112, %c2_113, %c0_114, %c0_115] : memref<2x18x16x384xbf16, #tpu.memory_space<vmem>>, vector<2x16x16x384xbf16>
    %94 = vector.shape_cast %93 : vector<2x16x16x384xbf16> to vector<512x384xbf16>
    %c2_116 = arith.constant 2 : index
    %c0_117 = arith.constant 0 : index
    %c0_118 = arith.constant 0 : index
    %95 = vector.load %arg2[%c2_116, %c0_117, %c0_118] : memref<3x384x64xbf16, #tpu.memory_space<vmem>>, vector<1x384x64xbf16>
    %96 = vector.shape_cast %95 : vector<1x384x64xbf16> to vector<384x64xbf16>
    %cst_119 = arith.constant dense<0.000000e+00> : vector<512x64xf32>
    %97 = tpu.matmul %94, %96, %cst_119 {dimension_numbers = #tpu.dot_dimension_numbers<[1], [0], [0], [1], [0, 0, 1, 1], [], []>} : vector<512x384xbf16>, vector<384x64xbf16>, vector<512x64xf32> -> vector<512x64xf32>
    %98 = arith.addf %92, %97 : vector<512x64xf32>
    %c0_120 = arith.constant 0 : index
    %c0_121 = arith.constant 0 : index
    %99 = vector.load %arg5[%c0_120, %c0_121] : memref<1x64xf32, #tpu.memory_space<vmem>>, vector<1x64xf32>
    %c0_122 = arith.constant 0 : index
    %c0_123 = arith.constant 0 : index
    %100 = vector.load %arg6[%c0_122, %c0_123] : memref<1x64xf32, #tpu.memory_space<vmem>>, vector<1x64xf32>
    %cst_124 = arith.constant dense<0.000000e+00> : vector<64xf32>
    %101 = vector.multi_reduction <add>, %98, %cst_124 [0] : vector<512x64xf32> to vector<64xf32>
    %102 = vector.shape_cast %101 : vector<64xf32> to vector<1x64xf32>
    %103 = arith.mulf %98, %98 : vector<512x64xf32>
    %cst_125 = arith.constant dense<0.000000e+00> : vector<64xf32>
    %104 = vector.multi_reduction <add>, %103, %cst_125 [0] : vector<512x64xf32> to vector<64xf32>
    %105 = vector.shape_cast %104 : vector<64xf32> to vector<1x64xf32>
    %cst_126 = arith.constant 0.001953125 : f32
    %106 = vector.broadcast %cst_126 : f32 to vector<1x64xf32>
    %107 = arith.mulf %102, %106 : vector<1x64xf32>
    %cst_127 = arith.constant 0.001953125 : f32
    %108 = vector.broadcast %cst_127 : f32 to vector<1x64xf32>
    %109 = arith.mulf %105, %108 : vector<1x64xf32>
    %110 = arith.mulf %107, %107 : vector<1x64xf32>
    %111 = arith.subf %109, %110 : vector<1x64xf32>
    %cst_128 = arith.constant 0.000000e+00 : f32
    %112 = vector.broadcast %cst_128 : f32 to vector<1x64xf32>
    %113 = arith.maximumf %111, %112 : vector<1x64xf32>
    %cst_129 = arith.constant 9.99999974E-6 : f32
    %114 = vector.broadcast %cst_129 : f32 to vector<1x64xf32>
    %115 = arith.addf %113, %114 : vector<1x64xf32>
    %116 = math.rsqrt %115 : vector<1x64xf32>
    %117 = arith.mulf %99, %116 : vector<1x64xf32>
    %118 = vector.broadcast %117 : vector<1x64xf32> to vector<512x64xf32>
    %119 = arith.mulf %98, %118 : vector<512x64xf32>
    %120 = arith.mulf %107, %117 : vector<1x64xf32>
    %121 = arith.subf %100, %120 : vector<1x64xf32>
    %122 = vector.broadcast %121 : vector<1x64xf32> to vector<512x64xf32>
    %123 = arith.addf %119, %122 : vector<512x64xf32>
    %c0_130 = arith.constant 0 : index
    %c0_131 = arith.constant 0 : index
    %c0_132 = arith.constant 0 : index
    %c0_133 = arith.constant 0 : index
    %124 = vector.load %arg0[%c0_130, %c0_131, %c0_132, %c0_133] : memref<2x16x16x64xf32, #tpu.memory_space<vmem>>, vector<2x16x16x64xf32>
    %125 = vector.shape_cast %124 : vector<2x16x16x64xf32> to vector<512x64xf32>
    %126 = arith.addf %123, %125 : vector<512x64xf32>
    %127 = vector.shape_cast %126 : vector<512x64xf32> to vector<2x16x16x64xf32>
    %c0_134 = arith.constant 0 : index
    %c0_135 = arith.constant 0 : index
    %c0_136 = arith.constant 0 : index
    %c0_137 = arith.constant 0 : index
    %128 = vector.load %arg8[%c0_134, %c0_135, %c0_136, %c0_137] : memref<2x16x16x64xf32, #tpu.memory_space<vmem>>, vector<2x16x16x64xf32>
    tpu.vector_store %arg8[%c0_134, %c0_135, %c0_136, %c0_137], %127 {strides = array<i32>} : memref<2x16x16x64xf32, #tpu.memory_space<vmem>>, vector<2x16x16x64xf32>,
    return
  }
}

</mosaic_0001>

<llo_original>
// kernel: tpu_custom_call.1
$region0: #{tpu_custom_call.1}
  #allocation0 [shape = 'u32[]', space=smem, size = 0x4, offset = 0x4, fixed_abs, tag = 'smem constant byte address 0x4 - core index']
  #allocation1 [shape = 'u32[72,128]{1,0:T(1,128)}', space=vmem, size = 0x9000, scoped, tag = 'internal scratch']
  #allocation2 [shape = 'bf16[2,18,16,384]{3,2,1,0:T(8,128)(2,1)}', space=vmem, size = 0x6c000, scoped, tag = 'scratch operand']
  #allocation3 [shape = 'f32[1]{0:T(128)S(6)}', space=smem, size = 0x200, scoped, tag = 'scoped memory for tpu_custom_call.1']
  %s0 = inlined_call_operand.vmem [shape: f32[2,16,16,64], index: 0, kind: input, shape index: {}]
  %s1 = inlined_call_operand.vmem [shape: bf16[3,384,64], index: 1, kind: input, shape index: {}]
  %s2 = inlined_call_operand.vmem [shape: bf16[3,384,64], index: 2, kind: input, shape index: {}]
  %s3 = inlined_call_operand.vmem [shape: f32[1,64], index: 3, kind: input, shape index: {}]
  %s4 = inlined_call_operand.vmem [shape: f32[1,64], index: 4, kind: input, shape index: {}]
  %s5 = inlined_call_operand.vmem [shape: f32[1,64], index: 5, kind: input, shape index: {}]
  %s6 = inlined_call_operand.vmem [shape: f32[1,64], index: 6, kind: input, shape index: {}]
  %s7 = inlined_call_operand.<no memory space> [shape: f32[1], index: 7, kind: input, shape index: {}]
  %s8 = inlined_call_operand.hbm [shape: f32[2,16,16,64], index: 8, kind: output, shape index: {}]
  %s9 = sld [smem:[#allocation0]]
  $region42: #{tpu_custom_call.1} parent=0
    _
  %s11 = ssub.s32 1, %s9
  %s12 = scalar_select 0, %s11, %s9
  %13 = sst [smem:[#allocation3]] %s7
  $region1: #{tpu_custom_call.1} parent=0
    #allocation4 [shape = 'u8[262144]{0}', space=vmem, size = 0x40000, scoped, tag = 'output window, operand 0, single buffered']
    #allocation5 [shape = 's32[1]{0}', space=sflag, size = 0x4, scoped, tag = 'scoped memory for tpu_custom_call.1']
    %14 = vsyncpa [#allocation5], 0
    // Predicated region
    $region2: #{tpu_custom_call.1} parent=1 // pred_check
      _
    $region3: #{tpu_custom_call.1} parent=1 // pred_check_branch
      %16 = sbr.rel (0) target = $region5
    $region4: #{tpu_custom_call.1} parent=1 // pred_region
      _
    $region5: #{tpu_custom_call.1} parent=1 // pred_fallthru
      _
    // Predicated region
    $region6: #{tpu_custom_call.1} parent=1 // pred_check
      _
    $region7: #{tpu_custom_call.1} parent=1 // pred_check_branch
      %18 = sbr.rel (0) target = $region9
    $region8: #{tpu_custom_call.1} parent=1 // pred_region
      _
    $region9: #{tpu_custom_call.1} parent=1 // pred_fallthru
      _
    // Predicated region
    $region10: #{tpu_custom_call.1} parent=1 // pred_check
      _
    $region11: #{tpu_custom_call.1} parent=1 // pred_check_branch
      %20 = sbr.rel (0) target = $region13
    $region12: #{tpu_custom_call.1} parent=1 // pred_region
      _
    $region13: #{tpu_custom_call.1} parent=1 // pred_fallthru
      _
    // Predicated region
    $region14: #{tpu_custom_call.1} parent=1 // pred_check
      _
    $region15: #{tpu_custom_call.1} parent=1 // pred_check_branch
      %22 = sbr.rel (0) target = $region17
    $region16: #{tpu_custom_call.1} parent=1 // pred_region
      _
    $region17: #{tpu_custom_call.1} parent=1 // pred_fallthru
      _
    // Predicated region
    $region18: #{tpu_custom_call.1} parent=1 // pred_check
      _
    $region19: #{tpu_custom_call.1} parent=1 // pred_check_branch
      %24 = sbr.rel (0) target = $region21
    $region20: #{tpu_custom_call.1} parent=1 // pred_region
      _
    $region21: #{tpu_custom_call.1} parent=1 // pred_fallthru
      _
    // Predicated region
    $region22: #{tpu_custom_call.1} parent=1 // pred_check
      _
    $region23: #{tpu_custom_call.1} parent=1 // pred_check_branch
      %26 = sbr.rel (0) target = $region25
    $region24: #{tpu_custom_call.1} parent=1 // pred_region
      _
    $region25: #{tpu_custom_call.1} parent=1 // pred_fallthru
      _
    // Predicated region
    $region26: #{tpu_custom_call.1} parent=1 // pred_check
      _
    $region27: #{tpu_custom_call.1} parent=1 // pred_check_branch
      %28 = sbr.rel (0) target = $region29
    $region28: #{tpu_custom_call.1} parent=1 // pred_region
      _
    $region29: #{tpu_custom_call.1} parent=1 // pred_fallthru
      _
    // Predicated region
    $region30: #{tpu_custom_call.1} parent=1 // pred_check
      _
    $region31: #{tpu_custom_call.1} parent=1 // pred_check_branch
      %30 = sbr.rel (0) target = $region33
    $region32: #{tpu_custom_call.1} parent=1 // pred_region
      _
    $region33: #{tpu_custom_call.1} parent=1 // pred_fallthru
      _
    %v32 = vld [vmem:[%s0] sm:$0xff]
    %v33 = vld [vmem:[%s0 + $0x8] sm:$0xff]
    %v34 = vld [vmem:[%s0 + $0x10] sm:$0xff]
    %v35 = vld [vmem:[%s0 + $0x18] sm:$0xff]
    %v36 = vld [vmem:[%s0 + $0x20] sm:$0xff]
    %v37 = vld [vmem:[%s0 + $0x28] sm:$0xff]
    %v38 = vld [vmem:[%s0 + $0x30] sm:$0xff]
    %v39 = vld [vmem:[%s0 + $0x38] sm:$0xff]
    %v40 = vld [vmem:[%s0 + $0x40] sm:$0xff]
    %v41 = vld [vmem:[%s0 + $0x48] sm:$0xff]
    %v42 = vld [vmem:[%s0 + $0x50] sm:$0xff]
    %v43 = vld [vmem:[%s0 + $0x58] sm:$0xff]
    %v44 = vld [vmem:[%s0 + $0x60] sm:$0xff]
    %v45 = vld [vmem:[%s0 + $0x68] sm:$0xff]
    %v46 = vld [vmem:[%s0 + $0x70] sm:$0xff]
    %v47 = vld [vmem:[%s0 + $0x78] sm:$0xff]
    %v48 = vld [vmem:[%s0 + $0x80] sm:$0xff]
    %v49 = vld [vmem:[%s0 + $0x88] sm:$0xff]
    %v50 = vld [vmem:[%s0 + $0x90] sm:$0xff]
    %v51 = vld [vmem:[%s0 + $0x98] sm:$0xff]
    %v52 = vld [vmem:[%s0 + $0xa0] sm:$0xff]
    %v53 = vld [vmem:[%s0 + $0xa8] sm:$0xff]
    %v54 = vld [vmem:[%s0 + $0xb0] sm:$0xff]
    %v55 = vld [vmem:[%s0 + $0xb8] sm:$0xff]
    %v56 = vld [vmem:[%s0 + $0xc0] sm:$0xff]
    %v57 = vld [vmem:[%s0 + $0xc8] sm:$0xff]
    %v58 = vld [vmem:[%s0 + $0xd0] sm:$0xff]
    %v59 = vld [vmem:[%s0 + $0xd8] sm:$0xff]
    %v60 = vld [vmem:[%s0 + $0xe0] sm:$0xff]
    %v61 = vld [vmem:[%s0 + $0xe8] sm:$0xff]
    %v62 = vld [vmem:[%s0 + $0xf0] sm:$0xff]
    %v63 = vld [vmem:[%s0 + $0xf8] sm:$0xff]
    %v64 = vld [vmem:[%s0 + $0x100] sm:$0xff]
    %v65 = vld [vmem:[%s0 + $0x108] sm:$0xff]
    %v66 = vld [vmem:[%s0 + $0x110] sm:$0xff]
    %v67 = vld [vmem:[%s0 + $0x118] sm:$0xff]
    %v68 = vld [vmem:[%s0 + $0x120] sm:$0xff]
    %v69 = vld [vmem:[%s0 + $0x128] sm:$0xff]
    %v70 = vld [vmem:[%s0 + $0x130] sm:$0xff]
    %v71 = vld [vmem:[%s0 + $0x138] sm:$0xff]
    %v72 = vld [vmem:[%s0 + $0x140] sm:$0xff]
    %v73 = vld [vmem:[%s0 + $0x148] sm:$0xff]
    %v74 = vld [vmem:[%s0 + $0x150] sm:$0xff]
    %v75 = vld [vmem:[%s0 + $0x158] sm:$0xff]
    %v76 = vld [vmem:[%s0 + $0x160] sm:$0xff]
    %v77 = vld [vmem:[%s0 + $0x168] sm:$0xff]
    %v78 = vld [vmem:[%s0 + $0x170] sm:$0xff]
    %v79 = vld [vmem:[%s0 + $0x178] sm:$0xff]
    %v80 = vld [vmem:[%s0 + $0x180] sm:$0xff]
    %v81 = vld [vmem:[%s0 + $0x188] sm:$0xff]
    %v82 = vld [vmem:[%s0 + $0x190] sm:$0xff]
    %v83 = vld [vmem:[%s0 + $0x198] sm:$0xff]
    %v84 = vld [vmem:[%s0 + $0x1a0] sm:$0xff]
    %v85 = vld [vmem:[%s0 + $0x1a8] sm:$0xff]
    %v86 = vld [vmem:[%s0 + $0x1b0] sm:$0xff]
    %v87 = vld [vmem:[%s0 + $0x1b8] sm:$0xff]
    %v88 = vld [vmem:[%s0 + $0x1c0] sm:$0xff]
    %v89 = vld [vmem:[%s0 + $0x1c8] sm:$0xff]
    %v90 = vld [vmem:[%s0 + $0x1d0] sm:$0xff]
    %v91 = vld [vmem:[%s0 + $0x1d8] sm:$0xff]
    %v92 = vld [vmem:[%s0 + $0x1e0] sm:$0xff]
    %v93 = vld [vmem:[%s0 + $0x1e8] sm:$0xff]
    %v94 = vld [vmem:[%s0 + $0x1f0] sm:$0xff]
    %v95 = vld [vmem:[%s0 + $0x1f8] sm:$0xff]
    %v96 = vpack.c.bf16 %v32, %v32
    %v97 = vpack.c.bf16 %v33, %v33
    %v98 = vpack.c.bf16 %v34, %v34
    %v99 = vpack.c.bf16 %v35, %v35
    %v100 = vpack.c.bf16 %v36, %v36
    %v101 = vpack.c.bf16 %v37, %v37
    %v102 = vpack.c.bf16 %v38, %v38
    %v103 = vpack.c.bf16 %v39, %v39
    %v104 = vpack.c.bf16 %v40, %v40
    %v105 = vpack.c.bf16 %v41, %v41
    %v106 = vpack.c.bf16 %v42, %v42
    %v107 = vpack.c.bf16 %v43, %v43
    %v108 = vpack.c.bf16 %v44, %v44
    %v109 = vpack.c.bf16 %v45, %v45
    %v110 = vpack.c.bf16 %v46, %v46
    %v111 = vpack.c.bf16 %v47, %v47
    %v112 = vpack.c.bf16 %v48, %v48
    %v113 = vpack.c.bf16 %v49, %v49
    %v114 = vpack.c.bf16 %v50, %v50
    %v115 = vpack.c.bf16 %v51, %v51
    %v116 = vpack.c.bf16 %v52, %v52
    %v117 = vpack.c.bf16 %v53, %v53
    %v118 = vpack.c.bf16 %v54, %v54
    %v119 = vpack.c.bf16 %v55, %v55
    %v120 = vpack.c.bf16 %v56, %v56
    %v121 = vpack.c.bf16 %v57, %v57
    %v122 = vpack.c.bf16 %v58, %v58
    %v123 = vpack.c.bf16 %v59, %v59
    %v124 = vpack.c.bf16 %v60, %v60
    %v125 = vpack.c.bf16 %v61, %v61
    %v126 = vpack.c.bf16 %v62, %v62
    %v127 = vpack.c.bf16 %v63, %v63
    %v128 = vpack.c.bf16 %v64, %v64
    %v129 = vpack.c.bf16 %v65, %v65
    %v130 = vpack.c.bf16 %v66, %v66
    %v131 = vpack.c.bf16 %v67, %v67
    %v132 = vpack.c.bf16 %v68, %v68
    %v133 = vpack.c.bf16 %v69, %v69
    %v134 = vpack.c.bf16 %v70, %v70
    %v135 = vpack.c.bf16 %v71, %v71
    %v136 = vpack.c.bf16 %v72, %v72
    %v137 = vpack.c.bf16 %v73, %v73
    %v138 = vpack.c.bf16 %v74, %v74
    %v139 = vpack.c.bf16 %v75, %v75
    %v140 = vpack.c.bf16 %v76, %v76
    %v141 = vpack.c.bf16 %v77, %v77
    %v142 = vpack.c.bf16 %v78, %v78
    %v143 = vpack.c.bf16 %v79, %v79
    %v144 = vpack.c.bf16 %v80, %v80
    %v145 = vpack.c.bf16 %v81, %v81
    %v146 = vpack.c.bf16 %v82, %v82
    %v147 = vpack.c.bf16 %v83, %v83
    %v148 = vpack.c.bf16 %v84, %v84
    %v149 = vpack.c.bf16 %v85, %v85
    %v150 = vpack.c.bf16 %v86, %v86
    %v151 = vpack.c.bf16 %v87, %v87
    %v152 = vpack.c.bf16 %v88, %v88
    %v153 = vpack.c.bf16 %v89, %v89
    %v154 = vpack.c.bf16 %v90, %v90
    %v155 = vpack.c.bf16 %v91, %v91
    %v156 = vpack.c.bf16 %v92, %v92
    %v157 = vpack.c.bf16 %v93, %v93
    %v158 = vpack.c.bf16 %v94, %v94
    %v159 = vpack.c.bf16 %v95, %v95
    %v224 = vunpack.c.l.b16 %v96
    %v225 = vunpack.c.l.b16 %v97
    %v226 = vunpack.c.l.b16 %v98
    %v227 = vunpack.c.l.b16 %v99
    %v228 = vunpack.c.l.b16 %v100
    %v229 = vunpack.c.l.b16 %v101
    %v230 = vunpack.c.l.b16 %v102
    %v231 = vunpack.c.l.b16 %v103
    %v232 = vunpack.c.l.b16 %v104
    %v233 = vunpack.c.l.b16 %v105
    %v234 = vunpack.c.l.b16 %v106
    %v235 = vunpack.c.l.b16 %v107
    %v236 = vunpack.c.l.b16 %v108
    %v237 = vunpack.c.l.b16 %v109
    %v238 = vunpack.c.l.b16 %v110
    %v239 = vunpack.c.l.b16 %v111
    %v240 = vunpack.c.l.b16 %v112
    %v241 = vunpack.c.l.b16 %v113
    %v242 = vunpack.c.l.b16 %v114
    %v243 = vunpack.c.l.b16 %v115
    %v244 = vunpack.c.l.b16 %v116
    %v245 = vunpack.c.l.b16 %v117
    %v246 = vunpack.c.l.b16 %v118
    %v247 = vunpack.c.l.b16 %v119
    %v248 = vunpack.c.l.b16 %v120
    %v249 = vunpack.c.l.b16 %v121
    %v250 = vunpack.c.l.b16 %v122
    %v251 = vunpack.c.l.b16 %v123
    %v252 = vunpack.c.l.b16 %v124
    %v253 = vunpack.c.l.b16 %v125
    %v254 = vunpack.c.l.b16 %v126
    %v255 = vunpack.c.l.b16 %v127
    %v256 = vunpack.c.l.b16 %v128
    %v257 = vunpack.c.l.b16 %v129
    %v258 = vunpack.c.l.b16 %v130
    %v259 = vunpack.c.l.b16 %v131
    %v260 = vunpack.c.l.b16 %v132
    %v261 = vunpack.c.l.b16 %v133
    %v262 = vunpack.c.l.b16 %v134
    %v263 = vunpack.c.l.b16 %v135
    %v264 = vunpack.c.l.b16 %v136
    %v265 = vunpack.c.l.b16 %v137
    %v266 = vunpack.c.l.b16 %v138
    %v267 = vunpack.c.l.b16 %v139
    %v268 = vunpack.c.l.b16 %v140
    %v269 = vunpack.c.l.b16 %v141
    %v270 = vunpack.c.l.b16 %v142
    %v271 = vunpack.c.l.b16 %v143
    %v272 = vunpack.c.l.b16 %v144
    %v273 = vunpack.c.l.b16 %v145
    %v274 = vunpack.c.l.b16 %v146
    %v275 = vunpack.c.l.b16 %v147
    %v276 = vunpack.c.l.b16 %v148
    %v277 = vunpack.c.l.b16 %v149
    %v278 = vunpack.c.l.b16 %v150
    %v279 = vunpack.c.l.b16 %v151
    %v280 = vunpack.c.l.b16 %v152
    %v281 = vunpack.c.l.b16 %v153
    %v282 = vunpack.c.l.b16 %v154
    %v283 = vunpack.c.l.b16 %v155
    %v284 = vunpack.c.l.b16 %v156
    %v285 = vunpack.c.l.b16 %v157
    %v286 = vunpack.c.l.b16 %v158
    %v287 = vunpack.c.l.b16 %v159
    %v288 = vpack.c.b16 %v225, %v224
    %v289 = vpack.c.b16 %v227, %v226
    %v290 = vpack.c.b16 %v229, %v228
    %v291 = vpack.c.b16 %v231, %v230
    %v292 = vpack.c.b16 %v233, %v232
    %v293 = vpack.c.b16 %v235, %v234
    %v294 = vpack.c.b16 %v237, %v236
    %v295 = vpack.c.b16 %v239, %v238
    %v296 = vpack.c.b16 %v241, %v240
    %v297 = vpack.c.b16 %v243, %v242
    %v298 = vpack.c.b16 %v245, %v244
    %v299 = vpack.c.b16 %v247, %v246
    %v300 = vpack.c.b16 %v249, %v248
    %v301 = vpack.c.b16 %v251, %v250
    %v302 = vpack.c.b16 %v253, %v252
    %v303 = vpack.c.b16 %v255, %v254
    %v304 = vpack.c.b16 %v257, %v256
    %v305 = vpack.c.b16 %v259, %v258
    %v306 = vpack.c.b16 %v261, %v260
    %v307 = vpack.c.b16 %v263, %v262
    %v308 = vpack.c.b16 %v265, %v264
    %v309 = vpack.c.b16 %v267, %v266
    %v310 = vpack.c.b16 %v269, %v268
    %v311 = vpack.c.b16 %v271, %v270
    %v312 = vpack.c.b16 %v273, %v272
    %v313 = vpack.c.b16 %v275, %v274
    %v314 = vpack.c.b16 %v277, %v276
    %v315 = vpack.c.b16 %v279, %v278
    %v316 = vpack.c.b16 %v281, %v280
    %v317 = vpack.c.b16 %v283, %v282
    %v318 = vpack.c.b16 %v285, %v284
    %v319 = vpack.c.b16 %v287, %v286
    %vm320 = vcmask 523264
    %v323 = vsel %vm320, %v288, 0
    %v325 = vsel %vm320, %v289, 0
    %v327 = vsel %vm320, %v290, 0
    %v329 = vsel %vm320, %v291, 0
    %v331 = vsel %vm320, %v292, 0
    %v333 = vsel %vm320, %v293, 0
    %v335 = vsel %vm320, %v294, 0
    %v337 = vsel %vm320, %v295, 0
    %v339 = vsel %vm320, %v296, 0
    %v341 = vsel %vm320, %v297, 0
    %v343 = vsel %vm320, %v298, 0
    %v345 = vsel %vm320, %v299, 0
    %v347 = vsel %vm320, %v300, 0
    %v349 = vsel %vm320, %v301, 0
    %v351 = vsel %vm320, %v302, 0
    %v353 = vsel %vm320, %v303, 0
    %v355 = vsel %vm320, %v304, 0
    %v357 = vsel %vm320, %v305, 0
    %v359 = vsel %vm320, %v306, 0
    %v361 = vsel %vm320, %v307, 0
    %v363 = vsel %vm320, %v308, 0
    %v365 = vsel %vm320, %v309, 0
    %v367 = vsel %vm320, %v310, 0
    %v369 = vsel %vm320, %v311, 0
    %v371 = vsel %vm320, %v312, 0
    %v373 = vsel %vm320, %v313, 0
    %v375 = vsel %vm320, %v314, 0
    %v377 = vsel %vm320, %v315, 0
    %v379 = vsel %vm320, %v316, 0
    %v381 = vsel %vm320, %v317, 0
    %v383 = vsel %vm320, %v318, 0
    %v385 = vsel %vm320, %v319, 0
    %386 = vst [vmem:[#allocation2] sm:$0xff] 0
    %387 = vst [vmem:[#allocation2 + $0x8] sm:$0xf] 0
    %388 = vst [vmem:[#allocation2 + $0xc] sm:$0xff] 0
    %389 = vst [vmem:[#allocation2 + $0x14] sm:$0xf] 0
    %390 = vst [vmem:[#allocation2 + $0x1b0] sm:$0xff] 0
    %391 = vst [vmem:[#allocation2 + $0x1b8] sm:$0xf] 0
    %392 = vst [vmem:[#allocation2 + $0x1bc] sm:$0xff] 0
    %393 = vst [vmem:[#allocation2 + $0x1c4] sm:$0xf] 0
    %s394 = scalar_lea.vmem [#allocation2], 408
    %395 = vst [vmem:[%s394] sm:$0xff] 0
    %396 = vst [vmem:[%s394 + $0x8] sm:$0xf] 0
    %397 = vst [vmem:[%s394 + $0xc] sm:$0xff] 0
    %398 = vst [vmem:[%s394 + $0x14] sm:$0xf] 0
    %399 = vst [vmem:[%s394 + $0x1b0] sm:$0xff] 0
    %400 = vst [vmem:[%s394 + $0x1b8] sm:$0xf] 0
    %401 = vst [vmem:[%s394 + $0x1bc] sm:$0xff] 0
    %402 = vst [vmem:[%s394 + $0x1c4] sm:$0xf] 0
    %v435 = vunpack.c.l.b16 %v323
    %v436 = vunpack.c.h.b16 %v323
    %v437 = vunpack.c.l.b16 %v325
    %v438 = vunpack.c.h.b16 %v325
    %v439 = vunpack.c.l.b16 %v327
    %v440 = vunpack.c.h.b16 %v327
    %v441 = vunpack.c.l.b16 %v329
    %v442 = vunpack.c.h.b16 %v329
    %v443 = vunpack.c.l.b16 %v331
    %v444 = vunpack.c.h.b16 %v331
    %v445 = vunpack.c.l.b16 %v333
    %v446 = vunpack.c.h.b16 %v333
    %v447 = vunpack.c.l.b16 %v335
    %v448 = vunpack.c.h.b16 %v335
    %v449 = vunpack.c.l.b16 %v337
    %v450 = vunpack.c.h.b16 %v337
    %v451 = vunpack.c.l.b16 %v339
    %v452 = vunpack.c.h.b16 %v339
    %v453 = vunpack.c.l.b16 %v341
    %v454 = vunpack.c.h.b16 %v341
    %v455 = vunpack.c.l.b16 %v343
    %v456 = vunpack.c.h.b16 %v343
    %v457 = vunpack.c.l.b16 %v345
    %v458 = vunpack.c.h.b16 %v345
    %v459 = vunpack.c.l.b16 %v347
    %v460 = vunpack.c.h.b16 %v347
    %v461 = vunpack.c.l.b16 %v349
    %v462 = vunpack.c.h.b16 %v349
    %v463 = vunpack.c.l.b16 %v351
    %v464 = vunpack.c.h.b16 %v351
    %v465 = vunpack.c.l.b16 %v353
    %v466 = vunpack.c.h.b16 %v353
    %v467 = vunpack.c.l.b16 %v355
    %v468 = vunpack.c.h.b16 %v355
    %v469 = vunpack.c.l.b16 %v357
    %v470 = vunpack.c.h.b16 %v357
    %v471 = vunpack.c.l.b16 %v359
    %v472 = vunpack.c.h.b16 %v359
    %v473 = vunpack.c.l.b16 %v361
    %v474 = vunpack.c.h.b16 %v361
    %v475 = vunpack.c.l.b16 %v363
    %v476 = vunpack.c.h.b16 %v363
    %v477 = vunpack.c.l.b16 %v365
    %v478 = vunpack.c.h.b16 %v365
    %v479 = vunpack.c.l.b16 %v367
    %v480 = vunpack.c.h.b16 %v367
    %v481 = vunpack.c.l.b16 %v369
    %v482 = vunpack.c.h.b16 %v369
    %v483 = vunpack.c.l.b16 %v371
    %v484 = vunpack.c.h.b16 %v371
    %v485 = vunpack.c.l.b16 %v373
    %v486 = vunpack.c.h.b16 %v373
    %v487 = vunpack.c.l.b16 %v375
    %v488 = vunpack.c.h.b16 %v375
    %v489 = vunpack.c.l.b16 %v377
    %v490 = vunpack.c.h.b16 %v377
    %v491 = vunpack.c.l.b16 %v379
    %v492 = vunpack.c.h.b16 %v379
    %v493 = vunpack.c.l.b16 %v381
    %v494 = vunpack.c.h.b16 %v381
    %v495 = vunpack.c.l.b16 %v383
    %v496 = vunpack.c.h.b16 %v383
    %v497 = vunpack.c.l.b16 %v385
    %v498 = vunpack.c.h.b16 %v385
    %v499 = vpack.c.b16 %v435, %v435
    %v500 = vpack.c.b16 %v436, %v436
    %v501 = vpack.c.b16 %v437, %v437
    %v502 = vpack.c.b16 %v438, %v438
    %v503 = vpack.c.b16 %v439, %v439
    %v504 = vpack.c.b16 %v440, %v440
    %v505 = vpack.c.b16 %v441, %v441
    %v506 = vpack.c.b16 %v442, %v442
    %v507 = vpack.c.b16 %v443, %v443
    %v508 = vpack.c.b16 %v444, %v444
    %v509 = vpack.c.b16 %v445, %v445
    %v510 = vpack.c.b16 %v446, %v446
    %v511 = vpack.c.b16 %v447, %v447
    %v512 = vpack.c.b16 %v448, %v448
    %v513 = vpack.c.b16 %v449, %v449
    %v514 = vpack.c.b16 %v450, %v450
    %v515 = vpack.c.b16 %v451, %v451
    %v516 = vpack.c.b16 %v452, %v452
    %v517 = vpack.c.b16 %v453, %v453
    %v518 = vpack.c.b16 %v454, %v454
    %v519 = vpack.c.b16 %v455, %v455
    %v520 = vpack.c.b16 %v456, %v456
    %v521 = vpack.c.b16 %v457, %v457
    %v522 = vpack.c.b16 %v458, %v458
    %v523 = vpack.c.b16 %v459, %v459
    %v524 = vpack.c.b16 %v460, %v460
    %v525 = vpack.c.b16 %v461, %v461
    %v526 = vpack.c.b16 %v462, %v462
    %v527 = vpack.c.b16 %v463, %v463
    %v528 = vpack.c.b16 %v464, %v464
    %v529 = vpack.c.b16 %v465, %v465
    %v530 = vpack.c.b16 %v466, %v466
    %v531 = vpack.c.b16 %v467, %v467
    %v532 = vpack.c.b16 %v468, %v468
    %v533 = vpack.c.b16 %v469, %v469
    %v534 = vpack.c.b16 %v470, %v470
    %v535 = vpack.c.b16 %v471, %v471
    %v536 = vpack.c.b16 %v472, %v472
    %v537 = vpack.c.b16 %v473, %v473
    %v538 = vpack.c.b16 %v474, %v474
    %v539 = vpack.c.b16 %v475, %v475
    %v540 = vpack.c.b16 %v476, %v476
    %v541 = vpack.c.b16 %v477, %v477
    %v542 = vpack.c.b16 %v478, %v478
    %v543 = vpack.c.b16 %v479, %v479
    %v544 = vpack.c.b16 %v480, %v480
    %v545 = vpack.c.b16 %v481, %v481
    %v546 = vpack.c.b16 %v482, %v482
    %v547 = vpack.c.b16 %v483, %v483
    %v548 = vpack.c.b16 %v484, %v484
    %v549 = vpack.c.b16 %v485, %v485
    %v550 = vpack.c.b16 %v486, %v486
    %v551 = vpack.c.b16 %v487, %v487
    %v552 = vpack.c.b16 %v488, %v488
    %v553 = vpack.c.b16 %v489, %v489
    %v554 = vpack.c.b16 %v490, %v490
    %v555 = vpack.c.b16 %v491, %v491
    %v556 = vpack.c.b16 %v492, %v492
    %v557 = vpack.c.b16 %v493, %v493
    %v558 = vpack.c.b16 %v494, %v494
    %v559 = vpack.c.b16 %v495, %v495
    %v560 = vpack.c.b16 %v496, %v496
    %v561 = vpack.c.b16 %v497, %v497
    %v562 = vpack.c.b16 %v498, %v498
    %s627 = scalar_lea.vmem [#allocation2], 24
    %628 = vst [vmem:[%s627 + $0x4] sm:$0xf] %v499
    %629 = vst [vmem:[%s627 + $0x10] sm:$0xf] %v500
    %630 = vst [vmem:[%s627 + $0x1c] sm:$0xf] %v501
    %631 = vst [vmem:[%s627 + $0x28] sm:$0xf] %v502
    %632 = vst [vmem:[%s627 + $0x34] sm:$0xf] %v503
    %633 = vst [vmem:[%s627 + $0x40] sm:$0xf] %v504
    %634 = vst [vmem:[%s627 + $0x4c] sm:$0xf] %v505
    %635 = vst [vmem:[%s627 + $0x58] sm:$0xf] %v506
    %636 = vst [vmem:[%s627 + $0x64] sm:$0xf] %v507
    %637 = vst [vmem:[%s627 + $0x70] sm:$0xf] %v508
    %638 = vst [vmem:[%s627 + $0x7c] sm:$0xf] %v509
    %639 = vst [vmem:[%s627 + $0x88] sm:$0xf] %v510
    %640 = vst [vmem:[%s627 + $0x94] sm:$0xf] %v511
    %641 = vst [vmem:[%s627 + $0xa0] sm:$0xf] %v512
    %642 = vst [vmem:[%s627 + $0xac] sm:$0xf] %v513
    %643 = vst [vmem:[%s627 + $0xb8] sm:$0xf] %v514
    %644 = vst [vmem:[%s627 + $0xc4] sm:$0xf] %v515
    %645 = vst [vmem:[%s627 + $0xd0] sm:$0xf] %v516
    %646 = vst [vmem:[%s627 + $0xdc] sm:$0xf] %v517
    %647 = vst [vmem:[%s627 + $0xe8] sm:$0xf] %v518
    %648 = vst [vmem:[%s627 + $0xf4] sm:$0xf] %v519
    %649 = vst [vmem:[%s627 + $0x100] sm:$0xf] %v520
    %650 = vst [vmem:[%s627 + $0x10c] sm:$0xf] %v521
    %651 = vst [vmem:[%s627 + $0x118] sm:$0xf] %v522
    %652 = vst [vmem:[%s627 + $0x124] sm:$0xf] %v523
    %653 = vst [vmem:[%s627 + $0x130] sm:$0xf] %v524
    %654 = vst [vmem:[%s627 + $0x13c] sm:$0xf] %v525
    %655 = vst [vmem:[%s627 + $0x148] sm:$0xf] %v526
    %656 = vst [vmem:[%s627 + $0x154] sm:$0xf] %v527
    %657 = vst [vmem:[%s627 + $0x160] sm:$0xf] %v528
    %658 = vst [vmem:[%s627 + $0x16c] sm:$0xf] %v529
    %659 = vst [vmem:[%s627 + $0x178] sm:$0xf] %v530
    %660 = vst [vmem:[%s627 + $0x1b4] sm:$0xf] %v531
    %661 = vst [vmem:[%s627 + $0x1c0] sm:$0xf] %v532
    %662 = vst [vmem:[%s627 + $0x1cc] sm:$0xf] %v533
    %663 = vst [vmem:[%s627 + $0x1d8] sm:$0xf] %v534
    %664 = vst [vmem:[%s627 + $0x1e4] sm:$0xf] %v535
    %665 = vst [vmem:[%s627 + $0x1f0] sm:$0xf] %v536
    %666 = vst [vmem:[%s627 + $0x1fc] sm:$0xf] %v537
    %667 = vst [vmem:[%s627 + $0x208] sm:$0xf] %v538
    %668 = vst [vmem:[%s627 + $0x214] sm:$0xf] %v539
    %669 = vst [vmem:[%s627 + $0x220] sm:$0xf] %v540
    %670 = vst [vmem:[%s627 + $0x22c] sm:$0xf] %v541
    %671 = vst [vmem:[%s627 + $0x238] sm:$0xf] %v542
    %672 = vst [vmem:[%s627 + $0x244] sm:$0xf] %v543
    %673 = vst [vmem:[%s627 + $0x250] sm:$0xf] %v544
    %674 = vst [vmem:[%s627 + $0x25c] sm:$0xf] %v545
    %675 = vst [vmem:[%s627 + $0x268] sm:$0xf] %v546
    %676 = vst [vmem:[%s627 + $0x274] sm:$0xf] %v547
    %677 = vst [vmem:[%s627 + $0x280] sm:$0xf] %v548
    %678 = vst [vmem:[%s627 + $0x28c] sm:$0xf] %v549
    %679 = vst [vmem:[%s627 + $0x298] sm:$0xf] %v550
    %680 = vst [vmem:[%s627 + $0x2a4] sm:$0xf] %v551
    %681 = vst [vmem:[%s627 + $0x2b0] sm:$0xf] %v552
    %682 = vst [vmem:[%s627 + $0x2bc] sm:$0xf] %v553
    %683 = vst [vmem:[%s627 + $0x2c8] sm:$0xf] %v554
    %684 = vst [vmem:[%s627 + $0x2d4] sm:$0xf] %v555
    %685 = vst [vmem:[%s627 + $0x2e0] sm:$0xf] %v556
    %686 = vst [vmem:[%s627 + $0x2ec] sm:$0xf] %v557
    %687 = vst [vmem:[%s627 + $0x2f8] sm:$0xf] %v558
    %688 = vst [vmem:[%s627 + $0x304] sm:$0xf] %v559
    %689 = vst [vmem:[%s627 + $0x310] sm:$0xf] %v560
    %690 = vst [vmem:[%s627 + $0x31c] sm:$0xf] %v561
    %691 = vst [vmem:[%s627 + $0x328] sm:$0xf] %v562
    %vm692 = vcmask 1040384
    %vm693 = vsmask.f32 256
    %vm694 = vmand %vm692, %vm693
    %v695 = vld [vmem:[%s627] sm:$0x1]
    %v696 = vsel %vm694, 0, %v695
    %697 = vst [vmem:[%s627] sm:$0x1] %v696
    %v698 = vld [vmem:[%s627 + $0x18] sm:$0x1]
    %v699 = vsel %vm694, 0, %v698
    %700 = vst [vmem:[%s627 + $0x18] sm:$0x1] %v699
    %v701 = vld [vmem:[%s627 + $0x30] sm:$0x1]
    %v702 = vsel %vm694, 0, %v701
    %703 = vst [vmem:[%s627 + $0x30] sm:$0x1] %v702
    %v704 = vld [vmem:[%s627 + $0x48] sm:$0x1]
    %v705 = vsel %vm694, 0, %v704
    %706 = vst [vmem:[%s627 + $0x48] sm:$0x1] %v705
    %v707 = vld [vmem:[%s627 + $0x60] sm:$0x1]
    %v708 = vsel %vm694, 0, %v707
    %709 = vst [vmem:[%s627 + $0x60] sm:$0x1] %v708
    %v710 = vld [vmem:[%s627 + $0x78] sm:$0x1]
    %v711 = vsel %vm694, 0, %v710
    %712 = vst [vmem:[%s627 + $0x78] sm:$0x1] %v711
    %v713 = vld [vmem:[%s627 + $0x90] sm:$0x1]
    %v714 = vsel %vm694, 0, %v713
    %715 = vst [vmem:[%s627 + $0x90] sm:$0x1] %v714
    %v716 = vld [vmem:[%s627 + $0xa8] sm:$0x1]
    %v717 = vsel %vm694, 0, %v716
    %718 = vst [vmem:[%s627 + $0xa8] sm:$0x1] %v717
    %v719 = vld [vmem:[%s627 + $0xc0] sm:$0x1]
    %v720 = vsel %vm694, 0, %v719
    %721 = vst [vmem:[%s627 + $0xc0] sm:$0x1] %v720
    %v722 = vld [vmem:[%s627 + $0xd8] sm:$0x1]
    %v723 = vsel %vm694, 0, %v722
    %724 = vst [vmem:[%s627 + $0xd8] sm:$0x1] %v723
    %v725 = vld [vmem:[%s627 + $0xf0] sm:$0x1]
    %v726 = vsel %vm694, 0, %v725
    %727 = vst [vmem:[%s627 + $0xf0] sm:$0x1] %v726
    %v728 = vld [vmem:[%s627 + $0x108] sm:$0x1]
    %v729 = vsel %vm694, 0, %v728
    %730 = vst [vmem:[%s627 + $0x108] sm:$0x1] %v729
    %v731 = vld [vmem:[%s627 + $0x120] sm:$0x1]
    %v732 = vsel %vm694, 0, %v731
    %733 = vst [vmem:[%s627 + $0x120] sm:$0x1] %v732
    %v734 = vld [vmem:[%s627 + $0x138] sm:$0x1]
    %v735 = vsel %vm694, 0, %v734
    %736 = vst [vmem:[%s627 + $0x138] sm:$0x1] %v735
    %v737 = vld [vmem:[%s627 + $0x150] sm:$0x1]
    %v738 = vsel %vm694, 0, %v737
    %739 = vst [vmem:[%s627 + $0x150] sm:$0x1] %v738
    %v740 = vld [vmem:[%s627 + $0x168] sm:$0x1]
    %v741 = vsel %vm694, 0, %v740
    %742 = vst [vmem:[%s627 + $0x168] sm:$0x1] %v741
    %v743 = vld [vmem:[%s627 + $0x1b0] sm:$0x1]
    %v744 = vsel %vm694, 0, %v743
    %745 = vst [vmem:[%s627 + $0x1b0] sm:$0x1] %v744
    %v746 = vld [vmem:[%s627 + $0x1c8] sm:$0x1]
    %v747 = vsel %vm694, 0, %v746
    %748 = vst [vmem:[%s627 + $0x1c8] sm:$0x1] %v747
    %v749 = vld [vmem:[%s627 + $0x1e0] sm:$0x1]
    %v750 = vsel %vm694, 0, %v749
    %751 = vst [vmem:[%s627 + $0x1e0] sm:$0x1] %v750
    %v752 = vld [vmem:[%s627 + $0x1f8] sm:$0x1]
    %v753 = vsel %vm694, 0, %v752
    %754 = vst [vmem:[%s627 + $0x1f8] sm:$0x1] %v753
    %v755 = vld [vmem:[%s627 + $0x210] sm:$0x1]
    %v756 = vsel %vm694, 0, %v755
    %757 = vst [vmem:[%s627 + $0x210] sm:$0x1] %v756
    %v758 = vld [vmem:[%s627 + $0x228] sm:$0x1]
    %v759 = vsel %vm694, 0, %v758
    %760 = vst [vmem:[%s627 + $0x228] sm:$0x1] %v759
    %v761 = vld [vmem:[%s627 + $0x240] sm:$0x1]
    %v762 = vsel %vm694, 0, %v761
    %763 = vst [vmem:[%s627 + $0x240] sm:$0x1] %v762
    %v764 = vld [vmem:[%s627 + $0x258] sm:$0x1]
    %v765 = vsel %vm694, 0, %v764
    %766 = vst [vmem:[%s627 + $0x258] sm:$0x1] %v765
    %v767 = vld [vmem:[%s627 + $0x270] sm:$0x1]
    %v768 = vsel %vm694, 0, %v767
    %769 = vst [vmem:[%s627 + $0x270] sm:$0x1] %v768
    %v770 = vld [vmem:[%s627 + $0x288] sm:$0x1]
    %v771 = vsel %vm694, 0, %v770
    %772 = vst [vmem:[%s627 + $0x288] sm:$0x1] %v771
    %v773 = vld [vmem:[%s627 + $0x2a0] sm:$0x1]
    %v774 = vsel %vm694, 0, %v773
    %775 = vst [vmem:[%s627 + $0x2a0] sm:$0x1] %v774
    %v776 = vld [vmem:[%s627 + $0x2b8] sm:$0x1]
    %v777 = vsel %vm694, 0, %v776
    %778 = vst [vmem:[%s627 + $0x2b8] sm:$0x1] %v777
    %v779 = vld [vmem:[%s627 + $0x2d0] sm:$0x1]
    %v780 = vsel %vm694, 0, %v779
    %781 = vst [vmem:[%s627 + $0x2d0] sm:$0x1] %v780
    %v782 = vld [vmem:[%s627 + $0x2e8] sm:$0x1]
    %v783 = vsel %vm694, 0, %v782
    %784 = vst [vmem:[%s627 + $0x2e8] sm:$0x1] %v783
    %v785 = vld [vmem:[%s627 + $0x300] sm:$0x1]
    %v786 = vsel %vm694, 0, %v785
    %787 = vst [vmem:[%s627 + $0x300] sm:$0x1] %v786
    %v788 = vld [vmem:[%s627 + $0x318] sm:$0x1]
    %v789 = vsel %vm694, 0, %v788
    %790 = vst [vmem:[%s627 + $0x318] sm:$0x1] %v789
    %vm791 = vsmask.f32 4368
    %vm792 = vmor %vm693, %vm791
    %v794 = vshrl.u32 %v499, 16
    %v796 = vrot.slane %v794, 7
    %v797 = vshll.u32 %v499, 16
    %v799 = vor.u32 %v796, %v797
    %v800 = vrot.slane %v796, 4
    %v802 = vshrl.u32 %v500, 16
    %v804 = vrot.slane %v802, 7
    %v805 = vshll.u32 %v500, 16
    %v807 = vor.u32 %v804, %v805
    %v808 = vsel %vm792, %v800, %v807
    %v810 = vshrl.u32 %v501, 16
    %v812 = vrot.slane %v810, 7
    %v813 = vshll.u32 %v501, 16
    %v815 = vor.u32 %v812, %v813
    %v816 = vrot.slane %v812, 4
    %v818 = vshrl.u32 %v502, 16
    %v820 = vrot.slane %v818, 7
    %v821 = vshll.u32 %v502, 16
    %v823 = vor.u32 %v820, %v821
    %v824 = vsel %vm792, %v816, %v823
    %v826 = vshrl.u32 %v503, 16
    %v828 = vrot.slane %v826, 7
    %v829 = vshll.u32 %v503, 16
    %v831 = vor.u32 %v828, %v829
    %v832 = vrot.slane %v828, 4
    %v834 = vshrl.u32 %v504, 16
    %v836 = vrot.slane %v834, 7
    %v837 = vshll.u32 %v504, 16
    %v839 = vor.u32 %v836, %v837
    %v840 = vsel %vm792, %v832, %v839
    %v842 = vshrl.u32 %v505, 16
    %v844 = vrot.slane %v842, 7
    %v845 = vshll.u32 %v505, 16
    %v847 = vor.u32 %v844, %v845
    %v848 = vrot.slane %v844, 4
    %v850 = vshrl.u32 %v506, 16
    %v852 = vrot.slane %v850, 7
    %v853 = vshll.u32 %v506, 16
    %v855 = vor.u32 %v852, %v853
    %v856 = vsel %vm792, %v848, %v855
    %v858 = vshrl.u32 %v507, 16
    %v860 = vrot.slane %v858, 7
    %v861 = vshll.u32 %v507, 16
    %v863 = vor.u32 %v860, %v861
    %v864 = vrot.slane %v860, 4
    %v866 = vshrl.u32 %v508, 16
    %v868 = vrot.slane %v866, 7
    %v869 = vshll.u32 %v508, 16
    %v871 = vor.u32 %v868, %v869
    %v872 = vsel %vm792, %v864, %v871
    %v874 = vshrl.u32 %v509, 16
    %v876 = vrot.slane %v874, 7
    %v877 = vshll.u32 %v509, 16
    %v879 = vor.u32 %v876, %v877
    %v880 = vrot.slane %v876, 4
    %v882 = vshrl.u32 %v510, 16
    %v884 = vrot.slane %v882, 7
    %v885 = vshll.u32 %v510, 16
    %v887 = vor.u32 %v884, %v885
    %v888 = vsel %vm792, %v880, %v887
    %v890 = vshrl.u32 %v511, 16
    %v892 = vrot.slane %v890, 7
    %v893 = vshll.u32 %v511, 16
    %v895 = vor.u32 %v892, %v893
    %v896 = vrot.slane %v892, 4
    %v898 = vshrl.u32 %v512, 16
    %v900 = vrot.slane %v898, 7
    %v901 = vshll.u32 %v512, 16
    %v903 = vor.u32 %v900, %v901
    %v904 = vsel %vm792, %v896, %v903
    %v906 = vshrl.u32 %v513, 16
    %v908 = vrot.slane %v906, 7
    %v909 = vshll.u32 %v513, 16
    %v911 = vor.u32 %v908, %v909
    %v912 = vrot.slane %v908, 4
    %v914 = vshrl.u32 %v514, 16
    %v916 = vrot.slane %v914, 7
    %v917 = vshll.u32 %v514, 16
    %v919 = vor.u32 %v916, %v917
    %v920 = vsel %vm792, %v912, %v919
    %v922 = vshrl.u32 %v515, 16
    %v924 = vrot.slane %v922, 7
    %v925 = vshll.u32 %v515, 16
    %v927 = vor.u32 %v924, %v925
    %v928 = vrot.slane %v924, 4
    %v930 = vshrl.u32 %v516, 16
    %v932 = vrot.slane %v930, 7
    %v933 = vshll.u32 %v516, 16
    %v935 = vor.u32 %v932, %v933
    %v936 = vsel %vm792, %v928, %v935
    %v938 = vshrl.u32 %v517, 16
    %v940 = vrot.slane %v938, 7
    %v941 = vshll.u32 %v517, 16
    %v943 = vor.u32 %v940, %v941
    %v944 = vrot.slane %v940, 4
    %v946 = vshrl.u32 %v518, 16
    %v948 = vrot.slane %v946, 7
    %v949 = vshll.u32 %v518, 16
    %v951 = vor.u32 %v948, %v949
    %v952 = vsel %vm792, %v944, %v951
    %v954 = vshrl.u32 %v519, 16
    %v956 = vrot.slane %v954, 7
    %v957 = vshll.u32 %v519, 16
    %v959 = vor.u32 %v956, %v957
    %v960 = vrot.slane %v956, 4
    %v962 = vshrl.u32 %v520, 16
    %v964 = vrot.slane %v962, 7
    %v965 = vshll.u32 %v520, 16
    %v967 = vor.u32 %v964, %v965
    %v968 = vsel %vm792, %v960, %v967
    %v970 = vshrl.u32 %v521, 16
    %v972 = vrot.slane %v970, 7
    %v973 = vshll.u32 %v521, 16
    %v975 = vor.u32 %v972, %v973
    %v976 = vrot.slane %v972, 4
    %v978 = vshrl.u32 %v522, 16
    %v980 = vrot.slane %v978, 7
    %v981 = vshll.u32 %v522, 16
    %v983 = vor.u32 %v980, %v981
    %v984 = vsel %vm792, %v976, %v983
    %v986 = vshrl.u32 %v523, 16
    %v988 = vrot.slane %v986, 7
    %v989 = vshll.u32 %v523, 16
    %v991 = vor.u32 %v988, %v989
    %v992 = vrot.slane %v988, 4
    %v994 = vshrl.u32 %v524, 16
    %v996 = vrot.slane %v994, 7
    %v997 = vshll.u32 %v524, 16
    %v999 = vor.u32 %v996, %v997
    %v1000 = vsel %vm792, %v992, %v999
    %v1002 = vshrl.u32 %v525, 16
    %v1004 = vrot.slane %v1002, 7
    %v1005 = vshll.u32 %v525, 16
    %v1007 = vor.u32 %v1004, %v1005
    %v1008 = vrot.slane %v1004, 4
    %v1010 = vshrl.u32 %v526, 16
    %v1012 = vrot.slane %v1010, 7
    %v1013 = vshll.u32 %v526, 16
    %v1015 = vor.u32 %v1012, %v1013
    %v1016 = vsel %vm792, %v1008, %v1015
    %v1018 = vshrl.u32 %v527, 16
    %v1020 = vrot.slane %v1018, 7
    %v1021 = vshll.u32 %v527, 16
    %v1023 = vor.u32 %v1020, %v1021
    %v1024 = vrot.slane %v1020, 4
    %v1026 = vshrl.u32 %v528, 16
    %v1028 = vrot.slane %v1026, 7
    %v1029 = vshll.u32 %v528, 16
    %v1031 = vor.u32 %v1028, %v1029
    %v1032 = vsel %vm792, %v1024, %v1031
    %v1034 = vshrl.u32 %v529, 16
    %v1036 = vrot.slane %v1034, 7
    %v1037 = vshll.u32 %v529, 16
    %v1039 = vor.u32 %v1036, %v1037
    %v1040 = vrot.slane %v1036, 4
    %v1042 = vshrl.u32 %v530, 16
    %v1044 = vrot.slane %v1042, 7
    %v1045 = vshll.u32 %v530, 16
    %v1047 = vor.u32 %v1044, %v1045
    %v1048 = vsel %vm792, %v1040, %v1047
    %v1050 = vshrl.u32 %v531, 16
    %v1052 = vrot.slane %v1050, 7
    %v1053 = vshll.u32 %v531, 16
    %v1055 = vor.u32 %v1052, %v1053
    %v1056 = vrot.slane %v1052, 4
    %v1058 = vshrl.u32 %v532, 16
    %v1060 = vrot.slane %v1058, 7
    %v1061 = vshll.u32 %v532, 16
    %v1063 = vor.u32 %v1060, %v1061
    %v1064 = vsel %vm792, %v1056, %v1063
    %v1066 = vshrl.u32 %v533, 16
    %v1068 = vrot.slane %v1066, 7
    %v1069 = vshll.u32 %v533, 16
    %v1071 = vor.u32 %v1068, %v1069
    %v1072 = vrot.slane %v1068, 4
    %v1074 = vshrl.u32 %v534, 16
    %v1076 = vrot.slane %v1074, 7
    %v1077 = vshll.u32 %v534, 16
    %v1079 = vor.u32 %v1076, %v1077
    %v1080 = vsel %vm792, %v1072, %v1079
    %v1082 = vshrl.u32 %v535, 16
    %v1084 = vrot.slane %v1082, 7
    %v1085 = vshll.u32 %v535, 16
    %v1087 = vor.u32 %v1084, %v1085
    %v1088 = vrot.slane %v1084, 4
    %v1090 = vshrl.u32 %v536, 16
    %v1092 = vrot.slane %v1090, 7
    %v1093 = vshll.u32 %v536, 16
    %v1095 = vor.u32 %v1092, %v1093
    %v1096 = vsel %vm792, %v1088, %v1095
    %v1098 = vshrl.u32 %v537, 16
    %v1100 = vrot.slane %v1098, 7
    %v1101 = vshll.u32 %v537, 16
    %v1103 = vor.u32 %v1100, %v1101
    %v1104 = vrot.slane %v1100, 4
    %v1106 = vshrl.u32 %v538, 16
    %v1108 = vrot.slane %v1106, 7
    %v1109 = vshll.u32 %v538, 16
    %v1111 = vor.u32 %v1108, %v1109
    %v1112 = vsel %vm792, %v1104, %v1111
    %v1114 = vshrl.u32 %v539, 16
    %v1116 = vrot.slane %v1114, 7
    %v1117 = vshll.u32 %v539, 16
    %v1119 = vor.u32 %v1116, %v1117
    %v1120 = vrot.slane %v1116, 4
    %v1122 = vshrl.u32 %v540, 16
    %v1124 = vrot.slane %v1122, 7
    %v1125 = vshll.u32 %v540, 16
    %v1127 = vor.u32 %v1124, %v1125
    %v1128 = vsel %vm792, %v1120, %v1127
    %v1130 = vshrl.u32 %v541, 16
    %v1132 = vrot.slane %v1130, 7
    %v1133 = vshll.u32 %v541, 16
    %v1135 = vor.u32 %v1132, %v1133
    %v1136 = vrot.slane %v1132, 4
    %v1138 = vshrl.u32 %v542, 16
    %v1140 = vrot.slane %v1138, 7
    %v1141 = vshll.u32 %v542, 16
    %v1143 = vor.u32 %v1140, %v1141
    %v1144 = vsel %vm792, %v1136, %v1143
    %v1146 = vshrl.u32 %v543, 16
    %v1148 = vrot.slane %v1146, 7
    %v1149 = vshll.u32 %v543, 16
    %v1151 = vor.u32 %v1148, %v1149
    %v1152 = vrot.slane %v1148, 4
    %v1154 = vshrl.u32 %v544, 16
    %v1156 = vrot.slane %v1154, 7
    %v1157 = vshll.u32 %v544, 16
    %v1159 = vor.u32 %v1156, %v1157
    %v1160 = vsel %vm792, %v1152, %v1159
    %v1162 = vshrl.u32 %v545, 16
    %v1164 = vrot.slane %v1162, 7
    %v1165 = vshll.u32 %v545, 16
    %v1167 = vor.u32 %v1164, %v1165
    %v1168 = vrot.slane %v1164, 4
    %v1170 = vshrl.u32 %v546, 16
    %v1172 = vrot.slane %v1170, 7
    %v1173 = vshll.u32 %v546, 16
    %v1175 = vor.u32 %v1172, %v1173
    %v1176 = vsel %vm792, %v1168, %v1175
    %v1178 = vshrl.u32 %v547, 16
    %v1180 = vrot.slane %v1178, 7
    %v1181 = vshll.u32 %v547, 16
    %v1183 = vor.u32 %v1180, %v1181
    %v1184 = vrot.slane %v1180, 4
    %v1186 = vshrl.u32 %v548, 16
    %v1188 = vrot.slane %v1186, 7
    %v1189 = vshll.u32 %v548, 16
    %v1191 = vor.u32 %v1188, %v1189
    %v1192 = vsel %vm792, %v1184, %v1191
    %v1194 = vshrl.u32 %v549, 16
    %v1196 = vrot.slane %v1194, 7
    %v1197 = vshll.u32 %v549, 16
    %v1199 = vor.u32 %v1196, %v1197
    %v1200 = vrot.slane %v1196, 4
    %v1202 = vshrl.u32 %v550, 16
    %v1204 = vrot.slane %v1202, 7
    %v1205 = vshll.u32 %v550, 16
    %v1207 = vor.u32 %v1204, %v1205
    %v1208 = vsel %vm792, %v1200, %v1207
    %v1210 = vshrl.u32 %v551, 16
    %v1212 = vrot.slane %v1210, 7
    %v1213 = vshll.u32 %v551, 16
    %v1215 = vor.u32 %v1212, %v1213
    %v1216 = vrot.slane %v1212, 4
    %v1218 = vshrl.u32 %v552, 16
    %v1220 = vrot.slane %v1218, 7
    %v1221 = vshll.u32 %v552, 16
    %v1223 = vor.u32 %v1220, %v1221
    %v1224 = vsel %vm792, %v1216, %v1223
    %v1226 = vshrl.u32 %v553, 16
    %v1228 = vrot.slane %v1226, 7
    %v1229 = vshll.u32 %v553, 16
    %v1231 = vor.u32 %v1228, %v1229
    %v1232 = vrot.slane %v1228, 4
    %v1234 = vshrl.u32 %v554, 16
    %v1236 = vrot.slane %v1234, 7
    %v1237 = vshll.u32 %v554, 16
    %v1239 = vor.u32 %v1236, %v1237
    %v1240 = vsel %vm792, %v1232, %v1239
    %v1242 = vshrl.u32 %v555, 16
    %v1244 = vrot.slane %v1242, 7
    %v1245 = vshll.u32 %v555, 16
    %v1247 = vor.u32 %v1244, %v1245
    %v1248 = vrot.slane %v1244, 4
    %v1250 = vshrl.u32 %v556, 16
    %v1252 = vrot.slane %v1250, 7
    %v1253 = vshll.u32 %v556, 16
    %v1255 = vor.u32 %v1252, %v1253
    %v1256 = vsel %vm792, %v1248, %v1255
    %v1258 = vshrl.u32 %v557, 16
    %v1260 = vrot.slane %v1258, 7
    %v1261 = vshll.u32 %v557, 16
    %v1263 = vor.u32 %v1260, %v1261
    %v1264 = vrot.slane %v1260, 4
    %v1266 = vshrl.u32 %v558, 16
    %v1268 = vrot.slane %v1266, 7
    %v1269 = vshll.u32 %v558, 16
    %v1271 = vor.u32 %v1268, %v1269
    %v1272 = vsel %vm792, %v1264, %v1271
    %v1274 = vshrl.u32 %v559, 16
    %v1276 = vrot.slane %v1274, 7
    %v1277 = vshll.u32 %v559, 16
    %v1279 = vor.u32 %v1276, %v1277
    %v1280 = vrot.slane %v1276, 4
    %v1282 = vshrl.u32 %v560, 16
    %v1284 = vrot.slane %v1282, 7
    %v1285 = vshll.u32 %v560, 16
    %v1287 = vor.u32 %v1284, %v1285
    %v1288 = vsel %vm792, %v1280, %v1287
    %v1290 = vshrl.u32 %v561, 16
    %v1292 = vrot.slane %v1290, 7
    %v1293 = vshll.u32 %v561, 16
    %v1295 = vor.u32 %v1292, %v1293
    %v1296 = vrot.slane %v1292, 4
    %v1298 = vshrl.u32 %v562, 16
    %v1300 = vrot.slane %v1298, 7
    %v1301 = vshll.u32 %v562, 16
    %v1303 = vor.u32 %v1300, %v1301
    %v1304 = vsel %vm792, %v1296, %v1303
    %vm1369 = vcmask 1043456
    %vm1370 = vsmask.f32 7938
    %vm1371 = vmand %vm1369, %vm1370
    %v1372 = vld [vmem:[%s627] sm:$0xf]
    %v1373 = vsel %vm1371, %v799, %v1372
    %1374 = vst [vmem:[%s627] sm:$0xf] %v1373
    %1375 = vst [vmem:[%s627 + $0xc] sm:$0xf] %v808
    %v1376 = vld [vmem:[%s627 + $0x18] sm:$0xf]
    %v1377 = vsel %vm1371, %v815, %v1376
    %1378 = vst [vmem:[%s627 + $0x18] sm:$0xf] %v1377
    %1379 = vst [vmem:[%s627 + $0x24] sm:$0xf] %v824
    %v1380 = vld [vmem:[%s627 + $0x30] sm:$0xf]
    %v1381 = vsel %vm1371, %v831, %v1380
    %1382 = vst [vmem:[%s627 + $0x30] sm:$0xf] %v1381
    %1383 = vst [vmem:[%s627 + $0x3c] sm:$0xf] %v840
    %v1384 = vld [vmem:[%s627 + $0x48] sm:$0xf]
    %v1385 = vsel %vm1371, %v847, %v1384
    %1386 = vst [vmem:[%s627 + $0x48] sm:$0xf] %v1385
    %1387 = vst [vmem:[%s627 + $0x54] sm:$0xf] %v856
    %v1388 = vld [vmem:[%s627 + $0x60] sm:$0xf]
    %v1389 = vsel %vm1371, %v863, %v1388
    %1390 = vst [vmem:[%s627 + $0x60] sm:$0xf] %v1389
    %1391 = vst [vmem:[%s627 + $0x6c] sm:$0xf] %v872
    %v1392 = vld [vmem:[%s627 + $0x78] sm:$0xf]
    %v1393 = vsel %vm1371, %v879, %v1392
    %1394 = vst [vmem:[%s627 + $0x78] sm:$0xf] %v1393
    %1395 = vst [vmem:[%s627 + $0x84] sm:$0xf] %v888
    %v1396 = vld [vmem:[%s627 + $0x90] sm:$0xf]
    %v1397 = vsel %vm1371, %v895, %v1396
    %1398 = vst [vmem:[%s627 + $0x90] sm:$0xf] %v1397
    %1399 = vst [vmem:[%s627 + $0x9c] sm:$0xf] %v904
    %v1400 = vld [vmem:[%s627 + $0xa8] sm:$0xf]
    %v1401 = vsel %vm1371, %v911, %v1400
    %1402 = vst [vmem:[%s627 + $0xa8] sm:$0xf] %v1401
    %1403 = vst [vmem:[%s627 + $0xb4] sm:$0xf] %v920
    %v1404 = vld [vmem:[%s627 + $0xc0] sm:$0xf]
    %v1405 = vsel %vm1371, %v927, %v1404
    %1406 = vst [vmem:[%s627 + $0xc0] sm:$0xf] %v1405
    %1407 = vst [vmem:[%s627 + $0xcc] sm:$0xf] %v936
    %v1408 = vld [vmem:[%s627 + $0xd8] sm:$0xf]
    %v1409 = vsel %vm1371, %v943, %v1408
    %1410 = vst [vmem:[%s627 + $0xd8] sm:$0xf] %v1409
    %1411 = vst [vmem:[%s627 + $0xe4] sm:$0xf] %v952
    %v1412 = vld [vmem:[%s627 + $0xf0] sm:$0xf]
    %v1413 = vsel %vm1371, %v959, %v1412
    %1414 = vst [vmem:[%s627 + $0xf0] sm:$0xf] %v1413
    %1415 = vst [vmem:[%s627 + $0xfc] sm:$0xf] %v968
    %v1416 = vld [vmem:[%s627 + $0x108] sm:$0xf]
    %v1417 = vsel %vm1371, %v975, %v1416
    %1418 = vst [vmem:[%s627 + $0x108] sm:$0xf] %v1417
    %1419 = vst [vmem:[%s627 + $0x114] sm:$0xf] %v984
    %v1420 = vld [vmem:[%s627 + $0x120] sm:$0xf]
    %v1421 = vsel %vm1371, %v991, %v1420
    %1422 = vst [vmem:[%s627 + $0x120] sm:$0xf] %v1421
    %1423 = vst [vmem:[%s627 + $0x12c] sm:$0xf] %v1000
    %v1424 = vld [vmem:[%s627 + $0x138] sm:$0xf]
    %v1425 = vsel %vm1371, %v1007, %v1424
    %1426 = vst [vmem:[%s627 + $0x138] sm:$0xf] %v1425
    %1427 = vst [vmem:[%s627 + $0x144] sm:$0xf] %v1016
    %v1428 = vld [vmem:[%s627 + $0x150] sm:$0xf]
    %v1429 = vsel %vm1371, %v1023, %v1428
    %1430 = vst [vmem:[%s627 + $0x150] sm:$0xf] %v1429
    %1431 = vst [vmem:[%s627 + $0x15c] sm:$0xf] %v1032
    %v1432 = vld [vmem:[%s627 + $0x168] sm:$0xf]
    %v1433 = vsel %vm1371, %v1039, %v1432
    %1434 = vst [vmem:[%s627 + $0x168] sm:$0xf] %v1433
    %1435 = vst [vmem:[%s627 + $0x174] sm:$0xf] %v1048
    %v1436 = vld [vmem:[%s627 + $0x1b0] sm:$0xf]
    %v1437 = vsel %vm1371, %v1055, %v1436
    %1438 = vst [vmem:[%s627 + $0x1b0] sm:$0xf] %v1437
    %1439 = vst [vmem:[%s627 + $0x1bc] sm:$0xf] %v1064
    %v1440 = vld [vmem:[%s627 + $0x1c8] sm:$0xf]
    %v1441 = vsel %vm1371, %v1071, %v1440
    %1442 = vst [vmem:[%s627 + $0x1c8] sm:$0xf] %v1441
    %1443 = vst [vmem:[%s627 + $0x1d4] sm:$0xf] %v1080
    %v1444 = vld [vmem:[%s627 + $0x1e0] sm:$0xf]
    %v1445 = vsel %vm1371, %v1087, %v1444
    %1446 = vst [vmem:[%s627 + $0x1e0] sm:$0xf] %v1445
    %1447 = vst [vmem:[%s627 + $0x1ec] sm:$0xf] %v1096
    %v1448 = vld [vmem:[%s627 + $0x1f8] sm:$0xf]
    %v1449 = vsel %vm1371, %v1103, %v1448
    %1450 = vst [vmem:[%s627 + $0x1f8] sm:$0xf] %v1449
    %1451 = vst [vmem:[%s627 + $0x204] sm:$0xf] %v1112
    %v1452 = vld [vmem:[%s627 + $0x210] sm:$0xf]
    %v1453 = vsel %vm1371, %v1119, %v1452
    %1454 = vst [vmem:[%s627 + $0x210] sm:$0xf] %v1453
    %1455 = vst [vmem:[%s627 + $0x21c] sm:$0xf] %v1128
    %v1456 = vld [vmem:[%s627 + $0x228] sm:$0xf]
    %v1457 = vsel %vm1371, %v1135, %v1456
    %1458 = vst [vmem:[%s627 + $0x228] sm:$0xf] %v1457
    %1459 = vst [vmem:[%s627 + $0x234] sm:$0xf] %v1144
    %v1460 = vld [vmem:[%s627 + $0x240] sm:$0xf]
    %v1461 = vsel %vm1371, %v1151, %v1460
    %1462 = vst [vmem:[%s627 + $0x240] sm:$0xf] %v1461
    %1463 = vst [vmem:[%s627 + $0x24c] sm:$0xf] %v1160
    %v1464 = vld [vmem:[%s627 + $0x258] sm:$0xf]
    %v1465 = vsel %vm1371, %v1167, %v1464
    %1466 = vst [vmem:[%s627 + $0x258] sm:$0xf] %v1465
    %1467 = vst [vmem:[%s627 + $0x264] sm:$0xf] %v1176
    %v1468 = vld [vmem:[%s627 + $0x270] sm:$0xf]
    %v1469 = vsel %vm1371, %v1183, %v1468
    %1470 = vst [vmem:[%s627 + $0x270] sm:$0xf] %v1469
    %1471 = vst [vmem:[%s627 + $0x27c] sm:$0xf] %v1192
    %v1472 = vld [vmem:[%s627 + $0x288] sm:$0xf]
    %v1473 = vsel %vm1371, %v1199, %v1472
    %1474 = vst [vmem:[%s627 + $0x288] sm:$0xf] %v1473
    %1475 = vst [vmem:[%s627 + $0x294] sm:$0xf] %v1208
    %v1476 = vld [vmem:[%s627 + $0x2a0] sm:$0xf]
    %v1477 = vsel %vm1371, %v1215, %v1476
    %1478 = vst [vmem:[%s627 + $0x2a0] sm:$0xf] %v1477
    %1479 = vst [vmem:[%s627 + $0x2ac] sm:$0xf] %v1224
    %v1480 = vld [vmem:[%s627 + $0x2b8] sm:$0xf]
    %v1481 = vsel %vm1371, %v1231, %v1480
    %1482 = vst [vmem:[%s627 + $0x2b8] sm:$0xf] %v1481
    %1483 = vst [vmem:[%s627 + $0x2c4] sm:$0xf] %v1240
    %v1484 = vld [vmem:[%s627 + $0x2d0] sm:$0xf]
    %v1485 = vsel %vm1371, %v1247, %v1484
    %1486 = vst [vmem:[%s627 + $0x2d0] sm:$0xf] %v1485
    %1487 = vst [vmem:[%s627 + $0x2dc] sm:$0xf] %v1256
    %v1488 = vld [vmem:[%s627 + $0x2e8] sm:$0xf]
    %v1489 = vsel %vm1371, %v1263, %v1488
    %1490 = vst [vmem:[%s627 + $0x2e8] sm:$0xf] %v1489
    %1491 = vst [vmem:[%s627 + $0x2f4] sm:$0xf] %v1272
    %v1492 = vld [vmem:[%s627 + $0x300] sm:$0xf]
    %v1493 = vsel %vm1371, %v1279, %v1492
    %1494 = vst [vmem:[%s627 + $0x300] sm:$0xf] %v1493
    %1495 = vst [vmem:[%s627 + $0x30c] sm:$0xf] %v1288
    %v1496 = vld [vmem:[%s627 + $0x318] sm:$0xf]
    %v1497 = vsel %vm1371, %v1295, %v1496
    %1498 = vst [vmem:[%s627 + $0x318] sm:$0xf] %v1497
    %1499 = vst [vmem:[%s627 + $0x324] sm:$0xf] %v1304
    %vm1500 = vsmask.f32 3328
    %vm1501 = vsmask.f32 7440
    %vm1502 = vmor %vm1500, %vm1501
    %v1503 = vrot.slane %v794, 4
    %v1504 = vrot.slane %v797, 5
    %v1505 = vor.u32 %v1503, %v1504
    %v1506 = vrot.slane %v1505, 4
    %v1507 = vrot.slane %v805, 5
    %v1508 = vsel %vm1502, %v1506, %v1507
    %v1509 = vrot.slane %v802, 4
    %v1510 = vor.u32 %v1509, %v1507
    %v1511 = vrot.slane %v1510, 4
    %v1512 = vrot.slane %v810, 4
    %v1513 = vrot.slane %v813, 5
    %v1514 = vor.u32 %v1512, %v1513
    %v1515 = vrot.slane %v1514, 4
    %v1516 = vrot.slane %v821, 5
    %v1517 = vsel %vm1502, %v1515, %v1516
    %v1518 = vrot.slane %v818, 4
    %v1519 = vor.u32 %v1518, %v1516
    %v1520 = vrot.slane %v1519, 4
    %v1521 = vrot.slane %v826, 4
    %v1522 = vrot.slane %v829, 5
    %v1523 = vor.u32 %v1521, %v1522
    %v1524 = vrot.slane %v1523, 4
    %v1525 = vrot.slane %v837, 5
    %v1526 = vsel %vm1502, %v1524, %v1525
    %v1527 = vrot.slane %v834, 4
    %v1528 = vor.u32 %v1527, %v1525
    %v1529 = vrot.slane %v1528, 4
    %v1530 = vrot.slane %v842, 4
    %v1531 = vrot.slane %v845, 5
    %v1532 = vor.u32 %v1530, %v1531
    %v1533 = vrot.slane %v1532, 4
    %v1534 = vrot.slane %v853, 5
    %v1535 = vsel %vm1502, %v1533, %v1534
    %v1536 = vrot.slane %v850, 4
    %v1537 = vor.u32 %v1536, %v1534
    %v1538 = vrot.slane %v1537, 4
    %v1539 = vrot.slane %v858, 4
    %v1540 = vrot.slane %v861, 5
    %v1541 = vor.u32 %v1539, %v1540
    %v1542 = vrot.slane %v1541, 4
    %v1543 = vrot.slane %v869, 5
    %v1544 = vsel %vm1502, %v1542, %v1543
    %v1545 = vrot.slane %v866, 4
    %v1546 = vor.u32 %v1545, %v1543
    %v1547 = vrot.slane %v1546, 4
    %v1548 = vrot.slane %v874, 4
    %v1549 = vrot.slane %v877, 5
    %v1550 = vor.u32 %v1548, %v1549
    %v1551 = vrot.slane %v1550, 4
    %v1552 = vrot.slane %v885, 5
    %v1553 = vsel %vm1502, %v1551, %v1552
    %v1554 = vrot.slane %v882, 4
    %v1555 = vor.u32 %v1554, %v1552
    %v1556 = vrot.slane %v1555, 4
    %v1557 = vrot.slane %v890, 4
    %v1558 = vrot.slane %v893, 5
    %v1559 = vor.u32 %v1557, %v1558
    %v1560 = vrot.slane %v1559, 4
    %v1561 = vrot.slane %v901, 5
    %v1562 = vsel %vm1502, %v1560, %v1561
    %v1563 = vrot.slane %v898, 4
    %v1564 = vor.u32 %v1563, %v1561
    %v1565 = vrot.slane %v1564, 4
    %v1566 = vrot.slane %v906, 4
    %v1567 = vrot.slane %v909, 5
    %v1568 = vor.u32 %v1566, %v1567
    %v1569 = vrot.slane %v1568, 4
    %v1570 = vrot.slane %v917, 5
    %v1571 = vsel %vm1502, %v1569, %v1570
    %v1572 = vrot.slane %v914, 4
    %v1573 = vor.u32 %v1572, %v1570
    %v1574 = vrot.slane %v1573, 4
    %v1575 = vrot.slane %v922, 4
    %v1576 = vrot.slane %v925, 5
    %v1577 = vor.u32 %v1575, %v1576
    %v1578 = vrot.slane %v1577, 4
    %v1579 = vrot.slane %v933, 5
    %v1580 = vsel %vm1502, %v1578, %v1579
    %v1581 = vrot.slane %v930, 4
    %v1582 = vor.u32 %v1581, %v1579
    %v1583 = vrot.slane %v1582, 4
    %v1584 = vrot.slane %v938, 4
    %v1585 = vrot.slane %v941, 5
    %v1586 = vor.u32 %v1584, %v1585
    %v1587 = vrot.slane %v1586, 4
    %v1588 = vrot.slane %v949, 5
    %v1589 = vsel %vm1502, %v1587, %v1588
    %v1590 = vrot.slane %v946, 4
    %v1591 = vor.u32 %v1590, %v1588
    %v1592 = vrot.slane %v1591, 4
    %v1593 = vrot.slane %v954, 4
    %v1594 = vrot.slane %v957, 5
    %v1595 = vor.u32 %v1593, %v1594
    %v1596 = vrot.slane %v1595, 4
    %v1597 = vrot.slane %v965, 5
    %v1598 = vsel %vm1502, %v1596, %v1597
    %v1599 = vrot.slane %v962, 4
    %v1600 = vor.u32 %v1599, %v1597
    %v1601 = vrot.slane %v1600, 4
    %v1602 = vrot.slane %v970, 4
    %v1603 = vrot.slane %v973, 5
    %v1604 = vor.u32 %v1602, %v1603
    %v1605 = vrot.slane %v1604, 4
    %v1606 = vrot.slane %v981, 5
    %v1607 = vsel %vm1502, %v1605, %v1606
    %v1608 = vrot.slane %v978, 4
    %v1609 = vor.u32 %v1608, %v1606
    %v1610 = vrot.slane %v1609, 4
    %v1611 = vrot.slane %v986, 4
    %v1612 = vrot.slane %v989, 5
    %v1613 = vor.u32 %v1611, %v1612
    %v1614 = vrot.slane %v1613, 4
    %v1615 = vrot.slane %v997, 5
    %v1616 = vsel %vm1502, %v1614, %v1615
    %v1617 = vrot.slane %v994, 4
    %v1618 = vor.u32 %v1617, %v1615
    %v1619 = vrot.slane %v1618, 4
    %v1620 = vrot.slane %v1002, 4
    %v1621 = vrot.slane %v1005, 5
    %v1622 = vor.u32 %v1620, %v1621
    %v1623 = vrot.slane %v1622, 4
    %v1624 = vrot.slane %v1013, 5
    %v1625 = vsel %vm1502, %v1623, %v1624
    %v1626 = vrot.slane %v1010, 4
    %v1627 = vor.u32 %v1626, %v1624
    %v1628 = vrot.slane %v1627, 4
    %v1629 = vrot.slane %v1018, 4
    %v1630 = vrot.slane %v1021, 5
    %v1631 = vor.u32 %v1629, %v1630
    %v1632 = vrot.slane %v1631, 4
    %v1633 = vrot.slane %v1029, 5
    %v1634 = vsel %vm1502, %v1632, %v1633
    %v1635 = vrot.slane %v1026, 4
    %v1636 = vor.u32 %v1635, %v1633
    %v1637 = vrot.slane %v1636, 4
    %v1638 = vrot.slane %v1034, 4
    %v1639 = vrot.slane %v1037, 5
    %v1640 = vor.u32 %v1638, %v1639
    %v1641 = vrot.slane %v1640, 4
    %v1642 = vrot.slane %v1045, 5
    %v1643 = vsel %vm1502, %v1641, %v1642
    %v1644 = vrot.slane %v1042, 4
    %v1645 = vor.u32 %v1644, %v1642
    %v1646 = vrot.slane %v1645, 4
    %v1647 = vrot.slane %v1050, 4
    %v1648 = vrot.slane %v1053, 5
    %v1649 = vor.u32 %v1647, %v1648
    %v1650 = vrot.slane %v1649, 4
    %v1651 = vrot.slane %v1061, 5
    %v1652 = vsel %vm1502, %v1650, %v1651
    %v1653 = vrot.slane %v1058, 4
    %v1654 = vor.u32 %v1653, %v1651
    %v1655 = vrot.slane %v1654, 4
    %v1656 = vrot.slane %v1066, 4
    %v1657 = vrot.slane %v1069, 5
    %v1658 = vor.u32 %v1656, %v1657
    %v1659 = vrot.slane %v1658, 4
    %v1660 = vrot.slane %v1077, 5
    %v1661 = vsel %vm1502, %v1659, %v1660
    %v1662 = vrot.slane %v1074, 4
    %v1663 = vor.u32 %v1662, %v1660
    %v1664 = vrot.slane %v1663, 4
    %v1665 = vrot.slane %v1082, 4
    %v1666 = vrot.slane %v1085, 5
    %v1667 = vor.u32 %v1665, %v1666
    %v1668 = vrot.slane %v1667, 4
    %v1669 = vrot.slane %v1093, 5
    %v1670 = vsel %vm1502, %v1668, %v1669
    %v1671 = vrot.slane %v1090, 4
    %v1672 = vor.u32 %v1671, %v1669
    %v1673 = vrot.slane %v1672, 4
    %v1674 = vrot.slane %v1098, 4
    %v1675 = vrot.slane %v1101, 5
    %v1676 = vor.u32 %v1674, %v1675
    %v1677 = vrot.slane %v1676, 4
    %v1678 = vrot.slane %v1109, 5
    %v1679 = vsel %vm1502, %v1677, %v1678
    %v1680 = vrot.slane %v1106, 4
    %v1681 = vor.u32 %v1680, %v1678
    %v1682 = vrot.slane %v1681, 4
    %v1683 = vrot.slane %v1114, 4
    %v1684 = vrot.slane %v1117, 5
    %v1685 = vor.u32 %v1683, %v1684
    %v1686 = vrot.slane %v1685, 4
    %v1687 = vrot.slane %v1125, 5
    %v1688 = vsel %vm1502, %v1686, %v1687
    %v1689 = vrot.slane %v1122, 4
    %v1690 = vor.u32 %v1689, %v1687
    %v1691 = vrot.slane %v1690, 4
    %v1692 = vrot.slane %v1130, 4
    %v1693 = vrot.slane %v1133, 5
    %v1694 = vor.u32 %v1692, %v1693
    %v1695 = vrot.slane %v1694, 4
    %v1696 = vrot.slane %v1141, 5
    %v1697 = vsel %vm1502, %v1695, %v1696
    %v1698 = vrot.slane %v1138, 4
    %v1699 = vor.u32 %v1698, %v1696
    %v1700 = vrot.slane %v1699, 4
    %v1701 = vrot.slane %v1146, 4
    %v1702 = vrot.slane %v1149, 5
    %v1703 = vor.u32 %v1701, %v1702
    %v1704 = vrot.slane %v1703, 4
    %v1705 = vrot.slane %v1157, 5
    %v1706 = vsel %vm1502, %v1704, %v1705
    %v1707 = vrot.slane %v1154, 4
    %v1708 = vor.u32 %v1707, %v1705
    %v1709 = vrot.slane %v1708, 4
    %v1710 = vrot.slane %v1162, 4
    %v1711 = vrot.slane %v1165, 5
    %v1712 = vor.u32 %v1710, %v1711
    %v1713 = vrot.slane %v1712, 4
    %v1714 = vrot.slane %v1173, 5
    %v1715 = vsel %vm1502, %v1713, %v1714
    %v1716 = vrot.slane %v1170, 4
    %v1717 = vor.u32 %v1716, %v1714
    %v1718 = vrot.slane %v1717, 4
    %v1719 = vrot.slane %v1178, 4
    %v1720 = vrot.slane %v1181, 5
    %v1721 = vor.u32 %v1719, %v1720
    %v1722 = vrot.slane %v1721, 4
    %v1723 = vrot.slane %v1189, 5
    %v1724 = vsel %vm1502, %v1722, %v1723
    %v1725 = vrot.slane %v1186, 4
    %v1726 = vor.u32 %v1725, %v1723
    %v1727 = vrot.slane %v1726, 4
    %v1728 = vrot.slane %v1194, 4
    %v1729 = vrot.slane %v1197, 5
    %v1730 = vor.u32 %v1728, %v1729
    %v1731 = vrot.slane %v1730, 4
    %v1732 = vrot.slane %v1205, 5
    %v1733 = vsel %vm1502, %v1731, %v1732
    %v1734 = vrot.slane %v1202, 4
    %v1735 = vor.u32 %v1734, %v1732
    %v1736 = vrot.slane %v1735, 4
    %v1737 = vrot.slane %v1210, 4
    %v1738 = vrot.slane %v1213, 5
    %v1739 = vor.u32 %v1737, %v1738
    %v1740 = vrot.slane %v1739, 4
    %v1741 = vrot.slane %v1221, 5
    %v1742 = vsel %vm1502, %v1740, %v1741
    %v1743 = vrot.slane %v1218, 4
    %v1744 = vor.u32 %v1743, %v1741
    %v1745 = vrot.slane %v1744, 4
    %v1746 = vrot.slane %v1226, 4
    %v1747 = vrot.slane %v1229, 5
    %v1748 = vor.u32 %v1746, %v1747
    %v1749 = vrot.slane %v1748, 4
    %v1750 = vrot.slane %v1237, 5
    %v1751 = vsel %vm1502, %v1749, %v1750
    %v1752 = vrot.slane %v1234, 4
    %v1753 = vor.u32 %v1752, %v1750
    %v1754 = vrot.slane %v1753, 4
    %v1755 = vrot.slane %v1242, 4
    %v1756 = vrot.slane %v1245, 5
    %v1757 = vor.u32 %v1755, %v1756
    %v1758 = vrot.slane %v1757, 4
    %v1759 = vrot.slane %v1253, 5
    %v1760 = vsel %vm1502, %v1758, %v1759
    %v1761 = vrot.slane %v1250, 4
    %v1762 = vor.u32 %v1761, %v1759
    %v1763 = vrot.slane %v1762, 4
    %v1764 = vrot.slane %v1258, 4
    %v1765 = vrot.slane %v1261, 5
    %v1766 = vor.u32 %v1764, %v1765
    %v1767 = vrot.slane %v1766, 4
    %v1768 = vrot.slane %v1269, 5
    %v1769 = vsel %vm1502, %v1767, %v1768
    %v1770 = vrot.slane %v1266, 4
    %v1771 = vor.u32 %v1770, %v1768
    %v1772 = vrot.slane %v1771, 4
    %v1773 = vrot.slane %v1274, 4
    %v1774 = vrot.slane %v1277, 5
    %v1775 = vor.u32 %v1773, %v1774
    %v1776 = vrot.slane %v1775, 4
    %v1777 = vrot.slane %v1285, 5
    %v1778 = vsel %vm1502, %v1776, %v1777
    %v1779 = vrot.slane %v1282, 4
    %v1780 = vor.u32 %v1779, %v1777
    %v1781 = vrot.slane %v1780, 4
    %v1782 = vrot.slane %v1290, 4
    %v1783 = vrot.slane %v1293, 5
    %v1784 = vor.u32 %v1782, %v1783
    %v1785 = vrot.slane %v1784, 4
    %v1786 = vrot.slane %v1301, 5
    %v1787 = vsel %vm1502, %v1785, %v1786
    %v1788 = vrot.slane %v1298, 4
    %v1789 = vor.u32 %v1788, %v1786
    %v1790 = vrot.slane %v1789, 4
    %1855 = vst [vmem:[%s627 + $0x8] sm:$0xf] %v1508
    %vm1856 = vmand %vm1369, %vm1500
    %v1857 = vld [vmem:[%s627 + $0x14] sm:$0xf]
    %v1858 = vsel %vm1856, %v1511, %v1857
    %1859 = vst [vmem:[%s627 + $0x14] sm:$0xf] %v1858
    %1860 = vst [vmem:[%s627 + $0x20] sm:$0xf] %v1517
    %v1861 = vld [vmem:[%s627 + $0x2c] sm:$0xf]
    %v1862 = vsel %vm1856, %v1520, %v1861
    %1863 = vst [vmem:[%s627 + $0x2c] sm:$0xf] %v1862
    %1864 = vst [vmem:[%s627 + $0x38] sm:$0xf] %v1526
    %v1865 = vld [vmem:[%s627 + $0x44] sm:$0xf]
    %v1866 = vsel %vm1856, %v1529, %v1865
    %1867 = vst [vmem:[%s627 + $0x44] sm:$0xf] %v1866
    %1868 = vst [vmem:[%s627 + $0x50] sm:$0xf] %v1535
    %v1869 = vld [vmem:[%s627 + $0x5c] sm:$0xf]
    %v1870 = vsel %vm1856, %v1538, %v1869
    %1871 = vst [vmem:[%s627 + $0x5c] sm:$0xf] %v1870
    %1872 = vst [vmem:[%s627 + $0x68] sm:$0xf] %v1544
    %v1873 = vld [vmem:[%s627 + $0x74] sm:$0xf]
    %v1874 = vsel %vm1856, %v1547, %v1873
    %1875 = vst [vmem:[%s627 + $0x74] sm:$0xf] %v1874
    %1876 = vst [vmem:[%s627 + $0x80] sm:$0xf] %v1553
    %v1877 = vld [vmem:[%s627 + $0x8c] sm:$0xf]
    %v1878 = vsel %vm1856, %v1556, %v1877
    %1879 = vst [vmem:[%s627 + $0x8c] sm:$0xf] %v1878
    %1880 = vst [vmem:[%s627 + $0x98] sm:$0xf] %v1562
    %v1881 = vld [vmem:[%s627 + $0xa4] sm:$0xf]
    %v1882 = vsel %vm1856, %v1565, %v1881
    %1883 = vst [vmem:[%s627 + $0xa4] sm:$0xf] %v1882
    %1884 = vst [vmem:[%s627 + $0xb0] sm:$0xf] %v1571
    %v1885 = vld [vmem:[%s627 + $0xbc] sm:$0xf]
    %v1886 = vsel %vm1856, %v1574, %v1885
    %1887 = vst [vmem:[%s627 + $0xbc] sm:$0xf] %v1886
    %1888 = vst [vmem:[%s627 + $0xc8] sm:$0xf] %v1580
    %v1889 = vld [vmem:[%s627 + $0xd4] sm:$0xf]
    %v1890 = vsel %vm1856, %v1583, %v1889
    %1891 = vst [vmem:[%s627 + $0xd4] sm:$0xf] %v1890
    %1892 = vst [vmem:[%s627 + $0xe0] sm:$0xf] %v1589
    %v1893 = vld [vmem:[%s627 + $0xec] sm:$0xf]
    %v1894 = vsel %vm1856, %v1592, %v1893
    %1895 = vst [vmem:[%s627 + $0xec] sm:$0xf] %v1894
    %1896 = vst [vmem:[%s627 + $0xf8] sm:$0xf] %v1598
    %v1897 = vld [vmem:[%s627 + $0x104] sm:$0xf]
    %v1898 = vsel %vm1856, %v1601, %v1897
    %1899 = vst [vmem:[%s627 + $0x104] sm:$0xf] %v1898
    %1900 = vst [vmem:[%s627 + $0x110] sm:$0xf] %v1607
    %v1901 = vld [vmem:[%s627 + $0x11c] sm:$0xf]
    %v1902 = vsel %vm1856, %v1610, %v1901
    %1903 = vst [vmem:[%s627 + $0x11c] sm:$0xf] %v1902
    %1904 = vst [vmem:[%s627 + $0x128] sm:$0xf] %v1616
    %v1905 = vld [vmem:[%s627 + $0x134] sm:$0xf]
    %v1906 = vsel %vm1856, %v1619, %v1905
    %1907 = vst [vmem:[%s627 + $0x134] sm:$0xf] %v1906
    %1908 = vst [vmem:[%s627 + $0x140] sm:$0xf] %v1625
    %v1909 = vld [vmem:[%s627 + $0x14c] sm:$0xf]
    %v1910 = vsel %vm1856, %v1628, %v1909
    %1911 = vst [vmem:[%s627 + $0x14c] sm:$0xf] %v1910
    %1912 = vst [vmem:[%s627 + $0x158] sm:$0xf] %v1634
    %v1913 = vld [vmem:[%s627 + $0x164] sm:$0xf]
    %v1914 = vsel %vm1856, %v1637, %v1913
    %1915 = vst [vmem:[%s627 + $0x164] sm:$0xf] %v1914
    %1916 = vst [vmem:[%s627 + $0x170] sm:$0xf] %v1643
    %v1917 = vld [vmem:[%s627 + $0x17c] sm:$0xf]
    %v1918 = vsel %vm1856, %v1646, %v1917
    %1919 = vst [vmem:[%s627 + $0x17c] sm:$0xf] %v1918
    %1920 = vst [vmem:[%s627 + $0x1b8] sm:$0xf] %v1652
    %v1921 = vld [vmem:[%s627 + $0x1c4] sm:$0xf]
    %v1922 = vsel %vm1856, %v1655, %v1921
    %1923 = vst [vmem:[%s627 + $0x1c4] sm:$0xf] %v1922
    %1924 = vst [vmem:[%s627 + $0x1d0] sm:$0xf] %v1661
    %v1925 = vld [vmem:[%s627 + $0x1dc] sm:$0xf]
    %v1926 = vsel %vm1856, %v1664, %v1925
    %1927 = vst [vmem:[%s627 + $0x1dc] sm:$0xf] %v1926
    %1928 = vst [vmem:[%s627 + $0x1e8] sm:$0xf] %v1670
    %v1929 = vld [vmem:[%s627 + $0x1f4] sm:$0xf]
    %v1930 = vsel %vm1856, %v1673, %v1929
    %1931 = vst [vmem:[%s627 + $0x1f4] sm:$0xf] %v1930
    %1932 = vst [vmem:[%s627 + $0x200] sm:$0xf] %v1679
    %v1933 = vld [vmem:[%s627 + $0x20c] sm:$0xf]
    %v1934 = vsel %vm1856, %v1682, %v1933
    %1935 = vst [vmem:[%s627 + $0x20c] sm:$0xf] %v1934
    %1936 = vst [vmem:[%s627 + $0x218] sm:$0xf] %v1688
    %v1937 = vld [vmem:[%s627 + $0x224] sm:$0xf]
    %v1938 = vsel %vm1856, %v1691, %v1937
    %1939 = vst [vmem:[%s627 + $0x224] sm:$0xf] %v1938
    %1940 = vst [vmem:[%s627 + $0x230] sm:$0xf] %v1697
    %v1941 = vld [vmem:[%s627 + $0x23c] sm:$0xf]
    %v1942 = vsel %vm1856, %v1700, %v1941
    %1943 = vst [vmem:[%s627 + $0x23c] sm:$0xf] %v1942
    %1944 = vst [vmem:[%s627 + $0x248] sm:$0xf] %v1706
    %v1945 = vld [vmem:[%s627 + $0x254] sm:$0xf]
    %v1946 = vsel %vm1856, %v1709, %v1945
    %1947 = vst [vmem:[%s627 + $0x254] sm:$0xf] %v1946
    %1948 = vst [vmem:[%s627 + $0x260] sm:$0xf] %v1715
    %v1949 = vld [vmem:[%s627 + $0x26c] sm:$0xf]
    %v1950 = vsel %vm1856, %v1718, %v1949
    %1951 = vst [vmem:[%s627 + $0x26c] sm:$0xf] %v1950
    %1952 = vst [vmem:[%s627 + $0x278] sm:$0xf] %v1724
    %v1953 = vld [vmem:[%s627 + $0x284] sm:$0xf]
    %v1954 = vsel %vm1856, %v1727, %v1953
    %1955 = vst [vmem:[%s627 + $0x284] sm:$0xf] %v1954
    %1956 = vst [vmem:[%s627 + $0x290] sm:$0xf] %v1733
    %v1957 = vld [vmem:[%s627 + $0x29c] sm:$0xf]
    %v1958 = vsel %vm1856, %v1736, %v1957
    %1959 = vst [vmem:[%s627 + $0x29c] sm:$0xf] %v1958
    %1960 = vst [vmem:[%s627 + $0x2a8] sm:$0xf] %v1742
    %v1961 = vld [vmem:[%s627 + $0x2b4] sm:$0xf]
    %v1962 = vsel %vm1856, %v1745, %v1961
    %1963 = vst [vmem:[%s627 + $0x2b4] sm:$0xf] %v1962
    %1964 = vst [vmem:[%s627 + $0x2c0] sm:$0xf] %v1751
    %v1965 = vld [vmem:[%s627 + $0x2cc] sm:$0xf]
    %v1966 = vsel %vm1856, %v1754, %v1965
    %1967 = vst [vmem:[%s627 + $0x2cc] sm:$0xf] %v1966
    %1968 = vst [vmem:[%s627 + $0x2d8] sm:$0xf] %v1760
    %v1969 = vld [vmem:[%s627 + $0x2e4] sm:$0xf]
    %v1970 = vsel %vm1856, %v1763, %v1969
    %1971 = vst [vmem:[%s627 + $0x2e4] sm:$0xf] %v1970
    %1972 = vst [vmem:[%s627 + $0x2f0] sm:$0xf] %v1769
    %v1973 = vld [vmem:[%s627 + $0x2fc] sm:$0xf]
    %v1974 = vsel %vm1856, %v1772, %v1973
    %1975 = vst [vmem:[%s627 + $0x2fc] sm:$0xf] %v1974
    %1976 = vst [vmem:[%s627 + $0x308] sm:$0xf] %v1778
    %v1977 = vld [vmem:[%s627 + $0x314] sm:$0xf]
    %v1978 = vsel %vm1856, %v1781, %v1977
    %1979 = vst [vmem:[%s627 + $0x314] sm:$0xf] %v1978
    %1980 = vst [vmem:[%s627 + $0x320] sm:$0xf] %v1787
    %v1981 = vld [vmem:[%s627 + $0x32c] sm:$0xf]
    %v1982 = vsel %vm1856, %v1790, %v1981
    %1983 = vst [vmem:[%s627 + $0x32c] sm:$0xf] %v1982
    %vm1984 = vcmask 1043459
    %vm1985 = vsmask.f32 7950
    %vm1986 = vmand %vm1984, %vm1985
    %v1987 = vld [vmem:[%s627 + $0x14] sm:$0x8]
    %v1988 = vsel %vm1986, 0, %v1987
    %1989 = vst [vmem:[%s627 + $0x14] sm:$0x8] %v1988
    %v1990 = vld [vmem:[%s627 + $0x2c] sm:$0x8]
    %v1991 = vsel %vm1986, 0, %v1990
    %1992 = vst [vmem:[%s627 + $0x2c] sm:$0x8] %v1991
    %v1993 = vld [vmem:[%s627 + $0x44] sm:$0x8]
    %v1994 = vsel %vm1986, 0, %v1993
    %1995 = vst [vmem:[%s627 + $0x44] sm:$0x8] %v1994
    %v1996 = vld [vmem:[%s627 + $0x5c] sm:$0x8]
    %v1997 = vsel %vm1986, 0, %v1996
    %1998 = vst [vmem:[%s627 + $0x5c] sm:$0x8] %v1997
    %v1999 = vld [vmem:[%s627 + $0x74] sm:$0x8]
    %v2000 = vsel %vm1986, 0, %v1999
    %2001 = vst [vmem:[%s627 + $0x74] sm:$0x8] %v2000
    %v2002 = vld [vmem:[%s627 + $0x8c] sm:$0x8]
    %v2003 = vsel %vm1986, 0, %v2002
    %2004 = vst [vmem:[%s627 + $0x8c] sm:$0x8] %v2003
    %v2005 = vld [vmem:[%s627 + $0xa4] sm:$0x8]
    %v2006 = vsel %vm1986, 0, %v2005
    %2007 = vst [vmem:[%s627 + $0xa4] sm:$0x8] %v2006
    %v2008 = vld [vmem:[%s627 + $0xbc] sm:$0x8]
    %v2009 = vsel %vm1986, 0, %v2008
    %2010 = vst [vmem:[%s627 + $0xbc] sm:$0x8] %v2009
    %v2011 = vld [vmem:[%s627 + $0xd4] sm:$0x8]
    %v2012 = vsel %vm1986, 0, %v2011
    %2013 = vst [vmem:[%s627 + $0xd4] sm:$0x8] %v2012
    %v2014 = vld [vmem:[%s627 + $0xec] sm:$0x8]
    %v2015 = vsel %vm1986, 0, %v2014
    %2016 = vst [vmem:[%s627 + $0xec] sm:$0x8] %v2015
    %v2017 = vld [vmem:[%s627 + $0x104] sm:$0x8]
    %v2018 = vsel %vm1986, 0, %v2017
    %2019 = vst [vmem:[%s627 + $0x104] sm:$0x8] %v2018
    %v2020 = vld [vmem:[%s627 + $0x11c] sm:$0x8]
    %v2021 = vsel %vm1986, 0, %v2020
    %2022 = vst [vmem:[%s627 + $0x11c] sm:$0x8] %v2021
    %v2023 = vld [vmem:[%s627 + $0x134] sm:$0x8]
    %v2024 = vsel %vm1986, 0, %v2023
    %2025 = vst [vmem:[%s627 + $0x134] sm:$0x8] %v2024
    %v2026 = vld [vmem:[%s627 + $0x14c] sm:$0x8]
    %v2027 = vsel %vm1986, 0, %v2026
    %2028 = vst [vmem:[%s627 + $0x14c] sm:$0x8] %v2027
    %v2029 = vld [vmem:[%s627 + $0x164] sm:$0x8]
    %v2030 = vsel %vm1986, 0, %v2029
    %2031 = vst [vmem:[%s627 + $0x164] sm:$0x8] %v2030
    %v2032 = vld [vmem:[%s627 + $0x17c] sm:$0x8]
    %v2033 = vsel %vm1986, 0, %v2032
    %2034 = vst [vmem:[%s627 + $0x17c] sm:$0x8] %v2033
    %v2035 = vld [vmem:[%s627 + $0x1c4] sm:$0x8]
    %v2036 = vsel %vm1986, 0, %v2035
    %2037 = vst [vmem:[%s627 + $0x1c4] sm:$0x8] %v2036
    %v2038 = vld [vmem:[%s627 + $0x1dc] sm:$0x8]
    %v2039 = vsel %vm1986, 0, %v2038
    %2040 = vst [vmem:[%s627 + $0x1dc] sm:$0x8] %v2039
    %v2041 = vld [vmem:[%s627 + $0x1f4] sm:$0x8]
    %v2042 = vsel %vm1986, 0, %v2041
    %2043 = vst [vmem:[%s627 + $0x1f4] sm:$0x8] %v2042
    %v2044 = vld [vmem:[%s627 + $0x20c] sm:$0x8]
    %v2045 = vsel %vm1986, 0, %v2044
    %2046 = vst [vmem:[%s627 + $0x20c] sm:$0x8] %v2045
    %v2047 = vld [vmem:[%s627 + $0x224] sm:$0x8]
    %v2048 = vsel %vm1986, 0, %v2047
    %2049 = vst [vmem:[%s627 + $0x224] sm:$0x8] %v2048
    %v2050 = vld [vmem:[%s627 + $0x23c] sm:$0x8]
    %v2051 = vsel %vm1986, 0, %v2050
    %2052 = vst [vmem:[%s627 + $0x23c] sm:$0x8] %v2051
    %v2053 = vld [vmem:[%s627 + $0x254] sm:$0x8]
    %v2054 = vsel %vm1986, 0, %v2053
    %2055 = vst [vmem:[%s627 + $0x254] sm:$0x8] %v2054
    %v2056 = vld [vmem:[%s627 + $0x26c] sm:$0x8]
    %v2057 = vsel %vm1986, 0, %v2056
    %2058 = vst [vmem:[%s627 + $0x26c] sm:$0x8] %v2057
    %v2059 = vld [vmem:[%s627 + $0x284] sm:$0x8]
    %v2060 = vsel %vm1986, 0, %v2059
    %2061 = vst [vmem:[%s627 + $0x284] sm:$0x8] %v2060
    %v2062 = vld [vmem:[%s627 + $0x29c] sm:$0x8]
    %v2063 = vsel %vm1986, 0, %v2062
    %2064 = vst [vmem:[%s627 + $0x29c] sm:$0x8] %v2063
    %v2065 = vld [vmem:[%s627 + $0x2b4] sm:$0x8]
    %v2066 = vsel %vm1986, 0, %v2065
    %2067 = vst [vmem:[%s627 + $0x2b4] sm:$0x8] %v2066
    %v2068 = vld [vmem:[%s627 + $0x2cc] sm:$0x8]
    %v2069 = vsel %vm1986, 0, %v2068
    %2070 = vst [vmem:[%s627 + $0x2cc] sm:$0x8] %v2069
    %v2071 = vld [vmem:[%s627 + $0x2e4] sm:$0x8]
    %v2072 = vsel %vm1986, 0, %v2071
    %2073 = vst [vmem:[%s627 + $0x2e4] sm:$0x8] %v2072
    %v2074 = vld [vmem:[%s627 + $0x2fc] sm:$0x8]
    %v2075 = vsel %vm1986, 0, %v2074
    %2076 = vst [vmem:[%s627 + $0x2fc] sm:$0x8] %v2075
    %v2077 = vld [vmem:[%s627 + $0x314] sm:$0x8]
    %v2078 = vsel %vm1986, 0, %v2077
    %2079 = vst [vmem:[%s627 + $0x314] sm:$0x8] %v2078
    %v2080 = vld [vmem:[%s627 + $0x32c] sm:$0x8]
    %v2081 = vsel %vm1986, 0, %v2080
    %2082 = vst [vmem:[%s627 + $0x32c] sm:$0x8] %v2081
    %v2083 = vld [vmem:[#allocation2] sm:$0xff]
    %v2084 = vld [vmem:[#allocation2 + $0x8] sm:$0xf]
    %v2085 = vld [vmem:[#allocation2 + $0xc] sm:$0xff]
    %v2086 = vld [vmem:[#allocation2 + $0x14] sm:$0xf]
    %v2087 = vld [vmem:[#allocation2 + $0x18] sm:$0xff]
    %v2088 = vld [vmem:[#allocation2 + $0x20] sm:$0xf]
    %v2089 = vld [vmem:[#allocation2 + $0x24] sm:$0xff]
    %v2090 = vld [vmem:[#allocation2 + $0x2c] sm:$0xf]
    %v2091 = vld [vmem:[#allocation2 + $0x30] sm:$0xff]
    %v2092 = vld [vmem:[#allocation2 + $0x38] sm:$0xf]
    %v2093 = vld [vmem:[#allocation2 + $0x3c] sm:$0xff]
    %v2094 = vld [vmem:[#allocation2 + $0x44] sm:$0xf]
    %v2095 = vld [vmem:[#allocation2 + $0x48] sm:$0xff]
    %v2096 = vld [vmem:[#allocation2 + $0x50] sm:$0xf]
    %v2097 = vld [vmem:[#allocation2 + $0x54] sm:$0xff]
    %v2098 = vld [vmem:[#allocation2 + $0x5c] sm:$0xf]
    %v2099 = vld [vmem:[#allocation2 + $0x60] sm:$0xff]
    %v2100 = vld [vmem:[#allocation2 + $0x68] sm:$0xf]
    %v2101 = vld [vmem:[#allocation2 + $0x6c] sm:$0xff]
    %v2102 = vld [vmem:[#allocation2 + $0x74] sm:$0xf]
    %v2103 = vld [vmem:[#allocation2 + $0x78] sm:$0xff]
    %v2104 = vld [vmem:[#allocation2 + $0x80] sm:$0xf]
    %v2105 = vld [vmem:[#allocation2 + $0x84] sm:$0xff]
    %v2106 = vld [vmem:[#allocation2 + $0x8c] sm:$0xf]
    %v2107 = vld [vmem:[#allocation2 + $0x90] sm:$0xff]
    %v2108 = vld [vmem:[#allocation2 + $0x98] sm:$0xf]
    %v2109 = vld [vmem:[#allocation2 + $0x9c] sm:$0xff]
    %v2110 = vld [vmem:[#allocation2 + $0xa4] sm:$0xf]
    %v2111 = vld [vmem:[#allocation2 + $0xa8] sm:$0xff]
    %v2112 = vld [vmem:[#allocation2 + $0xb0] sm:$0xf]
    %v2113 = vld [vmem:[#allocation2 + $0xb4] sm:$0xff]
    %v2114 = vld [vmem:[#allocation2 + $0xbc] sm:$0xf]
    %v2115 = vld [vmem:[#allocation2 + $0xc0] sm:$0xff]
    %v2116 = vld [vmem:[#allocation2 + $0xc8] sm:$0xf]
    %v2117 = vld [vmem:[#allocation2 + $0xcc] sm:$0xff]
    %v2118 = vld [vmem:[#allocation2 + $0xd4] sm:$0xf]
    %v2119 = vld [vmem:[#allocation2 + $0xd8] sm:$0xff]
    %v2120 = vld [vmem:[#allocation2 + $0xe0] sm:$0xf]
    %v2121 = vld [vmem:[#allocation2 + $0xe4] sm:$0xff]
    %v2122 = vld [vmem:[#allocation2 + $0xec] sm:$0xf]
    %v2123 = vld [vmem:[#allocation2 + $0xf0] sm:$0xff]
    %v2124 = vld [vmem:[#allocation2 + $0xf8] sm:$0xf]
    %v2125 = vld [vmem:[#allocation2 + $0xfc] sm:$0xff]
    %v2126 = vld [vmem:[#allocation2 + $0x104] sm:$0xf]
    %v2127 = vld [vmem:[#allocation2 + $0x108] sm:$0xff]
    %v2128 = vld [vmem:[#allocation2 + $0x110] sm:$0xf]
    %v2129 = vld [vmem:[#allocation2 + $0x114] sm:$0xff]
    %v2130 = vld [vmem:[#allocation2 + $0x11c] sm:$0xf]
    %v2131 = vld [vmem:[#allocation2 + $0x120] sm:$0xff]
    %v2132 = vld [vmem:[#allocation2 + $0x128] sm:$0xf]
    %v2133 = vld [vmem:[#allocation2 + $0x12c] sm:$0xff]
    %v2134 = vld [vmem:[#allocation2 + $0x134] sm:$0xf]
    %v2135 = vld [vmem:[#allocation2 + $0x138] sm:$0xff]
    %v2136 = vld [vmem:[#allocation2 + $0x140] sm:$0xf]
    %v2137 = vld [vmem:[#allocation2 + $0x144] sm:$0xff]
    %v2138 = vld [vmem:[#allocation2 + $0x14c] sm:$0xf]
    %v2139 = vld [vmem:[#allocation2 + $0x150] sm:$0xff]
    %v2140 = vld [vmem:[#allocation2 + $0x158] sm:$0xf]
    %v2141 = vld [vmem:[#allocation2 + $0x15c] sm:$0xff]
    %v2142 = vld [vmem:[#allocation2 + $0x164] sm:$0xf]
    %v2143 = vld [vmem:[#allocation2 + $0x168] sm:$0xff]
    %v2144 = vld [vmem:[#allocation2 + $0x170] sm:$0xf]
    %v2145 = vld [vmem:[#allocation2 + $0x174] sm:$0xff]
    %v2146 = vld [vmem:[#allocation2 + $0x17c] sm:$0xf]
    %v2147 = vld [vmem:[#allocation2 + $0x1b0] sm:$0xff]
    %v2148 = vld [vmem:[#allocation2 + $0x1b8] sm:$0xf]
    %v2149 = vld [vmem:[#allocation2 + $0x1bc] sm:$0xff]
    %v2150 = vld [vmem:[#allocation2 + $0x1c4] sm:$0xf]
    %v2151 = vld [vmem:[#allocation2 + $0x1c8] sm:$0xff]
    %v2152 = vld [vmem:[#allocation2 + $0x1d0] sm:$0xf]
    %v2153 = vld [vmem:[#allocation2 + $0x1d4] sm:$0xff]
    %v2154 = vld [vmem:[#allocation2 + $0x1dc] sm:$0xf]
    %v2155 = vld [vmem:[#allocation2 + $0x1e0] sm:$0xff]
    %v2156 = vld [vmem:[#allocation2 + $0x1e8] sm:$0xf]
    %v2157 = vld [vmem:[#allocation2 + $0x1ec] sm:$0xff]
    %v2158 = vld [vmem:[#allocation2 + $0x1f4] sm:$0xf]
    %v2159 = vld [vmem:[#allocation2 + $0x1f8] sm:$0xff]
    %v2160 = vld [vmem:[#allocation2 + $0x200] sm:$0xf]
    %v2161 = vld [vmem:[#allocation2 + $0x204] sm:$0xff]
    %v2162 = vld [vmem:[#allocation2 + $0x20c] sm:$0xf]
    %v2163 = vld [vmem:[#allocation2 + $0x210] sm:$0xff]
    %v2164 = vld [vmem:[#allocation2 + $0x218] sm:$0xf]
    %v2165 = vld [vmem:[#allocation2 + $0x21c] sm:$0xff]
    %v2166 = vld [vmem:[#allocation2 + $0x224] sm:$0xf]
    %v2167 = vld [vmem:[#allocation2 + $0x228] sm:$0xff]
    %v2168 = vld [vmem:[#allocation2 + $0x230] sm:$0xf]
    %v2169 = vld [vmem:[#allocation2 + $0x234] sm:$0xff]
    %v2170 = vld [vmem:[#allocation2 + $0x23c] sm:$0xf]
    %v2171 = vld [vmem:[#allocation2 + $0x240] sm:$0xff]
    %v2172 = vld [vmem:[#allocation2 + $0x248] sm:$0xf]
    %v2173 = vld [vmem:[#allocation2 + $0x24c] sm:$0xff]
    %v2174 = vld [vmem:[#allocation2 + $0x254] sm:$0xf]
    %v2175 = vld [vmem:[#allocation2 + $0x258] sm:$0xff]
    %v2176 = vld [vmem:[#allocation2 + $0x260] sm:$0xf]
    %v2177 = vld [vmem:[#allocation2 + $0x264] sm:$0xff]
    %v2178 = vld [vmem:[#allocation2 + $0x26c] sm:$0xf]
    %v2179 = vld [vmem:[#allocation2 + $0x270] sm:$0xff]
    %v2180 = vld [vmem:[#allocation2 + $0x278] sm:$0xf]
    %v2181 = vld [vmem:[#allocation2 + $0x27c] sm:$0xff]
    %v2182 = vld [vmem:[#allocation2 + $0x284] sm:$0xf]
    %v2183 = vld [vmem:[#allocation2 + $0x288] sm:$0xff]
    %v2184 = vld [vmem:[#allocation2 + $0x290] sm:$0xf]
    %v2185 = vld [vmem:[#allocation2 + $0x294] sm:$0xff]
    %v2186 = vld [vmem:[#allocation2 + $0x29c] sm:$0xf]
    %v2187 = vld [vmem:[#allocation2 + $0x2a0] sm:$0xff]
    %v2188 = vld [vmem:[#allocation2 + $0x2a8] sm:$0xf]
    %v2189 = vld [vmem:[#allocation2 + $0x2ac] sm:$0xff]
    %v2190 = vld [vmem:[#allocation2 + $0x2b4] sm:$0xf]
    %v2191 = vld [vmem:[#allocation2 + $0x2b8] sm:$0xff]
    %v2192 = vld [vmem:[#allocation2 + $0x2c0] sm:$0xf]
    %v2193 = vld [vmem:[#allocation2 + $0x2c4] sm:$0xff]
    %v2194 = vld [vmem:[#allocation2 + $0x2cc] sm:$0xf]
    %v2195 = vld [vmem:[#allocation2 + $0x2d0] sm:$0xff]
    %v2196 = vld [vmem:[#allocation2 + $0x2d8] sm:$0xf]
    %v2197 = vld [vmem:[#allocation2 + $0x2dc] sm:$0xff]
    %v2198 = vld [vmem:[#allocation2 + $0x2e4] sm:$0xf]
    %v2199 = vld [vmem:[#allocation2 + $0x2e8] sm:$0xff]
    %v2200 = vld [vmem:[#allocation2 + $0x2f0] sm:$0xf]
    %v2201 = vld [vmem:[#allocation2 + $0x2f4] sm:$0xff]
    %v2202 = vld [vmem:[#allocation2 + $0x2fc] sm:$0xf]
    %v2203 = vld [vmem:[#allocation2 + $0x300] sm:$0xff]
    %v2204 = vld [vmem:[#allocation2 + $0x308] sm:$0xf]
    %v2205 = vld [vmem:[#allocation2 + $0x30c] sm:$0xff]
    %v2206 = vld [vmem:[#allocation2 + $0x314] sm:$0xf]
    %v2207 = vld [vmem:[#allocation2 + $0x318] sm:$0xff]
    %v2208 = vld [vmem:[#allocation2 + $0x320] sm:$0xf]
    %v2209 = vld [vmem:[#allocation2 + $0x324] sm:$0xff]
    %v2210 = vld [vmem:[#allocation2 + $0x32c] sm:$0xf]
    %v2211 = vld [vmem:[%s1] sm:$0xf]
    %v2212 = vld [vmem:[%s1 + $0x4] sm:$0xf]
    %v2213 = vld [vmem:[%s1 + $0x8] sm:$0xf]
    %v2214 = vld [vmem:[%s1 + $0xc] sm:$0xf]
    %v2215 = vld [vmem:[%s1 + $0x10] sm:$0xf]
    %v2216 = vld [vmem:[%s1 + $0x14] sm:$0xf]
    %v2217 = vld [vmem:[%s1 + $0x18] sm:$0xf]
    %v2218 = vld [vmem:[%s1 + $0x1c] sm:$0xf]
    %v2219 = vld [vmem:[%s1 + $0x20] sm:$0xf]
    %v2220 = vld [vmem:[%s1 + $0x24] sm:$0xf]
    %v2221 = vld [vmem:[%s1 + $0x28] sm:$0xf]
    %v2222 = vld [vmem:[%s1 + $0x2c] sm:$0xf]
    %v2223 = vld [vmem:[%s1 + $0x30] sm:$0xf]
    %v2224 = vld [vmem:[%s1 + $0x34] sm:$0xf]
    %v2225 = vld [vmem:[%s1 + $0x38] sm:$0xf]
    %v2226 = vld [vmem:[%s1 + $0x3c] sm:$0xf]
    %v2227 = vld [vmem:[%s1 + $0x40] sm:$0xf]
    %v2228 = vld [vmem:[%s1 + $0x44] sm:$0xf]
    %v2229 = vld [vmem:[%s1 + $0x48] sm:$0xf]
    %v2230 = vld [vmem:[%s1 + $0x4c] sm:$0xf]
    %v2231 = vld [vmem:[%s1 + $0x50] sm:$0xf]
    %v2232 = vld [vmem:[%s1 + $0x54] sm:$0xf]
    %v2233 = vld [vmem:[%s1 + $0x58] sm:$0xf]
    %v2234 = vld [vmem:[%s1 + $0x5c] sm:$0xf]
    %v2235 = vld [vmem:[%s1 + $0x60] sm:$0xf]
    %v2236 = vld [vmem:[%s1 + $0x64] sm:$0xf]
    %v2237 = vld [vmem:[%s1 + $0x68] sm:$0xf]
    %v2238 = vld [vmem:[%s1 + $0x6c] sm:$0xf]
    %v2239 = vld [vmem:[%s1 + $0x70] sm:$0xf]
    %v2240 = vld [vmem:[%s1 + $0x74] sm:$0xf]
    %v2241 = vld [vmem:[%s1 + $0x78] sm:$0xf]
    %v2242 = vld [vmem:[%s1 + $0x7c] sm:$0xf]
    %v2243 = vld [vmem:[%s1 + $0x80] sm:$0xf]
    %v2244 = vld [vmem:[%s1 + $0x84] sm:$0xf]
    %v2245 = vld [vmem:[%s1 + $0x88] sm:$0xf]
    %v2246 = vld [vmem:[%s1 + $0x8c] sm:$0xf]
    %v2247 = vld [vmem:[%s1 + $0x90] sm:$0xf]
    %v2248 = vld [vmem:[%s1 + $0x94] sm:$0xf]
    %v2249 = vld [vmem:[%s1 + $0x98] sm:$0xf]
    %v2250 = vld [vmem:[%s1 + $0x9c] sm:$0xf]
    %v2251 = vld [vmem:[%s1 + $0xa0] sm:$0xf]
    %v2252 = vld [vmem:[%s1 + $0xa4] sm:$0xf]
    %v2253 = vld [vmem:[%s1 + $0xa8] sm:$0xf]
    %v2254 = vld [vmem:[%s1 + $0xac] sm:$0xf]
    %v2255 = vld [vmem:[%s1 + $0xb0] sm:$0xf]
    %v2256 = vld [vmem:[%s1 + $0xb4] sm:$0xf]
    %v2257 = vld [vmem:[%s1 + $0xb8] sm:$0xf]
    %v2258 = vld [vmem:[%s1 + $0xbc] sm:$0xf]
    %v2259 = vld [vmem:[%s627] sm:$0xff]
    %v2260 = vld [vmem:[%s627 + $0x8] sm:$0xf]
    %v2261 = vld [vmem:[%s627 + $0xc] sm:$0xff]
    %v2262 = vld [vmem:[%s627 + $0x14] sm:$0xf]
    %v2263 = vld [vmem:[%s627 + $0x18] sm:$0xff]
    %v2264 = vld [vmem:[%s627 + $0x20] sm:$0xf]
    %v2265 = vld [vmem:[%s627 + $0x24] sm:$0xff]
    %v2266 = vld [vmem:[%s627 + $0x2c] sm:$0xf]
    %v2267 = vld [vmem:[%s627 + $0x30] sm:$0xff]
    %v2268 = vld [vmem:[%s627 + $0x38] sm:$0xf]
    %v2269 = vld [vmem:[%s627 + $0x3c] sm:$0xff]
    %v2270 = vld [vmem:[%s627 + $0x44] sm:$0xf]
    %v2271 = vld [vmem:[%s627 + $0x48] sm:$0xff]
    %v2272 = vld [vmem:[%s627 + $0x50] sm:$0xf]
    %v2273 = vld [vmem:[%s627 + $0x54] sm:$0xff]
    %v2274 = vld [vmem:[%s627 + $0x5c] sm:$0xf]
    %v2275 = vld [vmem:[%s627 + $0x60] sm:$0xff]
    %v2276 = vld [vmem:[%s627 + $0x68] sm:$0xf]
    %v2277 = vld [vmem:[%s627 + $0x6c] sm:$0xff]
    %v2278 = vld [vmem:[%s627 + $0x74] sm:$0xf]
    %v2279 = vld [vmem:[%s627 + $0x78] sm:$0xff]
    %v2280 = vld [vmem:[%s627 + $0x80] sm:$0xf]
    %v2281 = vld [vmem:[%s627 + $0x84] sm:$0xff]
    %v2282 = vld [vmem:[%s627 + $0x8c] sm:$0xf]
    %v2283 = vld [vmem:[%s627 + $0x90] sm:$0xff]
    %v2284 = vld [vmem:[%s627 + $0x98] sm:$0xf]
    %v2285 = vld [vmem:[%s627 + $0x9c] sm:$0xff]
    %v2286 = vld [vmem:[%s627 + $0xa4] sm:$0xf]
    %v2287 = vld [vmem:[%s627 + $0xa8] sm:$0xff]
    %v2288 = vld [vmem:[%s627 + $0xb0] sm:$0xf]
    %v2289 = vld [vmem:[%s627 + $0xb4] sm:$0xff]
    %v2290 = vld [vmem:[%s627 + $0xbc] sm:$0xf]
    %v2291 = vld [vmem:[%s627 + $0xc0] sm:$0xff]
    %v2292 = vld [vmem:[%s627 + $0xc8] sm:$0xf]
    %v2293 = vld [vmem:[%s627 + $0xcc] sm:$0xff]
    %v2294 = vld [vmem:[%s627 + $0xd4] sm:$0xf]
    %v2295 = vld [vmem:[%s627 + $0xd8] sm:$0xff]
    %v2296 = vld [vmem:[%s627 + $0xe0] sm:$0xf]
    %v2297 = vld [vmem:[%s627 + $0xe4] sm:$0xff]
    %v2298 = vld [vmem:[%s627 + $0xec] sm:$0xf]
    %v2299 = vld [vmem:[%s627 + $0xf0] sm:$0xff]
    %v2300 = vld [vmem:[%s627 + $0xf8] sm:$0xf]
    %v2301 = vld [vmem:[%s627 + $0xfc] sm:$0xff]
    %v2302 = vld [vmem:[%s627 + $0x104] sm:$0xf]
    %v2303 = vld [vmem:[%s627 + $0x108] sm:$0xff]
    %v2304 = vld [vmem:[%s627 + $0x110] sm:$0xf]
    %v2305 = vld [vmem:[%s627 + $0x114] sm:$0xff]
    %v2306 = vld [vmem:[%s627 + $0x11c] sm:$0xf]
    %v2307 = vld [vmem:[%s627 + $0x120] sm:$0xff]
    %v2308 = vld [vmem:[%s627 + $0x128] sm:$0xf]
    %v2309 = vld [vmem:[%s627 + $0x12c] sm:$0xff]
    %v2310 = vld [vmem:[%s627 + $0x134] sm:$0xf]
    %v2311 = vld [vmem:[%s627 + $0x138] sm:$0xff]
    %v2312 = vld [vmem:[%s627 + $0x140] sm:$0xf]
    %v2313 = vld [vmem:[%s627 + $0x144] sm:$0xff]
    %v2314 = vld [vmem:[%s627 + $0x14c] sm:$0xf]
    %v2315 = vld [vmem:[%s627 + $0x150] sm:$0xff]
    %v2316 = vld [vmem:[%s627 + $0x158] sm:$0xf]
    %v2317 = vld [vmem:[%s627 + $0x15c] sm:$0xff]
    %v2318 = vld [vmem:[%s627 + $0x164] sm:$0xf]
    %v2319 = vld [vmem:[%s627 + $0x168] sm:$0xff]
    %v2320 = vld [vmem:[%s627 + $0x170] sm:$0xf]
    %v2321 = vld [vmem:[%s627 + $0x174] sm:$0xff]
    %v2322 = vld [vmem:[%s627 + $0x17c] sm:$0xf]
    %v2323 = vld [vmem:[%s627 + $0x1b0] sm:$0xff]
    %v2324 = vld [vmem:[%s627 + $0x1b8] sm:$0xf]
    %v2325 = vld [vmem:[%s627 + $0x1bc] sm:$0xff]
    %v2326 = vld [vmem:[%s627 + $0x1c4] sm:$0xf]
    %v2327 = vld [vmem:[%s627 + $0x1c8] sm:$0xff]
    %v2328 = vld [vmem:[%s627 + $0x1d0] sm:$0xf]
    %v2329 = vld [vmem:[%s627 + $0x1d4] sm:$0xff]
    %v2330 = vld [vmem:[%s627 + $0x1dc] sm:$0xf]
    %v2331 = vld [vmem:[%s627 + $0x1e0] sm:$0xff]
    %v2332 = vld [vmem:[%s627 + $0x1e8] sm:$0xf]
    %v2333 = vld [vmem:[%s627 + $0x1ec] sm:$0xff]
    %v2334 = vld [vmem:[%s627 + $0x1f4] sm:$0xf]
    %v2335 = vld [vmem:[%s627 + $0x1f8] sm:$0xff]
    %v2336 = vld [vmem:[%s627 + $0x200] sm:$0xf]
    %v2337 = vld [vmem:[%s627 + $0x204] sm:$0xff]
    %v2338 = vld [vmem:[%s627 + $0x20c] sm:$0xf]
    %v2339 = vld [vmem:[%s627 + $0x210] sm:$0xff]
    %v2340 = vld [vmem:[%s627 + $0x218] sm:$0xf]
    %v2341 = vld [vmem:[%s627 + $0x21c] sm:$0xff]
    %v2342 = vld [vmem:[%s627 + $0x224] sm:$0xf]
    %v2343 = vld [vmem:[%s627 + $0x228] sm:$0xff]
    %v2344 = vld [vmem:[%s627 + $0x230] sm:$0xf]
    %v2345 = vld [vmem:[%s627 + $0x234] sm:$0xff]
    %v2346 = vld [vmem:[%s627 + $0x23c] sm:$0xf]
    %v2347 = vld [vmem:[%s627 + $0x240] sm:$0xff]
    %v2348 = vld [vmem:[%s627 + $0x248] sm:$0xf]
    %v2349 = vld [vmem:[%s627 + $0x24c] sm:$0xff]
    %v2350 = vld [vmem:[%s627 + $0x254] sm:$0xf]
    %v2351 = vld [vmem:[%s627 + $0x258] sm:$0xff]
    %v2352 = vld [vmem:[%s627 + $0x260] sm:$0xf]
    %v2353 = vld [vmem:[%s627 + $0x264] sm:$0xff]
    %v2354 = vld [vmem:[%s627 + $0x26c] sm:$0xf]
    %v2355 = vld [vmem:[%s627 + $0x270] sm:$0xff]
    %v2356 = vld [vmem:[%s627 + $0x278] sm:$0xf]
    %v2357 = vld [vmem:[%s627 + $0x27c] sm:$0xff]
    %v2358 = vld [vmem:[%s627 + $0x284] sm:$0xf]
    %v2359 = vld [vmem:[%s627 + $0x288] sm:$0xff]
    %v2360 = vld [vmem:[%s627 + $0x290] sm:$0xf]
    %v2361 = vld [vmem:[%s627 + $0x294] sm:$0xff]
    %v2362 = vld [vmem:[%s627 + $0x29c] sm:$0xf]
    %v2363 = vld [vmem:[%s627 + $0x2a0] sm:$0xff]
    %v2364 = vld [vmem:[%s627 + $0x2a8] sm:$0xf]
    %v2365 = vld [vmem:[%s627 + $0x2ac] sm:$0xff]
    %v2366 = vld [vmem:[%s627 + $0x2b4] sm:$0xf]
    %v2367 = vld [vmem:[%s627 + $0x2b8] sm:$0xff]
    %v2368 = vld [vmem:[%s627 + $0x2c0] sm:$0xf]
    %v2369 = vld [vmem:[%s627 + $0x2c4] sm:$0xff]
    %v2370 = vld [vmem:[%s627 + $0x2cc] sm:$0xf]
    %v2371 = vld [vmem:[%s627 + $0x2d0] sm:$0xff]
    %v2372 = vld [vmem:[%s627 + $0x2d8] sm:$0xf]
    %v2373 = vld [vmem:[%s627 + $0x2dc] sm:$0xff]
    %v2374 = vld [vmem:[%s627 + $0x2e4] sm:$0xf]
    %v2375 = vld [vmem:[%s627 + $0x2e8] sm:$0xff]
    %v2376 = vld [vmem:[%s627 + $0x2f0] sm:$0xf]
    %v2377 = vld [vmem:[%s627 + $0x2f4] sm:$0xff]
    %v2378 = vld [vmem:[%s627 + $0x2fc] sm:$0xf]
    %v2379 = vld [vmem:[%s627 + $0x300] sm:$0xff]
    %v2380 = vld [vmem:[%s627 + $0x308] sm:$0xf]
    %v2381 = vld [vmem:[%s627 + $0x30c] sm:$0xff]
    %v2382 = vld [vmem:[%s627 + $0x314] sm:$0xf]
    %v2383 = vld [vmem:[%s627 + $0x318] sm:$0xff]
    %v2384 = vld [vmem:[%s627 + $0x320] sm:$0xf]
    %v2385 = vld [vmem:[%s627 + $0x324] sm:$0xff]
    %v2386 = vld [vmem:[%s627 + $0x32c] sm:$0xf]
    %s2387 = scalar_lea.vmem %s1, 192
    %v2388 = vld [vmem:[%s2387] sm:$0xf]
    %v2389 = vld [vmem:[%s2387 + $0x4] sm:$0xf]
    %v2390 = vld [vmem:[%s2387 + $0x8] sm:$0xf]
    %v2391 = vld [vmem:[%s2387 + $0xc] sm:$0xf]
    %v2392 = vld [vmem:[%s2387 + $0x10] sm:$0xf]
    %v2393 = vld [vmem:[%s2387 + $0x14] sm:$0xf]
    %v2394 = vld [vmem:[%s2387 + $0x18] sm:$0xf]
    %v2395 = vld [vmem:[%s2387 + $0x1c] sm:$0xf]
    %v2396 = vld [vmem:[%s2387 + $0x20] sm:$0xf]
    %v2397 = vld [vmem:[%s2387 + $0x24] sm:$0xf]
    %v2398 = vld [vmem:[%s2387 + $0x28] sm:$0xf]
    %v2399 = vld [vmem:[%s2387 + $0x2c] sm:$0xf]
    %v2400 = vld [vmem:[%s2387 + $0x30] sm:$0xf]
    %v2401 = vld [vmem:[%s2387 + $0x34] sm:$0xf]
    %v2402 = vld [vmem:[%s2387 + $0x38] sm:$0xf]
    %v2403 = vld [vmem:[%s2387 + $0x3c] sm:$0xf]
    %v2404 = vld [vmem:[%s2387 + $0x40] sm:$0xf]
    %v2405 = vld [vmem:[%s2387 + $0x44] sm:$0xf]
    %v2406 = vld [vmem:[%s2387 + $0x48] sm:$0xf]
    %v2407 = vld [vmem:[%s2387 + $0x4c] sm:$0xf]
    %v2408 = vld [vmem:[%s2387 + $0x50] sm:$0xf]
    %v2409 = vld [vmem:[%s2387 + $0x54] sm:$0xf]
    %v2410 = vld [vmem:[%s2387 + $0x58] sm:$0xf]
    %v2411 = vld [vmem:[%s2387 + $0x5c] sm:$0xf]
    %v2412 = vld [vmem:[%s2387 + $0x60] sm:$0xf]
    %v2413 = vld [vmem:[%s2387 + $0x64] sm:$0xf]
    %v2414 = vld [vmem:[%s2387 + $0x68] sm:$0xf]
    %v2415 = vld [vmem:[%s2387 + $0x6c] sm:$0xf]
    %v2416 = vld [vmem:[%s2387 + $0x70] sm:$0xf]
    %v2417 = vld [vmem:[%s2387 + $0x74] sm:$0xf]
    %v2418 = vld [vmem:[%s2387 + $0x78] sm:$0xf]
    %v2419 = vld [vmem:[%s2387 + $0x7c] sm:$0xf]
    %v2420 = vld [vmem:[%s2387 + $0x80] sm:$0xf]
    %v2421 = vld [vmem:[%s2387 + $0x84] sm:$0xf]
    %v2422 = vld [vmem:[%s2387 + $0x88] sm:$0xf]
    %v2423 = vld [vmem:[%s2387 + $0x8c] sm:$0xf]
    %v2424 = vld [vmem:[%s2387 + $0x90] sm:$0xf]
    %v2425 = vld [vmem:[%s2387 + $0x94] sm:$0xf]
    %v2426 = vld [vmem:[%s2387 + $0x98] sm:$0xf]
    %v2427 = vld [vmem:[%s2387 + $0x9c] sm:$0xf]
    %v2428 = vld [vmem:[%s2387 + $0xa0] sm:$0xf]
    %v2429 = vld [vmem:[%s2387 + $0xa4] sm:$0xf]
    %v2430 = vld [vmem:[%s2387 + $0xa8] sm:$0xf]
    %v2431 = vld [vmem:[%s2387 + $0xac] sm:$0xf]
    %v2432 = vld [vmem:[%s2387 + $0xb0] sm:$0xf]
    %v2433 = vld [vmem:[%s2387 + $0xb4] sm:$0xf]
    %v2434 = vld [vmem:[%s2387 + $0xb8] sm:$0xf]
    %v2435 = vld [vmem:[%s2387 + $0xbc] sm:$0xf]
    %v2564 = vunpack.c.l.b16 %v2259
    %v2565 = vunpack.c.h.b16 %v2259
    %v2566 = vunpack.c.l.b16 %v2260
    %v2567 = vunpack.c.l.b16 %v2261
    %v2568 = vunpack.c.h.b16 %v2261
    %v2569 = vunpack.c.l.b16 %v2262
    %v2570 = vunpack.c.l.b16 %v2263
    %v2571 = vunpack.c.h.b16 %v2263
    %v2572 = vunpack.c.l.b16 %v2264
    %v2573 = vunpack.c.l.b16 %v2265
    %v2574 = vunpack.c.h.b16 %v2265
    %v2575 = vunpack.c.l.b16 %v2266
    %v2576 = vunpack.c.l.b16 %v2267
    %v2577 = vunpack.c.h.b16 %v2267
    %v2578 = vunpack.c.l.b16 %v2268
    %v2579 = vunpack.c.l.b16 %v2269
    %v2580 = vunpack.c.h.b16 %v2269
    %v2581 = vunpack.c.l.b16 %v2270
    %v2582 = vunpack.c.l.b16 %v2271
    %v2583 = vunpack.c.h.b16 %v2271
    %v2584 = vunpack.c.l.b16 %v2272
    %v2585 = vunpack.c.l.b16 %v2273
    %v2586 = vunpack.c.h.b16 %v2273
    %v2587 = vunpack.c.l.b16 %v2274
    %v2588 = vunpack.c.l.b16 %v2275
    %v2589 = vunpack.c.h.b16 %v2275
    %v2590 = vunpack.c.l.b16 %v2276
    %v2591 = vunpack.c.l.b16 %v2277
    %v2592 = vunpack.c.h.b16 %v2277
    %v2593 = vunpack.c.l.b16 %v2278
    %v2594 = vunpack.c.l.b16 %v2279
    %v2595 = vunpack.c.h.b16 %v2279
    %v2596 = vunpack.c.l.b16 %v2280
    %v2597 = vunpack.c.l.b16 %v2281
    %v2598 = vunpack.c.h.b16 %v2281
    %v2599 = vunpack.c.l.b16 %v2282
    %v2600 = vunpack.c.l.b16 %v2283
    %v2601 = vunpack.c.h.b16 %v2283
    %v2602 = vunpack.c.l.b16 %v2284
    %v2603 = vunpack.c.l.b16 %v2285
    %v2604 = vunpack.c.h.b16 %v2285
    %v2605 = vunpack.c.l.b16 %v2286
    %v2606 = vunpack.c.l.b16 %v2287
    %v2607 = vunpack.c.h.b16 %v2287
    %v2608 = vunpack.c.l.b16 %v2288
    %v2609 = vunpack.c.l.b16 %v2289
    %v2610 = vunpack.c.h.b16 %v2289
    %v2611 = vunpack.c.l.b16 %v2290
    %v2612 = vunpack.c.l.b16 %v2291
    %v2613 = vunpack.c.h.b16 %v2291
    %v2614 = vunpack.c.l.b16 %v2292
    %v2615 = vunpack.c.l.b16 %v2293
    %v2616 = vunpack.c.h.b16 %v2293
    %v2617 = vunpack.c.l.b16 %v2294
    %v2618 = vunpack.c.l.b16 %v2295
    %v2619 = vunpack.c.h.b16 %v2295
    %v2620 = vunpack.c.l.b16 %v2296
    %v2621 = vunpack.c.l.b16 %v2297
    %v2622 = vunpack.c.h.b16 %v2297
    %v2623 = vunpack.c.l.b16 %v2298
    %v2624 = vunpack.c.l.b16 %v2299
    %v2625 = vunpack.c.h.b16 %v2299
    %v2626 = vunpack.c.l.b16 %v2300
    %v2627 = vunpack.c.l.b16 %v2301
    %v2628 = vunpack.c.h.b16 %v2301
    %v2629 = vunpack.c.l.b16 %v2302
    %v2630 = vunpack.c.l.b16 %v2303
    %v2631 = vunpack.c.h.b16 %v2303
    %v2632 = vunpack.c.l.b16 %v2304
    %v2633 = vunpack.c.l.b16 %v2305
    %v2634 = vunpack.c.h.b16 %v2305
    %v2635 = vunpack.c.l.b16 %v2306
    %v2636 = vunpack.c.l.b16 %v2307
    %v2637 = vunpack.c.h.b16 %v2307
    %v2638 = vunpack.c.l.b16 %v2308
    %v2639 = vunpack.c.l.b16 %v2309
    %v2640 = vunpack.c.h.b16 %v2309
    %v2641 = vunpack.c.l.b16 %v2310
    %v2642 = vunpack.c.l.b16 %v2311
    %v2643 = vunpack.c.h.b16 %v2311
    %v2644 = vunpack.c.l.b16 %v2312
    %v2645 = vunpack.c.l.b16 %v2313
    %v2646 = vunpack.c.h.b16 %v2313
    %v2647 = vunpack.c.l.b16 %v2314
    %v2648 = vunpack.c.l.b16 %v2315
    %v2649 = vunpack.c.h.b16 %v2315
    %v2650 = vunpack.c.l.b16 %v2316
    %v2651 = vunpack.c.l.b16 %v2317
    %v2652 = vunpack.c.h.b16 %v2317
    %v2653 = vunpack.c.l.b16 %v2318
    %v2654 = vunpack.c.l.b16 %v2319
    %v2655 = vunpack.c.h.b16 %v2319
    %v2656 = vunpack.c.l.b16 %v2320
    %v2657 = vunpack.c.l.b16 %v2321
    %v2658 = vunpack.c.h.b16 %v2321
    %v2659 = vunpack.c.l.b16 %v2322
    %v2660 = vunpack.c.l.b16 %v2323
    %v2661 = vunpack.c.h.b16 %v2323
    %v2662 = vunpack.c.l.b16 %v2324
    %v2663 = vunpack.c.l.b16 %v2325
    %v2664 = vunpack.c.h.b16 %v2325
    %v2665 = vunpack.c.l.b16 %v2326
    %v2666 = vunpack.c.l.b16 %v2327
    %v2667 = vunpack.c.h.b16 %v2327
    %v2668 = vunpack.c.l.b16 %v2328
    %v2669 = vunpack.c.l.b16 %v2329
    %v2670 = vunpack.c.h.b16 %v2329
    %v2671 = vunpack.c.l.b16 %v2330
    %v2672 = vunpack.c.l.b16 %v2331
    %v2673 = vunpack.c.h.b16 %v2331
    %v2674 = vunpack.c.l.b16 %v2332
    %v2675 = vunpack.c.l.b16 %v2333
    %v2676 = vunpack.c.h.b16 %v2333
    %v2677 = vunpack.c.l.b16 %v2334
    %v2678 = vunpack.c.l.b16 %v2335
    %v2679 = vunpack.c.h.b16 %v2335
    %v2680 = vunpack.c.l.b16 %v2336
    %v2681 = vunpack.c.l.b16 %v2337
    %v2682 = vunpack.c.h.b16 %v2337
    %v2683 = vunpack.c.l.b16 %v2338
    %v2684 = vunpack.c.l.b16 %v2339
    %v2685 = vunpack.c.h.b16 %v2339
    %v2686 = vunpack.c.l.b16 %v2340
    %v2687 = vunpack.c.l.b16 %v2341
    %v2688 = vunpack.c.h.b16 %v2341
    %v2689 = vunpack.c.l.b16 %v2342
    %v2690 = vunpack.c.l.b16 %v2343
    %v2691 = vunpack.c.h.b16 %v2343
    %v2692 = vunpack.c.l.b16 %v2344
    %v2693 = vunpack.c.l.b16 %v2345
    %v2694 = vunpack.c.h.b16 %v2345
    %v2695 = vunpack.c.l.b16 %v2346
    %v2696 = vunpack.c.l.b16 %v2347
    %v2697 = vunpack.c.h.b16 %v2347
    %v2698 = vunpack.c.l.b16 %v2348
    %v2699 = vunpack.c.l.b16 %v2349
    %v2700 = vunpack.c.h.b16 %v2349
    %v2701 = vunpack.c.l.b16 %v2350
    %v2702 = vunpack.c.l.b16 %v2351
    %v2703 = vunpack.c.h.b16 %v2351
    %v2704 = vunpack.c.l.b16 %v2352
    %v2705 = vunpack.c.l.b16 %v2353
    %v2706 = vunpack.c.h.b16 %v2353
    %v2707 = vunpack.c.l.b16 %v2354
    %v2708 = vunpack.c.l.b16 %v2355
    %v2709 = vunpack.c.h.b16 %v2355
    %v2710 = vunpack.c.l.b16 %v2356
    %v2711 = vunpack.c.l.b16 %v2357
    %v2712 = vunpack.c.h.b16 %v2357
    %v2713 = vunpack.c.l.b16 %v2358
    %v2714 = vunpack.c.l.b16 %v2359
    %v2715 = vunpack.c.h.b16 %v2359
    %v2716 = vunpack.c.l.b16 %v2360
    %v2717 = vunpack.c.l.b16 %v2361
    %v2718 = vunpack.c.h.b16 %v2361
    %v2719 = vunpack.c.l.b16 %v2362
    %v2720 = vunpack.c.l.b16 %v2363
    %v2721 = vunpack.c.h.b16 %v2363
    %v2722 = vunpack.c.l.b16 %v2364
    %v2723 = vunpack.c.l.b16 %v2365
    %v2724 = vunpack.c.h.b16 %v2365
    %v2725 = vunpack.c.l.b16 %v2366
    %v2726 = vunpack.c.l.b16 %v2367
    %v2727 = vunpack.c.h.b16 %v2367
    %v2728 = vunpack.c.l.b16 %v2368
    %v2729 = vunpack.c.l.b16 %v2369
    %v2730 = vunpack.c.h.b16 %v2369
    %v2731 = vunpack.c.l.b16 %v2370
    %v2732 = vunpack.c.l.b16 %v2371
    %v2733 = vunpack.c.h.b16 %v2371
    %v2734 = vunpack.c.l.b16 %v2372
    %v2735 = vunpack.c.l.b16 %v2373
    %v2736 = vunpack.c.h.b16 %v2373
    %v2737 = vunpack.c.l.b16 %v2374
    %v2738 = vunpack.c.l.b16 %v2375
    %v2739 = vunpack.c.h.b16 %v2375
    %v2740 = vunpack.c.l.b16 %v2376
    %v2741 = vunpack.c.l.b16 %v2377
    %v2742 = vunpack.c.h.b16 %v2377
    %v2743 = vunpack.c.l.b16 %v2378
    %v2744 = vunpack.c.l.b16 %v2379
    %v2745 = vunpack.c.h.b16 %v2379
    %v2746 = vunpack.c.l.b16 %v2380
    %v2747 = vunpack.c.l.b16 %v2381
    %v2748 = vunpack.c.h.b16 %v2381
    %v2749 = vunpack.c.l.b16 %v2382
    %v2750 = vunpack.c.l.b16 %v2383
    %v2751 = vunpack.c.h.b16 %v2383
    %v2752 = vunpack.c.l.b16 %v2384
    %v2753 = vunpack.c.l.b16 %v2385
    %v2754 = vunpack.c.h.b16 %v2385
    %v2755 = vunpack.c.l.b16 %v2386
    %v2756 = vpack.c.b16 %v2567, %v2564
    %v2757 = vpack.c.b16 %v2568, %v2565
    %v2758 = vpack.c.b16 %v2569, %v2566
    %v2759 = vpack.c.b16 %v2573, %v2570
    %v2760 = vpack.c.b16 %v2574, %v2571
    %v2761 = vpack.c.b16 %v2575, %v2572
    %v2762 = vpack.c.b16 %v2579, %v2576
    %v2763 = vpack.c.b16 %v2580, %v2577
    %v2764 = vpack.c.b16 %v2581, %v2578
    %v2765 = vpack.c.b16 %v2585, %v2582
    %v2766 = vpack.c.b16 %v2586, %v2583
    %v2767 = vpack.c.b16 %v2587, %v2584
    %v2768 = vpack.c.b16 %v2591, %v2588
    %v2769 = vpack.c.b16 %v2592, %v2589
    %v2770 = vpack.c.b16 %v2593, %v2590
    %v2771 = vpack.c.b16 %v2597, %v2594
    %v2772 = vpack.c.b16 %v2598, %v2595
    %v2773 = vpack.c.b16 %v2599, %v2596
    %v2774 = vpack.c.b16 %v2603, %v2600
    %v2775 = vpack.c.b16 %v2604, %v2601
    %v2776 = vpack.c.b16 %v2605, %v2602
    %v2777 = vpack.c.b16 %v2609, %v2606
    %v2778 = vpack.c.b16 %v2610, %v2607
    %v2779 = vpack.c.b16 %v2611, %v2608
    %v2780 = vpack.c.b16 %v2615, %v2612
    %v2781 = vpack.c.b16 %v2616, %v2613
    %v2782 = vpack.c.b16 %v2617, %v2614
    %v2783 = vpack.c.b16 %v2621, %v2618
    %v2784 = vpack.c.b16 %v2622, %v2619
    %v2785 = vpack.c.b16 %v2623, %v2620
    %v2786 = vpack.c.b16 %v2627, %v2624
    %v2787 = vpack.c.b16 %v2628, %v2625
    %v2788 = vpack.c.b16 %v2629, %v2626
    %v2789 = vpack.c.b16 %v2633, %v2630
    %v2790 = vpack.c.b16 %v2634, %v2631
    %v2791 = vpack.c.b16 %v2635, %v2632
    %v2792 = vpack.c.b16 %v2639, %v2636
    %v2793 = vpack.c.b16 %v2640, %v2637
    %v2794 = vpack.c.b16 %v2641, %v2638
    %v2795 = vpack.c.b16 %v2645, %v2642
    %v2796 = vpack.c.b16 %v2646, %v2643
    %v2797 = vpack.c.b16 %v2647, %v2644
    %v2798 = vpack.c.b16 %v2651, %v2648
    %v2799 = vpack.c.b16 %v2652, %v2649
    %v2800 = vpack.c.b16 %v2653, %v2650
    %v2801 = vpack.c.b16 %v2657, %v2654
    %v2802 = vpack.c.b16 %v2658, %v2655
    %v2803 = vpack.c.b16 %v2659, %v2656
    %v2804 = vpack.c.b16 %v2663, %v2660
    %v2805 = vpack.c.b16 %v2664, %v2661
    %v2806 = vpack.c.b16 %v2665, %v2662
    %v2807 = vpack.c.b16 %v2669, %v2666
    %v2808 = vpack.c.b16 %v2670, %v2667
    %v2809 = vpack.c.b16 %v2671, %v2668
    %v2810 = vpack.c.b16 %v2675, %v2672
    %v2811 = vpack.c.b16 %v2676, %v2673
    %v2812 = vpack.c.b16 %v2677, %v2674
    %v2813 = vpack.c.b16 %v2681, %v2678
    %v2814 = vpack.c.b16 %v2682, %v2679
    %v2815 = vpack.c.b16 %v2683, %v2680
    %v2816 = vpack.c.b16 %v2687, %v2684
    %v2817 = vpack.c.b16 %v2688, %v2685
    %v2818 = vpack.c.b16 %v2689, %v2686
    %v2819 = vpack.c.b16 %v2693, %v2690
    %v2820 = vpack.c.b16 %v2694, %v2691
    %v2821 = vpack.c.b16 %v2695, %v2692
    %v2822 = vpack.c.b16 %v2699, %v2696
    %v2823 = vpack.c.b16 %v2700, %v2697
    %v2824 = vpack.c.b16 %v2701, %v2698
    %v2825 = vpack.c.b16 %v2705, %v2702
    %v2826 = vpack.c.b16 %v2706, %v2703
    %v2827 = vpack.c.b16 %v2707, %v2704
    %v2828 = vpack.c.b16 %v2711, %v2708
    %v2829 = vpack.c.b16 %v2712, %v2709
    %v2830 = vpack.c.b16 %v2713, %v2710
    %v2831 = vpack.c.b16 %v2717, %v2714
    %v2832 = vpack.c.b16 %v2718, %v2715
    %v2833 = vpack.c.b16 %v2719, %v2716
    %v2834 = vpack.c.b16 %v2723, %v2720
    %v2835 = vpack.c.b16 %v2724, %v2721
    %v2836 = vpack.c.b16 %v2725, %v2722
    %v2837 = vpack.c.b16 %v2729, %v2726
    %v2838 = vpack.c.b16 %v2730, %v2727
    %v2839 = vpack.c.b16 %v2731, %v2728
    %v2840 = vpack.c.b16 %v2735, %v2732
    %v2841 = vpack.c.b16 %v2736, %v2733
    %v2842 = vpack.c.b16 %v2737, %v2734
    %v2843 = vpack.c.b16 %v2741, %v2738
    %v2844 = vpack.c.b16 %v2742, %v2739
    %v2845 = vpack.c.b16 %v2743, %v2740
    %v2846 = vpack.c.b16 %v2747, %v2744
    %v2847 = vpack.c.b16 %v2748, %v2745
    %v2848 = vpack.c.b16 %v2749, %v2746
    %v2849 = vpack.c.b16 %v2753, %v2750
    %v2850 = vpack.c.b16 %v2754, %v2751
    %v2851 = vpack.c.b16 %v2755, %v2752
    %v2996 = vunpack.c.l.b16 %v2388
    %v2997 = vunpack.c.l.b16 %v2389
    %v2998 = vunpack.c.l.b16 %v2390
    %v2999 = vunpack.c.l.b16 %v2391
    %v3000 = vunpack.c.l.b16 %v2392
    %v3001 = vunpack.c.l.b16 %v2393
    %v3002 = vunpack.c.l.b16 %v2394
    %v3003 = vunpack.c.l.b16 %v2395
    %v3004 = vunpack.c.l.b16 %v2396
    %v3005 = vunpack.c.l.b16 %v2397
    %v3006 = vunpack.c.l.b16 %v2398
    %v3007 = vunpack.c.l.b16 %v2399
    %v3008 = vunpack.c.l.b16 %v2400
    %v3009 = vunpack.c.l.b16 %v2401
    %v3010 = vunpack.c.l.b16 %v2402
    %v3011 = vunpack.c.l.b16 %v2403
    %v3012 = vunpack.c.l.b16 %v2404
    %v3013 = vunpack.c.l.b16 %v2405
    %v3014 = vunpack.c.l.b16 %v2406
    %v3015 = vunpack.c.l.b16 %v2407
    %v3016 = vunpack.c.l.b16 %v2408
    %v3017 = vunpack.c.l.b16 %v2409
    %v3018 = vunpack.c.l.b16 %v2410
    %v3019 = vunpack.c.l.b16 %v2411
    %v3020 = vunpack.c.l.b16 %v2412
    %v3021 = vunpack.c.l.b16 %v2413
    %v3022 = vunpack.c.l.b16 %v2414
    %v3023 = vunpack.c.l.b16 %v2415
    %v3024 = vunpack.c.l.b16 %v2416
    %v3025 = vunpack.c.l.b16 %v2417
    %v3026 = vunpack.c.l.b16 %v2418
    %v3027 = vunpack.c.l.b16 %v2419
    %v3028 = vunpack.c.l.b16 %v2420
    %v3029 = vunpack.c.l.b16 %v2421
    %v3030 = vunpack.c.l.b16 %v2422
    %v3031 = vunpack.c.l.b16 %v2423
    %v3032 = vunpack.c.l.b16 %v2424
    %v3033 = vunpack.c.l.b16 %v2425
    %v3034 = vunpack.c.l.b16 %v2426
    %v3035 = vunpack.c.l.b16 %v2427
    %v3036 = vunpack.c.l.b16 %v2428
    %v3037 = vunpack.c.l.b16 %v2429
    %v3038 = vunpack.c.l.b16 %v2430
    %v3039 = vunpack.c.l.b16 %v2431
    %v3040 = vunpack.c.l.b16 %v2432
    %v3041 = vunpack.c.l.b16 %v2433
    %v3042 = vunpack.c.l.b16 %v2434
    %v3043 = vunpack.c.l.b16 %v2435
    %v3044 = vpack.c.b16 %v2997, %v2996
    %v3045 = vpack.c.b16 %v2999, %v2998
    %v3046 = vpack.c.b16 %v3001, %v3000
    %v3047 = vpack.c.b16 %v3003, %v3002
    %v3048 = vpack.c.b16 %v3005, %v3004
    %v3049 = vpack.c.b16 %v3007, %v3006
    %v3050 = vpack.c.b16 %v3009, %v3008
    %v3051 = vpack.c.b16 %v3011, %v3010
    %v3052 = vpack.c.b16 %v3013, %v3012
    %v3053 = vpack.c.b16 %v3015, %v3014
    %v3054 = vpack.c.b16 %v3017, %v3016
    %v3055 = vpack.c.b16 %v3019, %v3018
    %v3056 = vpack.c.b16 %v3021, %v3020
    %v3057 = vpack.c.b16 %v3023, %v3022
    %v3058 = vpack.c.b16 %v3025, %v3024
    %v3059 = vpack.c.b16 %v3027, %v3026
    %v3060 = vpack.c.b16 %v3029, %v3028
    %v3061 = vpack.c.b16 %v3031, %v3030
    %v3062 = vpack.c.b16 %v3033, %v3032
    %v3063 = vpack.c.b16 %v3035, %v3034
    %v3064 = vpack.c.b16 %v3037, %v3036
    %v3065 = vpack.c.b16 %v3039, %v3038
    %v3066 = vpack.c.b16 %v3041, %v3040
    %v3067 = vpack.c.b16 %v3043, %v3042
    %3092 = vmatpush.bf16.msra.mxu0 %v3051
    %3093 = vmatpush.bf16.msra.mxu0 %v3050
    %3094 = vmatpush.bf16.msra.mxu0 %v3049
    %3095 = vmatpush.bf16.msra.mxu0 %v3048
    %3096 = vmatpush.bf16.msra.mxu0 %v3047
    %3097 = vmatpush.bf16.msra.mxu0 %v3046
    %3098 = vmatpush.bf16.msra.mxu0 %v3045
    %3099 = vmatpush.bf16.msra.mxu0 %v3044
    %3100 = vmatmul.bf16.gmra.mxu0 %v2756
    %v3101 = vpop.f32.mrf.mxu0
    %v3102 = vadd.f32 0.0, %v3101
    %v3103 = vpop.f32.mrf.mxu0
    %v3104 = vadd.f32 0.0, %v3103
    %3105 = vmatmul.bf16.gmra.mxu0 %v2759
    %v3106 = vpop.f32.mrf.mxu0
    %v3107 = vadd.f32 0.0, %v3106
    %v3108 = vpop.f32.mrf.mxu0
    %v3109 = vadd.f32 0.0, %v3108
    %3110 = vmatmul.bf16.gmra.mxu0 %v2762
    %v3111 = vpop.f32.mrf.mxu0
    %v3112 = vadd.f32 0.0, %v3111
    %v3113 = vpop.f32.mrf.mxu0
    %v3114 = vadd.f32 0.0, %v3113
    %3115 = vmatmul.bf16.gmra.mxu0 %v2765
    %v3116 = vpop.f32.mrf.mxu0
    %v3117 = vadd.f32 0.0, %v3116
    %v3118 = vpop.f32.mrf.mxu0
    %v3119 = vadd.f32 0.0, %v3118
    %3120 = vmatmul.bf16.gmra.mxu0 %v2768
    %v3121 = vpop.f32.mrf.mxu0
    %v3122 = vadd.f32 0.0, %v3121
    %v3123 = vpop.f32.mrf.mxu0
    %v3124 = vadd.f32 0.0, %v3123
    %3125 = vmatmul.bf16.gmra.mxu0 %v2771
    %v3126 = vpop.f32.mrf.mxu0
    %v3127 = vadd.f32 0.0, %v3126
    %v3128 = vpop.f32.mrf.mxu0
    %v3129 = vadd.f32 0.0, %v3128
    %3130 = vmatmul.bf16.gmra.mxu0 %v2774
    %v3131 = vpop.f32.mrf.mxu0
    %v3132 = vadd.f32 0.0, %v3131
    %v3133 = vpop.f32.mrf.mxu0
    %v3134 = vadd.f32 0.0, %v3133
    %3135 = vmatmul.bf16.gmra.mxu0 %v2777
    %v3136 = vpop.f32.mrf.mxu0
    %v3137 = vadd.f32 0.0, %v3136
    %v3138 = vpop.f32.mrf.mxu0
    %v3139 = vadd.f32 0.0, %v3138
    %3140 = vmatmul.bf16.gmra.mxu0 %v2780
    %v3141 = vpop.f32.mrf.mxu0
    %v3142 = vadd.f32 0.0, %v3141
    %v3143 = vpop.f32.mrf.mxu0
    %v3144 = vadd.f32 0.0, %v3143
    %3145 = vmatmul.bf16.gmra.mxu0 %v2783
    %v3146 = vpop.f32.mrf.mxu0
    %v3147 = vadd.f32 0.0, %v3146
    %v3148 = vpop.f32.mrf.mxu0
    %v3149 = vadd.f32 0.0, %v3148
    %3150 = vmatmul.bf16.gmra.mxu0 %v2786
    %v3151 = vpop.f32.mrf.mxu0
    %v3152 = vadd.f32 0.0, %v3151
    %v3153 = vpop.f32.mrf.mxu0
    %v3154 = vadd.f32 0.0, %v3153
    %3155 = vmatmul.bf16.gmra.mxu0 %v2789
    %v3156 = vpop.f32.mrf.mxu0
    %v3157 = vadd.f32 0.0, %v3156
    %v3158 = vpop.f32.mrf.mxu0
    %v3159 = vadd.f32 0.0, %v3158
    %3160 = vmatmul.bf16.gmra.mxu0 %v2792
    %v3161 = vpop.f32.mrf.mxu0
    %v3162 = vadd.f32 0.0, %v3161
    %v3163 = vpop.f32.mrf.mxu0
    %v3164 = vadd.f32 0.0, %v3163
    %3165 = vmatmul.bf16.gmra.mxu0 %v2795
    %v3166 = vpop.f32.mrf.mxu0
    %v3167 = vadd.f32 0.0, %v3166
    %v3168 = vpop.f32.mrf.mxu0
    %v3169 = vadd.f32 0.0, %v3168
    %3170 = vmatmul.bf16.gmra.mxu0 %v2798
    %v3171 = vpop.f32.mrf.mxu0
    %v3172 = vadd.f32 0.0, %v3171
    %v3173 = vpop.f32.mrf.mxu0
    %v3174 = vadd.f32 0.0, %v3173
    %3175 = vmatmul.bf16.gmra.mxu0 %v2801
    %v3176 = vpop.f32.mrf.mxu0
    %v3177 = vadd.f32 0.0, %v3176
    %v3178 = vpop.f32.mrf.mxu0
    %v3179 = vadd.f32 0.0, %v3178
    %3180 = vmatmul.bf16.gmra.mxu0 %v2804
    %v3181 = vpop.f32.mrf.mxu0
    %v3182 = vadd.f32 0.0, %v3181
    %v3183 = vpop.f32.mrf.mxu0
    %v3184 = vadd.f32 0.0, %v3183
    %3185 = vmatmul.bf16.gmra.mxu0 %v2807
    %v3186 = vpop.f32.mrf.mxu0
    %v3187 = vadd.f32 0.0, %v3186
    %v3188 = vpop.f32.mrf.mxu0
    %v3189 = vadd.f32 0.0, %v3188
    %3190 = vmatmul.bf16.gmra.mxu0 %v2810
    %v3191 = vpop.f32.mrf.mxu0
    %v3192 = vadd.f32 0.0, %v3191
    %v3193 = vpop.f32.mrf.mxu0
    %v3194 = vadd.f32 0.0, %v3193
    %3195 = vmatmul.bf16.gmra.mxu0 %v2813
    %v3196 = vpop.f32.mrf.mxu0
    %v3197 = vadd.f32 0.0, %v3196
    %v3198 = vpop.f32.mrf.mxu0
    %v3199 = vadd.f32 0.0, %v3198
    %3200 = vmatmul.bf16.gmra.mxu0 %v2816
    %v3201 = vpop.f32.mrf.mxu0
    %v3202 = vadd.f32 0.0, %v3201
    %v3203 = vpop.f32.mrf.mxu0
    %v3204 = vadd.f32 0.0, %v3203
    %3205 = vmatmul.bf16.gmra.mxu0 %v2819
    %v3206 = vpop.f32.mrf.mxu0
    %v3207 = vadd.f32 0.0, %v3206
    %v3208 = vpop.f32.mrf.mxu0
    %v3209 = vadd.f32 0.0, %v3208
    %3210 = vmatmul.bf16.gmra.mxu0 %v2822
    %v3211 = vpop.f32.mrf.mxu0
    %v3212 = vadd.f32 0.0, %v3211
    %v3213 = vpop.f32.mrf.mxu0
    %v3214 = vadd.f32 0.0, %v3213
    %3215 = vmatmul.bf16.gmra.mxu0 %v2825
    %v3216 = vpop.f32.mrf.mxu0
    %v3217 = vadd.f32 0.0, %v3216
    %v3218 = vpop.f32.mrf.mxu0
    %v3219 = vadd.f32 0.0, %v3218
    %3220 = vmatmul.bf16.gmra.mxu0 %v2828
    %v3221 = vpop.f32.mrf.mxu0
    %v3222 = vadd.f32 0.0, %v3221
    %v3223 = vpop.f32.mrf.mxu0
    %v3224 = vadd.f32 0.0, %v3223
    %3225 = vmatmul.bf16.gmra.mxu0 %v2831
    %v3226 = vpop.f32.mrf.mxu0
    %v3227 = vadd.f32 0.0, %v3226
    %v3228 = vpop.f32.mrf.mxu0
    %v3229 = vadd.f32 0.0, %v3228
    %3230 = vmatmul.bf16.gmra.mxu0 %v2834
    %v3231 = vpop.f32.mrf.mxu0
    %v3232 = vadd.f32 0.0, %v3231
    %v3233 = vpop.f32.mrf.mxu0
    %v3234 = vadd.f32 0.0, %v3233
    %3235 = vmatmul.bf16.gmra.mxu0 %v2837
    %v3236 = vpop.f32.mrf.mxu0
    %v3237 = vadd.f32 0.0, %v3236
    %v3238 = vpop.f32.mrf.mxu0
    %v3239 = vadd.f32 0.0, %v3238
    %3240 = vmatmul.bf16.gmra.mxu0 %v2840
    %v3241 = vpop.f32.mrf.mxu0
    %v3242 = vadd.f32 0.0, %v3241
    %v3243 = vpop.f32.mrf.mxu0
    %v3244 = vadd.f32 0.0, %v3243
    %3245 = vmatmul.bf16.gmra.mxu0 %v2843
    %v3246 = vpop.f32.mrf.mxu0
    %v3247 = vadd.f32 0.0, %v3246
    %v3248 = vpop.f32.mrf.mxu0
    %v3249 = vadd.f32 0.0, %v3248
    %3250 = vmatmul.bf16.gmra.mxu0 %v2846
    %v3251 = vpop.f32.mrf.mxu0
    %v3252 = vadd.f32 0.0, %v3251
    %v3253 = vpop.f32.mrf.mxu0
    %v3254 = vadd.f32 0.0, %v3253
    %3255 = vmatmul.bf16.gmra.mxu0 %v2849
    %v3256 = vpop.f32.mrf.mxu0
    %v3257 = vadd.f32 0.0, %v3256
    %v3258 = vpop.f32.mrf.mxu0
    %v3259 = vadd.f32 0.0, %v3258
    %3260 = vdwg.mxu0
    %3261 = vmatpush.bf16.msra.mxu0 %v3059
    %3262 = vmatpush.bf16.msra.mxu0 %v3058
    %3263 = vmatpush.bf16.msra.mxu0 %v3057
    %3264 = vmatpush.bf16.msra.mxu0 %v3056
    %3265 = vmatpush.bf16.msra.mxu0 %v3055
    %3266 = vmatpush.bf16.msra.mxu0 %v3054
    %3267 = vmatpush.bf16.msra.mxu0 %v3053
    %3268 = vmatpush.bf16.msra.mxu0 %v3052
    %3269 = vmatmul.bf16.gmra.mxu0 %v2757
    %v3270 = vpop.f32.mrf.mxu0
    %v3271 = vadd.f32 %v3102, %v3270
    %v3272 = vpop.f32.mrf.mxu0
    %v3273 = vadd.f32 %v3104, %v3272
    %3274 = vmatmul.bf16.gmra.mxu0 %v2760
    %v3275 = vpop.f32.mrf.mxu0
    %v3276 = vadd.f32 %v3107, %v3275
    %v3277 = vpop.f32.mrf.mxu0
    %v3278 = vadd.f32 %v3109, %v3277
    %3279 = vmatmul.bf16.gmra.mxu0 %v2763
    %v3280 = vpop.f32.mrf.mxu0
    %v3281 = vadd.f32 %v3112, %v3280
    %v3282 = vpop.f32.mrf.mxu0
    %v3283 = vadd.f32 %v3114, %v3282
    %3284 = vmatmul.bf16.gmra.mxu0 %v2766
    %v3285 = vpop.f32.mrf.mxu0
    %v3286 = vadd.f32 %v3117, %v3285
    %v3287 = vpop.f32.mrf.mxu0
    %v3288 = vadd.f32 %v3119, %v3287
    %3289 = vmatmul.bf16.gmra.mxu0 %v2769
    %v3290 = vpop.f32.mrf.mxu0
    %v3291 = vadd.f32 %v3122, %v3290
    %v3292 = vpop.f32.mrf.mxu0
    %v3293 = vadd.f32 %v3124, %v3292
    %3294 = vmatmul.bf16.gmra.mxu0 %v2772
    %v3295 = vpop.f32.mrf.mxu0
    %v3296 = vadd.f32 %v3127, %v3295
    %v3297 = vpop.f32.mrf.mxu0
    %v3298 = vadd.f32 %v3129, %v3297
    %3299 = vmatmul.bf16.gmra.mxu0 %v2775
    %v3300 = vpop.f32.mrf.mxu0
    %v3301 = vadd.f32 %v3132, %v3300
    %v3302 = vpop.f32.mrf.mxu0
    %v3303 = vadd.f32 %v3134, %v3302
    %3304 = vmatmul.bf16.gmra.mxu0 %v2778
    %v3305 = vpop.f32.mrf.mxu0
    %v3306 = vadd.f32 %v3137, %v3305
    %v3307 = vpop.f32.mrf.mxu0
    %v3308 = vadd.f32 %v3139, %v3307
    %3309 = vmatmul.bf16.gmra.mxu0 %v2781
    %v3310 = vpop.f32.mrf.mxu0
    %v3311 = vadd.f32 %v3142, %v3310
    %v3312 = vpop.f32.mrf.mxu0
    %v3313 = vadd.f32 %v3144, %v3312
    %3314 = vmatmul.bf16.gmra.mxu0 %v2784
    %v3315 = vpop.f32.mrf.mxu0
    %v3316 = vadd.f32 %v3147, %v3315
    %v3317 = vpop.f32.mrf.mxu0
    %v3318 = vadd.f32 %v3149, %v3317
    %3319 = vmatmul.bf16.gmra.mxu0 %v2787
    %v3320 = vpop.f32.mrf.mxu0
    %v3321 = vadd.f32 %v3152, %v3320
    %v3322 = vpop.f32.mrf.mxu0
    %v3323 = vadd.f32 %v3154, %v3322
    %3324 = vmatmul.bf16.gmra.mxu0 %v2790
    %v3325 = vpop.f32.mrf.mxu0
    %v3326 = vadd.f32 %v3157, %v3325
    %v3327 = vpop.f32.mrf.mxu0
    %v3328 = vadd.f32 %v3159, %v3327
    %3329 = vmatmul.bf16.gmra.mxu0 %v2793
    %v3330 = vpop.f32.mrf.mxu0
    %v3331 = vadd.f32 %v3162, %v3330
    %v3332 = vpop.f32.mrf.mxu0
    %v3333 = vadd.f32 %v3164, %v3332
    %3334 = vmatmul.bf16.gmra.mxu0 %v2796
    %v3335 = vpop.f32.mrf.mxu0
    %v3336 = vadd.f32 %v3167, %v3335
    %v3337 = vpop.f32.mrf.mxu0
    %v3338 = vadd.f32 %v3169, %v3337
    %3339 = vmatmul.bf16.gmra.mxu0 %v2799
    %v3340 = vpop.f32.mrf.mxu0
    %v3341 = vadd.f32 %v3172, %v3340
    %v3342 = vpop.f32.mrf.mxu0
    %v3343 = vadd.f32 %v3174, %v3342
    %3344 = vmatmul.bf16.gmra.mxu0 %v2802
    %v3345 = vpop.f32.mrf.mxu0
    %v3346 = vadd.f32 %v3177, %v3345
    %v3347 = vpop.f32.mrf.mxu0
    %v3348 = vadd.f32 %v3179, %v3347
    %3349 = vmatmul.bf16.gmra.mxu0 %v2805
    %v3350 = vpop.f32.mrf.mxu0
    %v3351 = vadd.f32 %v3182, %v3350
    %v3352 = vpop.f32.mrf.mxu0
    %v3353 = vadd.f32 %v3184, %v3352
    %3354 = vmatmul.bf16.gmra.mxu0 %v2808
    %v3355 = vpop.f32.mrf.mxu0
    %v3356 = vadd.f32 %v3187, %v3355
    %v3357 = vpop.f32.mrf.mxu0
    %v3358 = vadd.f32 %v3189, %v3357
    %3359 = vmatmul.bf16.gmra.mxu0 %v2811
    %v3360 = vpop.f32.mrf.mxu0
    %v3361 = vadd.f32 %v3192, %v3360
    %v3362 = vpop.f32.mrf.mxu0
    %v3363 = vadd.f32 %v3194, %v3362
    %3364 = vmatmul.bf16.gmra.mxu0 %v2814
    %v3365 = vpop.f32.mrf.mxu0
    %v3366 = vadd.f32 %v3197, %v3365
    %v3367 = vpop.f32.mrf.mxu0
    %v3368 = vadd.f32 %v3199, %v3367
    %3369 = vmatmul.bf16.gmra.mxu0 %v2817
    %v3370 = vpop.f32.mrf.mxu0
    %v3371 = vadd.f32 %v3202, %v3370
    %v3372 = vpop.f32.mrf.mxu0
    %v3373 = vadd.f32 %v3204, %v3372
    %3374 = vmatmul.bf16.gmra.mxu0 %v2820
    %v3375 = vpop.f32.mrf.mxu0
    %v3376 = vadd.f32 %v3207, %v3375
    %v3377 = vpop.f32.mrf.mxu0
    %v3378 = vadd.f32 %v3209, %v3377
    %3379 = vmatmul.bf16.gmra.mxu0 %v2823
    %v3380 = vpop.f32.mrf.mxu0
    %v3381 = vadd.f32 %v3212, %v3380
    %v3382 = vpop.f32.mrf.mxu0
    %v3383 = vadd.f32 %v3214, %v3382
    %3384 = vmatmul.bf16.gmra.mxu0 %v2826
    %v3385 = vpop.f32.mrf.mxu0
    %v3386 = vadd.f32 %v3217, %v3385
    %v3387 = vpop.f32.mrf.mxu0
    %v3388 = vadd.f32 %v3219, %v3387
    %3389 = vmatmul.bf16.gmra.mxu0 %v2829
    %v3390 = vpop.f32.mrf.mxu0
    %v3391 = vadd.f32 %v3222, %v3390
    %v3392 = vpop.f32.mrf.mxu0
    %v3393 = vadd.f32 %v3224, %v3392
    %3394 = vmatmul.bf16.gmra.mxu0 %v2832
    %v3395 = vpop.f32.mrf.mxu0
    %v3396 = vadd.f32 %v3227, %v3395
    %v3397 = vpop.f32.mrf.mxu0
    %v3398 = vadd.f32 %v3229, %v3397
    %3399 = vmatmul.bf16.gmra.mxu0 %v2835
    %v3400 = vpop.f32.mrf.mxu0
    %v3401 = vadd.f32 %v3232, %v3400
    %v3402 = vpop.f32.mrf.mxu0
    %v3403 = vadd.f32 %v3234, %v3402
    %3404 = vmatmul.bf16.gmra.mxu0 %v2838
    %v3405 = vpop.f32.mrf.mxu0
    %v3406 = vadd.f32 %v3237, %v3405
    %v3407 = vpop.f32.mrf.mxu0
    %v3408 = vadd.f32 %v3239, %v3407
    %3409 = vmatmul.bf16.gmra.mxu0 %v2841
    %v3410 = vpop.f32.mrf.mxu0
    %v3411 = vadd.f32 %v3242, %v3410
    %v3412 = vpop.f32.mrf.mxu0
    %v3413 = vadd.f32 %v3244, %v3412
    %3414 = vmatmul.bf16.gmra.mxu0 %v2844
    %v3415 = vpop.f32.mrf.mxu0
    %v3416 = vadd.f32 %v3247, %v3415
    %v3417 = vpop.f32.mrf.mxu0
    %v3418 = vadd.f32 %v3249, %v3417
    %3419 = vmatmul.bf16.gmra.mxu0 %v2847
    %v3420 = vpop.f32.mrf.mxu0
    %v3421 = vadd.f32 %v3252, %v3420
    %v3422 = vpop.f32.mrf.mxu0
    %v3423 = vadd.f32 %v3254, %v3422
    %3424 = vmatmul.bf16.gmra.mxu0 %v2850
    %v3425 = vpop.f32.mrf.mxu0
    %v3426 = vadd.f32 %v3257, %v3425
    %v3427 = vpop.f32.mrf.mxu0
    %v3428 = vadd.f32 %v3259, %v3427
    %3429 = vdwg.mxu0
    %3430 = vmatpush.bf16.msra.mxu0 %v3067
    %3431 = vmatpush.bf16.msra.mxu0 %v3066
    %3432 = vmatpush.bf16.msra.mxu0 %v3065
    %3433 = vmatpush.bf16.msra.mxu0 %v3064
    %3434 = vmatpush.bf16.msra.mxu0 %v3063
    %3435 = vmatpush.bf16.msra.mxu0 %v3062
    %3436 = vmatpush.bf16.msra.mxu0 %v3061
    %3437 = vmatpush.bf16.msra.mxu0 %v3060
    %3438 = vmatmul.bf16.gmra.mxu0 %v2758
    %v3439 = vpop.f32.mrf.mxu0
    %v3440 = vadd.f32 %v3271, %v3439
    %v3441 = vpop.f32.mrf.mxu0
    %v3442 = vadd.f32 %v3273, %v3441
    %3443 = vmatmul.bf16.gmra.mxu0 %v2761
    %v3444 = vpop.f32.mrf.mxu0
    %v3445 = vadd.f32 %v3276, %v3444
    %v3446 = vpop.f32.mrf.mxu0
    %v3447 = vadd.f32 %v3278, %v3446
    %3448 = vmatmul.bf16.gmra.mxu0 %v2764
    %v3449 = vpop.f32.mrf.mxu0
    %v3450 = vadd.f32 %v3281, %v3449
    %v3451 = vpop.f32.mrf.mxu0
    %v3452 = vadd.f32 %v3283, %v3451
    %3453 = vmatmul.bf16.gmra.mxu0 %v2767
    %v3454 = vpop.f32.mrf.mxu0
    %v3455 = vadd.f32 %v3286, %v3454
    %v3456 = vpop.f32.mrf.mxu0
    %v3457 = vadd.f32 %v3288, %v3456
    %3458 = vmatmul.bf16.gmra.mxu0 %v2770
    %v3459 = vpop.f32.mrf.mxu0
    %v3460 = vadd.f32 %v3291, %v3459
    %v3461 = vpop.f32.mrf.mxu0
    %v3462 = vadd.f32 %v3293, %v3461
    %3463 = vmatmul.bf16.gmra.mxu0 %v2773
    %v3464 = vpop.f32.mrf.mxu0
    %v3465 = vadd.f32 %v3296, %v3464
    %v3466 = vpop.f32.mrf.mxu0
    %v3467 = vadd.f32 %v3298, %v3466
    %3468 = vmatmul.bf16.gmra.mxu0 %v2776
    %v3469 = vpop.f32.mrf.mxu0
    %v3470 = vadd.f32 %v3301, %v3469
    %v3471 = vpop.f32.mrf.mxu0
    %v3472 = vadd.f32 %v3303, %v3471
    %3473 = vmatmul.bf16.gmra.mxu0 %v2779
    %v3474 = vpop.f32.mrf.mxu0
    %v3475 = vadd.f32 %v3306, %v3474
    %v3476 = vpop.f32.mrf.mxu0
    %v3477 = vadd.f32 %v3308, %v3476
    %3478 = vmatmul.bf16.gmra.mxu0 %v2782
    %v3479 = vpop.f32.mrf.mxu0
    %v3480 = vadd.f32 %v3311, %v3479
    %v3481 = vpop.f32.mrf.mxu0
    %v3482 = vadd.f32 %v3313, %v3481
    %3483 = vmatmul.bf16.gmra.mxu0 %v2785
    %v3484 = vpop.f32.mrf.mxu0
    %v3485 = vadd.f32 %v3316, %v3484
    %v3486 = vpop.f32.mrf.mxu0
    %v3487 = vadd.f32 %v3318, %v3486
    %3488 = vmatmul.bf16.gmra.mxu0 %v2788
    %v3489 = vpop.f32.mrf.mxu0
    %v3490 = vadd.f32 %v3321, %v3489
    %v3491 = vpop.f32.mrf.mxu0
    %v3492 = vadd.f32 %v3323, %v3491
    %3493 = vmatmul.bf16.gmra.mxu0 %v2791
    %v3494 = vpop.f32.mrf.mxu0
    %v3495 = vadd.f32 %v3326, %v3494
    %v3496 = vpop.f32.mrf.mxu0
    %v3497 = vadd.f32 %v3328, %v3496
    %3498 = vmatmul.bf16.gmra.mxu0 %v2794
    %v3499 = vpop.f32.mrf.mxu0
    %v3500 = vadd.f32 %v3331, %v3499
    %v3501 = vpop.f32.mrf.mxu0
    %v3502 = vadd.f32 %v3333, %v3501
    %3503 = vmatmul.bf16.gmra.mxu0 %v2797
    %v3504 = vpop.f32.mrf.mxu0
    %v3505 = vadd.f32 %v3336, %v3504
    %v3506 = vpop.f32.mrf.mxu0
    %v3507 = vadd.f32 %v3338, %v3506
    %3508 = vmatmul.bf16.gmra.mxu0 %v2800
    %v3509 = vpop.f32.mrf.mxu0
    %v3510 = vadd.f32 %v3341, %v3509
    %v3511 = vpop.f32.mrf.mxu0
    %v3512 = vadd.f32 %v3343, %v3511
    %3513 = vmatmul.bf16.gmra.mxu0 %v2803
    %v3514 = vpop.f32.mrf.mxu0
    %v3515 = vadd.f32 %v3346, %v3514
    %v3516 = vpop.f32.mrf.mxu0
    %v3517 = vadd.f32 %v3348, %v3516
    %3518 = vmatmul.bf16.gmra.mxu0 %v2806
    %v3519 = vpop.f32.mrf.mxu0
    %v3520 = vadd.f32 %v3351, %v3519
    %v3521 = vpop.f32.mrf.mxu0
    %v3522 = vadd.f32 %v3353, %v3521
    %3523 = vmatmul.bf16.gmra.mxu0 %v2809
    %v3524 = vpop.f32.mrf.mxu0
    %v3525 = vadd.f32 %v3356, %v3524
    %v3526 = vpop.f32.mrf.mxu0
    %v3527 = vadd.f32 %v3358, %v3526
    %3528 = vmatmul.bf16.gmra.mxu0 %v2812
    %v3529 = vpop.f32.mrf.mxu0
    %v3530 = vadd.f32 %v3361, %v3529
    %v3531 = vpop.f32.mrf.mxu0
    %v3532 = vadd.f32 %v3363, %v3531
    %3533 = vmatmul.bf16.gmra.mxu0 %v2815
    %v3534 = vpop.f32.mrf.mxu0
    %v3535 = vadd.f32 %v3366, %v3534
    %v3536 = vpop.f32.mrf.mxu0
    %v3537 = vadd.f32 %v3368, %v3536
    %3538 = vmatmul.bf16.gmra.mxu0 %v2818
    %v3539 = vpop.f32.mrf.mxu0
    %v3540 = vadd.f32 %v3371, %v3539
    %v3541 = vpop.f32.mrf.mxu0
    %v3542 = vadd.f32 %v3373, %v3541
    %3543 = vmatmul.bf16.gmra.mxu0 %v2821
    %v3544 = vpop.f32.mrf.mxu0
    %v3545 = vadd.f32 %v3376, %v3544
    %v3546 = vpop.f32.mrf.mxu0
    %v3547 = vadd.f32 %v3378, %v3546
    %3548 = vmatmul.bf16.gmra.mxu0 %v2824
    %v3549 = vpop.f32.mrf.mxu0
    %v3550 = vadd.f32 %v3381, %v3549
    %v3551 = vpop.f32.mrf.mxu0
    %v3552 = vadd.f32 %v3383, %v3551
    %3553 = vmatmul.bf16.gmra.mxu0 %v2827
    %v3554 = vpop.f32.mrf.mxu0
    %v3555 = vadd.f32 %v3386, %v3554
    %v3556 = vpop.f32.mrf.mxu0
    %v3557 = vadd.f32 %v3388, %v3556
    %3558 = vmatmul.bf16.gmra.mxu0 %v2830
    %v3559 = vpop.f32.mrf.mxu0
    %v3560 = vadd.f32 %v3391, %v3559
    %v3561 = vpop.f32.mrf.mxu0
    %v3562 = vadd.f32 %v3393, %v3561
    %3563 = vmatmul.bf16.gmra.mxu0 %v2833
    %v3564 = vpop.f32.mrf.mxu0
    %v3565 = vadd.f32 %v3396, %v3564
    %v3566 = vpop.f32.mrf.mxu0
    %v3567 = vadd.f32 %v3398, %v3566
    %3568 = vmatmul.bf16.gmra.mxu0 %v2836
    %v3569 = vpop.f32.mrf.mxu0
    %v3570 = vadd.f32 %v3401, %v3569
    %v3571 = vpop.f32.mrf.mxu0
    %v3572 = vadd.f32 %v3403, %v3571
    %3573 = vmatmul.bf16.gmra.mxu0 %v2839
    %v3574 = vpop.f32.mrf.mxu0
    %v3575 = vadd.f32 %v3406, %v3574
    %v3576 = vpop.f32.mrf.mxu0
    %v3577 = vadd.f32 %v3408, %v3576
    %3578 = vmatmul.bf16.gmra.mxu0 %v2842
    %v3579 = vpop.f32.mrf.mxu0
    %v3580 = vadd.f32 %v3411, %v3579
    %v3581 = vpop.f32.mrf.mxu0
    %v3582 = vadd.f32 %v3413, %v3581
    %3583 = vmatmul.bf16.gmra.mxu0 %v2845
    %v3584 = vpop.f32.mrf.mxu0
    %v3585 = vadd.f32 %v3416, %v3584
    %v3586 = vpop.f32.mrf.mxu0
    %v3587 = vadd.f32 %v3418, %v3586
    %3588 = vmatmul.bf16.gmra.mxu0 %v2848
    %v3589 = vpop.f32.mrf.mxu0
    %v3590 = vadd.f32 %v3421, %v3589
    %v3591 = vpop.f32.mrf.mxu0
    %v3592 = vadd.f32 %v3423, %v3591
    %3593 = vmatmul.bf16.gmra.mxu0 %v2851
    %v3594 = vpop.f32.mrf.mxu0
    %v3595 = vadd.f32 %v3426, %v3594
    %v3596 = vpop.f32.mrf.mxu0
    %v3597 = vadd.f32 %v3428, %v3596
    %3598 = vdwg.mxu0
    %v3727 = vunpack.c.l.b16 %v2083
    %v3728 = vunpack.c.h.b16 %v2083
    %v3729 = vunpack.c.l.b16 %v2084
    %v3730 = vunpack.c.l.b16 %v2085
    %v3731 = vunpack.c.h.b16 %v2085
    %v3732 = vunpack.c.l.b16 %v2086
    %v3733 = vunpack.c.l.b16 %v2087
    %v3734 = vunpack.c.h.b16 %v2087
    %v3735 = vunpack.c.l.b16 %v2088
    %v3736 = vunpack.c.l.b16 %v2089
    %v3737 = vunpack.c.h.b16 %v2089
    %v3738 = vunpack.c.l.b16 %v2090
    %v3739 = vunpack.c.l.b16 %v2091
    %v3740 = vunpack.c.h.b16 %v2091
    %v3741 = vunpack.c.l.b16 %v2092
    %v3742 = vunpack.c.l.b16 %v2093
    %v3743 = vunpack.c.h.b16 %v2093
    %v3744 = vunpack.c.l.b16 %v2094
    %v3745 = vunpack.c.l.b16 %v2095
    %v3746 = vunpack.c.h.b16 %v2095
    %v3747 = vunpack.c.l.b16 %v2096
    %v3748 = vunpack.c.l.b16 %v2097
    %v3749 = vunpack.c.h.b16 %v2097
    %v3750 = vunpack.c.l.b16 %v2098
    %v3751 = vunpack.c.l.b16 %v2099
    %v3752 = vunpack.c.h.b16 %v2099
    %v3753 = vunpack.c.l.b16 %v2100
    %v3754 = vunpack.c.l.b16 %v2101
    %v3755 = vunpack.c.h.b16 %v2101
    %v3756 = vunpack.c.l.b16 %v2102
    %v3757 = vunpack.c.l.b16 %v2103
    %v3758 = vunpack.c.h.b16 %v2103
    %v3759 = vunpack.c.l.b16 %v2104
    %v3760 = vunpack.c.l.b16 %v2105
    %v3761 = vunpack.c.h.b16 %v2105
    %v3762 = vunpack.c.l.b16 %v2106
    %v3763 = vunpack.c.l.b16 %v2107
    %v3764 = vunpack.c.h.b16 %v2107
    %v3765 = vunpack.c.l.b16 %v2108
    %v3766 = vunpack.c.l.b16 %v2109
    %v3767 = vunpack.c.h.b16 %v2109
    %v3768 = vunpack.c.l.b16 %v2110
    %v3769 = vunpack.c.l.b16 %v2111
    %v3770 = vunpack.c.h.b16 %v2111
    %v3771 = vunpack.c.l.b16 %v2112
    %v3772 = vunpack.c.l.b16 %v2113
    %v3773 = vunpack.c.h.b16 %v2113
    %v3774 = vunpack.c.l.b16 %v2114
    %v3775 = vunpack.c.l.b16 %v2115
    %v3776 = vunpack.c.h.b16 %v2115
    %v3777 = vunpack.c.l.b16 %v2116
    %v3778 = vunpack.c.l.b16 %v2117
    %v3779 = vunpack.c.h.b16 %v2117
    %v3780 = vunpack.c.l.b16 %v2118
    %v3781 = vunpack.c.l.b16 %v2119
    %v3782 = vunpack.c.h.b16 %v2119
    %v3783 = vunpack.c.l.b16 %v2120
    %v3784 = vunpack.c.l.b16 %v2121
    %v3785 = vunpack.c.h.b16 %v2121
    %v3786 = vunpack.c.l.b16 %v2122
    %v3787 = vunpack.c.l.b16 %v2123
    %v3788 = vunpack.c.h.b16 %v2123
    %v3789 = vunpack.c.l.b16 %v2124
    %v3790 = vunpack.c.l.b16 %v2125
    %v3791 = vunpack.c.h.b16 %v2125
    %v3792 = vunpack.c.l.b16 %v2126
    %v3793 = vunpack.c.l.b16 %v2127
    %v3794 = vunpack.c.h.b16 %v2127
    %v3795 = vunpack.c.l.b16 %v2128
    %v3796 = vunpack.c.l.b16 %v2129
    %v3797 = vunpack.c.h.b16 %v2129
    %v3798 = vunpack.c.l.b16 %v2130
    %v3799 = vunpack.c.l.b16 %v2131
    %v3800 = vunpack.c.h.b16 %v2131
    %v3801 = vunpack.c.l.b16 %v2132
    %v3802 = vunpack.c.l.b16 %v2133
    %v3803 = vunpack.c.h.b16 %v2133
    %v3804 = vunpack.c.l.b16 %v2134
    %v3805 = vunpack.c.l.b16 %v2135
    %v3806 = vunpack.c.h.b16 %v2135
    %v3807 = vunpack.c.l.b16 %v2136
    %v3808 = vunpack.c.l.b16 %v2137
    %v3809 = vunpack.c.h.b16 %v2137
    %v3810 = vunpack.c.l.b16 %v2138
    %v3811 = vunpack.c.l.b16 %v2139
    %v3812 = vunpack.c.h.b16 %v2139
    %v3813 = vunpack.c.l.b16 %v2140
    %v3814 = vunpack.c.l.b16 %v2141
    %v3815 = vunpack.c.h.b16 %v2141
    %v3816 = vunpack.c.l.b16 %v2142
    %v3817 = vunpack.c.l.b16 %v2143
    %v3818 = vunpack.c.h.b16 %v2143
    %v3819 = vunpack.c.l.b16 %v2144
    %v3820 = vunpack.c.l.b16 %v2145
    %v3821 = vunpack.c.h.b16 %v2145
    %v3822 = vunpack.c.l.b16 %v2146
    %v3823 = vunpack.c.l.b16 %v2147
    %v3824 = vunpack.c.h.b16 %v2147
    %v3825 = vunpack.c.l.b16 %v2148
    %v3826 = vunpack.c.l.b16 %v2149
    %v3827 = vunpack.c.h.b16 %v2149
    %v3828 = vunpack.c.l.b16 %v2150
    %v3829 = vunpack.c.l.b16 %v2151
    %v3830 = vunpack.c.h.b16 %v2151
    %v3831 = vunpack.c.l.b16 %v2152
    %v3832 = vunpack.c.l.b16 %v2153
    %v3833 = vunpack.c.h.b16 %v2153
    %v3834 = vunpack.c.l.b16 %v2154
    %v3835 = vunpack.c.l.b16 %v2155
    %v3836 = vunpack.c.h.b16 %v2155
    %v3837 = vunpack.c.l.b16 %v2156
    %v3838 = vunpack.c.l.b16 %v2157
    %v3839 = vunpack.c.h.b16 %v2157
    %v3840 = vunpack.c.l.b16 %v2158
    %v3841 = vunpack.c.l.b16 %v2159
    %v3842 = vunpack.c.h.b16 %v2159
    %v3843 = vunpack.c.l.b16 %v2160
    %v3844 = vunpack.c.l.b16 %v2161
    %v3845 = vunpack.c.h.b16 %v2161
    %v3846 = vunpack.c.l.b16 %v2162
    %v3847 = vunpack.c.l.b16 %v2163
    %v3848 = vunpack.c.h.b16 %v2163
    %v3849 = vunpack.c.l.b16 %v2164
    %v3850 = vunpack.c.l.b16 %v2165
    %v3851 = vunpack.c.h.b16 %v2165
    %v3852 = vunpack.c.l.b16 %v2166
    %v3853 = vunpack.c.l.b16 %v2167
    %v3854 = vunpack.c.h.b16 %v2167
    %v3855 = vunpack.c.l.b16 %v2168
    %v3856 = vunpack.c.l.b16 %v2169
    %v3857 = vunpack.c.h.b16 %v2169
    %v3858 = vunpack.c.l.b16 %v2170
    %v3859 = vunpack.c.l.b16 %v2171
    %v3860 = vunpack.c.h.b16 %v2171
    %v3861 = vunpack.c.l.b16 %v2172
    %v3862 = vunpack.c.l.b16 %v2173
    %v3863 = vunpack.c.h.b16 %v2173
    %v3864 = vunpack.c.l.b16 %v2174
    %v3865 = vunpack.c.l.b16 %v2175
    %v3866 = vunpack.c.h.b16 %v2175
    %v3867 = vunpack.c.l.b16 %v2176
    %v3868 = vunpack.c.l.b16 %v2177
    %v3869 = vunpack.c.h.b16 %v2177
    %v3870 = vunpack.c.l.b16 %v2178
    %v3871 = vunpack.c.l.b16 %v2179
    %v3872 = vunpack.c.h.b16 %v2179
    %v3873 = vunpack.c.l.b16 %v2180
    %v3874 = vunpack.c.l.b16 %v2181
    %v3875 = vunpack.c.h.b16 %v2181
    %v3876 = vunpack.c.l.b16 %v2182
    %v3877 = vunpack.c.l.b16 %v2183
    %v3878 = vunpack.c.h.b16 %v2183
    %v3879 = vunpack.c.l.b16 %v2184
    %v3880 = vunpack.c.l.b16 %v2185
    %v3881 = vunpack.c.h.b16 %v2185
    %v3882 = vunpack.c.l.b16 %v2186
    %v3883 = vunpack.c.l.b16 %v2187
    %v3884 = vunpack.c.h.b16 %v2187
    %v3885 = vunpack.c.l.b16 %v2188
    %v3886 = vunpack.c.l.b16 %v2189
    %v3887 = vunpack.c.h.b16 %v2189
    %v3888 = vunpack.c.l.b16 %v2190
    %v3889 = vunpack.c.l.b16 %v2191
    %v3890 = vunpack.c.h.b16 %v2191
    %v3891 = vunpack.c.l.b16 %v2192
    %v3892 = vunpack.c.l.b16 %v2193
    %v3893 = vunpack.c.h.b16 %v2193
    %v3894 = vunpack.c.l.b16 %v2194
    %v3895 = vunpack.c.l.b16 %v2195
    %v3896 = vunpack.c.h.b16 %v2195
    %v3897 = vunpack.c.l.b16 %v2196
    %v3898 = vunpack.c.l.b16 %v2197
    %v3899 = vunpack.c.h.b16 %v2197
    %v3900 = vunpack.c.l.b16 %v2198
    %v3901 = vunpack.c.l.b16 %v2199
    %v3902 = vunpack.c.h.b16 %v2199
    %v3903 = vunpack.c.l.b16 %v2200
    %v3904 = vunpack.c.l.b16 %v2201
    %v3905 = vunpack.c.h.b16 %v2201
    %v3906 = vunpack.c.l.b16 %v2202
    %v3907 = vunpack.c.l.b16 %v2203
    %v3908 = vunpack.c.h.b16 %v2203
    %v3909 = vunpack.c.l.b16 %v2204
    %v3910 = vunpack.c.l.b16 %v2205
    %v3911 = vunpack.c.h.b16 %v2205
    %v3912 = vunpack.c.l.b16 %v2206
    %v3913 = vunpack.c.l.b16 %v2207
    %v3914 = vunpack.c.h.b16 %v2207
    %v3915 = vunpack.c.l.b16 %v2208
    %v3916 = vunpack.c.l.b16 %v2209
    %v3917 = vunpack.c.h.b16 %v2209
    %v3918 = vunpack.c.l.b16 %v2210
    %v3919 = vpack.c.b16 %v3730, %v3727
    %v3920 = vpack.c.b16 %v3731, %v3728
    %v3921 = vpack.c.b16 %v3732, %v3729
    %v3922 = vpack.c.b16 %v3736, %v3733
    %v3923 = vpack.c.b16 %v3737, %v3734
    %v3924 = vpack.c.b16 %v3738, %v3735
    %v3925 = vpack.c.b16 %v3742, %v3739
    %v3926 = vpack.c.b16 %v3743, %v3740
    %v3927 = vpack.c.b16 %v3744, %v3741
    %v3928 = vpack.c.b16 %v3748, %v3745
    %v3929 = vpack.c.b16 %v3749, %v3746
    %v3930 = vpack.c.b16 %v3750, %v3747
    %v3931 = vpack.c.b16 %v3754, %v3751
    %v3932 = vpack.c.b16 %v3755, %v3752
    %v3933 = vpack.c.b16 %v3756, %v3753
    %v3934 = vpack.c.b16 %v3760, %v3757
    %v3935 = vpack.c.b16 %v3761, %v3758
    %v3936 = vpack.c.b16 %v3762, %v3759
    %v3937 = vpack.c.b16 %v3766, %v3763
    %v3938 = vpack.c.b16 %v3767, %v3764
    %v3939 = vpack.c.b16 %v3768, %v3765
    %v3940 = vpack.c.b16 %v3772, %v3769
    %v3941 = vpack.c.b16 %v3773, %v3770
    %v3942 = vpack.c.b16 %v3774, %v3771
    %v3943 = vpack.c.b16 %v3778, %v3775
    %v3944 = vpack.c.b16 %v3779, %v3776
    %v3945 = vpack.c.b16 %v3780, %v3777
    %v3946 = vpack.c.b16 %v3784, %v3781
    %v3947 = vpack.c.b16 %v3785, %v3782
    %v3948 = vpack.c.b16 %v3786, %v3783
    %v3949 = vpack.c.b16 %v3790, %v3787
    %v3950 = vpack.c.b16 %v3791, %v3788
    %v3951 = vpack.c.b16 %v3792, %v3789
    %v3952 = vpack.c.b16 %v3796, %v3793
    %v3953 = vpack.c.b16 %v3797, %v3794
    %v3954 = vpack.c.b16 %v3798, %v3795
    %v3955 = vpack.c.b16 %v3802, %v3799
    %v3956 = vpack.c.b16 %v3803, %v3800
    %v3957 = vpack.c.b16 %v3804, %v3801
    %v3958 = vpack.c.b16 %v3808, %v3805
    %v3959 = vpack.c.b16 %v3809, %v3806
    %v3960 = vpack.c.b16 %v3810, %v3807
    %v3961 = vpack.c.b16 %v3814, %v3811
    %v3962 = vpack.c.b16 %v3815, %v3812
    %v3963 = vpack.c.b16 %v3816, %v3813
    %v3964 = vpack.c.b16 %v3820, %v3817
    %v3965 = vpack.c.b16 %v3821, %v3818
    %v3966 = vpack.c.b16 %v3822, %v3819
    %v3967 = vpack.c.b16 %v3826, %v3823
    %v3968 = vpack.c.b16 %v3827, %v3824
    %v3969 = vpack.c.b16 %v3828, %v3825
    %v3970 = vpack.c.b16 %v3832, %v3829
    %v3971 = vpack.c.b16 %v3833, %v3830
    %v3972 = vpack.c.b16 %v3834, %v3831
    %v3973 = vpack.c.b16 %v3838, %v3835
    %v3974 = vpack.c.b16 %v3839, %v3836
    %v3975 = vpack.c.b16 %v3840, %v3837
    %v3976 = vpack.c.b16 %v3844, %v3841
    %v3977 = vpack.c.b16 %v3845, %v3842
    %v3978 = vpack.c.b16 %v3846, %v3843
    %v3979 = vpack.c.b16 %v3850, %v3847
    %v3980 = vpack.c.b16 %v3851, %v3848
    %v3981 = vpack.c.b16 %v3852, %v3849
    %v3982 = vpack.c.b16 %v3856, %v3853
    %v3983 = vpack.c.b16 %v3857, %v3854
    %v3984 = vpack.c.b16 %v3858, %v3855
    %v3985 = vpack.c.b16 %v3862, %v3859
    %v3986 = vpack.c.b16 %v3863, %v3860
    %v3987 = vpack.c.b16 %v3864, %v3861
    %v3988 = vpack.c.b16 %v3868, %v3865
    %v3989 = vpack.c.b16 %v3869, %v3866
    %v3990 = vpack.c.b16 %v3870, %v3867
    %v3991 = vpack.c.b16 %v3874, %v3871
    %v3992 = vpack.c.b16 %v3875, %v3872
    %v3993 = vpack.c.b16 %v3876, %v3873
    %v3994 = vpack.c.b16 %v3880, %v3877
    %v3995 = vpack.c.b16 %v3881, %v3878
    %v3996 = vpack.c.b16 %v3882, %v3879
    %v3997 = vpack.c.b16 %v3886, %v3883
    %v3998 = vpack.c.b16 %v3887, %v3884
    %v3999 = vpack.c.b16 %v3888, %v3885
    %v4000 = vpack.c.b16 %v3892, %v3889
    %v4001 = vpack.c.b16 %v3893, %v3890
    %v4002 = vpack.c.b16 %v3894, %v3891
    %v4003 = vpack.c.b16 %v3898, %v3895
    %v4004 = vpack.c.b16 %v3899, %v3896
    %v4005 = vpack.c.b16 %v3900, %v3897
    %v4006 = vpack.c.b16 %v3904, %v3901
    %v4007 = vpack.c.b16 %v3905, %v3902
    %v4008 = vpack.c.b16 %v3906, %v3903
    %v4009 = vpack.c.b16 %v3910, %v3907
    %v4010 = vpack.c.b16 %v3911, %v3908
    %v4011 = vpack.c.b16 %v3912, %v3909
    %v4012 = vpack.c.b16 %v3916, %v3913
    %v4013 = vpack.c.b16 %v3917, %v3914
    %v4014 = vpack.c.b16 %v3918, %v3915
    %v4159 = vunpack.c.l.b16 %v2211
    %v4160 = vunpack.c.l.b16 %v2212
    %v4161 = vunpack.c.l.b16 %v2213
    %v4162 = vunpack.c.l.b16 %v2214
    %v4163 = vunpack.c.l.b16 %v2215
    %v4164 = vunpack.c.l.b16 %v2216
    %v4165 = vunpack.c.l.b16 %v2217
    %v4166 = vunpack.c.l.b16 %v2218
    %v4167 = vunpack.c.l.b16 %v2219
    %v4168 = vunpack.c.l.b16 %v2220
    %v4169 = vunpack.c.l.b16 %v2221
    %v4170 = vunpack.c.l.b16 %v2222
    %v4171 = vunpack.c.l.b16 %v2223
    %v4172 = vunpack.c.l.b16 %v2224
    %v4173 = vunpack.c.l.b16 %v2225
    %v4174 = vunpack.c.l.b16 %v2226
    %v4175 = vunpack.c.l.b16 %v2227
    %v4176 = vunpack.c.l.b16 %v2228
    %v4177 = vunpack.c.l.b16 %v2229
    %v4178 = vunpack.c.l.b16 %v2230
    %v4179 = vunpack.c.l.b16 %v2231
    %v4180 = vunpack.c.l.b16 %v2232
    %v4181 = vunpack.c.l.b16 %v2233
    %v4182 = vunpack.c.l.b16 %v2234
    %v4183 = vunpack.c.l.b16 %v2235
    %v4184 = vunpack.c.l.b16 %v2236
    %v4185 = vunpack.c.l.b16 %v2237
    %v4186 = vunpack.c.l.b16 %v2238
    %v4187 = vunpack.c.l.b16 %v2239
    %v4188 = vunpack.c.l.b16 %v2240
    %v4189 = vunpack.c.l.b16 %v2241
    %v4190 = vunpack.c.l.b16 %v2242
    %v4191 = vunpack.c.l.b16 %v2243
    %v4192 = vunpack.c.l.b16 %v2244
    %v4193 = vunpack.c.l.b16 %v2245
    %v4194 = vunpack.c.l.b16 %v2246
    %v4195 = vunpack.c.l.b16 %v2247
    %v4196 = vunpack.c.l.b16 %v2248
    %v4197 = vunpack.c.l.b16 %v2249
    %v4198 = vunpack.c.l.b16 %v2250
    %v4199 = vunpack.c.l.b16 %v2251
    %v4200 = vunpack.c.l.b16 %v2252
    %v4201 = vunpack.c.l.b16 %v2253
    %v4202 = vunpack.c.l.b16 %v2254
    %v4203 = vunpack.c.l.b16 %v2255
    %v4204 = vunpack.c.l.b16 %v2256
    %v4205 = vunpack.c.l.b16 %v2257
    %v4206 = vunpack.c.l.b16 %v2258
    %v4207 = vpack.c.b16 %v4160, %v4159
    %v4208 = vpack.c.b16 %v4162, %v4161
    %v4209 = vpack.c.b16 %v4164, %v4163
    %v4210 = vpack.c.b16 %v4166, %v4165
    %v4211 = vpack.c.b16 %v4168, %v4167
    %v4212 = vpack.c.b16 %v4170, %v4169
    %v4213 = vpack.c.b16 %v4172, %v4171
    %v4214 = vpack.c.b16 %v4174, %v4173
    %v4215 = vpack.c.b16 %v4176, %v4175
    %v4216 = vpack.c.b16 %v4178, %v4177
    %v4217 = vpack.c.b16 %v4180, %v4179
    %v4218 = vpack.c.b16 %v4182, %v4181
    %v4219 = vpack.c.b16 %v4184, %v4183
    %v4220 = vpack.c.b16 %v4186, %v4185
    %v4221 = vpack.c.b16 %v4188, %v4187
    %v4222 = vpack.c.b16 %v4190, %v4189
    %v4223 = vpack.c.b16 %v4192, %v4191
    %v4224 = vpack.c.b16 %v4194, %v4193
    %v4225 = vpack.c.b16 %v4196, %v4195
    %v4226 = vpack.c.b16 %v4198, %v4197
    %v4227 = vpack.c.b16 %v4200, %v4199
    %v4228 = vpack.c.b16 %v4202, %v4201
    %v4229 = vpack.c.b16 %v4204, %v4203
    %v4230 = vpack.c.b16 %v4206, %v4205
    %4255 = vmatpush.bf16.msra.mxu0 %v4214
    %4256 = vmatpush.bf16.msra.mxu0 %v4213
    %4257 = vmatpush.bf16.msra.mxu0 %v4212
    %4258 = vmatpush.bf16.msra.mxu0 %v4211
    %4259 = vmatpush.bf16.msra.mxu0 %v4210
    %4260 = vmatpush.bf16.msra.mxu0 %v4209
    %4261 = vmatpush.bf16.msra.mxu0 %v4208
    %4262 = vmatpush.bf16.msra.mxu0 %v4207
    %4263 = vmatmul.bf16.gmra.mxu0 %v3919
    %v4264 = vpop.f32.mrf.mxu0
    %v4265 = vadd.f32 %v3440, %v4264
    %v4266 = vpop.f32.mrf.mxu0
    %v4267 = vadd.f32 %v3442, %v4266
    %4268 = vmatmul.bf16.gmra.mxu0 %v3922
    %v4269 = vpop.f32.mrf.mxu0
    %v4270 = vadd.f32 %v3445, %v4269
    %v4271 = vpop.f32.mrf.mxu0
    %v4272 = vadd.f32 %v3447, %v4271
    %4273 = vmatmul.bf16.gmra.mxu0 %v3925
    %v4274 = vpop.f32.mrf.mxu0
    %v4275 = vadd.f32 %v3450, %v4274
    %v4276 = vpop.f32.mrf.mxu0
    %v4277 = vadd.f32 %v3452, %v4276
    %4278 = vmatmul.bf16.gmra.mxu0 %v3928
    %v4279 = vpop.f32.mrf.mxu0
    %v4280 = vadd.f32 %v3455, %v4279
    %v4281 = vpop.f32.mrf.mxu0
    %v4282 = vadd.f32 %v3457, %v4281
    %4283 = vmatmul.bf16.gmra.mxu0 %v3931
    %v4284 = vpop.f32.mrf.mxu0
    %v4285 = vadd.f32 %v3460, %v4284
    %v4286 = vpop.f32.mrf.mxu0
    %v4287 = vadd.f32 %v3462, %v4286
    %4288 = vmatmul.bf16.gmra.mxu0 %v3934
    %v4289 = vpop.f32.mrf.mxu0
    %v4290 = vadd.f32 %v3465, %v4289
    %v4291 = vpop.f32.mrf.mxu0
    %v4292 = vadd.f32 %v3467, %v4291
    %4293 = vmatmul.bf16.gmra.mxu0 %v3937
    %v4294 = vpop.f32.mrf.mxu0
    %v4295 = vadd.f32 %v3470, %v4294
    %v4296 = vpop.f32.mrf.mxu0
    %v4297 = vadd.f32 %v3472, %v4296
    %4298 = vmatmul.bf16.gmra.mxu0 %v3940
    %v4299 = vpop.f32.mrf.mxu0
    %v4300 = vadd.f32 %v3475, %v4299
    %v4301 = vpop.f32.mrf.mxu0
    %v4302 = vadd.f32 %v3477, %v4301
    %4303 = vmatmul.bf16.gmra.mxu0 %v3943
    %v4304 = vpop.f32.mrf.mxu0
    %v4305 = vadd.f32 %v3480, %v4304
    %v4306 = vpop.f32.mrf.mxu0
    %v4307 = vadd.f32 %v3482, %v4306
    %4308 = vmatmul.bf16.gmra.mxu0 %v3946
    %v4309 = vpop.f32.mrf.mxu0
    %v4310 = vadd.f32 %v3485, %v4309
    %v4311 = vpop.f32.mrf.mxu0
    %v4312 = vadd.f32 %v3487, %v4311
    %4313 = vmatmul.bf16.gmra.mxu0 %v3949
    %v4314 = vpop.f32.mrf.mxu0
    %v4315 = vadd.f32 %v3490, %v4314
    %v4316 = vpop.f32.mrf.mxu0
    %v4317 = vadd.f32 %v3492, %v4316
    %4318 = vmatmul.bf16.gmra.mxu0 %v3952
    %v4319 = vpop.f32.mrf.mxu0
    %v4320 = vadd.f32 %v3495, %v4319
    %v4321 = vpop.f32.mrf.mxu0
    %v4322 = vadd.f32 %v3497, %v4321
    %4323 = vmatmul.bf16.gmra.mxu0 %v3955
    %v4324 = vpop.f32.mrf.mxu0
    %v4325 = vadd.f32 %v3500, %v4324
    %v4326 = vpop.f32.mrf.mxu0
    %v4327 = vadd.f32 %v3502, %v4326
    %4328 = vmatmul.bf16.gmra.mxu0 %v3958
    %v4329 = vpop.f32.mrf.mxu0
    %v4330 = vadd.f32 %v3505, %v4329
    %v4331 = vpop.f32.mrf.mxu0
    %v4332 = vadd.f32 %v3507, %v4331
    %4333 = vmatmul.bf16.gmra.mxu0 %v3961
    %v4334 = vpop.f32.mrf.mxu0
    %v4335 = vadd.f32 %v3510, %v4334
    %v4336 = vpop.f32.mrf.mxu0
    %v4337 = vadd.f32 %v3512, %v4336
    %4338 = vmatmul.bf16.gmra.mxu0 %v3964
    %v4339 = vpop.f32.mrf.mxu0
    %v4340 = vadd.f32 %v3515, %v4339
    %v4341 = vpop.f32.mrf.mxu0
    %v4342 = vadd.f32 %v3517, %v4341
    %4343 = vmatmul.bf16.gmra.mxu0 %v3967
    %v4344 = vpop.f32.mrf.mxu0
    %v4345 = vadd.f32 %v3520, %v4344
    %v4346 = vpop.f32.mrf.mxu0
    %v4347 = vadd.f32 %v3522, %v4346
    %4348 = vmatmul.bf16.gmra.mxu0 %v3970
    %v4349 = vpop.f32.mrf.mxu0
    %v4350 = vadd.f32 %v3525, %v4349
    %v4351 = vpop.f32.mrf.mxu0
    %v4352 = vadd.f32 %v3527, %v4351
    %4353 = vmatmul.bf16.gmra.mxu0 %v3973
    %v4354 = vpop.f32.mrf.mxu0
    %v4355 = vadd.f32 %v3530, %v4354
    %v4356 = vpop.f32.mrf.mxu0
    %v4357 = vadd.f32 %v3532, %v4356
    %4358 = vmatmul.bf16.gmra.mxu0 %v3976
    %v4359 = vpop.f32.mrf.mxu0
    %v4360 = vadd.f32 %v3535, %v4359
    %v4361 = vpop.f32.mrf.mxu0
    %v4362 = vadd.f32 %v3537, %v4361
    %4363 = vmatmul.bf16.gmra.mxu0 %v3979
    %v4364 = vpop.f32.mrf.mxu0
    %v4365 = vadd.f32 %v3540, %v4364
    %v4366 = vpop.f32.mrf.mxu0
    %v4367 = vadd.f32 %v3542, %v4366
    %4368 = vmatmul.bf16.gmra.mxu0 %v3982
    %v4369 = vpop.f32.mrf.mxu0
    %v4370 = vadd.f32 %v3545, %v4369
    %v4371 = vpop.f32.mrf.mxu0
    %v4372 = vadd.f32 %v3547, %v4371
    %4373 = vmatmul.bf16.gmra.mxu0 %v3985
    %v4374 = vpop.f32.mrf.mxu0
    %v4375 = vadd.f32 %v3550, %v4374
    %v4376 = vpop.f32.mrf.mxu0
    %v4377 = vadd.f32 %v3552, %v4376
    %4378 = vmatmul.bf16.gmra.mxu0 %v3988
    %v4379 = vpop.f32.mrf.mxu0
    %v4380 = vadd.f32 %v3555, %v4379
    %v4381 = vpop.f32.mrf.mxu0
    %v4382 = vadd.f32 %v3557, %v4381
    %4383 = vmatmul.bf16.gmra.mxu0 %v3991
    %v4384 = vpop.f32.mrf.mxu0
    %v4385 = vadd.f32 %v3560, %v4384
    %v4386 = vpop.f32.mrf.mxu0
    %v4387 = vadd.f32 %v3562, %v4386
    %4388 = vmatmul.bf16.gmra.mxu0 %v3994
    %v4389 = vpop.f32.mrf.mxu0
    %v4390 = vadd.f32 %v3565, %v4389
    %v4391 = vpop.f32.mrf.mxu0
    %v4392 = vadd.f32 %v3567, %v4391
    %4393 = vmatmul.bf16.gmra.mxu0 %v3997
    %v4394 = vpop.f32.mrf.mxu0
    %v4395 = vadd.f32 %v3570, %v4394
    %v4396 = vpop.f32.mrf.mxu0
    %v4397 = vadd.f32 %v3572, %v4396
    %4398 = vmatmul.bf16.gmra.mxu0 %v4000
    %v4399 = vpop.f32.mrf.mxu0
    %v4400 = vadd.f32 %v3575, %v4399
    %v4401 = vpop.f32.mrf.mxu0
    %v4402 = vadd.f32 %v3577, %v4401
    %4403 = vmatmul.bf16.gmra.mxu0 %v4003
    %v4404 = vpop.f32.mrf.mxu0
    %v4405 = vadd.f32 %v3580, %v4404
    %v4406 = vpop.f32.mrf.mxu0
    %v4407 = vadd.f32 %v3582, %v4406
    %4408 = vmatmul.bf16.gmra.mxu0 %v4006
    %v4409 = vpop.f32.mrf.mxu0
    %v4410 = vadd.f32 %v3585, %v4409
    %v4411 = vpop.f32.mrf.mxu0
    %v4412 = vadd.f32 %v3587, %v4411
    %4413 = vmatmul.bf16.gmra.mxu0 %v4009
    %v4414 = vpop.f32.mrf.mxu0
    %v4415 = vadd.f32 %v3590, %v4414
    %v4416 = vpop.f32.mrf.mxu0
    %v4417 = vadd.f32 %v3592, %v4416
    %4418 = vmatmul.bf16.gmra.mxu0 %v4012
    %v4419 = vpop.f32.mrf.mxu0
    %v4420 = vadd.f32 %v3595, %v4419
    %v4421 = vpop.f32.mrf.mxu0
    %v4422 = vadd.f32 %v3597, %v4421
    %4423 = vdwg.mxu0
    %4424 = vmatpush.bf16.msra.mxu0 %v4222
    %4425 = vmatpush.bf16.msra.mxu0 %v4221
    %4426 = vmatpush.bf16.msra.mxu0 %v4220
    %4427 = vmatpush.bf16.msra.mxu0 %v4219
    %4428 = vmatpush.bf16.msra.mxu0 %v4218
    %4429 = vmatpush.bf16.msra.mxu0 %v4217
    %4430 = vmatpush.bf16.msra.mxu0 %v4216
    %4431 = vmatpush.bf16.msra.mxu0 %v4215
    %4432 = vmatmul.bf16.gmra.mxu0 %v3920
    %v4433 = vpop.f32.mrf.mxu0
    %v4434 = vadd.f32 %v4265, %v4433
    %v4435 = vpop.f32.mrf.mxu0
    %v4436 = vadd.f32 %v4267, %v4435
    %4437 = vmatmul.bf16.gmra.mxu0 %v3923
    %v4438 = vpop.f32.mrf.mxu0
    %v4439 = vadd.f32 %v4270, %v4438
    %v4440 = vpop.f32.mrf.mxu0
    %v4441 = vadd.f32 %v4272, %v4440
    %4442 = vmatmul.bf16.gmra.mxu0 %v3926
    %v4443 = vpop.f32.mrf.mxu0
    %v4444 = vadd.f32 %v4275, %v4443
    %v4445 = vpop.f32.mrf.mxu0
    %v4446 = vadd.f32 %v4277, %v4445
    %4447 = vmatmul.bf16.gmra.mxu0 %v3929
    %v4448 = vpop.f32.mrf.mxu0
    %v4449 = vadd.f32 %v4280, %v4448
    %v4450 = vpop.f32.mrf.mxu0
    %v4451 = vadd.f32 %v4282, %v4450
    %4452 = vmatmul.bf16.gmra.mxu0 %v3932
    %v4453 = vpop.f32.mrf.mxu0
    %v4454 = vadd.f32 %v4285, %v4453
    %v4455 = vpop.f32.mrf.mxu0
    %v4456 = vadd.f32 %v4287, %v4455
    %4457 = vmatmul.bf16.gmra.mxu0 %v3935
    %v4458 = vpop.f32.mrf.mxu0
    %v4459 = vadd.f32 %v4290, %v4458
    %v4460 = vpop.f32.mrf.mxu0
    %v4461 = vadd.f32 %v4292, %v4460
    %4462 = vmatmul.bf16.gmra.mxu0 %v3938
    %v4463 = vpop.f32.mrf.mxu0
    %v4464 = vadd.f32 %v4295, %v4463
    %v4465 = vpop.f32.mrf.mxu0
    %v4466 = vadd.f32 %v4297, %v4465
    %4467 = vmatmul.bf16.gmra.mxu0 %v3941
    %v4468 = vpop.f32.mrf.mxu0
    %v4469 = vadd.f32 %v4300, %v4468
    %v4470 = vpop.f32.mrf.mxu0
    %v4471 = vadd.f32 %v4302, %v4470
    %4472 = vmatmul.bf16.gmra.mxu0 %v3944
    %v4473 = vpop.f32.mrf.mxu0
    %v4474 = vadd.f32 %v4305, %v4473
    %v4475 = vpop.f32.mrf.mxu0
    %v4476 = vadd.f32 %v4307, %v4475
    %4477 = vmatmul.bf16.gmra.mxu0 %v3947
    %v4478 = vpop.f32.mrf.mxu0
    %v4479 = vadd.f32 %v4310, %v4478
    %v4480 = vpop.f32.mrf.mxu0
    %v4481 = vadd.f32 %v4312, %v4480
    %4482 = vmatmul.bf16.gmra.mxu0 %v3950
    %v4483 = vpop.f32.mrf.mxu0
    %v4484 = vadd.f32 %v4315, %v4483
    %v4485 = vpop.f32.mrf.mxu0
    %v4486 = vadd.f32 %v4317, %v4485
    %4487 = vmatmul.bf16.gmra.mxu0 %v3953
    %v4488 = vpop.f32.mrf.mxu0
    %v4489 = vadd.f32 %v4320, %v4488
    %v4490 = vpop.f32.mrf.mxu0
    %v4491 = vadd.f32 %v4322, %v4490
    %4492 = vmatmul.bf16.gmra.mxu0 %v3956
    %v4493 = vpop.f32.mrf.mxu0
    %v4494 = vadd.f32 %v4325, %v4493
    %v4495 = vpop.f32.mrf.mxu0
    %v4496 = vadd.f32 %v4327, %v4495
    %4497 = vmatmul.bf16.gmra.mxu0 %v3959
    %v4498 = vpop.f32.mrf.mxu0
    %v4499 = vadd.f32 %v4330, %v4498
    %v4500 = vpop.f32.mrf.mxu0
    %v4501 = vadd.f32 %v4332, %v4500
    %4502 = vmatmul.bf16.gmra.mxu0 %v3962
    %v4503 = vpop.f32.mrf.mxu0
    %v4504 = vadd.f32 %v4335, %v4503
    %v4505 = vpop.f32.mrf.mxu0
    %v4506 = vadd.f32 %v4337, %v4505
    %4507 = vmatmul.bf16.gmra.mxu0 %v3965
    %v4508 = vpop.f32.mrf.mxu0
    %v4509 = vadd.f32 %v4340, %v4508
    %v4510 = vpop.f32.mrf.mxu0
    %v4511 = vadd.f32 %v4342, %v4510
    %4512 = vmatmul.bf16.gmra.mxu0 %v3968
    %v4513 = vpop.f32.mrf.mxu0
    %v4514 = vadd.f32 %v4345, %v4513
    %v4515 = vpop.f32.mrf.mxu0
    %v4516 = vadd.f32 %v4347, %v4515
    %4517 = vmatmul.bf16.gmra.mxu0 %v3971
    %v4518 = vpop.f32.mrf.mxu0
    %v4519 = vadd.f32 %v4350, %v4518
    %v4520 = vpop.f32.mrf.mxu0
    %v4521 = vadd.f32 %v4352, %v4520
    %4522 = vmatmul.bf16.gmra.mxu0 %v3974
    %v4523 = vpop.f32.mrf.mxu0
    %v4524 = vadd.f32 %v4355, %v4523
    %v4525 = vpop.f32.mrf.mxu0
    %v4526 = vadd.f32 %v4357, %v4525
    %4527 = vmatmul.bf16.gmra.mxu0 %v3977
    %v4528 = vpop.f32.mrf.mxu0
    %v4529 = vadd.f32 %v4360, %v4528
    %v4530 = vpop.f32.mrf.mxu0
    %v4531 = vadd.f32 %v4362, %v4530
    %4532 = vmatmul.bf16.gmra.mxu0 %v3980
    %v4533 = vpop.f32.mrf.mxu0
    %v4534 = vadd.f32 %v4365, %v4533
    %v4535 = vpop.f32.mrf.mxu0
    %v4536 = vadd.f32 %v4367, %v4535
    %4537 = vmatmul.bf16.gmra.mxu0 %v3983
    %v4538 = vpop.f32.mrf.mxu0
    %v4539 = vadd.f32 %v4370, %v4538
    %v4540 = vpop.f32.mrf.mxu0
    %v4541 = vadd.f32 %v4372, %v4540
    %4542 = vmatmul.bf16.gmra.mxu0 %v3986
    %v4543 = vpop.f32.mrf.mxu0
    %v4544 = vadd.f32 %v4375, %v4543
    %v4545 = vpop.f32.mrf.mxu0
    %v4546 = vadd.f32 %v4377, %v4545
    %4547 = vmatmul.bf16.gmra.mxu0 %v3989
    %v4548 = vpop.f32.mrf.mxu0
    %v4549 = vadd.f32 %v4380, %v4548
    %v4550 = vpop.f32.mrf.mxu0
    %v4551 = vadd.f32 %v4382, %v4550
    %4552 = vmatmul.bf16.gmra.mxu0 %v3992
    %v4553 = vpop.f32.mrf.mxu0
    %v4554 = vadd.f32 %v4385, %v4553
    %v4555 = vpop.f32.mrf.mxu0
    %v4556 = vadd.f32 %v4387, %v4555
    %4557 = vmatmul.bf16.gmra.mxu0 %v3995
    %v4558 = vpop.f32.mrf.mxu0
    %v4559 = vadd.f32 %v4390, %v4558
    %v4560 = vpop.f32.mrf.mxu0
    %v4561 = vadd.f32 %v4392, %v4560
    %4562 = vmatmul.bf16.gmra.mxu0 %v3998
    %v4563 = vpop.f32.mrf.mxu0
    %v4564 = vadd.f32 %v4395, %v4563
    %v4565 = vpop.f32.mrf.mxu0
    %v4566 = vadd.f32 %v4397, %v4565
    %4567 = vmatmul.bf16.gmra.mxu0 %v4001
    %v4568 = vpop.f32.mrf.mxu0
    %v4569 = vadd.f32 %v4400, %v4568
    %v4570 = vpop.f32.mrf.mxu0
    %v4571 = vadd.f32 %v4402, %v4570
    %4572 = vmatmul.bf16.gmra.mxu0 %v4004
    %v4573 = vpop.f32.mrf.mxu0
    %v4574 = vadd.f32 %v4405, %v4573
    %v4575 = vpop.f32.mrf.mxu0
    %v4576 = vadd.f32 %v4407, %v4575
    %4577 = vmatmul.bf16.gmra.mxu0 %v4007
    %v4578 = vpop.f32.mrf.mxu0
    %v4579 = vadd.f32 %v4410, %v4578
    %v4580 = vpop.f32.mrf.mxu0
    %v4581 = vadd.f32 %v4412, %v4580
    %4582 = vmatmul.bf16.gmra.mxu0 %v4010
    %v4583 = vpop.f32.mrf.mxu0
    %v4584 = vadd.f32 %v4415, %v4583
    %v4585 = vpop.f32.mrf.mxu0
    %v4586 = vadd.f32 %v4417, %v4585
    %4587 = vmatmul.bf16.gmra.mxu0 %v4013
    %v4588 = vpop.f32.mrf.mxu0
    %v4589 = vadd.f32 %v4420, %v4588
    %v4590 = vpop.f32.mrf.mxu0
    %v4591 = vadd.f32 %v4422, %v4590
    %4592 = vdwg.mxu0
    %4593 = vmatpush.bf16.msra.mxu0 %v4230
    %4594 = vmatpush.bf16.msra.mxu0 %v4229
    %4595 = vmatpush.bf16.msra.mxu0 %v4228
    %4596 = vmatpush.bf16.msra.mxu0 %v4227
    %4597 = vmatpush.bf16.msra.mxu0 %v4226
    %4598 = vmatpush.bf16.msra.mxu0 %v4225
    %4599 = vmatpush.bf16.msra.mxu0 %v4224
    %4600 = vmatpush.bf16.msra.mxu0 %v4223
    %4601 = vmatmul.bf16.gmra.mxu0 %v3921
    %v4602 = vpop.f32.mrf.mxu0
    %v4603 = vadd.f32 %v4434, %v4602
    %v4604 = vpop.f32.mrf.mxu0
    %v4605 = vadd.f32 %v4436, %v4604
    %4606 = vmatmul.bf16.gmra.mxu0 %v3924
    %v4607 = vpop.f32.mrf.mxu0
    %v4608 = vadd.f32 %v4439, %v4607
    %v4609 = vpop.f32.mrf.mxu0
    %v4610 = vadd.f32 %v4441, %v4609
    %4611 = vmatmul.bf16.gmra.mxu0 %v3927
    %v4612 = vpop.f32.mrf.mxu0
    %v4613 = vadd.f32 %v4444, %v4612
    %v4614 = vpop.f32.mrf.mxu0
    %v4615 = vadd.f32 %v4446, %v4614
    %4616 = vmatmul.bf16.gmra.mxu0 %v3930
    %v4617 = vpop.f32.mrf.mxu0
    %v4618 = vadd.f32 %v4449, %v4617
    %v4619 = vpop.f32.mrf.mxu0
    %v4620 = vadd.f32 %v4451, %v4619
    %4621 = vmatmul.bf16.gmra.mxu0 %v3933
    %v4622 = vpop.f32.mrf.mxu0
    %v4623 = vadd.f32 %v4454, %v4622
    %v4624 = vpop.f32.mrf.mxu0
    %v4625 = vadd.f32 %v4456, %v4624
    %4626 = vmatmul.bf16.gmra.mxu0 %v3936
    %v4627 = vpop.f32.mrf.mxu0
    %v4628 = vadd.f32 %v4459, %v4627
    %v4629 = vpop.f32.mrf.mxu0
    %v4630 = vadd.f32 %v4461, %v4629
    %4631 = vmatmul.bf16.gmra.mxu0 %v3939
    %v4632 = vpop.f32.mrf.mxu0
    %v4633 = vadd.f32 %v4464, %v4632
    %v4634 = vpop.f32.mrf.mxu0
    %v4635 = vadd.f32 %v4466, %v4634
    %4636 = vmatmul.bf16.gmra.mxu0 %v3942
    %v4637 = vpop.f32.mrf.mxu0
    %v4638 = vadd.f32 %v4469, %v4637
    %v4639 = vpop.f32.mrf.mxu0
    %v4640 = vadd.f32 %v4471, %v4639
    %4641 = vmatmul.bf16.gmra.mxu0 %v3945
    %v4642 = vpop.f32.mrf.mxu0
    %v4643 = vadd.f32 %v4474, %v4642
    %v4644 = vpop.f32.mrf.mxu0
    %v4645 = vadd.f32 %v4476, %v4644
    %4646 = vmatmul.bf16.gmra.mxu0 %v3948
    %v4647 = vpop.f32.mrf.mxu0
    %v4648 = vadd.f32 %v4479, %v4647
    %v4649 = vpop.f32.mrf.mxu0
    %v4650 = vadd.f32 %v4481, %v4649
    %4651 = vmatmul.bf16.gmra.mxu0 %v3951
    %v4652 = vpop.f32.mrf.mxu0
    %v4653 = vadd.f32 %v4484, %v4652
    %v4654 = vpop.f32.mrf.mxu0
    %v4655 = vadd.f32 %v4486, %v4654
    %4656 = vmatmul.bf16.gmra.mxu0 %v3954
    %v4657 = vpop.f32.mrf.mxu0
    %v4658 = vadd.f32 %v4489, %v4657
    %v4659 = vpop.f32.mrf.mxu0
    %v4660 = vadd.f32 %v4491, %v4659
    %4661 = vmatmul.bf16.gmra.mxu0 %v3957
    %v4662 = vpop.f32.mrf.mxu0
    %v4663 = vadd.f32 %v4494, %v4662
    %v4664 = vpop.f32.mrf.mxu0
    %v4665 = vadd.f32 %v4496, %v4664
    %4666 = vmatmul.bf16.gmra.mxu0 %v3960
    %v4667 = vpop.f32.mrf.mxu0
    %v4668 = vadd.f32 %v4499, %v4667
    %v4669 = vpop.f32.mrf.mxu0
    %v4670 = vadd.f32 %v4501, %v4669
    %4671 = vmatmul.bf16.gmra.mxu0 %v3963
    %v4672 = vpop.f32.mrf.mxu0
    %v4673 = vadd.f32 %v4504, %v4672
    %v4674 = vpop.f32.mrf.mxu0
    %v4675 = vadd.f32 %v4506, %v4674
    %4676 = vmatmul.bf16.gmra.mxu0 %v3966
    %v4677 = vpop.f32.mrf.mxu0
    %v4678 = vadd.f32 %v4509, %v4677
    %v4679 = vpop.f32.mrf.mxu0
    %v4680 = vadd.f32 %v4511, %v4679
    %4681 = vmatmul.bf16.gmra.mxu0 %v3969
    %v4682 = vpop.f32.mrf.mxu0
    %v4683 = vadd.f32 %v4514, %v4682
    %v4684 = vpop.f32.mrf.mxu0
    %v4685 = vadd.f32 %v4516, %v4684
    %4686 = vmatmul.bf16.gmra.mxu0 %v3972
    %v4687 = vpop.f32.mrf.mxu0
    %v4688 = vadd.f32 %v4519, %v4687
    %v4689 = vpop.f32.mrf.mxu0
    %v4690 = vadd.f32 %v4521, %v4689
    %4691 = vmatmul.bf16.gmra.mxu0 %v3975
    %v4692 = vpop.f32.mrf.mxu0
    %v4693 = vadd.f32 %v4524, %v4692
    %v4694 = vpop.f32.mrf.mxu0
    %v4695 = vadd.f32 %v4526, %v4694
    %4696 = vmatmul.bf16.gmra.mxu0 %v3978
    %v4697 = vpop.f32.mrf.mxu0
    %v4698 = vadd.f32 %v4529, %v4697
    %v4699 = vpop.f32.mrf.mxu0
    %v4700 = vadd.f32 %v4531, %v4699
    %4701 = vmatmul.bf16.gmra.mxu0 %v3981
    %v4702 = vpop.f32.mrf.mxu0
    %v4703 = vadd.f32 %v4534, %v4702
    %v4704 = vpop.f32.mrf.mxu0
    %v4705 = vadd.f32 %v4536, %v4704
    %4706 = vmatmul.bf16.gmra.mxu0 %v3984
    %v4707 = vpop.f32.mrf.mxu0
    %v4708 = vadd.f32 %v4539, %v4707
    %v4709 = vpop.f32.mrf.mxu0
    %v4710 = vadd.f32 %v4541, %v4709
    %4711 = vmatmul.bf16.gmra.mxu0 %v3987
    %v4712 = vpop.f32.mrf.mxu0
    %v4713 = vadd.f32 %v4544, %v4712
    %v4714 = vpop.f32.mrf.mxu0
    %v4715 = vadd.f32 %v4546, %v4714
    %4716 = vmatmul.bf16.gmra.mxu0 %v3990
    %v4717 = vpop.f32.mrf.mxu0
    %v4718 = vadd.f32 %v4549, %v4717
    %v4719 = vpop.f32.mrf.mxu0
    %v4720 = vadd.f32 %v4551, %v4719
    %4721 = vmatmul.bf16.gmra.mxu0 %v3993
    %v4722 = vpop.f32.mrf.mxu0
    %v4723 = vadd.f32 %v4554, %v4722
    %v4724 = vpop.f32.mrf.mxu0
    %v4725 = vadd.f32 %v4556, %v4724
    %4726 = vmatmul.bf16.gmra.mxu0 %v3996
    %v4727 = vpop.f32.mrf.mxu0
    %v4728 = vadd.f32 %v4559, %v4727
    %v4729 = vpop.f32.mrf.mxu0
    %v4730 = vadd.f32 %v4561, %v4729
    %4731 = vmatmul.bf16.gmra.mxu0 %v3999
    %v4732 = vpop.f32.mrf.mxu0
    %v4733 = vadd.f32 %v4564, %v4732
    %v4734 = vpop.f32.mrf.mxu0
    %v4735 = vadd.f32 %v4566, %v4734
    %4736 = vmatmul.bf16.gmra.mxu0 %v4002
    %v4737 = vpop.f32.mrf.mxu0
    %v4738 = vadd.f32 %v4569, %v4737
    %v4739 = vpop.f32.mrf.mxu0
    %v4740 = vadd.f32 %v4571, %v4739
    %4741 = vmatmul.bf16.gmra.mxu0 %v4005
    %v4742 = vpop.f32.mrf.mxu0
    %v4743 = vadd.f32 %v4574, %v4742
    %v4744 = vpop.f32.mrf.mxu0
    %v4745 = vadd.f32 %v4576, %v4744
    %4746 = vmatmul.bf16.gmra.mxu0 %v4008
    %v4747 = vpop.f32.mrf.mxu0
    %v4748 = vadd.f32 %v4579, %v4747
    %v4749 = vpop.f32.mrf.mxu0
    %v4750 = vadd.f32 %v4581, %v4749
    %4751 = vmatmul.bf16.gmra.mxu0 %v4011
    %v4752 = vpop.f32.mrf.mxu0
    %v4753 = vadd.f32 %v4584, %v4752
    %v4754 = vpop.f32.mrf.mxu0
    %v4755 = vadd.f32 %v4586, %v4754
    %4756 = vmatmul.bf16.gmra.mxu0 %v4014
    %v4757 = vpop.f32.mrf.mxu0
    %v4758 = vadd.f32 %v4589, %v4757
    %v4759 = vpop.f32.mrf.mxu0
    %v4760 = vadd.f32 %v4591, %v4759
    %4761 = vdwg.mxu0
    %s4762 = scalar_lea.vmem [#allocation2], 48
    %v4763 = vld [vmem:[%s4762] sm:$0xff]
    %v4764 = vld [vmem:[%s4762 + $0x8] sm:$0xf]
    %v4765 = vld [vmem:[%s4762 + $0xc] sm:$0xff]
    %v4766 = vld [vmem:[%s4762 + $0x14] sm:$0xf]
    %v4767 = vld [vmem:[%s4762 + $0x18] sm:$0xff]
    %v4768 = vld [vmem:[%s4762 + $0x20] sm:$0xf]
    %v4769 = vld [vmem:[%s4762 + $0x24] sm:$0xff]
    %v4770 = vld [vmem:[%s4762 + $0x2c] sm:$0xf]
    %v4771 = vld [vmem:[%s4762 + $0x30] sm:$0xff]
    %v4772 = vld [vmem:[%s4762 + $0x38] sm:$0xf]
    %v4773 = vld [vmem:[%s4762 + $0x3c] sm:$0xff]
    %v4774 = vld [vmem:[%s4762 + $0x44] sm:$0xf]
    %v4775 = vld [vmem:[%s4762 + $0x48] sm:$0xff]
    %v4776 = vld [vmem:[%s4762 + $0x50] sm:$0xf]
    %v4777 = vld [vmem:[%s4762 + $0x54] sm:$0xff]
    %v4778 = vld [vmem:[%s4762 + $0x5c] sm:$0xf]
    %v4779 = vld [vmem:[%s4762 + $0x60] sm:$0xff]
    %v4780 = vld [vmem:[%s4762 + $0x68] sm:$0xf]
    %v4781 = vld [vmem:[%s4762 + $0x6c] sm:$0xff]
    %v4782 = vld [vmem:[%s4762 + $0x74] sm:$0xf]
    %v4783 = vld [vmem:[%s4762 + $0x78] sm:$0xff]
    %v4784 = vld [vmem:[%s4762 + $0x80] sm:$0xf]
    %v4785 = vld [vmem:[%s4762 + $0x84] sm:$0xff]
    %v4786 = vld [vmem:[%s4762 + $0x8c] sm:$0xf]
    %v4787 = vld [vmem:[%s4762 + $0x90] sm:$0xff]
    %v4788 = vld [vmem:[%s4762 + $0x98] sm:$0xf]
    %v4789 = vld [vmem:[%s4762 + $0x9c] sm:$0xff]
    %v4790 = vld [vmem:[%s4762 + $0xa4] sm:$0xf]
    %v4791 = vld [vmem:[%s4762 + $0xa8] sm:$0xff]
    %v4792 = vld [vmem:[%s4762 + $0xb0] sm:$0xf]
    %v4793 = vld [vmem:[%s4762 + $0xb4] sm:$0xff]
    %v4794 = vld [vmem:[%s4762 + $0xbc] sm:$0xf]
    %v4795 = vld [vmem:[%s4762 + $0xc0] sm:$0xff]
    %v4796 = vld [vmem:[%s4762 + $0xc8] sm:$0xf]
    %v4797 = vld [vmem:[%s4762 + $0xcc] sm:$0xff]
    %v4798 = vld [vmem:[%s4762 + $0xd4] sm:$0xf]
    %v4799 = vld [vmem:[%s4762 + $0xd8] sm:$0xff]
    %v4800 = vld [vmem:[%s4762 + $0xe0] sm:$0xf]
    %v4801 = vld [vmem:[%s4762 + $0xe4] sm:$0xff]
    %v4802 = vld [vmem:[%s4762 + $0xec] sm:$0xf]
    %v4803 = vld [vmem:[%s4762 + $0xf0] sm:$0xff]
    %v4804 = vld [vmem:[%s4762 + $0xf8] sm:$0xf]
    %v4805 = vld [vmem:[%s4762 + $0xfc] sm:$0xff]
    %v4806 = vld [vmem:[%s4762 + $0x104] sm:$0xf]
    %v4807 = vld [vmem:[%s4762 + $0x108] sm:$0xff]
    %v4808 = vld [vmem:[%s4762 + $0x110] sm:$0xf]
    %v4809 = vld [vmem:[%s4762 + $0x114] sm:$0xff]
    %v4810 = vld [vmem:[%s4762 + $0x11c] sm:$0xf]
    %v4811 = vld [vmem:[%s4762 + $0x120] sm:$0xff]
    %v4812 = vld [vmem:[%s4762 + $0x128] sm:$0xf]
    %v4813 = vld [vmem:[%s4762 + $0x12c] sm:$0xff]
    %v4814 = vld [vmem:[%s4762 + $0x134] sm:$0xf]
    %v4815 = vld [vmem:[%s4762 + $0x138] sm:$0xff]
    %v4816 = vld [vmem:[%s4762 + $0x140] sm:$0xf]
    %v4817 = vld [vmem:[%s4762 + $0x144] sm:$0xff]
    %v4818 = vld [vmem:[%s4762 + $0x14c] sm:$0xf]
    %v4819 = vld [vmem:[%s4762 + $0x150] sm:$0xff]
    %v4820 = vld [vmem:[%s4762 + $0x158] sm:$0xf]
    %v4821 = vld [vmem:[%s4762 + $0x15c] sm:$0xff]
    %v4822 = vld [vmem:[%s4762 + $0x164] sm:$0xf]
    %v4823 = vld [vmem:[%s4762 + $0x168] sm:$0xff]
    %v4824 = vld [vmem:[%s4762 + $0x170] sm:$0xf]
    %v4825 = vld [vmem:[%s4762 + $0x174] sm:$0xff]
    %v4826 = vld [vmem:[%s4762 + $0x17c] sm:$0xf]
    %v4827 = vld [vmem:[%s4762 + $0x1b0] sm:$0xff]
    %v4828 = vld [vmem:[%s4762 + $0x1b8] sm:$0xf]
    %v4829 = vld [vmem:[%s4762 + $0x1bc] sm:$0xff]
    %v4830 = vld [vmem:[%s4762 + $0x1c4] sm:$0xf]
    %v4831 = vld [vmem:[%s4762 + $0x1c8] sm:$0xff]
    %v4832 = vld [vmem:[%s4762 + $0x1d0] sm:$0xf]
    %v4833 = vld [vmem:[%s4762 + $0x1d4] sm:$0xff]
    %v4834 = vld [vmem:[%s4762 + $0x1dc] sm:$0xf]
    %v4835 = vld [vmem:[%s4762 + $0x1e0] sm:$0xff]
    %v4836 = vld [vmem:[%s4762 + $0x1e8] sm:$0xf]
    %v4837 = vld [vmem:[%s4762 + $0x1ec] sm:$0xff]
    %v4838 = vld [vmem:[%s4762 + $0x1f4] sm:$0xf]
    %v4839 = vld [vmem:[%s4762 + $0x1f8] sm:$0xff]
    %v4840 = vld [vmem:[%s4762 + $0x200] sm:$0xf]
    %v4841 = vld [vmem:[%s4762 + $0x204] sm:$0xff]
    %v4842 = vld [vmem:[%s4762 + $0x20c] sm:$0xf]
    %v4843 = vld [vmem:[%s4762 + $0x210] sm:$0xff]
    %v4844 = vld [vmem:[%s4762 + $0x218] sm:$0xf]
    %v4845 = vld [vmem:[%s4762 + $0x21c] sm:$0xff]
    %v4846 = vld [vmem:[%s4762 + $0x224] sm:$0xf]
    %v4847 = vld [vmem:[%s4762 + $0x228] sm:$0xff]
    %v4848 = vld [vmem:[%s4762 + $0x230] sm:$0xf]
    %v4849 = vld [vmem:[%s4762 + $0x234] sm:$0xff]
    %v4850 = vld [vmem:[%s4762 + $0x23c] sm:$0xf]
    %v4851 = vld [vmem:[%s4762 + $0x240] sm:$0xff]
    %v4852 = vld [vmem:[%s4762 + $0x248] sm:$0xf]
    %v4853 = vld [vmem:[%s4762 + $0x24c] sm:$0xff]
    %v4854 = vld [vmem:[%s4762 + $0x254] sm:$0xf]
    %v4855 = vld [vmem:[%s4762 + $0x258] sm:$0xff]
    %v4856 = vld [vmem:[%s4762 + $0x260] sm:$0xf]
    %v4857 = vld [vmem:[%s4762 + $0x264] sm:$0xff]
    %v4858 = vld [vmem:[%s4762 + $0x26c] sm:$0xf]
    %v4859 = vld [vmem:[%s4762 + $0x270] sm:$0xff]
    %v4860 = vld [vmem:[%s4762 + $0x278] sm:$0xf]
    %v4861 = vld [vmem:[%s4762 + $0x27c] sm:$0xff]
    %v4862 = vld [vmem:[%s4762 + $0x284] sm:$0xf]
    %v4863 = vld [vmem:[%s4762 + $0x288] sm:$0xff]
    %v4864 = vld [vmem:[%s4762 + $0x290] sm:$0xf]
    %v4865 = vld [vmem:[%s4762 + $0x294] sm:$0xff]
    %v4866 = vld [vmem:[%s4762 + $0x29c] sm:$0xf]
    %v4867 = vld [vmem:[%s4762 + $0x2a0] sm:$0xff]
    %v4868 = vld [vmem:[%s4762 + $0x2a8] sm:$0xf]
    %v4869 = vld [vmem:[%s4762 + $0x2ac] sm:$0xff]
    %v4870 = vld [vmem:[%s4762 + $0x2b4] sm:$0xf]
    %v4871 = vld [vmem:[%s4762 + $0x2b8] sm:$0xff]
    %v4872 = vld [vmem:[%s4762 + $0x2c0] sm:$0xf]
    %v4873 = vld [vmem:[%s4762 + $0x2c4] sm:$0xff]
    %v4874 = vld [vmem:[%s4762 + $0x2cc] sm:$0xf]
    %v4875 = vld [vmem:[%s4762 + $0x2d0] sm:$0xff]
    %v4876 = vld [vmem:[%s4762 + $0x2d8] sm:$0xf]
    %v4877 = vld [vmem:[%s4762 + $0x2dc] sm:$0xff]
    %v4878 = vld [vmem:[%s4762 + $0x2e4] sm:$0xf]
    %v4879 = vld [vmem:[%s4762 + $0x2e8] sm:$0xff]
    %v4880 = vld [vmem:[%s4762 + $0x2f0] sm:$0xf]
    %v4881 = vld [vmem:[%s4762 + $0x2f4] sm:$0xff]
    %v4882 = vld [vmem:[%s4762 + $0x2fc] sm:$0xf]
    %v4883 = vld [vmem:[%s4762 + $0x300] sm:$0xff]
    %v4884 = vld [vmem:[%s4762 + $0x308] sm:$0xf]
    %v4885 = vld [vmem:[%s4762 + $0x30c] sm:$0xff]
    %v4886 = vld [vmem:[%s4762 + $0x314] sm:$0xf]
    %v4887 = vld [vmem:[%s4762 + $0x318] sm:$0xff]
    %v4888 = vld [vmem:[%s4762 + $0x320] sm:$0xf]
    %v4889 = vld [vmem:[%s4762 + $0x324] sm:$0xff]
    %v4890 = vld [vmem:[%s4762 + $0x32c] sm:$0xf]
    %s4891 = scalar_lea.vmem %s1, 384
    %v4892 = vld [vmem:[%s4891] sm:$0xf]
    %v4893 = vld [vmem:[%s4891 + $0x4] sm:$0xf]
    %v4894 = vld [vmem:[%s4891 + $0x8] sm:$0xf]
    %v4895 = vld [vmem:[%s4891 + $0xc] sm:$0xf]
    %v4896 = vld [vmem:[%s4891 + $0x10] sm:$0xf]
    %v4897 = vld [vmem:[%s4891 + $0x14] sm:$0xf]
    %v4898 = vld [vmem:[%s4891 + $0x18] sm:$0xf]
    %v4899 = vld [vmem:[%s4891 + $0x1c] sm:$0xf]
    %v4900 = vld [vmem:[%s4891 + $0x20] sm:$0xf]
    %v4901 = vld [vmem:[%s4891 + $0x24] sm:$0xf]
    %v4902 = vld [vmem:[%s4891 + $0x28] sm:$0xf]
    %v4903 = vld [vmem:[%s4891 + $0x2c] sm:$0xf]
    %v4904 = vld [vmem:[%s4891 + $0x30] sm:$0xf]
    %v4905 = vld [vmem:[%s4891 + $0x34] sm:$0xf]
    %v4906 = vld [vmem:[%s4891 + $0x38] sm:$0xf]
    %v4907 = vld [vmem:[%s4891 + $0x3c] sm:$0xf]
    %v4908 = vld [vmem:[%s4891 + $0x40] sm:$0xf]
    %v4909 = vld [vmem:[%s4891 + $0x44] sm:$0xf]
    %v4910 = vld [vmem:[%s4891 + $0x48] sm:$0xf]
    %v4911 = vld [vmem:[%s4891 + $0x4c] sm:$0xf]
    %v4912 = vld [vmem:[%s4891 + $0x50] sm:$0xf]
    %v4913 = vld [vmem:[%s4891 + $0x54] sm:$0xf]
    %v4914 = vld [vmem:[%s4891 + $0x58] sm:$0xf]
    %v4915 = vld [vmem:[%s4891 + $0x5c] sm:$0xf]
    %v4916 = vld [vmem:[%s4891 + $0x60] sm:$0xf]
    %v4917 = vld [vmem:[%s4891 + $0x64] sm:$0xf]
    %v4918 = vld [vmem:[%s4891 + $0x68] sm:$0xf]
    %v4919 = vld [vmem:[%s4891 + $0x6c] sm:$0xf]
    %v4920 = vld [vmem:[%s4891 + $0x70] sm:$0xf]
    %v4921 = vld [vmem:[%s4891 + $0x74] sm:$0xf]
    %v4922 = vld [vmem:[%s4891 + $0x78] sm:$0xf]
    %v4923 = vld [vmem:[%s4891 + $0x7c] sm:$0xf]
    %v4924 = vld [vmem:[%s4891 + $0x80] sm:$0xf]
    %v4925 = vld [vmem:[%s4891 + $0x84] sm:$0xf]
    %v4926 = vld [vmem:[%s4891 + $0x88] sm:$0xf]
    %v4927 = vld [vmem:[%s4891 + $0x8c] sm:$0xf]
    %v4928 = vld [vmem:[%s4891 + $0x90] sm:$0xf]
    %v4929 = vld [vmem:[%s4891 + $0x94] sm:$0xf]
    %v4930 = vld [vmem:[%s4891 + $0x98] sm:$0xf]
    %v4931 = vld [vmem:[%s4891 + $0x9c] sm:$0xf]
    %v4932 = vld [vmem:[%s4891 + $0xa0] sm:$0xf]
    %v4933 = vld [vmem:[%s4891 + $0xa4] sm:$0xf]
    %v4934 = vld [vmem:[%s4891 + $0xa8] sm:$0xf]
    %v4935 = vld [vmem:[%s4891 + $0xac] sm:$0xf]
    %v4936 = vld [vmem:[%s4891 + $0xb0] sm:$0xf]
    %v4937 = vld [vmem:[%s4891 + $0xb4] sm:$0xf]
    %v4938 = vld [vmem:[%s4891 + $0xb8] sm:$0xf]
    %v4939 = vld [vmem:[%s4891 + $0xbc] sm:$0xf]
    %v5068 = vunpack.c.l.b16 %v4763
    %v5069 = vunpack.c.h.b16 %v4763
    %v5070 = vunpack.c.l.b16 %v4764
    %v5071 = vunpack.c.l.b16 %v4765
    %v5072 = vunpack.c.h.b16 %v4765
    %v5073 = vunpack.c.l.b16 %v4766
    %v5074 = vunpack.c.l.b16 %v4767
    %v5075 = vunpack.c.h.b16 %v4767
    %v5076 = vunpack.c.l.b16 %v4768
    %v5077 = vunpack.c.l.b16 %v4769
    %v5078 = vunpack.c.h.b16 %v4769
    %v5079 = vunpack.c.l.b16 %v4770
    %v5080 = vunpack.c.l.b16 %v4771
    %v5081 = vunpack.c.h.b16 %v4771
    %v5082 = vunpack.c.l.b16 %v4772
    %v5083 = vunpack.c.l.b16 %v4773
    %v5084 = vunpack.c.h.b16 %v4773
    %v5085 = vunpack.c.l.b16 %v4774
    %v5086 = vunpack.c.l.b16 %v4775
    %v5087 = vunpack.c.h.b16 %v4775
    %v5088 = vunpack.c.l.b16 %v4776
    %v5089 = vunpack.c.l.b16 %v4777
    %v5090 = vunpack.c.h.b16 %v4777
    %v5091 = vunpack.c.l.b16 %v4778
    %v5092 = vunpack.c.l.b16 %v4779
    %v5093 = vunpack.c.h.b16 %v4779
    %v5094 = vunpack.c.l.b16 %v4780
    %v5095 = vunpack.c.l.b16 %v4781
    %v5096 = vunpack.c.h.b16 %v4781
    %v5097 = vunpack.c.l.b16 %v4782
    %v5098 = vunpack.c.l.b16 %v4783
    %v5099 = vunpack.c.h.b16 %v4783
    %v5100 = vunpack.c.l.b16 %v4784
    %v5101 = vunpack.c.l.b16 %v4785
    %v5102 = vunpack.c.h.b16 %v4785
    %v5103 = vunpack.c.l.b16 %v4786
    %v5104 = vunpack.c.l.b16 %v4787
    %v5105 = vunpack.c.h.b16 %v4787
    %v5106 = vunpack.c.l.b16 %v4788
    %v5107 = vunpack.c.l.b16 %v4789
    %v5108 = vunpack.c.h.b16 %v4789
    %v5109 = vunpack.c.l.b16 %v4790
    %v5110 = vunpack.c.l.b16 %v4791
    %v5111 = vunpack.c.h.b16 %v4791
    %v5112 = vunpack.c.l.b16 %v4792
    %v5113 = vunpack.c.l.b16 %v4793
    %v5114 = vunpack.c.h.b16 %v4793
    %v5115 = vunpack.c.l.b16 %v4794
    %v5116 = vunpack.c.l.b16 %v4795
    %v5117 = vunpack.c.h.b16 %v4795
    %v5118 = vunpack.c.l.b16 %v4796
    %v5119 = vunpack.c.l.b16 %v4797
    %v5120 = vunpack.c.h.b16 %v4797
    %v5121 = vunpack.c.l.b16 %v4798
    %v5122 = vunpack.c.l.b16 %v4799
    %v5123 = vunpack.c.h.b16 %v4799
    %v5124 = vunpack.c.l.b16 %v4800
    %v5125 = vunpack.c.l.b16 %v4801
    %v5126 = vunpack.c.h.b16 %v4801
    %v5127 = vunpack.c.l.b16 %v4802
    %v5128 = vunpack.c.l.b16 %v4803
    %v5129 = vunpack.c.h.b16 %v4803
    %v5130 = vunpack.c.l.b16 %v4804
    %v5131 = vunpack.c.l.b16 %v4805
    %v5132 = vunpack.c.h.b16 %v4805
    %v5133 = vunpack.c.l.b16 %v4806
    %v5134 = vunpack.c.l.b16 %v4807
    %v5135 = vunpack.c.h.b16 %v4807
    %v5136 = vunpack.c.l.b16 %v4808
    %v5137 = vunpack.c.l.b16 %v4809
    %v5138 = vunpack.c.h.b16 %v4809
    %v5139 = vunpack.c.l.b16 %v4810
    %v5140 = vunpack.c.l.b16 %v4811
    %v5141 = vunpack.c.h.b16 %v4811
    %v5142 = vunpack.c.l.b16 %v4812
    %v5143 = vunpack.c.l.b16 %v4813
    %v5144 = vunpack.c.h.b16 %v4813
    %v5145 = vunpack.c.l.b16 %v4814
    %v5146 = vunpack.c.l.b16 %v4815
    %v5147 = vunpack.c.h.b16 %v4815
    %v5148 = vunpack.c.l.b16 %v4816
    %v5149 = vunpack.c.l.b16 %v4817
    %v5150 = vunpack.c.h.b16 %v4817
    %v5151 = vunpack.c.l.b16 %v4818
    %v5152 = vunpack.c.l.b16 %v4819
    %v5153 = vunpack.c.h.b16 %v4819
    %v5154 = vunpack.c.l.b16 %v4820
    %v5155 = vunpack.c.l.b16 %v4821
    %v5156 = vunpack.c.h.b16 %v4821
    %v5157 = vunpack.c.l.b16 %v4822
    %v5158 = vunpack.c.l.b16 %v4823
    %v5159 = vunpack.c.h.b16 %v4823
    %v5160 = vunpack.c.l.b16 %v4824
    %v5161 = vunpack.c.l.b16 %v4825
    %v5162 = vunpack.c.h.b16 %v4825
    %v5163 = vunpack.c.l.b16 %v4826
    %v5164 = vunpack.c.l.b16 %v4827
    %v5165 = vunpack.c.h.b16 %v4827
    %v5166 = vunpack.c.l.b16 %v4828
    %v5167 = vunpack.c.l.b16 %v4829
    %v5168 = vunpack.c.h.b16 %v4829
    %v5169 = vunpack.c.l.b16 %v4830
    %v5170 = vunpack.c.l.b16 %v4831
    %v5171 = vunpack.c.h.b16 %v4831
    %v5172 = vunpack.c.l.b16 %v4832
    %v5173 = vunpack.c.l.b16 %v4833
    %v5174 = vunpack.c.h.b16 %v4833
    %v5175 = vunpack.c.l.b16 %v4834
    %v5176 = vunpack.c.l.b16 %v4835
    %v5177 = vunpack.c.h.b16 %v4835
    %v5178 = vunpack.c.l.b16 %v4836
    %v5179 = vunpack.c.l.b16 %v4837
    %v5180 = vunpack.c.h.b16 %v4837
    %v5181 = vunpack.c.l.b16 %v4838
    %v5182 = vunpack.c.l.b16 %v4839
    %v5183 = vunpack.c.h.b16 %v4839
    %v5184 = vunpack.c.l.b16 %v4840
    %v5185 = vunpack.c.l.b16 %v4841
    %v5186 = vunpack.c.h.b16 %v4841
    %v5187 = vunpack.c.l.b16 %v4842
    %v5188 = vunpack.c.l.b16 %v4843
    %v5189 = vunpack.c.h.b16 %v4843
    %v5190 = vunpack.c.l.b16 %v4844
    %v5191 = vunpack.c.l.b16 %v4845
    %v5192 = vunpack.c.h.b16 %v4845
    %v5193 = vunpack.c.l.b16 %v4846
    %v5194 = vunpack.c.l.b16 %v4847
    %v5195 = vunpack.c.h.b16 %v4847
    %v5196 = vunpack.c.l.b16 %v4848
    %v5197 = vunpack.c.l.b16 %v4849
    %v5198 = vunpack.c.h.b16 %v4849
    %v5199 = vunpack.c.l.b16 %v4850
    %v5200 = vunpack.c.l.b16 %v4851
    %v5201 = vunpack.c.h.b16 %v4851
    %v5202 = vunpack.c.l.b16 %v4852
    %v5203 = vunpack.c.l.b16 %v4853
    %v5204 = vunpack.c.h.b16 %v4853
    %v5205 = vunpack.c.l.b16 %v4854
    %v5206 = vunpack.c.l.b16 %v4855
    %v5207 = vunpack.c.h.b16 %v4855
    %v5208 = vunpack.c.l.b16 %v4856
    %v5209 = vunpack.c.l.b16 %v4857
    %v5210 = vunpack.c.h.b16 %v4857
    %v5211 = vunpack.c.l.b16 %v4858
    %v5212 = vunpack.c.l.b16 %v4859
    %v5213 = vunpack.c.h.b16 %v4859
    %v5214 = vunpack.c.l.b16 %v4860
    %v5215 = vunpack.c.l.b16 %v4861
    %v5216 = vunpack.c.h.b16 %v4861
    %v5217 = vunpack.c.l.b16 %v4862
    %v5218 = vunpack.c.l.b16 %v4863
    %v5219 = vunpack.c.h.b16 %v4863
    %v5220 = vunpack.c.l.b16 %v4864
    %v5221 = vunpack.c.l.b16 %v4865
    %v5222 = vunpack.c.h.b16 %v4865
    %v5223 = vunpack.c.l.b16 %v4866
    %v5224 = vunpack.c.l.b16 %v4867
    %v5225 = vunpack.c.h.b16 %v4867
    %v5226 = vunpack.c.l.b16 %v4868
    %v5227 = vunpack.c.l.b16 %v4869
    %v5228 = vunpack.c.h.b16 %v4869
    %v5229 = vunpack.c.l.b16 %v4870
    %v5230 = vunpack.c.l.b16 %v4871
    %v5231 = vunpack.c.h.b16 %v4871
    %v5232 = vunpack.c.l.b16 %v4872
    %v5233 = vunpack.c.l.b16 %v4873
    %v5234 = vunpack.c.h.b16 %v4873
    %v5235 = vunpack.c.l.b16 %v4874
    %v5236 = vunpack.c.l.b16 %v4875
    %v5237 = vunpack.c.h.b16 %v4875
    %v5238 = vunpack.c.l.b16 %v4876
    %v5239 = vunpack.c.l.b16 %v4877
    %v5240 = vunpack.c.h.b16 %v4877
    %v5241 = vunpack.c.l.b16 %v4878
    %v5242 = vunpack.c.l.b16 %v4879
    %v5243 = vunpack.c.h.b16 %v4879
    %v5244 = vunpack.c.l.b16 %v4880
    %v5245 = vunpack.c.l.b16 %v4881
    %v5246 = vunpack.c.h.b16 %v4881
    %v5247 = vunpack.c.l.b16 %v4882
    %v5248 = vunpack.c.l.b16 %v4883
    %v5249 = vunpack.c.h.b16 %v4883
    %v5250 = vunpack.c.l.b16 %v4884
    %v5251 = vunpack.c.l.b16 %v4885
    %v5252 = vunpack.c.h.b16 %v4885
    %v5253 = vunpack.c.l.b16 %v4886
    %v5254 = vunpack.c.l.b16 %v4887
    %v5255 = vunpack.c.h.b16 %v4887
    %v5256 = vunpack.c.l.b16 %v4888
    %v5257 = vunpack.c.l.b16 %v4889
    %v5258 = vunpack.c.h.b16 %v4889
    %v5259 = vunpack.c.l.b16 %v4890
    %v5260 = vpack.c.b16 %v5071, %v5068
    %v5261 = vpack.c.b16 %v5072, %v5069
    %v5262 = vpack.c.b16 %v5073, %v5070
    %v5263 = vpack.c.b16 %v5077, %v5074
    %v5264 = vpack.c.b16 %v5078, %v5075
    %v5265 = vpack.c.b16 %v5079, %v5076
    %v5266 = vpack.c.b16 %v5083, %v5080
    %v5267 = vpack.c.b16 %v5084, %v5081
    %v5268 = vpack.c.b16 %v5085, %v5082
    %v5269 = vpack.c.b16 %v5089, %v5086
    %v5270 = vpack.c.b16 %v5090, %v5087
    %v5271 = vpack.c.b16 %v5091, %v5088
    %v5272 = vpack.c.b16 %v5095, %v5092
    %v5273 = vpack.c.b16 %v5096, %v5093
    %v5274 = vpack.c.b16 %v5097, %v5094
    %v5275 = vpack.c.b16 %v5101, %v5098
    %v5276 = vpack.c.b16 %v5102, %v5099
    %v5277 = vpack.c.b16 %v5103, %v5100
    %v5278 = vpack.c.b16 %v5107, %v5104
    %v5279 = vpack.c.b16 %v5108, %v5105
    %v5280 = vpack.c.b16 %v5109, %v5106
    %v5281 = vpack.c.b16 %v5113, %v5110
    %v5282 = vpack.c.b16 %v5114, %v5111
    %v5283 = vpack.c.b16 %v5115, %v5112
    %v5284 = vpack.c.b16 %v5119, %v5116
    %v5285 = vpack.c.b16 %v5120, %v5117
    %v5286 = vpack.c.b16 %v5121, %v5118
    %v5287 = vpack.c.b16 %v5125, %v5122
    %v5288 = vpack.c.b16 %v5126, %v5123
    %v5289 = vpack.c.b16 %v5127, %v5124
    %v5290 = vpack.c.b16 %v5131, %v5128
    %v5291 = vpack.c.b16 %v5132, %v5129
    %v5292 = vpack.c.b16 %v5133, %v5130
    %v5293 = vpack.c.b16 %v5137, %v5134
    %v5294 = vpack.c.b16 %v5138, %v5135
    %v5295 = vpack.c.b16 %v5139, %v5136
    %v5296 = vpack.c.b16 %v5143, %v5140
    %v5297 = vpack.c.b16 %v5144, %v5141
    %v5298 = vpack.c.b16 %v5145, %v5142
    %v5299 = vpack.c.b16 %v5149, %v5146
    %v5300 = vpack.c.b16 %v5150, %v5147
    %v5301 = vpack.c.b16 %v5151, %v5148
    %v5302 = vpack.c.b16 %v5155, %v5152
    %v5303 = vpack.c.b16 %v5156, %v5153
    %v5304 = vpack.c.b16 %v5157, %v5154
    %v5305 = vpack.c.b16 %v5161, %v5158
    %v5306 = vpack.c.b16 %v5162, %v5159
    %v5307 = vpack.c.b16 %v5163, %v5160
    %v5308 = vpack.c.b16 %v5167, %v5164
    %v5309 = vpack.c.b16 %v5168, %v5165
    %v5310 = vpack.c.b16 %v5169, %v5166
    %v5311 = vpack.c.b16 %v5173, %v5170
    %v5312 = vpack.c.b16 %v5174, %v5171
    %v5313 = vpack.c.b16 %v5175, %v5172
    %v5314 = vpack.c.b16 %v5179, %v5176
    %v5315 = vpack.c.b16 %v5180, %v5177
    %v5316 = vpack.c.b16 %v5181, %v5178
    %v5317 = vpack.c.b16 %v5185, %v5182
    %v5318 = vpack.c.b16 %v5186, %v5183
    %v5319 = vpack.c.b16 %v5187, %v5184
    %v5320 = vpack.c.b16 %v5191, %v5188
    %v5321 = vpack.c.b16 %v5192, %v5189
    %v5322 = vpack.c.b16 %v5193, %v5190
    %v5323 = vpack.c.b16 %v5197, %v5194
    %v5324 = vpack.c.b16 %v5198, %v5195
    %v5325 = vpack.c.b16 %v5199, %v5196
    %v5326 = vpack.c.b16 %v5203, %v5200
    %v5327 = vpack.c.b16 %v5204, %v5201
    %v5328 = vpack.c.b16 %v5205, %v5202
    %v5329 = vpack.c.b16 %v5209, %v5206
    %v5330 = vpack.c.b16 %v5210, %v5207
    %v5331 = vpack.c.b16 %v5211, %v5208
    %v5332 = vpack.c.b16 %v5215, %v5212
    %v5333 = vpack.c.b16 %v5216, %v5213
    %v5334 = vpack.c.b16 %v5217, %v5214
    %v5335 = vpack.c.b16 %v5221, %v5218
    %v5336 = vpack.c.b16 %v5222, %v5219
    %v5337 = vpack.c.b16 %v5223, %v5220
    %v5338 = vpack.c.b16 %v5227, %v5224
    %v5339 = vpack.c.b16 %v5228, %v5225
    %v5340 = vpack.c.b16 %v5229, %v5226
    %v5341 = vpack.c.b16 %v5233, %v5230
    %v5342 = vpack.c.b16 %v5234, %v5231
    %v5343 = vpack.c.b16 %v5235, %v5232
    %v5344 = vpack.c.b16 %v5239, %v5236
    %v5345 = vpack.c.b16 %v5240, %v5237
    %v5346 = vpack.c.b16 %v5241, %v5238
    %v5347 = vpack.c.b16 %v5245, %v5242
    %v5348 = vpack.c.b16 %v5246, %v5243
    %v5349 = vpack.c.b16 %v5247, %v5244
    %v5350 = vpack.c.b16 %v5251, %v5248
    %v5351 = vpack.c.b16 %v5252, %v5249
    %v5352 = vpack.c.b16 %v5253, %v5250
    %v5353 = vpack.c.b16 %v5257, %v5254
    %v5354 = vpack.c.b16 %v5258, %v5255
    %v5355 = vpack.c.b16 %v5259, %v5256
    %v5500 = vunpack.c.l.b16 %v4892
    %v5501 = vunpack.c.l.b16 %v4893
    %v5502 = vunpack.c.l.b16 %v4894
    %v5503 = vunpack.c.l.b16 %v4895
    %v5504 = vunpack.c.l.b16 %v4896
    %v5505 = vunpack.c.l.b16 %v4897
    %v5506 = vunpack.c.l.b16 %v4898
    %v5507 = vunpack.c.l.b16 %v4899
    %v5508 = vunpack.c.l.b16 %v4900
    %v5509 = vunpack.c.l.b16 %v4901
    %v5510 = vunpack.c.l.b16 %v4902
    %v5511 = vunpack.c.l.b16 %v4903
    %v5512 = vunpack.c.l.b16 %v4904
    %v5513 = vunpack.c.l.b16 %v4905
    %v5514 = vunpack.c.l.b16 %v4906
    %v5515 = vunpack.c.l.b16 %v4907
    %v5516 = vunpack.c.l.b16 %v4908
    %v5517 = vunpack.c.l.b16 %v4909
    %v5518 = vunpack.c.l.b16 %v4910
    %v5519 = vunpack.c.l.b16 %v4911
    %v5520 = vunpack.c.l.b16 %v4912
    %v5521 = vunpack.c.l.b16 %v4913
    %v5522 = vunpack.c.l.b16 %v4914
    %v5523 = vunpack.c.l.b16 %v4915
    %v5524 = vunpack.c.l.b16 %v4916
    %v5525 = vunpack.c.l.b16 %v4917
    %v5526 = vunpack.c.l.b16 %v4918
    %v5527 = vunpack.c.l.b16 %v4919
    %v5528 = vunpack.c.l.b16 %v4920
    %v5529 = vunpack.c.l.b16 %v4921
    %v5530 = vunpack.c.l.b16 %v4922
    %v5531 = vunpack.c.l.b16 %v4923
    %v5532 = vunpack.c.l.b16 %v4924
    %v5533 = vunpack.c.l.b16 %v4925
    %v5534 = vunpack.c.l.b16 %v4926
    %v5535 = vunpack.c.l.b16 %v4927
    %v5536 = vunpack.c.l.b16 %v4928
    %v5537 = vunpack.c.l.b16 %v4929
    %v5538 = vunpack.c.l.b16 %v4930
    %v5539 = vunpack.c.l.b16 %v4931
    %v5540 = vunpack.c.l.b16 %v4932
    %v5541 = vunpack.c.l.b16 %v4933
    %v5542 = vunpack.c.l.b16 %v4934
    %v5543 = vunpack.c.l.b16 %v4935
    %v5544 = vunpack.c.l.b16 %v4936
    %v5545 = vunpack.c.l.b16 %v4937
    %v5546 = vunpack.c.l.b16 %v4938
    %v5547 = vunpack.c.l.b16 %v4939
    %v5548 = vpack.c.b16 %v5501, %v5500
    %v5549 = vpack.c.b16 %v5503, %v5502
    %v5550 = vpack.c.b16 %v5505, %v5504
    %v5551 = vpack.c.b16 %v5507, %v5506
    %v5552 = vpack.c.b16 %v5509, %v5508
    %v5553 = vpack.c.b16 %v5511, %v5510
    %v5554 = vpack.c.b16 %v5513, %v5512
    %v5555 = vpack.c.b16 %v5515, %v5514
    %v5556 = vpack.c.b16 %v5517, %v5516
    %v5557 = vpack.c.b16 %v5519, %v5518
    %v5558 = vpack.c.b16 %v5521, %v5520
    %v5559 = vpack.c.b16 %v5523, %v5522
    %v5560 = vpack.c.b16 %v5525, %v5524
    %v5561 = vpack.c.b16 %v5527, %v5526
    %v5562 = vpack.c.b16 %v5529, %v5528
    %v5563 = vpack.c.b16 %v5531, %v5530
    %v5564 = vpack.c.b16 %v5533, %v5532
    %v5565 = vpack.c.b16 %v5535, %v5534
    %v5566 = vpack.c.b16 %v5537, %v5536
    %v5567 = vpack.c.b16 %v5539, %v5538
    %v5568 = vpack.c.b16 %v5541, %v5540
    %v5569 = vpack.c.b16 %v5543, %v5542
    %v5570 = vpack.c.b16 %v5545, %v5544
    %v5571 = vpack.c.b16 %v5547, %v5546
    %5596 = vmatpush.bf16.msra.mxu0 %v5555
    %5597 = vmatpush.bf16.msra.mxu0 %v5554
    %5598 = vmatpush.bf16.msra.mxu0 %v5553
    %5599 = vmatpush.bf16.msra.mxu0 %v5552
    %5600 = vmatpush.bf16.msra.mxu0 %v5551
    %5601 = vmatpush.bf16.msra.mxu0 %v5550
    %5602 = vmatpush.bf16.msra.mxu0 %v5549
    %5603 = vmatpush.bf16.msra.mxu0 %v5548
    %5604 = vmatmul.bf16.gmra.mxu0 %v5260
    %v5605 = vpop.f32.mrf.mxu0
    %v5606 = vadd.f32 0.0, %v5605
    %v5607 = vpop.f32.mrf.mxu0
    %v5608 = vadd.f32 0.0, %v5607
    %5609 = vmatmul.bf16.gmra.mxu0 %v5263
    %v5610 = vpop.f32.mrf.mxu0
    %v5611 = vadd.f32 0.0, %v5610
    %v5612 = vpop.f32.mrf.mxu0
    %v5613 = vadd.f32 0.0, %v5612
    %5614 = vmatmul.bf16.gmra.mxu0 %v5266
    %v5615 = vpop.f32.mrf.mxu0
    %v5616 = vadd.f32 0.0, %v5615
    %v5617 = vpop.f32.mrf.mxu0
    %v5618 = vadd.f32 0.0, %v5617
    %5619 = vmatmul.bf16.gmra.mxu0 %v5269
    %v5620 = vpop.f32.mrf.mxu0
    %v5621 = vadd.f32 0.0, %v5620
    %v5622 = vpop.f32.mrf.mxu0
    %v5623 = vadd.f32 0.0, %v5622
    %5624 = vmatmul.bf16.gmra.mxu0 %v5272
    %v5625 = vpop.f32.mrf.mxu0
    %v5626 = vadd.f32 0.0, %v5625
    %v5627 = vpop.f32.mrf.mxu0
    %v5628 = vadd.f32 0.0, %v5627
    %5629 = vmatmul.bf16.gmra.mxu0 %v5275
    %v5630 = vpop.f32.mrf.mxu0
    %v5631 = vadd.f32 0.0, %v5630
    %v5632 = vpop.f32.mrf.mxu0
    %v5633 = vadd.f32 0.0, %v5632
    %5634 = vmatmul.bf16.gmra.mxu0 %v5278
    %v5635 = vpop.f32.mrf.mxu0
    %v5636 = vadd.f32 0.0, %v5635
    %v5637 = vpop.f32.mrf.mxu0
    %v5638 = vadd.f32 0.0, %v5637
    %5639 = vmatmul.bf16.gmra.mxu0 %v5281
    %v5640 = vpop.f32.mrf.mxu0
    %v5641 = vadd.f32 0.0, %v5640
    %v5642 = vpop.f32.mrf.mxu0
    %v5643 = vadd.f32 0.0, %v5642
    %5644 = vmatmul.bf16.gmra.mxu0 %v5284
    %v5645 = vpop.f32.mrf.mxu0
    %v5646 = vadd.f32 0.0, %v5645
    %v5647 = vpop.f32.mrf.mxu0
    %v5648 = vadd.f32 0.0, %v5647
    %5649 = vmatmul.bf16.gmra.mxu0 %v5287
    %v5650 = vpop.f32.mrf.mxu0
    %v5651 = vadd.f32 0.0, %v5650
    %v5652 = vpop.f32.mrf.mxu0
    %v5653 = vadd.f32 0.0, %v5652
    %5654 = vmatmul.bf16.gmra.mxu0 %v5290
    %v5655 = vpop.f32.mrf.mxu0
    %v5656 = vadd.f32 0.0, %v5655
    %v5657 = vpop.f32.mrf.mxu0
    %v5658 = vadd.f32 0.0, %v5657
    %5659 = vmatmul.bf16.gmra.mxu0 %v5293
    %v5660 = vpop.f32.mrf.mxu0
    %v5661 = vadd.f32 0.0, %v5660
    %v5662 = vpop.f32.mrf.mxu0
    %v5663 = vadd.f32 0.0, %v5662
    %5664 = vmatmul.bf16.gmra.mxu0 %v5296
    %v5665 = vpop.f32.mrf.mxu0
    %v5666 = vadd.f32 0.0, %v5665
    %v5667 = vpop.f32.mrf.mxu0
    %v5668 = vadd.f32 0.0, %v5667
    %5669 = vmatmul.bf16.gmra.mxu0 %v5299
    %v5670 = vpop.f32.mrf.mxu0
    %v5671 = vadd.f32 0.0, %v5670
    %v5672 = vpop.f32.mrf.mxu0
    %v5673 = vadd.f32 0.0, %v5672
    %5674 = vmatmul.bf16.gmra.mxu0 %v5302
    %v5675 = vpop.f32.mrf.mxu0
    %v5676 = vadd.f32 0.0, %v5675
    %v5677 = vpop.f32.mrf.mxu0
    %v5678 = vadd.f32 0.0, %v5677
    %5679 = vmatmul.bf16.gmra.mxu0 %v5305
    %v5680 = vpop.f32.mrf.mxu0
    %v5681 = vadd.f32 0.0, %v5680
    %v5682 = vpop.f32.mrf.mxu0
    %v5683 = vadd.f32 0.0, %v5682
    %5684 = vmatmul.bf16.gmra.mxu0 %v5308
    %v5685 = vpop.f32.mrf.mxu0
    %v5686 = vadd.f32 0.0, %v5685
    %v5687 = vpop.f32.mrf.mxu0
    %v5688 = vadd.f32 0.0, %v5687
    %5689 = vmatmul.bf16.gmra.mxu0 %v5311
    %v5690 = vpop.f32.mrf.mxu0
    %v5691 = vadd.f32 0.0, %v5690
    %v5692 = vpop.f32.mrf.mxu0
    %v5693 = vadd.f32 0.0, %v5692
    %5694 = vmatmul.bf16.gmra.mxu0 %v5314
    %v5695 = vpop.f32.mrf.mxu0
    %v5696 = vadd.f32 0.0, %v5695
    %v5697 = vpop.f32.mrf.mxu0
    %v5698 = vadd.f32 0.0, %v5697
    %5699 = vmatmul.bf16.gmra.mxu0 %v5317
    %v5700 = vpop.f32.mrf.mxu0
    %v5701 = vadd.f32 0.0, %v5700
    %v5702 = vpop.f32.mrf.mxu0
    %v5703 = vadd.f32 0.0, %v5702
    %5704 = vmatmul.bf16.gmra.mxu0 %v5320
    %v5705 = vpop.f32.mrf.mxu0
    %v5706 = vadd.f32 0.0, %v5705
    %v5707 = vpop.f32.mrf.mxu0
    %v5708 = vadd.f32 0.0, %v5707
    %5709 = vmatmul.bf16.gmra.mxu0 %v5323
    %v5710 = vpop.f32.mrf.mxu0
    %v5711 = vadd.f32 0.0, %v5710
    %v5712 = vpop.f32.mrf.mxu0
    %v5713 = vadd.f32 0.0, %v5712
    %5714 = vmatmul.bf16.gmra.mxu0 %v5326
    %v5715 = vpop.f32.mrf.mxu0
    %v5716 = vadd.f32 0.0, %v5715
    %v5717 = vpop.f32.mrf.mxu0
    %v5718 = vadd.f32 0.0, %v5717
    %5719 = vmatmul.bf16.gmra.mxu0 %v5329
    %v5720 = vpop.f32.mrf.mxu0
    %v5721 = vadd.f32 0.0, %v5720
    %v5722 = vpop.f32.mrf.mxu0
    %v5723 = vadd.f32 0.0, %v5722
    %5724 = vmatmul.bf16.gmra.mxu0 %v5332
    %v5725 = vpop.f32.mrf.mxu0
    %v5726 = vadd.f32 0.0, %v5725
    %v5727 = vpop.f32.mrf.mxu0
    %v5728 = vadd.f32 0.0, %v5727
    %5729 = vmatmul.bf16.gmra.mxu0 %v5335
    %v5730 = vpop.f32.mrf.mxu0
    %v5731 = vadd.f32 0.0, %v5730
    %v5732 = vpop.f32.mrf.mxu0
    %v5733 = vadd.f32 0.0, %v5732
    %5734 = vmatmul.bf16.gmra.mxu0 %v5338
    %v5735 = vpop.f32.mrf.mxu0
    %v5736 = vadd.f32 0.0, %v5735
    %v5737 = vpop.f32.mrf.mxu0
    %v5738 = vadd.f32 0.0, %v5737
    %5739 = vmatmul.bf16.gmra.mxu0 %v5341
    %v5740 = vpop.f32.mrf.mxu0
    %v5741 = vadd.f32 0.0, %v5740
    %v5742 = vpop.f32.mrf.mxu0
    %v5743 = vadd.f32 0.0, %v5742
    %5744 = vmatmul.bf16.gmra.mxu0 %v5344
    %v5745 = vpop.f32.mrf.mxu0
    %v5746 = vadd.f32 0.0, %v5745
    %v5747 = vpop.f32.mrf.mxu0
    %v5748 = vadd.f32 0.0, %v5747
    %5749 = vmatmul.bf16.gmra.mxu0 %v5347
    %v5750 = vpop.f32.mrf.mxu0
    %v5751 = vadd.f32 0.0, %v5750
    %v5752 = vpop.f32.mrf.mxu0
    %v5753 = vadd.f32 0.0, %v5752
    %5754 = vmatmul.bf16.gmra.mxu0 %v5350
    %v5755 = vpop.f32.mrf.mxu0
    %v5756 = vadd.f32 0.0, %v5755
    %v5757 = vpop.f32.mrf.mxu0
    %v5758 = vadd.f32 0.0, %v5757
    %5759 = vmatmul.bf16.gmra.mxu0 %v5353
    %v5760 = vpop.f32.mrf.mxu0
    %v5761 = vadd.f32 0.0, %v5760
    %v5762 = vpop.f32.mrf.mxu0
    %v5763 = vadd.f32 0.0, %v5762
    %5764 = vdwg.mxu0
    %5765 = vmatpush.bf16.msra.mxu0 %v5563
    %5766 = vmatpush.bf16.msra.mxu0 %v5562
    %5767 = vmatpush.bf16.msra.mxu0 %v5561
    %5768 = vmatpush.bf16.msra.mxu0 %v5560
    %5769 = vmatpush.bf16.msra.mxu0 %v5559
    %5770 = vmatpush.bf16.msra.mxu0 %v5558
    %5771 = vmatpush.bf16.msra.mxu0 %v5557
    %5772 = vmatpush.bf16.msra.mxu0 %v5556
    %5773 = vmatmul.bf16.gmra.mxu0 %v5261
    %v5774 = vpop.f32.mrf.mxu0
    %v5775 = vadd.f32 %v5606, %v5774
    %v5776 = vpop.f32.mrf.mxu0
    %v5777 = vadd.f32 %v5608, %v5776
    %5778 = vmatmul.bf16.gmra.mxu0 %v5264
    %v5779 = vpop.f32.mrf.mxu0
    %v5780 = vadd.f32 %v5611, %v5779
    %v5781 = vpop.f32.mrf.mxu0
    %v5782 = vadd.f32 %v5613, %v5781
    %5783 = vmatmul.bf16.gmra.mxu0 %v5267
    %v5784 = vpop.f32.mrf.mxu0
    %v5785 = vadd.f32 %v5616, %v5784
    %v5786 = vpop.f32.mrf.mxu0
    %v5787 = vadd.f32 %v5618, %v5786
    %5788 = vmatmul.bf16.gmra.mxu0 %v5270
    %v5789 = vpop.f32.mrf.mxu0
    %v5790 = vadd.f32 %v5621, %v5789
    %v5791 = vpop.f32.mrf.mxu0
    %v5792 = vadd.f32 %v5623, %v5791
    %5793 = vmatmul.bf16.gmra.mxu0 %v5273
    %v5794 = vpop.f32.mrf.mxu0
    %v5795 = vadd.f32 %v5626, %v5794
    %v5796 = vpop.f32.mrf.mxu0
    %v5797 = vadd.f32 %v5628, %v5796
    %5798 = vmatmul.bf16.gmra.mxu0 %v5276
    %v5799 = vpop.f32.mrf.mxu0
    %v5800 = vadd.f32 %v5631, %v5799
    %v5801 = vpop.f32.mrf.mxu0
    %v5802 = vadd.f32 %v5633, %v5801
    %5803 = vmatmul.bf16.gmra.mxu0 %v5279
    %v5804 = vpop.f32.mrf.mxu0
    %v5805 = vadd.f32 %v5636, %v5804
    %v5806 = vpop.f32.mrf.mxu0
    %v5807 = vadd.f32 %v5638, %v5806
    %5808 = vmatmul.bf16.gmra.mxu0 %v5282
    %v5809 = vpop.f32.mrf.mxu0
    %v5810 = vadd.f32 %v5641, %v5809
    %v5811 = vpop.f32.mrf.mxu0
    %v5812 = vadd.f32 %v5643, %v5811
    %5813 = vmatmul.bf16.gmra.mxu0 %v5285
    %v5814 = vpop.f32.mrf.mxu0
    %v5815 = vadd.f32 %v5646, %v5814
    %v5816 = vpop.f32.mrf.mxu0
    %v5817 = vadd.f32 %v5648, %v5816
    %5818 = vmatmul.bf16.gmra.mxu0 %v5288
    %v5819 = vpop.f32.mrf.mxu0
    %v5820 = vadd.f32 %v5651, %v5819
    %v5821 = vpop.f32.mrf.mxu0
    %v5822 = vadd.f32 %v5653, %v5821
    %5823 = vmatmul.bf16.gmra.mxu0 %v5291
    %v5824 = vpop.f32.mrf.mxu0
    %v5825 = vadd.f32 %v5656, %v5824
    %v5826 = vpop.f32.mrf.mxu0
    %v5827 = vadd.f32 %v5658, %v5826
    %5828 = vmatmul.bf16.gmra.mxu0 %v5294
    %v5829 = vpop.f32.mrf.mxu0
    %v5830 = vadd.f32 %v5661, %v5829
    %v5831 = vpop.f32.mrf.mxu0
    %v5832 = vadd.f32 %v5663, %v5831
    %5833 = vmatmul.bf16.gmra.mxu0 %v5297
    %v5834 = vpop.f32.mrf.mxu0
    %v5835 = vadd.f32 %v5666, %v5834
    %v5836 = vpop.f32.mrf.mxu0
    %v5837 = vadd.f32 %v5668, %v5836
    %5838 = vmatmul.bf16.gmra.mxu0 %v5300
    %v5839 = vpop.f32.mrf.mxu0
    %v5840 = vadd.f32 %v5671, %v5839
    %v5841 = vpop.f32.mrf.mxu0
    %v5842 = vadd.f32 %v5673, %v5841
    %5843 = vmatmul.bf16.gmra.mxu0 %v5303
    %v5844 = vpop.f32.mrf.mxu0
    %v5845 = vadd.f32 %v5676, %v5844
    %v5846 = vpop.f32.mrf.mxu0
    %v5847 = vadd.f32 %v5678, %v5846
    %5848 = vmatmul.bf16.gmra.mxu0 %v5306
    %v5849 = vpop.f32.mrf.mxu0
    %v5850 = vadd.f32 %v5681, %v5849
    %v5851 = vpop.f32.mrf.mxu0
    %v5852 = vadd.f32 %v5683, %v5851
    %5853 = vmatmul.bf16.gmra.mxu0 %v5309
    %v5854 = vpop.f32.mrf.mxu0
    %v5855 = vadd.f32 %v5686, %v5854
    %v5856 = vpop.f32.mrf.mxu0
    %v5857 = vadd.f32 %v5688, %v5856
    %5858 = vmatmul.bf16.gmra.mxu0 %v5312
    %v5859 = vpop.f32.mrf.mxu0
    %v5860 = vadd.f32 %v5691, %v5859
    %v5861 = vpop.f32.mrf.mxu0
    %v5862 = vadd.f32 %v5693, %v5861
    %5863 = vmatmul.bf16.gmra.mxu0 %v5315
    %v5864 = vpop.f32.mrf.mxu0
    %v5865 = vadd.f32 %v5696, %v5864
    %v5866 = vpop.f32.mrf.mxu0
    %v5867 = vadd.f32 %v5698, %v5866
    %5868 = vmatmul.bf16.gmra.mxu0 %v5318
    %v5869 = vpop.f32.mrf.mxu0
    %v5870 = vadd.f32 %v5701, %v5869
    %v5871 = vpop.f32.mrf.mxu0
    %v5872 = vadd.f32 %v5703, %v5871
    %5873 = vmatmul.bf16.gmra.mxu0 %v5321
    %v5874 = vpop.f32.mrf.mxu0
    %v5875 = vadd.f32 %v5706, %v5874
    %v5876 = vpop.f32.mrf.mxu0
    %v5877 = vadd.f32 %v5708, %v5876
    %5878 = vmatmul.bf16.gmra.mxu0 %v5324
    %v5879 = vpop.f32.mrf.mxu0
    %v5880 = vadd.f32 %v5711, %v5879
    %v5881 = vpop.f32.mrf.mxu0
    %v5882 = vadd.f32 %v5713, %v5881
    %5883 = vmatmul.bf16.gmra.mxu0 %v5327
    %v5884 = vpop.f32.mrf.mxu0
    %v5885 = vadd.f32 %v5716, %v5884
    %v5886 = vpop.f32.mrf.mxu0
    %v5887 = vadd.f32 %v5718, %v5886
    %5888 = vmatmul.bf16.gmra.mxu0 %v5330
    %v5889 = vpop.f32.mrf.mxu0
    %v5890 = vadd.f32 %v5721, %v5889
    %v5891 = vpop.f32.mrf.mxu0
    %v5892 = vadd.f32 %v5723, %v5891
    %5893 = vmatmul.bf16.gmra.mxu0 %v5333
    %v5894 = vpop.f32.mrf.mxu0
    %v5895 = vadd.f32 %v5726, %v5894
    %v5896 = vpop.f32.mrf.mxu0
    %v5897 = vadd.f32 %v5728, %v5896
    %5898 = vmatmul.bf16.gmra.mxu0 %v5336
    %v5899 = vpop.f32.mrf.mxu0
    %v5900 = vadd.f32 %v5731, %v5899
    %v5901 = vpop.f32.mrf.mxu0
    %v5902 = vadd.f32 %v5733, %v5901
    %5903 = vmatmul.bf16.gmra.mxu0 %v5339
    %v5904 = vpop.f32.mrf.mxu0
    %v5905 = vadd.f32 %v5736, %v5904
    %v5906 = vpop.f32.mrf.mxu0
    %v5907 = vadd.f32 %v5738, %v5906
    %5908 = vmatmul.bf16.gmra.mxu0 %v5342
    %v5909 = vpop.f32.mrf.mxu0
    %v5910 = vadd.f32 %v5741, %v5909
    %v5911 = vpop.f32.mrf.mxu0
    %v5912 = vadd.f32 %v5743, %v5911
    %5913 = vmatmul.bf16.gmra.mxu0 %v5345
    %v5914 = vpop.f32.mrf.mxu0
    %v5915 = vadd.f32 %v5746, %v5914
    %v5916 = vpop.f32.mrf.mxu0
    %v5917 = vadd.f32 %v5748, %v5916
    %5918 = vmatmul.bf16.gmra.mxu0 %v5348
    %v5919 = vpop.f32.mrf.mxu0
    %v5920 = vadd.f32 %v5751, %v5919
    %v5921 = vpop.f32.mrf.mxu0
    %v5922 = vadd.f32 %v5753, %v5921
    %5923 = vmatmul.bf16.gmra.mxu0 %v5351
    %v5924 = vpop.f32.mrf.mxu0
    %v5925 = vadd.f32 %v5756, %v5924
    %v5926 = vpop.f32.mrf.mxu0
    %v5927 = vadd.f32 %v5758, %v5926
    %5928 = vmatmul.bf16.gmra.mxu0 %v5354
    %v5929 = vpop.f32.mrf.mxu0
    %v5930 = vadd.f32 %v5761, %v5929
    %v5931 = vpop.f32.mrf.mxu0
    %v5932 = vadd.f32 %v5763, %v5931
    %5933 = vdwg.mxu0
    %5934 = vmatpush.bf16.msra.mxu0 %v5571
    %5935 = vmatpush.bf16.msra.mxu0 %v5570
    %5936 = vmatpush.bf16.msra.mxu0 %v5569
    %5937 = vmatpush.bf16.msra.mxu0 %v5568
    %5938 = vmatpush.bf16.msra.mxu0 %v5567
    %5939 = vmatpush.bf16.msra.mxu0 %v5566
    %5940 = vmatpush.bf16.msra.mxu0 %v5565
    %5941 = vmatpush.bf16.msra.mxu0 %v5564
    %5942 = vmatmul.bf16.gmra.mxu0 %v5262
    %v5943 = vpop.f32.mrf.mxu0
    %v5944 = vadd.f32 %v5775, %v5943
    %v5945 = vpop.f32.mrf.mxu0
    %v5946 = vadd.f32 %v5777, %v5945
    %5947 = vmatmul.bf16.gmra.mxu0 %v5265
    %v5948 = vpop.f32.mrf.mxu0
    %v5949 = vadd.f32 %v5780, %v5948
    %v5950 = vpop.f32.mrf.mxu0
    %v5951 = vadd.f32 %v5782, %v5950
    %5952 = vmatmul.bf16.gmra.mxu0 %v5268
    %v5953 = vpop.f32.mrf.mxu0
    %v5954 = vadd.f32 %v5785, %v5953
    %v5955 = vpop.f32.mrf.mxu0
    %v5956 = vadd.f32 %v5787, %v5955
    %5957 = vmatmul.bf16.gmra.mxu0 %v5271
    %v5958 = vpop.f32.mrf.mxu0
    %v5959 = vadd.f32 %v5790, %v5958
    %v5960 = vpop.f32.mrf.mxu0
    %v5961 = vadd.f32 %v5792, %v5960
    %5962 = vmatmul.bf16.gmra.mxu0 %v5274
    %v5963 = vpop.f32.mrf.mxu0
    %v5964 = vadd.f32 %v5795, %v5963
    %v5965 = vpop.f32.mrf.mxu0
    %v5966 = vadd.f32 %v5797, %v5965
    %5967 = vmatmul.bf16.gmra.mxu0 %v5277
    %v5968 = vpop.f32.mrf.mxu0
    %v5969 = vadd.f32 %v5800, %v5968
    %v5970 = vpop.f32.mrf.mxu0
    %v5971 = vadd.f32 %v5802, %v5970
    %5972 = vmatmul.bf16.gmra.mxu0 %v5280
    %v5973 = vpop.f32.mrf.mxu0
    %v5974 = vadd.f32 %v5805, %v5973
    %v5975 = vpop.f32.mrf.mxu0
    %v5976 = vadd.f32 %v5807, %v5975
    %5977 = vmatmul.bf16.gmra.mxu0 %v5283
    %v5978 = vpop.f32.mrf.mxu0
    %v5979 = vadd.f32 %v5810, %v5978
    %v5980 = vpop.f32.mrf.mxu0
    %v5981 = vadd.f32 %v5812, %v5980
    %5982 = vmatmul.bf16.gmra.mxu0 %v5286
    %v5983 = vpop.f32.mrf.mxu0
    %v5984 = vadd.f32 %v5815, %v5983
    %v5985 = vpop.f32.mrf.mxu0
    %v5986 = vadd.f32 %v5817, %v5985
    %5987 = vmatmul.bf16.gmra.mxu0 %v5289
    %v5988 = vpop.f32.mrf.mxu0
    %v5989 = vadd.f32 %v5820, %v5988
    %v5990 = vpop.f32.mrf.mxu0
    %v5991 = vadd.f32 %v5822, %v5990
    %5992 = vmatmul.bf16.gmra.mxu0 %v5292
    %v5993 = vpop.f32.mrf.mxu0
    %v5994 = vadd.f32 %v5825, %v5993
    %v5995 = vpop.f32.mrf.mxu0
    %v5996 = vadd.f32 %v5827, %v5995
    %5997 = vmatmul.bf16.gmra.mxu0 %v5295
    %v5998 = vpop.f32.mrf.mxu0
    %v5999 = vadd.f32 %v5830, %v5998
    %v6000 = vpop.f32.mrf.mxu0
    %v6001 = vadd.f32 %v5832, %v6000
    %6002 = vmatmul.bf16.gmra.mxu0 %v5298
    %v6003 = vpop.f32.mrf.mxu0
    %v6004 = vadd.f32 %v5835, %v6003
    %v6005 = vpop.f32.mrf.mxu0
    %v6006 = vadd.f32 %v5837, %v6005
    %6007 = vmatmul.bf16.gmra.mxu0 %v5301
    %v6008 = vpop.f32.mrf.mxu0
    %v6009 = vadd.f32 %v5840, %v6008
    %v6010 = vpop.f32.mrf.mxu0
    %v6011 = vadd.f32 %v5842, %v6010
    %6012 = vmatmul.bf16.gmra.mxu0 %v5304
    %v6013 = vpop.f32.mrf.mxu0
    %v6014 = vadd.f32 %v5845, %v6013
    %v6015 = vpop.f32.mrf.mxu0
    %v6016 = vadd.f32 %v5847, %v6015
    %6017 = vmatmul.bf16.gmra.mxu0 %v5307
    %v6018 = vpop.f32.mrf.mxu0
    %v6019 = vadd.f32 %v5850, %v6018
    %v6020 = vpop.f32.mrf.mxu0
    %v6021 = vadd.f32 %v5852, %v6020
    %6022 = vmatmul.bf16.gmra.mxu0 %v5310
    %v6023 = vpop.f32.mrf.mxu0
    %v6024 = vadd.f32 %v5855, %v6023
    %v6025 = vpop.f32.mrf.mxu0
    %v6026 = vadd.f32 %v5857, %v6025
    %6027 = vmatmul.bf16.gmra.mxu0 %v5313
    %v6028 = vpop.f32.mrf.mxu0
    %v6029 = vadd.f32 %v5860, %v6028
    %v6030 = vpop.f32.mrf.mxu0
    %v6031 = vadd.f32 %v5862, %v6030
    %6032 = vmatmul.bf16.gmra.mxu0 %v5316
    %v6033 = vpop.f32.mrf.mxu0
    %v6034 = vadd.f32 %v5865, %v6033
    %v6035 = vpop.f32.mrf.mxu0
    %v6036 = vadd.f32 %v5867, %v6035
    %6037 = vmatmul.bf16.gmra.mxu0 %v5319
    %v6038 = vpop.f32.mrf.mxu0
    %v6039 = vadd.f32 %v5870, %v6038
    %v6040 = vpop.f32.mrf.mxu0
    %v6041 = vadd.f32 %v5872, %v6040
    %6042 = vmatmul.bf16.gmra.mxu0 %v5322
    %v6043 = vpop.f32.mrf.mxu0
    %v6044 = vadd.f32 %v5875, %v6043
    %v6045 = vpop.f32.mrf.mxu0
    %v6046 = vadd.f32 %v5877, %v6045
    %6047 = vmatmul.bf16.gmra.mxu0 %v5325
    %v6048 = vpop.f32.mrf.mxu0
    %v6049 = vadd.f32 %v5880, %v6048
    %v6050 = vpop.f32.mrf.mxu0
    %v6051 = vadd.f32 %v5882, %v6050
    %6052 = vmatmul.bf16.gmra.mxu0 %v5328
    %v6053 = vpop.f32.mrf.mxu0
    %v6054 = vadd.f32 %v5885, %v6053
    %v6055 = vpop.f32.mrf.mxu0
    %v6056 = vadd.f32 %v5887, %v6055
    %6057 = vmatmul.bf16.gmra.mxu0 %v5331
    %v6058 = vpop.f32.mrf.mxu0
    %v6059 = vadd.f32 %v5890, %v6058
    %v6060 = vpop.f32.mrf.mxu0
    %v6061 = vadd.f32 %v5892, %v6060
    %6062 = vmatmul.bf16.gmra.mxu0 %v5334
    %v6063 = vpop.f32.mrf.mxu0
    %v6064 = vadd.f32 %v5895, %v6063
    %v6065 = vpop.f32.mrf.mxu0
    %v6066 = vadd.f32 %v5897, %v6065
    %6067 = vmatmul.bf16.gmra.mxu0 %v5337
    %v6068 = vpop.f32.mrf.mxu0
    %v6069 = vadd.f32 %v5900, %v6068
    %v6070 = vpop.f32.mrf.mxu0
    %v6071 = vadd.f32 %v5902, %v6070
    %6072 = vmatmul.bf16.gmra.mxu0 %v5340
    %v6073 = vpop.f32.mrf.mxu0
    %v6074 = vadd.f32 %v5905, %v6073
    %v6075 = vpop.f32.mrf.mxu0
    %v6076 = vadd.f32 %v5907, %v6075
    %6077 = vmatmul.bf16.gmra.mxu0 %v5343
    %v6078 = vpop.f32.mrf.mxu0
    %v6079 = vadd.f32 %v5910, %v6078
    %v6080 = vpop.f32.mrf.mxu0
    %v6081 = vadd.f32 %v5912, %v6080
    %6082 = vmatmul.bf16.gmra.mxu0 %v5346
    %v6083 = vpop.f32.mrf.mxu0
    %v6084 = vadd.f32 %v5915, %v6083
    %v6085 = vpop.f32.mrf.mxu0
    %v6086 = vadd.f32 %v5917, %v6085
    %6087 = vmatmul.bf16.gmra.mxu0 %v5349
    %v6088 = vpop.f32.mrf.mxu0
    %v6089 = vadd.f32 %v5920, %v6088
    %v6090 = vpop.f32.mrf.mxu0
    %v6091 = vadd.f32 %v5922, %v6090
    %6092 = vmatmul.bf16.gmra.mxu0 %v5352
    %v6093 = vpop.f32.mrf.mxu0
    %v6094 = vadd.f32 %v5925, %v6093
    %v6095 = vpop.f32.mrf.mxu0
    %v6096 = vadd.f32 %v5927, %v6095
    %6097 = vmatmul.bf16.gmra.mxu0 %v5355
    %v6098 = vpop.f32.mrf.mxu0
    %v6099 = vadd.f32 %v5930, %v6098
    %v6100 = vpop.f32.mrf.mxu0
    %v6101 = vadd.f32 %v5932, %v6100
    %6102 = vdwg.mxu0
    %v6103 = vadd.f32 %v4603, %v5944
    %v6104 = vadd.f32 %v4605, %v5946
    %v6105 = vadd.f32 %v4608, %v5949
    %v6106 = vadd.f32 %v4610, %v5951
    %v6107 = vadd.f32 %v4613, %v5954
    %v6108 = vadd.f32 %v4615, %v5956
    %v6109 = vadd.f32 %v4618, %v5959
    %v6110 = vadd.f32 %v4620, %v5961
    %v6111 = vadd.f32 %v4623, %v5964
    %v6112 = vadd.f32 %v4625, %v5966
    %v6113 = vadd.f32 %v4628, %v5969
    %v6114 = vadd.f32 %v4630, %v5971
    %v6115 = vadd.f32 %v4633, %v5974
    %v6116 = vadd.f32 %v4635, %v5976
    %v6117 = vadd.f32 %v4638, %v5979
    %v6118 = vadd.f32 %v4640, %v5981
    %v6119 = vadd.f32 %v4643, %v5984
    %v6120 = vadd.f32 %v4645, %v5986
    %v6121 = vadd.f32 %v4648, %v5989
    %v6122 = vadd.f32 %v4650, %v5991
    %v6123 = vadd.f32 %v4653, %v5994
    %v6124 = vadd.f32 %v4655, %v5996
    %v6125 = vadd.f32 %v4658, %v5999
    %v6126 = vadd.f32 %v4660, %v6001
    %v6127 = vadd.f32 %v4663, %v6004
    %v6128 = vadd.f32 %v4665, %v6006
    %v6129 = vadd.f32 %v4668, %v6009
    %v6130 = vadd.f32 %v4670, %v6011
    %v6131 = vadd.f32 %v4673, %v6014
    %v6132 = vadd.f32 %v4675, %v6016
    %v6133 = vadd.f32 %v4678, %v6019
    %v6134 = vadd.f32 %v4680, %v6021
    %v6135 = vadd.f32 %v4683, %v6024
    %v6136 = vadd.f32 %v4685, %v6026
    %v6137 = vadd.f32 %v4688, %v6029
    %v6138 = vadd.f32 %v4690, %v6031
    %v6139 = vadd.f32 %v4693, %v6034
    %v6140 = vadd.f32 %v4695, %v6036
    %v6141 = vadd.f32 %v4698, %v6039
    %v6142 = vadd.f32 %v4700, %v6041
    %v6143 = vadd.f32 %v4703, %v6044
    %v6144 = vadd.f32 %v4705, %v6046
    %v6145 = vadd.f32 %v4708, %v6049
    %v6146 = vadd.f32 %v4710, %v6051
    %v6147 = vadd.f32 %v4713, %v6054
    %v6148 = vadd.f32 %v4715, %v6056
    %v6149 = vadd.f32 %v4718, %v6059
    %v6150 = vadd.f32 %v4720, %v6061
    %v6151 = vadd.f32 %v4723, %v6064
    %v6152 = vadd.f32 %v4725, %v6066
    %v6153 = vadd.f32 %v4728, %v6069
    %v6154 = vadd.f32 %v4730, %v6071
    %v6155 = vadd.f32 %v4733, %v6074
    %v6156 = vadd.f32 %v4735, %v6076
    %v6157 = vadd.f32 %v4738, %v6079
    %v6158 = vadd.f32 %v4740, %v6081
    %v6159 = vadd.f32 %v4743, %v6084
    %v6160 = vadd.f32 %v4745, %v6086
    %v6161 = vadd.f32 %v4748, %v6089
    %v6162 = vadd.f32 %v4750, %v6091
    %v6163 = vadd.f32 %v4753, %v6094
    %v6164 = vadd.f32 %v4755, %v6096
    %v6165 = vadd.f32 %v4758, %v6099
    %v6166 = vadd.f32 %v4760, %v6101
    %v6167 = vld [vmem:[%s3] sm:$0x1]
    %v6168 = vld [vmem:[%s4] sm:$0x1]
    %v6169 = vsel %vm320, %v6103, 0.0
    %v6170 = vsel %vm320, %v6104, 0.0
    %v6171 = vadd.f32 %v6169, %v6170
    %v6172 = vsel %vm320, %v6105, 0.0
    %v6173 = vadd.f32 %v6171, %v6172
    %v6174 = vsel %vm320, %v6106, 0.0
    %v6175 = vadd.f32 %v6173, %v6174
    %v6176 = vsel %vm320, %v6107, 0.0
    %v6177 = vadd.f32 %v6175, %v6176
    %v6178 = vsel %vm320, %v6108, 0.0
    %v6179 = vadd.f32 %v6177, %v6178
    %v6180 = vsel %vm320, %v6109, 0.0
    %v6181 = vadd.f32 %v6179, %v6180
    %v6182 = vsel %vm320, %v6110, 0.0
    %v6183 = vadd.f32 %v6181, %v6182
    %v6184 = vsel %vm320, %v6111, 0.0
    %v6185 = vadd.f32 %v6183, %v6184
    %v6186 = vsel %vm320, %v6112, 0.0
    %v6187 = vadd.f32 %v6185, %v6186
    %v6188 = vsel %vm320, %v6113, 0.0
    %v6189 = vadd.f32 %v6187, %v6188
    %v6190 = vsel %vm320, %v6114, 0.0
    %v6191 = vadd.f32 %v6189, %v6190
    %v6192 = vsel %vm320, %v6115, 0.0
    %v6193 = vadd.f32 %v6191, %v6192
    %v6194 = vsel %vm320, %v6116, 0.0
    %v6195 = vadd.f32 %v6193, %v6194
    %v6196 = vsel %vm320, %v6117, 0.0
    %v6197 = vadd.f32 %v6195, %v6196
    %v6198 = vsel %vm320, %v6118, 0.0
    %v6199 = vadd.f32 %v6197, %v6198
    %v6200 = vsel %vm320, %v6119, 0.0
    %v6201 = vadd.f32 %v6199, %v6200
    %v6202 = vsel %vm320, %v6120, 0.0
    %v6203 = vadd.f32 %v6201, %v6202
    %v6204 = vsel %vm320, %v6121, 0.0
    %v6205 = vadd.f32 %v6203, %v6204
    %v6206 = vsel %vm320, %v6122, 0.0
    %v6207 = vadd.f32 %v6205, %v6206
    %v6208 = vsel %vm320, %v6123, 0.0
    %v6209 = vadd.f32 %v6207, %v6208
    %v6210 = vsel %vm320, %v6124, 0.0
    %v6211 = vadd.f32 %v6209, %v6210
    %v6212 = vsel %vm320, %v6125, 0.0
    %v6213 = vadd.f32 %v6211, %v6212
    %v6214 = vsel %vm320, %v6126, 0.0
    %v6215 = vadd.f32 %v6213, %v6214
    %v6216 = vsel %vm320, %v6127, 0.0
    %v6217 = vadd.f32 %v6215, %v6216
    %v6218 = vsel %vm320, %v6128, 0.0
    %v6219 = vadd.f32 %v6217, %v6218
    %v6220 = vsel %vm320, %v6129, 0.0
    %v6221 = vadd.f32 %v6219, %v6220
    %v6222 = vsel %vm320, %v6130, 0.0
    %v6223 = vadd.f32 %v6221, %v6222
    %v6224 = vsel %vm320, %v6131, 0.0
    %v6225 = vadd.f32 %v6223, %v6224
    %v6226 = vsel %vm320, %v6132, 0.0
    %v6227 = vadd.f32 %v6225, %v6226
    %v6228 = vsel %vm320, %v6133, 0.0
    %v6229 = vadd.f32 %v6227, %v6228
    %v6230 = vsel %vm320, %v6134, 0.0
    %v6231 = vadd.f32 %v6229, %v6230
    %v6232 = vsel %vm320, %v6135, 0.0
    %v6233 = vadd.f32 %v6231, %v6232
    %v6234 = vsel %vm320, %v6136, 0.0
    %v6235 = vadd.f32 %v6233, %v6234
    %v6236 = vsel %vm320, %v6137, 0.0
    %v6237 = vadd.f32 %v6235, %v6236
    %v6238 = vsel %vm320, %v6138, 0.0
    %v6239 = vadd.f32 %v6237, %v6238
    %v6240 = vsel %vm320, %v6139, 0.0
    %v6241 = vadd.f32 %v6239, %v6240
    %v6242 = vsel %vm320, %v6140, 0.0
    %v6243 = vadd.f32 %v6241, %v6242
    %v6244 = vsel %vm320, %v6141, 0.0
    %v6245 = vadd.f32 %v6243, %v6244
    %v6246 = vsel %vm320, %v6142, 0.0
    %v6247 = vadd.f32 %v6245, %v6246
    %v6248 = vsel %vm320, %v6143, 0.0
    %v6249 = vadd.f32 %v6247, %v6248
    %v6250 = vsel %vm320, %v6144, 0.0
    %v6251 = vadd.f32 %v6249, %v6250
    %v6252 = vsel %vm320, %v6145, 0.0
    %v6253 = vadd.f32 %v6251, %v6252
    %v6254 = vsel %vm320, %v6146, 0.0
    %v6255 = vadd.f32 %v6253, %v6254
    %v6256 = vsel %vm320, %v6147, 0.0
    %v6257 = vadd.f32 %v6255, %v6256
    %v6258 = vsel %vm320, %v6148, 0.0
    %v6259 = vadd.f32 %v6257, %v6258
    %v6260 = vsel %vm320, %v6149, 0.0
    %v6261 = vadd.f32 %v6259, %v6260
    %v6262 = vsel %vm320, %v6150, 0.0
    %v6263 = vadd.f32 %v6261, %v6262
    %v6264 = vsel %vm320, %v6151, 0.0
    %v6265 = vadd.f32 %v6263, %v6264
    %v6266 = vsel %vm320, %v6152, 0.0
    %v6267 = vadd.f32 %v6265, %v6266
    %v6268 = vsel %vm320, %v6153, 0.0
    %v6269 = vadd.f32 %v6267, %v6268
    %v6270 = vsel %vm320, %v6154, 0.0
    %v6271 = vadd.f32 %v6269, %v6270
    %v6272 = vsel %vm320, %v6155, 0.0
    %v6273 = vadd.f32 %v6271, %v6272
    %v6274 = vsel %vm320, %v6156, 0.0
    %v6275 = vadd.f32 %v6273, %v6274
    %v6276 = vsel %vm320, %v6157, 0.0
    %v6277 = vadd.f32 %v6275, %v6276
    %v6278 = vsel %vm320, %v6158, 0.0
    %v6279 = vadd.f32 %v6277, %v6278
    %v6280 = vsel %vm320, %v6159, 0.0
    %v6281 = vadd.f32 %v6279, %v6280
    %v6282 = vsel %vm320, %v6160, 0.0
    %v6283 = vadd.f32 %v6281, %v6282
    %v6284 = vsel %vm320, %v6161, 0.0
    %v6285 = vadd.f32 %v6283, %v6284
    %v6286 = vsel %vm320, %v6162, 0.0
    %v6287 = vadd.f32 %v6285, %v6286
    %v6288 = vsel %vm320, %v6163, 0.0
    %v6289 = vadd.f32 %v6287, %v6288
    %v6290 = vsel %vm320, %v6164, 0.0
    %v6291 = vadd.f32 %v6289, %v6290
    %v6292 = vsel %vm320, %v6165, 0.0
    %v6293 = vadd.f32 %v6291, %v6292
    %v6294 = vsel %vm320, %v6166, 0.0
    %v6295 = vadd.f32 %v6293, %v6294
    %v6296 = vrot.slane %v6295, 4
    %v6297 = vadd.f32 %v6295, %v6296
    %v6298 = vrot.slane %v6297, 2
    %v6299 = vadd.f32 %v6297, %v6298
    %v6300 = vrot.slane %v6299, 1
    %v6301 = vadd.f32 %v6299, %v6300
    %v6302 = vmul.f32 %v6103, %v6103
    %v6303 = vmul.f32 %v6104, %v6104
    %v6304 = vmul.f32 %v6105, %v6105
    %v6305 = vmul.f32 %v6106, %v6106
    %v6306 = vmul.f32 %v6107, %v6107
    %v6307 = vmul.f32 %v6108, %v6108
    %v6308 = vmul.f32 %v6109, %v6109
    %v6309 = vmul.f32 %v6110, %v6110
    %v6310 = vmul.f32 %v6111, %v6111
    %v6311 = vmul.f32 %v6112, %v6112
    %v6312 = vmul.f32 %v6113, %v6113
    %v6313 = vmul.f32 %v6114, %v6114
    %v6314 = vmul.f32 %v6115, %v6115
    %v6315 = vmul.f32 %v6116, %v6116
    %v6316 = vmul.f32 %v6117, %v6117
    %v6317 = vmul.f32 %v6118, %v6118
    %v6318 = vmul.f32 %v6119, %v6119
    %v6319 = vmul.f32 %v6120, %v6120
    %v6320 = vmul.f32 %v6121, %v6121
    %v6321 = vmul.f32 %v6122, %v6122
    %v6322 = vmul.f32 %v6123, %v6123
    %v6323 = vmul.f32 %v6124, %v6124
    %v6324 = vmul.f32 %v6125, %v6125
    %v6325 = vmul.f32 %v6126, %v6126
    %v6326 = vmul.f32 %v6127, %v6127
    %v6327 = vmul.f32 %v6128, %v6128
    %v6328 = vmul.f32 %v6129, %v6129
    %v6329 = vmul.f32 %v6130, %v6130
    %v6330 = vmul.f32 %v6131, %v6131
    %v6331 = vmul.f32 %v6132, %v6132
    %v6332 = vmul.f32 %v6133, %v6133
    %v6333 = vmul.f32 %v6134, %v6134
    %v6334 = vmul.f32 %v6135, %v6135
    %v6335 = vmul.f32 %v6136, %v6136
    %v6336 = vmul.f32 %v6137, %v6137
    %v6337 = vmul.f32 %v6138, %v6138
    %v6338 = vmul.f32 %v6139, %v6139
    %v6339 = vmul.f32 %v6140, %v6140
    %v6340 = vmul.f32 %v6141, %v6141
    %v6341 = vmul.f32 %v6142, %v6142
    %v6342 = vmul.f32 %v6143, %v6143
    %v6343 = vmul.f32 %v6144, %v6144
    %v6344 = vmul.f32 %v6145, %v6145
    %v6345 = vmul.f32 %v6146, %v6146
    %v6346 = vmul.f32 %v6147, %v6147
    %v6347 = vmul.f32 %v6148, %v6148
    %v6348 = vmul.f32 %v6149, %v6149
    %v6349 = vmul.f32 %v6150, %v6150
    %v6350 = vmul.f32 %v6151, %v6151
    %v6351 = vmul.f32 %v6152, %v6152
    %v6352 = vmul.f32 %v6153, %v6153
    %v6353 = vmul.f32 %v6154, %v6154
    %v6354 = vmul.f32 %v6155, %v6155
    %v6355 = vmul.f32 %v6156, %v6156
    %v6356 = vmul.f32 %v6157, %v6157
    %v6357 = vmul.f32 %v6158, %v6158
    %v6358 = vmul.f32 %v6159, %v6159
    %v6359 = vmul.f32 %v6160, %v6160
    %v6360 = vmul.f32 %v6161, %v6161
    %v6361 = vmul.f32 %v6162, %v6162
    %v6362 = vmul.f32 %v6163, %v6163
    %v6363 = vmul.f32 %v6164, %v6164
    %v6364 = vmul.f32 %v6165, %v6165
    %v6365 = vmul.f32 %v6166, %v6166
    %v6366 = vsel %vm320, %v6302, 0.0
    %v6367 = vsel %vm320, %v6303, 0.0
    %v6368 = vadd.f32 %v6366, %v6367
    %v6369 = vsel %vm320, %v6304, 0.0
    %v6370 = vadd.f32 %v6368, %v6369
    %v6371 = vsel %vm320, %v6305, 0.0
    %v6372 = vadd.f32 %v6370, %v6371
    %v6373 = vsel %vm320, %v6306, 0.0
    %v6374 = vadd.f32 %v6372, %v6373
    %v6375 = vsel %vm320, %v6307, 0.0
    %v6376 = vadd.f32 %v6374, %v6375
    %v6377 = vsel %vm320, %v6308, 0.0
    %v6378 = vadd.f32 %v6376, %v6377
    %v6379 = vsel %vm320, %v6309, 0.0
    %v6380 = vadd.f32 %v6378, %v6379
    %v6381 = vsel %vm320, %v6310, 0.0
    %v6382 = vadd.f32 %v6380, %v6381
    %v6383 = vsel %vm320, %v6311, 0.0
    %v6384 = vadd.f32 %v6382, %v6383
    %v6385 = vsel %vm320, %v6312, 0.0
    %v6386 = vadd.f32 %v6384, %v6385
    %v6387 = vsel %vm320, %v6313, 0.0
    %v6388 = vadd.f32 %v6386, %v6387
    %v6389 = vsel %vm320, %v6314, 0.0
    %v6390 = vadd.f32 %v6388, %v6389
    %v6391 = vsel %vm320, %v6315, 0.0
    %v6392 = vadd.f32 %v6390, %v6391
    %v6393 = vsel %vm320, %v6316, 0.0
    %v6394 = vadd.f32 %v6392, %v6393
    %v6395 = vsel %vm320, %v6317, 0.0
    %v6396 = vadd.f32 %v6394, %v6395
    %v6397 = vsel %vm320, %v6318, 0.0
    %v6398 = vadd.f32 %v6396, %v6397
    %v6399 = vsel %vm320, %v6319, 0.0
    %v6400 = vadd.f32 %v6398, %v6399
    %v6401 = vsel %vm320, %v6320, 0.0
    %v6402 = vadd.f32 %v6400, %v6401
    %v6403 = vsel %vm320, %v6321, 0.0
    %v6404 = vadd.f32 %v6402, %v6403
    %v6405 = vsel %vm320, %v6322, 0.0
    %v6406 = vadd.f32 %v6404, %v6405
    %v6407 = vsel %vm320, %v6323, 0.0
    %v6408 = vadd.f32 %v6406, %v6407
    %v6409 = vsel %vm320, %v6324, 0.0
    %v6410 = vadd.f32 %v6408, %v6409
    %v6411 = vsel %vm320, %v6325, 0.0
    %v6412 = vadd.f32 %v6410, %v6411
    %v6413 = vsel %vm320, %v6326, 0.0
    %v6414 = vadd.f32 %v6412, %v6413
    %v6415 = vsel %vm320, %v6327, 0.0
    %v6416 = vadd.f32 %v6414, %v6415
    %v6417 = vsel %vm320, %v6328, 0.0
    %v6418 = vadd.f32 %v6416, %v6417
    %v6419 = vsel %vm320, %v6329, 0.0
    %v6420 = vadd.f32 %v6418, %v6419
    %v6421 = vsel %vm320, %v6330, 0.0
    %v6422 = vadd.f32 %v6420, %v6421
    %v6423 = vsel %vm320, %v6331, 0.0
    %v6424 = vadd.f32 %v6422, %v6423
    %v6425 = vsel %vm320, %v6332, 0.0
    %v6426 = vadd.f32 %v6424, %v6425
    %v6427 = vsel %vm320, %v6333, 0.0
    %v6428 = vadd.f32 %v6426, %v6427
    %v6429 = vsel %vm320, %v6334, 0.0
    %v6430 = vadd.f32 %v6428, %v6429
    %v6431 = vsel %vm320, %v6335, 0.0
    %v6432 = vadd.f32 %v6430, %v6431
    %v6433 = vsel %vm320, %v6336, 0.0
    %v6434 = vadd.f32 %v6432, %v6433
    %v6435 = vsel %vm320, %v6337, 0.0
    %v6436 = vadd.f32 %v6434, %v6435
    %v6437 = vsel %vm320, %v6338, 0.0
    %v6438 = vadd.f32 %v6436, %v6437
    %v6439 = vsel %vm320, %v6339, 0.0
    %v6440 = vadd.f32 %v6438, %v6439
    %v6441 = vsel %vm320, %v6340, 0.0
    %v6442 = vadd.f32 %v6440, %v6441
    %v6443 = vsel %vm320, %v6341, 0.0
    %v6444 = vadd.f32 %v6442, %v6443
    %v6445 = vsel %vm320, %v6342, 0.0
    %v6446 = vadd.f32 %v6444, %v6445
    %v6447 = vsel %vm320, %v6343, 0.0
    %v6448 = vadd.f32 %v6446, %v6447
    %v6449 = vsel %vm320, %v6344, 0.0
    %v6450 = vadd.f32 %v6448, %v6449
    %v6451 = vsel %vm320, %v6345, 0.0
    %v6452 = vadd.f32 %v6450, %v6451
    %v6453 = vsel %vm320, %v6346, 0.0
    %v6454 = vadd.f32 %v6452, %v6453
    %v6455 = vsel %vm320, %v6347, 0.0
    %v6456 = vadd.f32 %v6454, %v6455
    %v6457 = vsel %vm320, %v6348, 0.0
    %v6458 = vadd.f32 %v6456, %v6457
    %v6459 = vsel %vm320, %v6349, 0.0
    %v6460 = vadd.f32 %v6458, %v6459
    %v6461 = vsel %vm320, %v6350, 0.0
    %v6462 = vadd.f32 %v6460, %v6461
    %v6463 = vsel %vm320, %v6351, 0.0
    %v6464 = vadd.f32 %v6462, %v6463
    %v6465 = vsel %vm320, %v6352, 0.0
    %v6466 = vadd.f32 %v6464, %v6465
    %v6467 = vsel %vm320, %v6353, 0.0
    %v6468 = vadd.f32 %v6466, %v6467
    %v6469 = vsel %vm320, %v6354, 0.0
    %v6470 = vadd.f32 %v6468, %v6469
    %v6471 = vsel %vm320, %v6355, 0.0
    %v6472 = vadd.f32 %v6470, %v6471
    %v6473 = vsel %vm320, %v6356, 0.0
    %v6474 = vadd.f32 %v6472, %v6473
    %v6475 = vsel %vm320, %v6357, 0.0
    %v6476 = vadd.f32 %v6474, %v6475
    %v6477 = vsel %vm320, %v6358, 0.0
    %v6478 = vadd.f32 %v6476, %v6477
    %v6479 = vsel %vm320, %v6359, 0.0
    %v6480 = vadd.f32 %v6478, %v6479
    %v6481 = vsel %vm320, %v6360, 0.0
    %v6482 = vadd.f32 %v6480, %v6481
    %v6483 = vsel %vm320, %v6361, 0.0
    %v6484 = vadd.f32 %v6482, %v6483
    %v6485 = vsel %vm320, %v6362, 0.0
    %v6486 = vadd.f32 %v6484, %v6485
    %v6487 = vsel %vm320, %v6363, 0.0
    %v6488 = vadd.f32 %v6486, %v6487
    %v6489 = vsel %vm320, %v6364, 0.0
    %v6490 = vadd.f32 %v6488, %v6489
    %v6491 = vsel %vm320, %v6365, 0.0
    %v6492 = vadd.f32 %v6490, %v6491
    %v6493 = vrot.slane %v6492, 4
    %v6494 = vadd.f32 %v6492, %v6493
    %v6495 = vrot.slane %v6494, 2
    %v6496 = vadd.f32 %v6494, %v6495
    %v6497 = vrot.slane %v6496, 1
    %v6498 = vadd.f32 %v6496, %v6497
    %v6499 = vmul.f32 %v6301, 0.001953125
    %v6500 = vmul.f32 %v6498, 0.001953125
    %v6501 = vmul.f32 %v6499, %v6499
    %v6502 = vsub.f32 %v6500, %v6501
    %v6503 = vmax.f32 %v6502, 0.0
    %v6504 = vadd.f32 %v6503, 1e-05
    %v6505 = vrsqrt.pop %v6504
    %v6506 = vmul.f32 %v6505, %v6504
    %v6507 = vmul.f32 %v6506, %v6505
    %v6508 = vmul.f32 0.5, %v6507
    %v6509 = vsub.f32 1.5, %v6508
    %v6510 = vmul.f32 %v6505, %v6509
    %vm6511 = vweird.f32 %v6504
    %vm6512 = vweird.f32 %v6505
    %vm6513 = vmor %vm6511, %vm6512
    %v6514 = vsel %vm6513, %v6505, %v6510
    %v6515 = vmul.f32 %v6167, %v6514
    %v6517 = vperm.slane %v6515, 0
    %v6519 = vmul.f32 %v6103, %v6517
    %v6520 = vmul.f32 %v6104, %v6517
    %v6521 = vmul.f32 %v6105, %v6517
    %v6522 = vmul.f32 %v6106, %v6517
    %v6523 = vmul.f32 %v6107, %v6517
    %v6524 = vmul.f32 %v6108, %v6517
    %v6525 = vmul.f32 %v6109, %v6517
    %v6526 = vmul.f32 %v6110, %v6517
    %v6527 = vmul.f32 %v6111, %v6517
    %v6528 = vmul.f32 %v6112, %v6517
    %v6529 = vmul.f32 %v6113, %v6517
    %v6530 = vmul.f32 %v6114, %v6517
    %v6531 = vmul.f32 %v6115, %v6517
    %v6532 = vmul.f32 %v6116, %v6517
    %v6533 = vmul.f32 %v6117, %v6517
    %v6534 = vmul.f32 %v6118, %v6517
    %v6535 = vmul.f32 %v6119, %v6517
    %v6536 = vmul.f32 %v6120, %v6517
    %v6537 = vmul.f32 %v6121, %v6517
    %v6538 = vmul.f32 %v6122, %v6517
    %v6539 = vmul.f32 %v6123, %v6517
    %v6540 = vmul.f32 %v6124, %v6517
    %v6541 = vmul.f32 %v6125, %v6517
    %v6542 = vmul.f32 %v6126, %v6517
    %v6543 = vmul.f32 %v6127, %v6517
    %v6544 = vmul.f32 %v6128, %v6517
    %v6545 = vmul.f32 %v6129, %v6517
    %v6546 = vmul.f32 %v6130, %v6517
    %v6547 = vmul.f32 %v6131, %v6517
    %v6548 = vmul.f32 %v6132, %v6517
    %v6549 = vmul.f32 %v6133, %v6517
    %v6550 = vmul.f32 %v6134, %v6517
    %v6551 = vmul.f32 %v6135, %v6517
    %v6552 = vmul.f32 %v6136, %v6517
    %v6553 = vmul.f32 %v6137, %v6517
    %v6554 = vmul.f32 %v6138, %v6517
    %v6555 = vmul.f32 %v6139, %v6517
    %v6556 = vmul.f32 %v6140, %v6517
    %v6557 = vmul.f32 %v6141, %v6517
    %v6558 = vmul.f32 %v6142, %v6517
    %v6559 = vmul.f32 %v6143, %v6517
    %v6560 = vmul.f32 %v6144, %v6517
    %v6561 = vmul.f32 %v6145, %v6517
    %v6562 = vmul.f32 %v6146, %v6517
    %v6563 = vmul.f32 %v6147, %v6517
    %v6564 = vmul.f32 %v6148, %v6517
    %v6565 = vmul.f32 %v6149, %v6517
    %v6566 = vmul.f32 %v6150, %v6517
    %v6567 = vmul.f32 %v6151, %v6517
    %v6568 = vmul.f32 %v6152, %v6517
    %v6569 = vmul.f32 %v6153, %v6517
    %v6570 = vmul.f32 %v6154, %v6517
    %v6571 = vmul.f32 %v6155, %v6517
    %v6572 = vmul.f32 %v6156, %v6517
    %v6573 = vmul.f32 %v6157, %v6517
    %v6574 = vmul.f32 %v6158, %v6517
    %v6575 = vmul.f32 %v6159, %v6517
    %v6576 = vmul.f32 %v6160, %v6517
    %v6577 = vmul.f32 %v6161, %v6517
    %v6578 = vmul.f32 %v6162, %v6517
    %v6579 = vmul.f32 %v6163, %v6517
    %v6580 = vmul.f32 %v6164, %v6517
    %v6581 = vmul.f32 %v6165, %v6517
    %v6582 = vmul.f32 %v6166, %v6517
    %v6583 = vmul.f32 %v6499, %v6515
    %v6584 = vsub.f32 %v6168, %v6583
    %v6586 = vperm.slane %v6584, 0
    %v6588 = vadd.f32 %v6519, %v6586
    %v6589 = vadd.f32 %v6520, %v6586
    %v6590 = vadd.f32 %v6521, %v6586
    %v6591 = vadd.f32 %v6522, %v6586
    %v6592 = vadd.f32 %v6523, %v6586
    %v6593 = vadd.f32 %v6524, %v6586
    %v6594 = vadd.f32 %v6525, %v6586
    %v6595 = vadd.f32 %v6526, %v6586
    %v6596 = vadd.f32 %v6527, %v6586
    %v6597 = vadd.f32 %v6528, %v6586
    %v6598 = vadd.f32 %v6529, %v6586
    %v6599 = vadd.f32 %v6530, %v6586
    %v6600 = vadd.f32 %v6531, %v6586
    %v6601 = vadd.f32 %v6532, %v6586
    %v6602 = vadd.f32 %v6533, %v6586
    %v6603 = vadd.f32 %v6534, %v6586
    %v6604 = vadd.f32 %v6535, %v6586
    %v6605 = vadd.f32 %v6536, %v6586
    %v6606 = vadd.f32 %v6537, %v6586
    %v6607 = vadd.f32 %v6538, %v6586
    %v6608 = vadd.f32 %v6539, %v6586
    %v6609 = vadd.f32 %v6540, %v6586
    %v6610 = vadd.f32 %v6541, %v6586
    %v6611 = vadd.f32 %v6542, %v6586
    %v6612 = vadd.f32 %v6543, %v6586
    %v6613 = vadd.f32 %v6544, %v6586
    %v6614 = vadd.f32 %v6545, %v6586
    %v6615 = vadd.f32 %v6546, %v6586
    %v6616 = vadd.f32 %v6547, %v6586
    %v6617 = vadd.f32 %v6548, %v6586
    %v6618 = vadd.f32 %v6549, %v6586
    %v6619 = vadd.f32 %v6550, %v6586
    %v6620 = vadd.f32 %v6551, %v6586
    %v6621 = vadd.f32 %v6552, %v6586
    %v6622 = vadd.f32 %v6553, %v6586
    %v6623 = vadd.f32 %v6554, %v6586
    %v6624 = vadd.f32 %v6555, %v6586
    %v6625 = vadd.f32 %v6556, %v6586
    %v6626 = vadd.f32 %v6557, %v6586
    %v6627 = vadd.f32 %v6558, %v6586
    %v6628 = vadd.f32 %v6559, %v6586
    %v6629 = vadd.f32 %v6560, %v6586
    %v6630 = vadd.f32 %v6561, %v6586
    %v6631 = vadd.f32 %v6562, %v6586
    %v6632 = vadd.f32 %v6563, %v6586
    %v6633 = vadd.f32 %v6564, %v6586
    %v6634 = vadd.f32 %v6565, %v6586
    %v6635 = vadd.f32 %v6566, %v6586
    %v6636 = vadd.f32 %v6567, %v6586
    %v6637 = vadd.f32 %v6568, %v6586
    %v6638 = vadd.f32 %v6569, %v6586
    %v6639 = vadd.f32 %v6570, %v6586
    %v6640 = vadd.f32 %v6571, %v6586
    %v6641 = vadd.f32 %v6572, %v6586
    %v6642 = vadd.f32 %v6573, %v6586
    %v6643 = vadd.f32 %v6574, %v6586
    %v6644 = vadd.f32 %v6575, %v6586
    %v6645 = vadd.f32 %v6576, %v6586
    %v6646 = vadd.f32 %v6577, %v6586
    %v6647 = vadd.f32 %v6578, %v6586
    %v6648 = vadd.f32 %v6579, %v6586
    %v6649 = vadd.f32 %v6580, %v6586
    %v6650 = vadd.f32 %v6581, %v6586
    %v6651 = vadd.f32 %v6582, %v6586
    %s6652 = sld [smem:[#allocation3]]
    %vm6653 = vcmp.ge.f32.partialorder %v6588, 0.0
    %vm6654 = vcmp.ge.f32.partialorder %v6589, 0.0
    %vm6655 = vcmp.ge.f32.partialorder %v6590, 0.0
    %vm6656 = vcmp.ge.f32.partialorder %v6591, 0.0
    %vm6657 = vcmp.ge.f32.partialorder %v6592, 0.0
    %vm6658 = vcmp.ge.f32.partialorder %v6593, 0.0
    %vm6659 = vcmp.ge.f32.partialorder %v6594, 0.0
    %vm6660 = vcmp.ge.f32.partialorder %v6595, 0.0
    %vm6661 = vcmp.ge.f32.partialorder %v6596, 0.0
    %vm6662 = vcmp.ge.f32.partialorder %v6597, 0.0
    %vm6663 = vcmp.ge.f32.partialorder %v6598, 0.0
    %vm6664 = vcmp.ge.f32.partialorder %v6599, 0.0
    %vm6665 = vcmp.ge.f32.partialorder %v6600, 0.0
    %vm6666 = vcmp.ge.f32.partialorder %v6601, 0.0
    %vm6667 = vcmp.ge.f32.partialorder %v6602, 0.0
    %vm6668 = vcmp.ge.f32.partialorder %v6603, 0.0
    %vm6669 = vcmp.ge.f32.partialorder %v6604, 0.0
    %vm6670 = vcmp.ge.f32.partialorder %v6605, 0.0
    %vm6671 = vcmp.ge.f32.partialorder %v6606, 0.0
    %vm6672 = vcmp.ge.f32.partialorder %v6607, 0.0
    %vm6673 = vcmp.ge.f32.partialorder %v6608, 0.0
    %vm6674 = vcmp.ge.f32.partialorder %v6609, 0.0
    %vm6675 = vcmp.ge.f32.partialorder %v6610, 0.0
    %vm6676 = vcmp.ge.f32.partialorder %v6611, 0.0
    %vm6677 = vcmp.ge.f32.partialorder %v6612, 0.0
    %vm6678 = vcmp.ge.f32.partialorder %v6613, 0.0
    %vm6679 = vcmp.ge.f32.partialorder %v6614, 0.0
    %vm6680 = vcmp.ge.f32.partialorder %v6615, 0.0
    %vm6681 = vcmp.ge.f32.partialorder %v6616, 0.0
    %vm6682 = vcmp.ge.f32.partialorder %v6617, 0.0
    %vm6683 = vcmp.ge.f32.partialorder %v6618, 0.0
    %vm6684 = vcmp.ge.f32.partialorder %v6619, 0.0
    %vm6685 = vcmp.ge.f32.partialorder %v6620, 0.0
    %vm6686 = vcmp.ge.f32.partialorder %v6621, 0.0
    %vm6687 = vcmp.ge.f32.partialorder %v6622, 0.0
    %vm6688 = vcmp.ge.f32.partialorder %v6623, 0.0
    %vm6689 = vcmp.ge.f32.partialorder %v6624, 0.0
    %vm6690 = vcmp.ge.f32.partialorder %v6625, 0.0
    %vm6691 = vcmp.ge.f32.partialorder %v6626, 0.0
    %vm6692 = vcmp.ge.f32.partialorder %v6627, 0.0
    %vm6693 = vcmp.ge.f32.partialorder %v6628, 0.0
    %vm6694 = vcmp.ge.f32.partialorder %v6629, 0.0
    %vm6695 = vcmp.ge.f32.partialorder %v6630, 0.0
    %vm6696 = vcmp.ge.f32.partialorder %v6631, 0.0
    %vm6697 = vcmp.ge.f32.partialorder %v6632, 0.0
    %vm6698 = vcmp.ge.f32.partialorder %v6633, 0.0
    %vm6699 = vcmp.ge.f32.partialorder %v6634, 0.0
    %vm6700 = vcmp.ge.f32.partialorder %v6635, 0.0
    %vm6701 = vcmp.ge.f32.partialorder %v6636, 0.0
    %vm6702 = vcmp.ge.f32.partialorder %v6637, 0.0
    %vm6703 = vcmp.ge.f32.partialorder %v6638, 0.0
    %vm6704 = vcmp.ge.f32.partialorder %v6639, 0.0
    %vm6705 = vcmp.ge.f32.partialorder %v6640, 0.0
    %vm6706 = vcmp.ge.f32.partialorder %v6641, 0.0
    %vm6707 = vcmp.ge.f32.partialorder %v6642, 0.0
    %vm6708 = vcmp.ge.f32.partialorder %v6643, 0.0
    %vm6709 = vcmp.ge.f32.partialorder %v6644, 0.0
    %vm6710 = vcmp.ge.f32.partialorder %v6645, 0.0
    %vm6711 = vcmp.ge.f32.partialorder %v6646, 0.0
    %vm6712 = vcmp.ge.f32.partialorder %v6647, 0.0
    %vm6713 = vcmp.ge.f32.partialorder %v6648, 0.0
    %vm6714 = vcmp.ge.f32.partialorder %v6649, 0.0
    %vm6715 = vcmp.ge.f32.partialorder %v6650, 0.0
    %vm6716 = vcmp.ge.f32.partialorder %v6651, 0.0
    %v6717 = vstv %s6652
    %v6718 = vmul.f32 %v6717, %v6588
    %v6719 = vmul.f32 %v6717, %v6589
    %v6720 = vmul.f32 %v6717, %v6590
    %v6721 = vmul.f32 %v6717, %v6591
    %v6722 = vmul.f32 %v6717, %v6592
    %v6723 = vmul.f32 %v6717, %v6593
    %v6724 = vmul.f32 %v6717, %v6594
    %v6725 = vmul.f32 %v6717, %v6595
    %v6726 = vmul.f32 %v6717, %v6596
    %v6727 = vmul.f32 %v6717, %v6597
    %v6728 = vmul.f32 %v6717, %v6598
    %v6729 = vmul.f32 %v6717, %v6599
    %v6730 = vmul.f32 %v6717, %v6600
    %v6731 = vmul.f32 %v6717, %v6601
    %v6732 = vmul.f32 %v6717, %v6602
    %v6733 = vmul.f32 %v6717, %v6603
    %v6734 = vmul.f32 %v6717, %v6604
    %v6735 = vmul.f32 %v6717, %v6605
    %v6736 = vmul.f32 %v6717, %v6606
    %v6737 = vmul.f32 %v6717, %v6607
    %v6738 = vmul.f32 %v6717, %v6608
    %v6739 = vmul.f32 %v6717, %v6609
    %v6740 = vmul.f32 %v6717, %v6610
    %v6741 = vmul.f32 %v6717, %v6611
    %v6742 = vmul.f32 %v6717, %v6612
    %v6743 = vmul.f32 %v6717, %v6613
    %v6744 = vmul.f32 %v6717, %v6614
    %v6745 = vmul.f32 %v6717, %v6615
    %v6746 = vmul.f32 %v6717, %v6616
    %v6747 = vmul.f32 %v6717, %v6617
    %v6748 = vmul.f32 %v6717, %v6618
    %v6749 = vmul.f32 %v6717, %v6619
    %v6750 = vmul.f32 %v6717, %v6620
    %v6751 = vmul.f32 %v6717, %v6621
    %v6752 = vmul.f32 %v6717, %v6622
    %v6753 = vmul.f32 %v6717, %v6623
    %v6754 = vmul.f32 %v6717, %v6624
    %v6755 = vmul.f32 %v6717, %v6625
    %v6756 = vmul.f32 %v6717, %v6626
    %v6757 = vmul.f32 %v6717, %v6627
    %v6758 = vmul.f32 %v6717, %v6628
    %v6759 = vmul.f32 %v6717, %v6629
    %v6760 = vmul.f32 %v6717, %v6630
    %v6761 = vmul.f32 %v6717, %v6631
    %v6762 = vmul.f32 %v6717, %v6632
    %v6763 = vmul.f32 %v6717, %v6633
    %v6764 = vmul.f32 %v6717, %v6634
    %v6765 = vmul.f32 %v6717, %v6635
    %v6766 = vmul.f32 %v6717, %v6636
    %v6767 = vmul.f32 %v6717, %v6637
    %v6768 = vmul.f32 %v6717, %v6638
    %v6769 = vmul.f32 %v6717, %v6639
    %v6770 = vmul.f32 %v6717, %v6640
    %v6771 = vmul.f32 %v6717, %v6641
    %v6772 = vmul.f32 %v6717, %v6642
    %v6773 = vmul.f32 %v6717, %v6643
    %v6774 = vmul.f32 %v6717, %v6644
    %v6775 = vmul.f32 %v6717, %v6645
    %v6776 = vmul.f32 %v6717, %v6646
    %v6777 = vmul.f32 %v6717, %v6647
    %v6778 = vmul.f32 %v6717, %v6648
    %v6779 = vmul.f32 %v6717, %v6649
    %v6780 = vmul.f32 %v6717, %v6650
    %v6781 = vmul.f32 %v6717, %v6651
    %v6782 = vsel %vm6653, %v6588, %v6718
    %v6783 = vsel %vm6654, %v6589, %v6719
    %v6784 = vsel %vm6655, %v6590, %v6720
    %v6785 = vsel %vm6656, %v6591, %v6721
    %v6786 = vsel %vm6657, %v6592, %v6722
    %v6787 = vsel %vm6658, %v6593, %v6723
    %v6788 = vsel %vm6659, %v6594, %v6724
    %v6789 = vsel %vm6660, %v6595, %v6725
    %v6790 = vsel %vm6661, %v6596, %v6726
    %v6791 = vsel %vm6662, %v6597, %v6727
    %v6792 = vsel %vm6663, %v6598, %v6728
    %v6793 = vsel %vm6664, %v6599, %v6729
    %v6794 = vsel %vm6665, %v6600, %v6730
    %v6795 = vsel %vm6666, %v6601, %v6731
    %v6796 = vsel %vm6667, %v6602, %v6732
    %v6797 = vsel %vm6668, %v6603, %v6733
    %v6798 = vsel %vm6669, %v6604, %v6734
    %v6799 = vsel %vm6670, %v6605, %v6735
    %v6800 = vsel %vm6671, %v6606, %v6736
    %v6801 = vsel %vm6672, %v6607, %v6737
    %v6802 = vsel %vm6673, %v6608, %v6738
    %v6803 = vsel %vm6674, %v6609, %v6739
    %v6804 = vsel %vm6675, %v6610, %v6740
    %v6805 = vsel %vm6676, %v6611, %v6741
    %v6806 = vsel %vm6677, %v6612, %v6742
    %v6807 = vsel %vm6678, %v6613, %v6743
    %v6808 = vsel %vm6679, %v6614, %v6744
    %v6809 = vsel %vm6680, %v6615, %v6745
    %v6810 = vsel %vm6681, %v6616, %v6746
    %v6811 = vsel %vm6682, %v6617, %v6747
    %v6812 = vsel %vm6683, %v6618, %v6748
    %v6813 = vsel %vm6684, %v6619, %v6749
    %v6814 = vsel %vm6685, %v6620, %v6750
    %v6815 = vsel %vm6686, %v6621, %v6751
    %v6816 = vsel %vm6687, %v6622, %v6752
    %v6817 = vsel %vm6688, %v6623, %v6753
    %v6818 = vsel %vm6689, %v6624, %v6754
    %v6819 = vsel %vm6690, %v6625, %v6755
    %v6820 = vsel %vm6691, %v6626, %v6756
    %v6821 = vsel %vm6692, %v6627, %v6757
    %v6822 = vsel %vm6693, %v6628, %v6758
    %v6823 = vsel %vm6694, %v6629, %v6759
    %v6824 = vsel %vm6695, %v6630, %v6760
    %v6825 = vsel %vm6696, %v6631, %v6761
    %v6826 = vsel %vm6697, %v6632, %v6762
    %v6827 = vsel %vm6698, %v6633, %v6763
    %v6828 = vsel %vm6699, %v6634, %v6764
    %v6829 = vsel %vm6700, %v6635, %v6765
    %v6830 = vsel %vm6701, %v6636, %v6766
    %v6831 = vsel %vm6702, %v6637, %v6767
    %v6832 = vsel %vm6703, %v6638, %v6768
    %v6833 = vsel %vm6704, %v6639, %v6769
    %v6834 = vsel %vm6705, %v6640, %v6770
    %v6835 = vsel %vm6706, %v6641, %v6771
    %v6836 = vsel %vm6707, %v6642, %v6772
    %v6837 = vsel %vm6708, %v6643, %v6773
    %v6838 = vsel %vm6709, %v6644, %v6774
    %v6839 = vsel %vm6710, %v6645, %v6775
    %v6840 = vsel %vm6711, %v6646, %v6776
    %v6841 = vsel %vm6712, %v6647, %v6777
    %v6842 = vsel %vm6713, %v6648, %v6778
    %v6843 = vsel %vm6714, %v6649, %v6779
    %v6844 = vsel %vm6715, %v6650, %v6780
    %v6845 = vsel %vm6716, %v6651, %v6781
    %v6846 = vpack.c.bf16 %v6782, %v6782
    %v6847 = vpack.c.bf16 %v6783, %v6783
    %v6848 = vpack.c.bf16 %v6784, %v6784
    %v6849 = vpack.c.bf16 %v6785, %v6785
    %v6850 = vpack.c.bf16 %v6786, %v6786
    %v6851 = vpack.c.bf16 %v6787, %v6787
    %v6852 = vpack.c.bf16 %v6788, %v6788
    %v6853 = vpack.c.bf16 %v6789, %v6789
    %v6854 = vpack.c.bf16 %v6790, %v6790
    %v6855 = vpack.c.bf16 %v6791, %v6791
    %v6856 = vpack.c.bf16 %v6792, %v6792
    %v6857 = vpack.c.bf16 %v6793, %v6793
    %v6858 = vpack.c.bf16 %v6794, %v6794
    %v6859 = vpack.c.bf16 %v6795, %v6795
    %v6860 = vpack.c.bf16 %v6796, %v6796
    %v6861 = vpack.c.bf16 %v6797, %v6797
    %v6862 = vpack.c.bf16 %v6798, %v6798
    %v6863 = vpack.c.bf16 %v6799, %v6799
    %v6864 = vpack.c.bf16 %v6800, %v6800
    %v6865 = vpack.c.bf16 %v6801, %v6801
    %v6866 = vpack.c.bf16 %v6802, %v6802
    %v6867 = vpack.c.bf16 %v6803, %v6803
    %v6868 = vpack.c.bf16 %v6804, %v6804
    %v6869 = vpack.c.bf16 %v6805, %v6805
    %v6870 = vpack.c.bf16 %v6806, %v6806
    %v6871 = vpack.c.bf16 %v6807, %v6807
    %v6872 = vpack.c.bf16 %v6808, %v6808
    %v6873 = vpack.c.bf16 %v6809, %v6809
    %v6874 = vpack.c.bf16 %v6810, %v6810
    %v6875 = vpack.c.bf16 %v6811, %v6811
    %v6876 = vpack.c.bf16 %v6812, %v6812
    %v6877 = vpack.c.bf16 %v6813, %v6813
    %v6878 = vpack.c.bf16 %v6814, %v6814
    %v6879 = vpack.c.bf16 %v6815, %v6815
    %v6880 = vpack.c.bf16 %v6816, %v6816
    %v6881 = vpack.c.bf16 %v6817, %v6817
    %v6882 = vpack.c.bf16 %v6818, %v6818
    %v6883 = vpack.c.bf16 %v6819, %v6819
    %v6884 = vpack.c.bf16 %v6820, %v6820
    %v6885 = vpack.c.bf16 %v6821, %v6821
    %v6886 = vpack.c.bf16 %v6822, %v6822
    %v6887 = vpack.c.bf16 %v6823, %v6823
    %v6888 = vpack.c.bf16 %v6824, %v6824
    %v6889 = vpack.c.bf16 %v6825, %v6825
    %v6890 = vpack.c.bf16 %v6826, %v6826
    %v6891 = vpack.c.bf16 %v6827, %v6827
    %v6892 = vpack.c.bf16 %v6828, %v6828
    %v6893 = vpack.c.bf16 %v6829, %v6829
    %v6894 = vpack.c.bf16 %v6830, %v6830
    %v6895 = vpack.c.bf16 %v6831, %v6831
    %v6896 = vpack.c.bf16 %v6832, %v6832
    %v6897 = vpack.c.bf16 %v6833, %v6833
    %v6898 = vpack.c.bf16 %v6834, %v6834
    %v6899 = vpack.c.bf16 %v6835, %v6835
    %v6900 = vpack.c.bf16 %v6836, %v6836
    %v6901 = vpack.c.bf16 %v6837, %v6837
    %v6902 = vpack.c.bf16 %v6838, %v6838
    %v6903 = vpack.c.bf16 %v6839, %v6839
    %v6904 = vpack.c.bf16 %v6840, %v6840
    %v6905 = vpack.c.bf16 %v6841, %v6841
    %v6906 = vpack.c.bf16 %v6842, %v6842
    %v6907 = vpack.c.bf16 %v6843, %v6843
    %v6908 = vpack.c.bf16 %v6844, %v6844
    %v6909 = vpack.c.bf16 %v6845, %v6845
    %v6974 = vunpack.c.l.b16 %v6846
    %v6975 = vunpack.c.l.b16 %v6847
    %v6976 = vunpack.c.l.b16 %v6848
    %v6977 = vunpack.c.l.b16 %v6849
    %v6978 = vunpack.c.l.b16 %v6850
    %v6979 = vunpack.c.l.b16 %v6851
    %v6980 = vunpack.c.l.b16 %v6852
    %v6981 = vunpack.c.l.b16 %v6853
    %v6982 = vunpack.c.l.b16 %v6854
    %v6983 = vunpack.c.l.b16 %v6855
    %v6984 = vunpack.c.l.b16 %v6856
    %v6985 = vunpack.c.l.b16 %v6857
    %v6986 = vunpack.c.l.b16 %v6858
    %v6987 = vunpack.c.l.b16 %v6859
    %v6988 = vunpack.c.l.b16 %v6860
    %v6989 = vunpack.c.l.b16 %v6861
    %v6990 = vunpack.c.l.b16 %v6862
    %v6991 = vunpack.c.l.b16 %v6863
    %v6992 = vunpack.c.l.b16 %v6864
    %v6993 = vunpack.c.l.b16 %v6865
    %v6994 = vunpack.c.l.b16 %v6866
    %v6995 = vunpack.c.l.b16 %v6867
    %v6996 = vunpack.c.l.b16 %v6868
    %v6997 = vunpack.c.l.b16 %v6869
    %v6998 = vunpack.c.l.b16 %v6870
    %v6999 = vunpack.c.l.b16 %v6871
    %v7000 = vunpack.c.l.b16 %v6872
    %v7001 = vunpack.c.l.b16 %v6873
    %v7002 = vunpack.c.l.b16 %v6874
    %v7003 = vunpack.c.l.b16 %v6875
    %v7004 = vunpack.c.l.b16 %v6876
    %v7005 = vunpack.c.l.b16 %v6877
    %v7006 = vunpack.c.l.b16 %v6878
    %v7007 = vunpack.c.l.b16 %v6879
    %v7008 = vunpack.c.l.b16 %v6880
    %v7009 = vunpack.c.l.b16 %v6881
    %v7010 = vunpack.c.l.b16 %v6882
    %v7011 = vunpack.c.l.b16 %v6883
    %v7012 = vunpack.c.l.b16 %v6884
    %v7013 = vunpack.c.l.b16 %v6885
    %v7014 = vunpack.c.l.b16 %v6886
    %v7015 = vunpack.c.l.b16 %v6887
    %v7016 = vunpack.c.l.b16 %v6888
    %v7017 = vunpack.c.l.b16 %v6889
    %v7018 = vunpack.c.l.b16 %v6890
    %v7019 = vunpack.c.l.b16 %v6891
    %v7020 = vunpack.c.l.b16 %v6892
    %v7021 = vunpack.c.l.b16 %v6893
    %v7022 = vunpack.c.l.b16 %v6894
    %v7023 = vunpack.c.l.b16 %v6895
    %v7024 = vunpack.c.l.b16 %v6896
    %v7025 = vunpack.c.l.b16 %v6897
    %v7026 = vunpack.c.l.b16 %v6898
    %v7027 = vunpack.c.l.b16 %v6899
    %v7028 = vunpack.c.l.b16 %v6900
    %v7029 = vunpack.c.l.b16 %v6901
    %v7030 = vunpack.c.l.b16 %v6902
    %v7031 = vunpack.c.l.b16 %v6903
    %v7032 = vunpack.c.l.b16 %v6904
    %v7033 = vunpack.c.l.b16 %v6905
    %v7034 = vunpack.c.l.b16 %v6906
    %v7035 = vunpack.c.l.b16 %v6907
    %v7036 = vunpack.c.l.b16 %v6908
    %v7037 = vunpack.c.l.b16 %v6909
    %v7038 = vpack.c.b16 %v6975, %v6974
    %v7039 = vpack.c.b16 %v6977, %v6976
    %v7040 = vpack.c.b16 %v6979, %v6978
    %v7041 = vpack.c.b16 %v6981, %v6980
    %v7042 = vpack.c.b16 %v6983, %v6982
    %v7043 = vpack.c.b16 %v6985, %v6984
    %v7044 = vpack.c.b16 %v6987, %v6986
    %v7045 = vpack.c.b16 %v6989, %v6988
    %v7046 = vpack.c.b16 %v6991, %v6990
    %v7047 = vpack.c.b16 %v6993, %v6992
    %v7048 = vpack.c.b16 %v6995, %v6994
    %v7049 = vpack.c.b16 %v6997, %v6996
    %v7050 = vpack.c.b16 %v6999, %v6998
    %v7051 = vpack.c.b16 %v7001, %v7000
    %v7052 = vpack.c.b16 %v7003, %v7002
    %v7053 = vpack.c.b16 %v7005, %v7004
    %v7054 = vpack.c.b16 %v7007, %v7006
    %v7055 = vpack.c.b16 %v7009, %v7008
    %v7056 = vpack.c.b16 %v7011, %v7010
    %v7057 = vpack.c.b16 %v7013, %v7012
    %v7058 = vpack.c.b16 %v7015, %v7014
    %v7059 = vpack.c.b16 %v7017, %v7016
    %v7060 = vpack.c.b16 %v7019, %v7018
    %v7061 = vpack.c.b16 %v7021, %v7020
    %v7062 = vpack.c.b16 %v7023, %v7022
    %v7063 = vpack.c.b16 %v7025, %v7024
    %v7064 = vpack.c.b16 %v7027, %v7026
    %v7065 = vpack.c.b16 %v7029, %v7028
    %v7066 = vpack.c.b16 %v7031, %v7030
    %v7067 = vpack.c.b16 %v7033, %v7032
    %v7068 = vpack.c.b16 %v7035, %v7034
    %v7069 = vpack.c.b16 %v7037, %v7036
    %v7071 = vsel %vm320, %v7038, 0
    %v7073 = vsel %vm320, %v7039, 0
    %v7075 = vsel %vm320, %v7040, 0
    %v7077 = vsel %vm320, %v7041, 0
    %v7079 = vsel %vm320, %v7042, 0
    %v7081 = vsel %vm320, %v7043, 0
    %v7083 = vsel %vm320, %v7044, 0
    %v7085 = vsel %vm320, %v7045, 0
    %v7087 = vsel %vm320, %v7046, 0
    %v7089 = vsel %vm320, %v7047, 0
    %v7091 = vsel %vm320, %v7048, 0
    %v7093 = vsel %vm320, %v7049, 0
    %v7095 = vsel %vm320, %v7050, 0
    %v7097 = vsel %vm320, %v7051, 0
    %v7099 = vsel %vm320, %v7052, 0
    %v7101 = vsel %vm320, %v7053, 0
    %v7103 = vsel %vm320, %v7054, 0
    %v7105 = vsel %vm320, %v7055, 0
    %v7107 = vsel %vm320, %v7056, 0
    %v7109 = vsel %vm320, %v7057, 0
    %v7111 = vsel %vm320, %v7058, 0
    %v7113 = vsel %vm320, %v7059, 0
    %v7115 = vsel %vm320, %v7060, 0
    %v7117 = vsel %vm320, %v7061, 0
    %v7119 = vsel %vm320, %v7062, 0
    %v7121 = vsel %vm320, %v7063, 0
    %v7123 = vsel %vm320, %v7064, 0
    %v7125 = vsel %vm320, %v7065, 0
    %v7127 = vsel %vm320, %v7066, 0
    %v7129 = vsel %vm320, %v7067, 0
    %v7131 = vsel %vm320, %v7068, 0
    %v7133 = vsel %vm320, %v7069, 0
    %7134 = vst [vmem:[#allocation2] sm:$0xff] 0
    %7135 = vst [vmem:[#allocation2 + $0x8] sm:$0xf] 0
    %7136 = vst [vmem:[#allocation2 + $0xc] sm:$0xff] 0
    %7137 = vst [vmem:[#allocation2 + $0x14] sm:$0xf] 0
    %7138 = vst [vmem:[#allocation2 + $0x1b0] sm:$0xff] 0
    %7139 = vst [vmem:[#allocation2 + $0x1b8] sm:$0xf] 0
    %7140 = vst [vmem:[#allocation2 + $0x1bc] sm:$0xff] 0
    %7141 = vst [vmem:[#allocation2 + $0x1c4] sm:$0xf] 0
    %7142 = vst [vmem:[%s394] sm:$0xff] 0
    %7143 = vst [vmem:[%s394 + $0x8] sm:$0xf] 0
    %7144 = vst [vmem:[%s394 + $0xc] sm:$0xff] 0
    %7145 = vst [vmem:[%s394 + $0x14] sm:$0xf] 0
    %7146 = vst [vmem:[%s394 + $0x1b0] sm:$0xff] 0
    %7147 = vst [vmem:[%s394 + $0x1b8] sm:$0xf] 0
    %7148 = vst [vmem:[%s394 + $0x1bc] sm:$0xff] 0
    %7149 = vst [vmem:[%s394 + $0x1c4] sm:$0xf] 0
    %v7182 = vunpack.c.l.b16 %v7071
    %v7183 = vunpack.c.h.b16 %v7071
    %v7184 = vunpack.c.l.b16 %v7073
    %v7185 = vunpack.c.h.b16 %v7073
    %v7186 = vunpack.c.l.b16 %v7075
    %v7187 = vunpack.c.h.b16 %v7075
    %v7188 = vunpack.c.l.b16 %v7077
    %v7189 = vunpack.c.h.b16 %v7077
    %v7190 = vunpack.c.l.b16 %v7079
    %v7191 = vunpack.c.h.b16 %v7079
    %v7192 = vunpack.c.l.b16 %v7081
    %v7193 = vunpack.c.h.b16 %v7081
    %v7194 = vunpack.c.l.b16 %v7083
    %v7195 = vunpack.c.h.b16 %v7083
    %v7196 = vunpack.c.l.b16 %v7085
    %v7197 = vunpack.c.h.b16 %v7085
    %v7198 = vunpack.c.l.b16 %v7087
    %v7199 = vunpack.c.h.b16 %v7087
    %v7200 = vunpack.c.l.b16 %v7089
    %v7201 = vunpack.c.h.b16 %v7089
    %v7202 = vunpack.c.l.b16 %v7091
    %v7203 = vunpack.c.h.b16 %v7091
    %v7204 = vunpack.c.l.b16 %v7093
    %v7205 = vunpack.c.h.b16 %v7093
    %v7206 = vunpack.c.l.b16 %v7095
    %v7207 = vunpack.c.h.b16 %v7095
    %v7208 = vunpack.c.l.b16 %v7097
    %v7209 = vunpack.c.h.b16 %v7097
    %v7210 = vunpack.c.l.b16 %v7099
    %v7211 = vunpack.c.h.b16 %v7099
    %v7212 = vunpack.c.l.b16 %v7101
    %v7213 = vunpack.c.h.b16 %v7101
    %v7214 = vunpack.c.l.b16 %v7103
    %v7215 = vunpack.c.h.b16 %v7103
    %v7216 = vunpack.c.l.b16 %v7105
    %v7217 = vunpack.c.h.b16 %v7105
    %v7218 = vunpack.c.l.b16 %v7107
    %v7219 = vunpack.c.h.b16 %v7107
    %v7220 = vunpack.c.l.b16 %v7109
    %v7221 = vunpack.c.h.b16 %v7109
    %v7222 = vunpack.c.l.b16 %v7111
    %v7223 = vunpack.c.h.b16 %v7111
    %v7224 = vunpack.c.l.b16 %v7113
    %v7225 = vunpack.c.h.b16 %v7113
    %v7226 = vunpack.c.l.b16 %v7115
    %v7227 = vunpack.c.h.b16 %v7115
    %v7228 = vunpack.c.l.b16 %v7117
    %v7229 = vunpack.c.h.b16 %v7117
    %v7230 = vunpack.c.l.b16 %v7119
    %v7231 = vunpack.c.h.b16 %v7119
    %v7232 = vunpack.c.l.b16 %v7121
    %v7233 = vunpack.c.h.b16 %v7121
    %v7234 = vunpack.c.l.b16 %v7123
    %v7235 = vunpack.c.h.b16 %v7123
    %v7236 = vunpack.c.l.b16 %v7125
    %v7237 = vunpack.c.h.b16 %v7125
    %v7238 = vunpack.c.l.b16 %v7127
    %v7239 = vunpack.c.h.b16 %v7127
    %v7240 = vunpack.c.l.b16 %v7129
    %v7241 = vunpack.c.h.b16 %v7129
    %v7242 = vunpack.c.l.b16 %v7131
    %v7243 = vunpack.c.h.b16 %v7131
    %v7244 = vunpack.c.l.b16 %v7133
    %v7245 = vunpack.c.h.b16 %v7133
    %v7246 = vpack.c.b16 %v7182, %v7182
    %v7247 = vpack.c.b16 %v7183, %v7183
    %v7248 = vpack.c.b16 %v7184, %v7184
    %v7249 = vpack.c.b16 %v7185, %v7185
    %v7250 = vpack.c.b16 %v7186, %v7186
    %v7251 = vpack.c.b16 %v7187, %v7187
    %v7252 = vpack.c.b16 %v7188, %v7188
    %v7253 = vpack.c.b16 %v7189, %v7189
    %v7254 = vpack.c.b16 %v7190, %v7190
    %v7255 = vpack.c.b16 %v7191, %v7191
    %v7256 = vpack.c.b16 %v7192, %v7192
    %v7257 = vpack.c.b16 %v7193, %v7193
    %v7258 = vpack.c.b16 %v7194, %v7194
    %v7259 = vpack.c.b16 %v7195, %v7195
    %v7260 = vpack.c.b16 %v7196, %v7196
    %v7261 = vpack.c.b16 %v7197, %v7197
    %v7262 = vpack.c.b16 %v7198, %v7198
    %v7263 = vpack.c.b16 %v7199, %v7199
    %v7264 = vpack.c.b16 %v7200, %v7200
    %v7265 = vpack.c.b16 %v7201, %v7201
    %v7266 = vpack.c.b16 %v7202, %v7202
    %v7267 = vpack.c.b16 %v7203, %v7203
    %v7268 = vpack.c.b16 %v7204, %v7204
    %v7269 = vpack.c.b16 %v7205, %v7205
    %v7270 = vpack.c.b16 %v7206, %v7206
    %v7271 = vpack.c.b16 %v7207, %v7207
    %v7272 = vpack.c.b16 %v7208, %v7208
    %v7273 = vpack.c.b16 %v7209, %v7209
    %v7274 = vpack.c.b16 %v7210, %v7210
    %v7275 = vpack.c.b16 %v7211, %v7211
    %v7276 = vpack.c.b16 %v7212, %v7212
    %v7277 = vpack.c.b16 %v7213, %v7213
    %v7278 = vpack.c.b16 %v7214, %v7214
    %v7279 = vpack.c.b16 %v7215, %v7215
    %v7280 = vpack.c.b16 %v7216, %v7216
    %v7281 = vpack.c.b16 %v7217, %v7217
    %v7282 = vpack.c.b16 %v7218, %v7218
    %v7283 = vpack.c.b16 %v7219, %v7219
    %v7284 = vpack.c.b16 %v7220, %v7220
    %v7285 = vpack.c.b16 %v7221, %v7221
    %v7286 = vpack.c.b16 %v7222, %v7222
    %v7287 = vpack.c.b16 %v7223, %v7223
    %v7288 = vpack.c.b16 %v7224, %v7224
    %v7289 = vpack.c.b16 %v7225, %v7225
    %v7290 = vpack.c.b16 %v7226, %v7226
    %v7291 = vpack.c.b16 %v7227, %v7227
    %v7292 = vpack.c.b16 %v7228, %v7228
    %v7293 = vpack.c.b16 %v7229, %v7229
    %v7294 = vpack.c.b16 %v7230, %v7230
    %v7295 = vpack.c.b16 %v7231, %v7231
    %v7296 = vpack.c.b16 %v7232, %v7232
    %v7297 = vpack.c.b16 %v7233, %v7233
    %v7298 = vpack.c.b16 %v7234, %v7234
    %v7299 = vpack.c.b16 %v7235, %v7235
    %v7300 = vpack.c.b16 %v7236, %v7236
    %v7301 = vpack.c.b16 %v7237, %v7237
    %v7302 = vpack.c.b16 %v7238, %v7238
    %v7303 = vpack.c.b16 %v7239, %v7239
    %v7304 = vpack.c.b16 %v7240, %v7240
    %v7305 = vpack.c.b16 %v7241, %v7241
    %v7306 = vpack.c.b16 %v7242, %v7242
    %v7307 = vpack.c.b16 %v7243, %v7243
    %v7308 = vpack.c.b16 %v7244, %v7244
    %v7309 = vpack.c.b16 %v7245, %v7245
    %7374 = vst [vmem:[%s627 + $0x4] sm:$0xf] %v7246
    %7375 = vst [vmem:[%s627 + $0x10] sm:$0xf] %v7247
    %7376 = vst [vmem:[%s627 + $0x1c] sm:$0xf] %v7248
    %7377 = vst [vmem:[%s627 + $0x28] sm:$0xf] %v7249
    %7378 = vst [vmem:[%s627 + $0x34] sm:$0xf] %v7250
    %7379 = vst [vmem:[%s627 + $0x40] sm:$0xf] %v7251
    %7380 = vst [vmem:[%s627 + $0x4c] sm:$0xf] %v7252
    %7381 = vst [vmem:[%s627 + $0x58] sm:$0xf] %v7253
    %7382 = vst [vmem:[%s627 + $0x64] sm:$0xf] %v7254
    %7383 = vst [vmem:[%s627 + $0x70] sm:$0xf] %v7255
    %7384 = vst [vmem:[%s627 + $0x7c] sm:$0xf] %v7256
    %7385 = vst [vmem:[%s627 + $0x88] sm:$0xf] %v7257
    %7386 = vst [vmem:[%s627 + $0x94] sm:$0xf] %v7258
    %7387 = vst [vmem:[%s627 + $0xa0] sm:$0xf] %v7259
    %7388 = vst [vmem:[%s627 + $0xac] sm:$0xf] %v7260
    %7389 = vst [vmem:[%s627 + $0xb8] sm:$0xf] %v7261
    %7390 = vst [vmem:[%s627 + $0xc4] sm:$0xf] %v7262
    %7391 = vst [vmem:[%s627 + $0xd0] sm:$0xf] %v7263
    %7392 = vst [vmem:[%s627 + $0xdc] sm:$0xf] %v7264
    %7393 = vst [vmem:[%s627 + $0xe8] sm:$0xf] %v7265
    %7394 = vst [vmem:[%s627 + $0xf4] sm:$0xf] %v7266
    %7395 = vst [vmem:[%s627 + $0x100] sm:$0xf] %v7267
    %7396 = vst [vmem:[%s627 + $0x10c] sm:$0xf] %v7268
    %7397 = vst [vmem:[%s627 + $0x118] sm:$0xf] %v7269
    %7398 = vst [vmem:[%s627 + $0x124] sm:$0xf] %v7270
    %7399 = vst [vmem:[%s627 + $0x130] sm:$0xf] %v7271
    %7400 = vst [vmem:[%s627 + $0x13c] sm:$0xf] %v7272
    %7401 = vst [vmem:[%s627 + $0x148] sm:$0xf] %v7273
    %7402 = vst [vmem:[%s627 + $0x154] sm:$0xf] %v7274
    %7403 = vst [vmem:[%s627 + $0x160] sm:$0xf] %v7275
    %7404 = vst [vmem:[%s627 + $0x16c] sm:$0xf] %v7276
    %7405 = vst [vmem:[%s627 + $0x178] sm:$0xf] %v7277
    %7406 = vst [vmem:[%s627 + $0x1b4] sm:$0xf] %v7278
    %7407 = vst [vmem:[%s627 + $0x1c0] sm:$0xf] %v7279
    %7408 = vst [vmem:[%s627 + $0x1cc] sm:$0xf] %v7280
    %7409 = vst [vmem:[%s627 + $0x1d8] sm:$0xf] %v7281
    %7410 = vst [vmem:[%s627 + $0x1e4] sm:$0xf] %v7282
    %7411 = vst [vmem:[%s627 + $0x1f0] sm:$0xf] %v7283
    %7412 = vst [vmem:[%s627 + $0x1fc] sm:$0xf] %v7284
    %7413 = vst [vmem:[%s627 + $0x208] sm:$0xf] %v7285
    %7414 = vst [vmem:[%s627 + $0x214] sm:$0xf] %v7286
    %7415 = vst [vmem:[%s627 + $0x220] sm:$0xf] %v7287
    %7416 = vst [vmem:[%s627 + $0x22c] sm:$0xf] %v7288
    %7417 = vst [vmem:[%s627 + $0x238] sm:$0xf] %v7289
    %7418 = vst [vmem:[%s627 + $0x244] sm:$0xf] %v7290
    %7419 = vst [vmem:[%s627 + $0x250] sm:$0xf] %v7291
    %7420 = vst [vmem:[%s627 + $0x25c] sm:$0xf] %v7292
    %7421 = vst [vmem:[%s627 + $0x268] sm:$0xf] %v7293
    %7422 = vst [vmem:[%s627 + $0x274] sm:$0xf] %v7294
    %7423 = vst [vmem:[%s627 + $0x280] sm:$0xf] %v7295
    %7424 = vst [vmem:[%s627 + $0x28c] sm:$0xf] %v7296
    %7425 = vst [vmem:[%s627 + $0x298] sm:$0xf] %v7297
    %7426 = vst [vmem:[%s627 + $0x2a4] sm:$0xf] %v7298
    %7427 = vst [vmem:[%s627 + $0x2b0] sm:$0xf] %v7299
    %7428 = vst [vmem:[%s627 + $0x2bc] sm:$0xf] %v7300
    %7429 = vst [vmem:[%s627 + $0x2c8] sm:$0xf] %v7301
    %7430 = vst [vmem:[%s627 + $0x2d4] sm:$0xf] %v7302
    %7431 = vst [vmem:[%s627 + $0x2e0] sm:$0xf] %v7303
    %7432 = vst [vmem:[%s627 + $0x2ec] sm:$0xf] %v7304
    %7433 = vst [vmem:[%s627 + $0x2f8] sm:$0xf] %v7305
    %7434 = vst [vmem:[%s627 + $0x304] sm:$0xf] %v7306
    %7435 = vst [vmem:[%s627 + $0x310] sm:$0xf] %v7307
    %7436 = vst [vmem:[%s627 + $0x31c] sm:$0xf] %v7308
    %7437 = vst [vmem:[%s627 + $0x328] sm:$0xf] %v7309
    %v7438 = vld [vmem:[%s627] sm:$0x1]
    %v7439 = vsel %vm694, 0, %v7438
    %7440 = vst [vmem:[%s627] sm:$0x1] %v7439
    %v7441 = vld [vmem:[%s627 + $0x18] sm:$0x1]
    %v7442 = vsel %vm694, 0, %v7441
    %7443 = vst [vmem:[%s627 + $0x18] sm:$0x1] %v7442
    %v7444 = vld [vmem:[%s627 + $0x30] sm:$0x1]
    %v7445 = vsel %vm694, 0, %v7444
    %7446 = vst [vmem:[%s627 + $0x30] sm:$0x1] %v7445
    %v7447 = vld [vmem:[%s627 + $0x48] sm:$0x1]
    %v7448 = vsel %vm694, 0, %v7447
    %7449 = vst [vmem:[%s627 + $0x48] sm:$0x1] %v7448
    %v7450 = vld [vmem:[%s627 + $0x60] sm:$0x1]
    %v7451 = vsel %vm694, 0, %v7450
    %7452 = vst [vmem:[%s627 + $0x60] sm:$0x1] %v7451
    %v7453 = vld [vmem:[%s627 + $0x78] sm:$0x1]
    %v7454 = vsel %vm694, 0, %v7453
    %7455 = vst [vmem:[%s627 + $0x78] sm:$0x1] %v7454
    %v7456 = vld [vmem:[%s627 + $0x90] sm:$0x1]
    %v7457 = vsel %vm694, 0, %v7456
    %7458 = vst [vmem:[%s627 + $0x90] sm:$0x1] %v7457
    %v7459 = vld [vmem:[%s627 + $0xa8] sm:$0x1]
    %v7460 = vsel %vm694, 0, %v7459
    %7461 = vst [vmem:[%s627 + $0xa8] sm:$0x1] %v7460
    %v7462 = vld [vmem:[%s627 + $0xc0] sm:$0x1]
    %v7463 = vsel %vm694, 0, %v7462
    %7464 = vst [vmem:[%s627 + $0xc0] sm:$0x1] %v7463
    %v7465 = vld [vmem:[%s627 + $0xd8] sm:$0x1]
    %v7466 = vsel %vm694, 0, %v7465
    %7467 = vst [vmem:[%s627 + $0xd8] sm:$0x1] %v7466
    %v7468 = vld [vmem:[%s627 + $0xf0] sm:$0x1]
    %v7469 = vsel %vm694, 0, %v7468
    %7470 = vst [vmem:[%s627 + $0xf0] sm:$0x1] %v7469
    %v7471 = vld [vmem:[%s627 + $0x108] sm:$0x1]
    %v7472 = vsel %vm694, 0, %v7471
    %7473 = vst [vmem:[%s627 + $0x108] sm:$0x1] %v7472
    %v7474 = vld [vmem:[%s627 + $0x120] sm:$0x1]
    %v7475 = vsel %vm694, 0, %v7474
    %7476 = vst [vmem:[%s627 + $0x120] sm:$0x1] %v7475
    %v7477 = vld [vmem:[%s627 + $0x138] sm:$0x1]
    %v7478 = vsel %vm694, 0, %v7477
    %7479 = vst [vmem:[%s627 + $0x138] sm:$0x1] %v7478
    %v7480 = vld [vmem:[%s627 + $0x150] sm:$0x1]
    %v7481 = vsel %vm694, 0, %v7480
    %7482 = vst [vmem:[%s627 + $0x150] sm:$0x1] %v7481
    %v7483 = vld [vmem:[%s627 + $0x168] sm:$0x1]
    %v7484 = vsel %vm694, 0, %v7483
    %7485 = vst [vmem:[%s627 + $0x168] sm:$0x1] %v7484
    %v7486 = vld [vmem:[%s627 + $0x1b0] sm:$0x1]
    %v7487 = vsel %vm694, 0, %v7486
    %7488 = vst [vmem:[%s627 + $0x1b0] sm:$0x1] %v7487
    %v7489 = vld [vmem:[%s627 + $0x1c8] sm:$0x1]
    %v7490 = vsel %vm694, 0, %v7489
    %7491 = vst [vmem:[%s627 + $0x1c8] sm:$0x1] %v7490
    %v7492 = vld [vmem:[%s627 + $0x1e0] sm:$0x1]
    %v7493 = vsel %vm694, 0, %v7492
    %7494 = vst [vmem:[%s627 + $0x1e0] sm:$0x1] %v7493
    %v7495 = vld [vmem:[%s627 + $0x1f8] sm:$0x1]
    %v7496 = vsel %vm694, 0, %v7495
    %7497 = vst [vmem:[%s627 + $0x1f8] sm:$0x1] %v7496
    %v7498 = vld [vmem:[%s627 + $0x210] sm:$0x1]
    %v7499 = vsel %vm694, 0, %v7498
    %7500 = vst [vmem:[%s627 + $0x210] sm:$0x1] %v7499
    %v7501 = vld [vmem:[%s627 + $0x228] sm:$0x1]
    %v7502 = vsel %vm694, 0, %v7501
    %7503 = vst [vmem:[%s627 + $0x228] sm:$0x1] %v7502
    %v7504 = vld [vmem:[%s627 + $0x240] sm:$0x1]
    %v7505 = vsel %vm694, 0, %v7504
    %7506 = vst [vmem:[%s627 + $0x240] sm:$0x1] %v7505
    %v7507 = vld [vmem:[%s627 + $0x258] sm:$0x1]
    %v7508 = vsel %vm694, 0, %v7507
    %7509 = vst [vmem:[%s627 + $0x258] sm:$0x1] %v7508
    %v7510 = vld [vmem:[%s627 + $0x270] sm:$0x1]
    %v7511 = vsel %vm694, 0, %v7510
    %7512 = vst [vmem:[%s627 + $0x270] sm:$0x1] %v7511
    %v7513 = vld [vmem:[%s627 + $0x288] sm:$0x1]
    %v7514 = vsel %vm694, 0, %v7513
    %7515 = vst [vmem:[%s627 + $0x288] sm:$0x1] %v7514
    %v7516 = vld [vmem:[%s627 + $0x2a0] sm:$0x1]
    %v7517 = vsel %vm694, 0, %v7516
    %7518 = vst [vmem:[%s627 + $0x2a0] sm:$0x1] %v7517
    %v7519 = vld [vmem:[%s627 + $0x2b8] sm:$0x1]
    %v7520 = vsel %vm694, 0, %v7519
    %7521 = vst [vmem:[%s627 + $0x2b8] sm:$0x1] %v7520
    %v7522 = vld [vmem:[%s627 + $0x2d0] sm:$0x1]
    %v7523 = vsel %vm694, 0, %v7522
    %7524 = vst [vmem:[%s627 + $0x2d0] sm:$0x1] %v7523
    %v7525 = vld [vmem:[%s627 + $0x2e8] sm:$0x1]
    %v7526 = vsel %vm694, 0, %v7525
    %7527 = vst [vmem:[%s627 + $0x2e8] sm:$0x1] %v7526
    %v7528 = vld [vmem:[%s627 + $0x300] sm:$0x1]
    %v7529 = vsel %vm694, 0, %v7528
    %7530 = vst [vmem:[%s627 + $0x300] sm:$0x1] %v7529
    %v7531 = vld [vmem:[%s627 + $0x318] sm:$0x1]
    %v7532 = vsel %vm694, 0, %v7531
    %7533 = vst [vmem:[%s627 + $0x318] sm:$0x1] %v7532
    %v7535 = vshrl.u32 %v7246, 16
    %v7537 = vrot.slane %v7535, 7
    %v7538 = vshll.u32 %v7246, 16
    %v7540 = vor.u32 %v7537, %v7538
    %v7541 = vrot.slane %v7537, 4
    %v7543 = vshrl.u32 %v7247, 16
    %v7545 = vrot.slane %v7543, 7
    %v7546 = vshll.u32 %v7247, 16
    %v7548 = vor.u32 %v7545, %v7546
    %v7549 = vsel %vm792, %v7541, %v7548
    %v7551 = vshrl.u32 %v7248, 16
    %v7553 = vrot.slane %v7551, 7
    %v7554 = vshll.u32 %v7248, 16
    %v7556 = vor.u32 %v7553, %v7554
    %v7557 = vrot.slane %v7553, 4
    %v7559 = vshrl.u32 %v7249, 16
    %v7561 = vrot.slane %v7559, 7
    %v7562 = vshll.u32 %v7249, 16
    %v7564 = vor.u32 %v7561, %v7562
    %v7565 = vsel %vm792, %v7557, %v7564
    %v7567 = vshrl.u32 %v7250, 16
    %v7569 = vrot.slane %v7567, 7
    %v7570 = vshll.u32 %v7250, 16
    %v7572 = vor.u32 %v7569, %v7570
    %v7573 = vrot.slane %v7569, 4
    %v7575 = vshrl.u32 %v7251, 16
    %v7577 = vrot.slane %v7575, 7
    %v7578 = vshll.u32 %v7251, 16
    %v7580 = vor.u32 %v7577, %v7578
    %v7581 = vsel %vm792, %v7573, %v7580
    %v7583 = vshrl.u32 %v7252, 16
    %v7585 = vrot.slane %v7583, 7
    %v7586 = vshll.u32 %v7252, 16
    %v7588 = vor.u32 %v7585, %v7586
    %v7589 = vrot.slane %v7585, 4
    %v7591 = vshrl.u32 %v7253, 16
    %v7593 = vrot.slane %v7591, 7
    %v7594 = vshll.u32 %v7253, 16
    %v7596 = vor.u32 %v7593, %v7594
    %v7597 = vsel %vm792, %v7589, %v7596
    %v7599 = vshrl.u32 %v7254, 16
    %v7601 = vrot.slane %v7599, 7
    %v7602 = vshll.u32 %v7254, 16
    %v7604 = vor.u32 %v7601, %v7602
    %v7605 = vrot.slane %v7601, 4
    %v7607 = vshrl.u32 %v7255, 16
    %v7609 = vrot.slane %v7607, 7
    %v7610 = vshll.u32 %v7255, 16
    %v7612 = vor.u32 %v7609, %v7610
    %v7613 = vsel %vm792, %v7605, %v7612
    %v7615 = vshrl.u32 %v7256, 16
    %v7617 = vrot.slane %v7615, 7
    %v7618 = vshll.u32 %v7256, 16
    %v7620 = vor.u32 %v7617, %v7618
    %v7621 = vrot.slane %v7617, 4
    %v7623 = vshrl.u32 %v7257, 16
    %v7625 = vrot.slane %v7623, 7
    %v7626 = vshll.u32 %v7257, 16
    %v7628 = vor.u32 %v7625, %v7626
    %v7629 = vsel %vm792, %v7621, %v7628
    %v7631 = vshrl.u32 %v7258, 16
    %v7633 = vrot.slane %v7631, 7
    %v7634 = vshll.u32 %v7258, 16
    %v7636 = vor.u32 %v7633, %v7634
    %v7637 = vrot.slane %v7633, 4
    %v7639 = vshrl.u32 %v7259, 16
    %v7641 = vrot.slane %v7639, 7
    %v7642 = vshll.u32 %v7259, 16
    %v7644 = vor.u32 %v7641, %v7642
    %v7645 = vsel %vm792, %v7637, %v7644
    %v7647 = vshrl.u32 %v7260, 16
    %v7649 = vrot.slane %v7647, 7
    %v7650 = vshll.u32 %v7260, 16
    %v7652 = vor.u32 %v7649, %v7650
    %v7653 = vrot.slane %v7649, 4
    %v7655 = vshrl.u32 %v7261, 16
    %v7657 = vrot.slane %v7655, 7
    %v7658 = vshll.u32 %v7261, 16
    %v7660 = vor.u32 %v7657, %v7658
    %v7661 = vsel %vm792, %v7653, %v7660
    %v7663 = vshrl.u32 %v7262, 16
    %v7665 = vrot.slane %v7663, 7
    %v7666 = vshll.u32 %v7262, 16
    %v7668 = vor.u32 %v7665, %v7666
    %v7669 = vrot.slane %v7665, 4
    %v7671 = vshrl.u32 %v7263, 16
    %v7673 = vrot.slane %v7671, 7
    %v7674 = vshll.u32 %v7263, 16
    %v7676 = vor.u32 %v7673, %v7674
    %v7677 = vsel %vm792, %v7669, %v7676
    %v7679 = vshrl.u32 %v7264, 16
    %v7681 = vrot.slane %v7679, 7
    %v7682 = vshll.u32 %v7264, 16
    %v7684 = vor.u32 %v7681, %v7682
    %v7685 = vrot.slane %v7681, 4
    %v7687 = vshrl.u32 %v7265, 16
    %v7689 = vrot.slane %v7687, 7
    %v7690 = vshll.u32 %v7265, 16
    %v7692 = vor.u32 %v7689, %v7690
    %v7693 = vsel %vm792, %v7685, %v7692
    %v7695 = vshrl.u32 %v7266, 16
    %v7697 = vrot.slane %v7695, 7
    %v7698 = vshll.u32 %v7266, 16
    %v7700 = vor.u32 %v7697, %v7698
    %v7701 = vrot.slane %v7697, 4
    %v7703 = vshrl.u32 %v7267, 16
    %v7705 = vrot.slane %v7703, 7
    %v7706 = vshll.u32 %v7267, 16
    %v7708 = vor.u32 %v7705, %v7706
    %v7709 = vsel %vm792, %v7701, %v7708
    %v7711 = vshrl.u32 %v7268, 16
    %v7713 = vrot.slane %v7711, 7
    %v7714 = vshll.u32 %v7268, 16
    %v7716 = vor.u32 %v7713, %v7714
    %v7717 = vrot.slane %v7713, 4
    %v7719 = vshrl.u32 %v7269, 16
    %v7721 = vrot.slane %v7719, 7
    %v7722 = vshll.u32 %v7269, 16
    %v7724 = vor.u32 %v7721, %v7722
    %v7725 = vsel %vm792, %v7717, %v7724
    %v7727 = vshrl.u32 %v7270, 16
    %v7729 = vrot.slane %v7727, 7
    %v7730 = vshll.u32 %v7270, 16
    %v7732 = vor.u32 %v7729, %v7730
    %v7733 = vrot.slane %v7729, 4
    %v7735 = vshrl.u32 %v7271, 16
    %v7737 = vrot.slane %v7735, 7
    %v7738 = vshll.u32 %v7271, 16
    %v7740 = vor.u32 %v7737, %v7738
    %v7741 = vsel %vm792, %v7733, %v7740
    %v7743 = vshrl.u32 %v7272, 16
    %v7745 = vrot.slane %v7743, 7
    %v7746 = vshll.u32 %v7272, 16
    %v7748 = vor.u32 %v7745, %v7746
    %v7749 = vrot.slane %v7745, 4
    %v7751 = vshrl.u32 %v7273, 16
    %v7753 = vrot.slane %v7751, 7
    %v7754 = vshll.u32 %v7273, 16
    %v7756 = vor.u32 %v7753, %v7754
    %v7757 = vsel %vm792, %v7749, %v7756
    %v7759 = vshrl.u32 %v7274, 16
    %v7761 = vrot.slane %v7759, 7
    %v7762 = vshll.u32 %v7274, 16
    %v7764 = vor.u32 %v7761, %v7762
    %v7765 = vrot.slane %v7761, 4
    %v7767 = vshrl.u32 %v7275, 16
    %v7769 = vrot.slane %v7767, 7
    %v7770 = vshll.u32 %v7275, 16
    %v7772 = vor.u32 %v7769, %v7770
    %v7773 = vsel %vm792, %v7765, %v7772
    %v7775 = vshrl.u32 %v7276, 16
    %v7777 = vrot.slane %v7775, 7
    %v7778 = vshll.u32 %v7276, 16
    %v7780 = vor.u32 %v7777, %v7778
    %v7781 = vrot.slane %v7777, 4
    %v7783 = vshrl.u32 %v7277, 16
    %v7785 = vrot.slane %v7783, 7
    %v7786 = vshll.u32 %v7277, 16
    %v7788 = vor.u32 %v7785, %v7786
    %v7789 = vsel %vm792, %v7781, %v7788
    %v7791 = vshrl.u32 %v7278, 16
    %v7793 = vrot.slane %v7791, 7
    %v7794 = vshll.u32 %v7278, 16
    %v7796 = vor.u32 %v7793, %v7794
    %v7797 = vrot.slane %v7793, 4
    %v7799 = vshrl.u32 %v7279, 16
    %v7801 = vrot.slane %v7799, 7
    %v7802 = vshll.u32 %v7279, 16
    %v7804 = vor.u32 %v7801, %v7802
    %v7805 = vsel %vm792, %v7797, %v7804
    %v7807 = vshrl.u32 %v7280, 16
    %v7809 = vrot.slane %v7807, 7
    %v7810 = vshll.u32 %v7280, 16
    %v7812 = vor.u32 %v7809, %v7810
    %v7813 = vrot.slane %v7809, 4
    %v7815 = vshrl.u32 %v7281, 16
    %v7817 = vrot.slane %v7815, 7
    %v7818 = vshll.u32 %v7281, 16
    %v7820 = vor.u32 %v7817, %v7818
    %v7821 = vsel %vm792, %v7813, %v7820
    %v7823 = vshrl.u32 %v7282, 16
    %v7825 = vrot.slane %v7823, 7
    %v7826 = vshll.u32 %v7282, 16
    %v7828 = vor.u32 %v7825, %v7826
    %v7829 = vrot.slane %v7825, 4
    %v7831 = vshrl.u32 %v7283, 16
    %v7833 = vrot.slane %v7831, 7
    %v7834 = vshll.u32 %v7283, 16
    %v7836 = vor.u32 %v7833, %v7834
    %v7837 = vsel %vm792, %v7829, %v7836
    %v7839 = vshrl.u32 %v7284, 16
    %v7841 = vrot.slane %v7839, 7
    %v7842 = vshll.u32 %v7284, 16
    %v7844 = vor.u32 %v7841, %v7842
    %v7845 = vrot.slane %v7841, 4
    %v7847 = vshrl.u32 %v7285, 16
    %v7849 = vrot.slane %v7847, 7
    %v7850 = vshll.u32 %v7285, 16
    %v7852 = vor.u32 %v7849, %v7850
    %v7853 = vsel %vm792, %v7845, %v7852
    %v7855 = vshrl.u32 %v7286, 16
    %v7857 = vrot.slane %v7855, 7
    %v7858 = vshll.u32 %v7286, 16
    %v7860 = vor.u32 %v7857, %v7858
    %v7861 = vrot.slane %v7857, 4
    %v7863 = vshrl.u32 %v7287, 16
    %v7865 = vrot.slane %v7863, 7
    %v7866 = vshll.u32 %v7287, 16
    %v7868 = vor.u32 %v7865, %v7866
    %v7869 = vsel %vm792, %v7861, %v7868
    %v7871 = vshrl.u32 %v7288, 16
    %v7873 = vrot.slane %v7871, 7
    %v7874 = vshll.u32 %v7288, 16
    %v7876 = vor.u32 %v7873, %v7874
    %v7877 = vrot.slane %v7873, 4
    %v7879 = vshrl.u32 %v7289, 16
    %v7881 = vrot.slane %v7879, 7
    %v7882 = vshll.u32 %v7289, 16
    %v7884 = vor.u32 %v7881, %v7882
    %v7885 = vsel %vm792, %v7877, %v7884
    %v7887 = vshrl.u32 %v7290, 16
    %v7889 = vrot.slane %v7887, 7
    %v7890 = vshll.u32 %v7290, 16
    %v7892 = vor.u32 %v7889, %v7890
    %v7893 = vrot.slane %v7889, 4
    %v7895 = vshrl.u32 %v7291, 16
    %v7897 = vrot.slane %v7895, 7
    %v7898 = vshll.u32 %v7291, 16
    %v7900 = vor.u32 %v7897, %v7898
    %v7901 = vsel %vm792, %v7893, %v7900
    %v7903 = vshrl.u32 %v7292, 16
    %v7905 = vrot.slane %v7903, 7
    %v7906 = vshll.u32 %v7292, 16
    %v7908 = vor.u32 %v7905, %v7906
    %v7909 = vrot.slane %v7905, 4
    %v7911 = vshrl.u32 %v7293, 16
    %v7913 = vrot.slane %v7911, 7
    %v7914 = vshll.u32 %v7293, 16
    %v7916 = vor.u32 %v7913, %v7914
    %v7917 = vsel %vm792, %v7909, %v7916
    %v7919 = vshrl.u32 %v7294, 16
    %v7921 = vrot.slane %v7919, 7
    %v7922 = vshll.u32 %v7294, 16
    %v7924 = vor.u32 %v7921, %v7922
    %v7925 = vrot.slane %v7921, 4
    %v7927 = vshrl.u32 %v7295, 16
    %v7929 = vrot.slane %v7927, 7
    %v7930 = vshll.u32 %v7295, 16
    %v7932 = vor.u32 %v7929, %v7930
    %v7933 = vsel %vm792, %v7925, %v7932
    %v7935 = vshrl.u32 %v7296, 16
    %v7937 = vrot.slane %v7935, 7
    %v7938 = vshll.u32 %v7296, 16
    %v7940 = vor.u32 %v7937, %v7938
    %v7941 = vrot.slane %v7937, 4
    %v7943 = vshrl.u32 %v7297, 16
    %v7945 = vrot.slane %v7943, 7
    %v7946 = vshll.u32 %v7297, 16
    %v7948 = vor.u32 %v7945, %v7946
    %v7949 = vsel %vm792, %v7941, %v7948
    %v7951 = vshrl.u32 %v7298, 16
    %v7953 = vrot.slane %v7951, 7
    %v7954 = vshll.u32 %v7298, 16
    %v7956 = vor.u32 %v7953, %v7954
    %v7957 = vrot.slane %v7953, 4
    %v7959 = vshrl.u32 %v7299, 16
    %v7961 = vrot.slane %v7959, 7
    %v7962 = vshll.u32 %v7299, 16
    %v7964 = vor.u32 %v7961, %v7962
    %v7965 = vsel %vm792, %v7957, %v7964
    %v7967 = vshrl.u32 %v7300, 16
    %v7969 = vrot.slane %v7967, 7
    %v7970 = vshll.u32 %v7300, 16
    %v7972 = vor.u32 %v7969, %v7970
    %v7973 = vrot.slane %v7969, 4
    %v7975 = vshrl.u32 %v7301, 16
    %v7977 = vrot.slane %v7975, 7
    %v7978 = vshll.u32 %v7301, 16
    %v7980 = vor.u32 %v7977, %v7978
    %v7981 = vsel %vm792, %v7973, %v7980
    %v7983 = vshrl.u32 %v7302, 16
    %v7985 = vrot.slane %v7983, 7
    %v7986 = vshll.u32 %v7302, 16
    %v7988 = vor.u32 %v7985, %v7986
    %v7989 = vrot.slane %v7985, 4
    %v7991 = vshrl.u32 %v7303, 16
    %v7993 = vrot.slane %v7991, 7
    %v7994 = vshll.u32 %v7303, 16
    %v7996 = vor.u32 %v7993, %v7994
    %v7997 = vsel %vm792, %v7989, %v7996
    %v7999 = vshrl.u32 %v7304, 16
    %v8001 = vrot.slane %v7999, 7
    %v8002 = vshll.u32 %v7304, 16
    %v8004 = vor.u32 %v8001, %v8002
    %v8005 = vrot.slane %v8001, 4
    %v8007 = vshrl.u32 %v7305, 16
    %v8009 = vrot.slane %v8007, 7
    %v8010 = vshll.u32 %v7305, 16
    %v8012 = vor.u32 %v8009, %v8010
    %v8013 = vsel %vm792, %v8005, %v8012
    %v8015 = vshrl.u32 %v7306, 16
    %v8017 = vrot.slane %v8015, 7
    %v8018 = vshll.u32 %v7306, 16
    %v8020 = vor.u32 %v8017, %v8018
    %v8021 = vrot.slane %v8017, 4
    %v8023 = vshrl.u32 %v7307, 16
    %v8025 = vrot.slane %v8023, 7
    %v8026 = vshll.u32 %v7307, 16
    %v8028 = vor.u32 %v8025, %v8026
    %v8029 = vsel %vm792, %v8021, %v8028
    %v8031 = vshrl.u32 %v7308, 16
    %v8033 = vrot.slane %v8031, 7
    %v8034 = vshll.u32 %v7308, 16
    %v8036 = vor.u32 %v8033, %v8034
    %v8037 = vrot.slane %v8033, 4
    %v8039 = vshrl.u32 %v7309, 16
    %v8041 = vrot.slane %v8039, 7
    %v8042 = vshll.u32 %v7309, 16
    %v8044 = vor.u32 %v8041, %v8042
    %v8045 = vsel %vm792, %v8037, %v8044
    %v8110 = vld [vmem:[%s627] sm:$0xf]
    %v8111 = vsel %vm1371, %v7540, %v8110
    %8112 = vst [vmem:[%s627] sm:$0xf] %v8111
    %8113 = vst [vmem:[%s627 + $0xc] sm:$0xf] %v7549
    %v8114 = vld [vmem:[%s627 + $0x18] sm:$0xf]
    %v8115 = vsel %vm1371, %v7556, %v8114
    %8116 = vst [vmem:[%s627 + $0x18] sm:$0xf] %v8115
    %8117 = vst [vmem:[%s627 + $0x24] sm:$0xf] %v7565
    %v8118 = vld [vmem:[%s627 + $0x30] sm:$0xf]
    %v8119 = vsel %vm1371, %v7572, %v8118
    %8120 = vst [vmem:[%s627 + $0x30] sm:$0xf] %v8119
    %8121 = vst [vmem:[%s627 + $0x3c] sm:$0xf] %v7581
    %v8122 = vld [vmem:[%s627 + $0x48] sm:$0xf]
    %v8123 = vsel %vm1371, %v7588, %v8122
    %8124 = vst [vmem:[%s627 + $0x48] sm:$0xf] %v8123
    %8125 = vst [vmem:[%s627 + $0x54] sm:$0xf] %v7597
    %v8126 = vld [vmem:[%s627 + $0x60] sm:$0xf]
    %v8127 = vsel %vm1371, %v7604, %v8126
    %8128 = vst [vmem:[%s627 + $0x60] sm:$0xf] %v8127
    %8129 = vst [vmem:[%s627 + $0x6c] sm:$0xf] %v7613
    %v8130 = vld [vmem:[%s627 + $0x78] sm:$0xf]
    %v8131 = vsel %vm1371, %v7620, %v8130
    %8132 = vst [vmem:[%s627 + $0x78] sm:$0xf] %v8131
    %8133 = vst [vmem:[%s627 + $0x84] sm:$0xf] %v7629
    %v8134 = vld [vmem:[%s627 + $0x90] sm:$0xf]
    %v8135 = vsel %vm1371, %v7636, %v8134
    %8136 = vst [vmem:[%s627 + $0x90] sm:$0xf] %v8135
    %8137 = vst [vmem:[%s627 + $0x9c] sm:$0xf] %v7645
    %v8138 = vld [vmem:[%s627 + $0xa8] sm:$0xf]
    %v8139 = vsel %vm1371, %v7652, %v8138
    %8140 = vst [vmem:[%s627 + $0xa8] sm:$0xf] %v8139
    %8141 = vst [vmem:[%s627 + $0xb4] sm:$0xf] %v7661
    %v8142 = vld [vmem:[%s627 + $0xc0] sm:$0xf]
    %v8143 = vsel %vm1371, %v7668, %v8142
    %8144 = vst [vmem:[%s627 + $0xc0] sm:$0xf] %v8143
    %8145 = vst [vmem:[%s627 + $0xcc] sm:$0xf] %v7677
    %v8146 = vld [vmem:[%s627 + $0xd8] sm:$0xf]
    %v8147 = vsel %vm1371, %v7684, %v8146
    %8148 = vst [vmem:[%s627 + $0xd8] sm:$0xf] %v8147
    %8149 = vst [vmem:[%s627 + $0xe4] sm:$0xf] %v7693
    %v8150 = vld [vmem:[%s627 + $0xf0] sm:$0xf]
    %v8151 = vsel %vm1371, %v7700, %v8150
    %8152 = vst [vmem:[%s627 + $0xf0] sm:$0xf] %v8151
    %8153 = vst [vmem:[%s627 + $0xfc] sm:$0xf] %v7709
    %v8154 = vld [vmem:[%s627 + $0x108] sm:$0xf]
    %v8155 = vsel %vm1371, %v7716, %v8154
    %8156 = vst [vmem:[%s627 + $0x108] sm:$0xf] %v8155
    %8157 = vst [vmem:[%s627 + $0x114] sm:$0xf] %v7725
    %v8158 = vld [vmem:[%s627 + $0x120] sm:$0xf]
    %v8159 = vsel %vm1371, %v7732, %v8158
    %8160 = vst [vmem:[%s627 + $0x120] sm:$0xf] %v8159
    %8161 = vst [vmem:[%s627 + $0x12c] sm:$0xf] %v7741
    %v8162 = vld [vmem:[%s627 + $0x138] sm:$0xf]
    %v8163 = vsel %vm1371, %v7748, %v8162
    %8164 = vst [vmem:[%s627 + $0x138] sm:$0xf] %v8163
    %8165 = vst [vmem:[%s627 + $0x144] sm:$0xf] %v7757
    %v8166 = vld [vmem:[%s627 + $0x150] sm:$0xf]
    %v8167 = vsel %vm1371, %v7764, %v8166
    %8168 = vst [vmem:[%s627 + $0x150] sm:$0xf] %v8167
    %8169 = vst [vmem:[%s627 + $0x15c] sm:$0xf] %v7773
    %v8170 = vld [vmem:[%s627 + $0x168] sm:$0xf]
    %v8171 = vsel %vm1371, %v7780, %v8170
    %8172 = vst [vmem:[%s627 + $0x168] sm:$0xf] %v8171
    %8173 = vst [vmem:[%s627 + $0x174] sm:$0xf] %v7789
    %v8174 = vld [vmem:[%s627 + $0x1b0] sm:$0xf]
    %v8175 = vsel %vm1371, %v7796, %v8174
    %8176 = vst [vmem:[%s627 + $0x1b0] sm:$0xf] %v8175
    %8177 = vst [vmem:[%s627 + $0x1bc] sm:$0xf] %v7805
    %v8178 = vld [vmem:[%s627 + $0x1c8] sm:$0xf]
    %v8179 = vsel %vm1371, %v7812, %v8178
    %8180 = vst [vmem:[%s627 + $0x1c8] sm:$0xf] %v8179
    %8181 = vst [vmem:[%s627 + $0x1d4] sm:$0xf] %v7821
    %v8182 = vld [vmem:[%s627 + $0x1e0] sm:$0xf]
    %v8183 = vsel %vm1371, %v7828, %v8182
    %8184 = vst [vmem:[%s627 + $0x1e0] sm:$0xf] %v8183
    %8185 = vst [vmem:[%s627 + $0x1ec] sm:$0xf] %v7837
    %v8186 = vld [vmem:[%s627 + $0x1f8] sm:$0xf]
    %v8187 = vsel %vm1371, %v7844, %v8186
    %8188 = vst [vmem:[%s627 + $0x1f8] sm:$0xf] %v8187
    %8189 = vst [vmem:[%s627 + $0x204] sm:$0xf] %v7853
    %v8190 = vld [vmem:[%s627 + $0x210] sm:$0xf]
    %v8191 = vsel %vm1371, %v7860, %v8190
    %8192 = vst [vmem:[%s627 + $0x210] sm:$0xf] %v8191
    %8193 = vst [vmem:[%s627 + $0x21c] sm:$0xf] %v7869
    %v8194 = vld [vmem:[%s627 + $0x228] sm:$0xf]
    %v8195 = vsel %vm1371, %v7876, %v8194
    %8196 = vst [vmem:[%s627 + $0x228] sm:$0xf] %v8195
    %8197 = vst [vmem:[%s627 + $0x234] sm:$0xf] %v7885
    %v8198 = vld [vmem:[%s627 + $0x240] sm:$0xf]
    %v8199 = vsel %vm1371, %v7892, %v8198
    %8200 = vst [vmem:[%s627 + $0x240] sm:$0xf] %v8199
    %8201 = vst [vmem:[%s627 + $0x24c] sm:$0xf] %v7901
    %v8202 = vld [vmem:[%s627 + $0x258] sm:$0xf]
    %v8203 = vsel %vm1371, %v7908, %v8202
    %8204 = vst [vmem:[%s627 + $0x258] sm:$0xf] %v8203
    %8205 = vst [vmem:[%s627 + $0x264] sm:$0xf] %v7917
    %v8206 = vld [vmem:[%s627 + $0x270] sm:$0xf]
    %v8207 = vsel %vm1371, %v7924, %v8206
    %8208 = vst [vmem:[%s627 + $0x270] sm:$0xf] %v8207
    %8209 = vst [vmem:[%s627 + $0x27c] sm:$0xf] %v7933
    %v8210 = vld [vmem:[%s627 + $0x288] sm:$0xf]
    %v8211 = vsel %vm1371, %v7940, %v8210
    %8212 = vst [vmem:[%s627 + $0x288] sm:$0xf] %v8211
    %8213 = vst [vmem:[%s627 + $0x294] sm:$0xf] %v7949
    %v8214 = vld [vmem:[%s627 + $0x2a0] sm:$0xf]
    %v8215 = vsel %vm1371, %v7956, %v8214
    %8216 = vst [vmem:[%s627 + $0x2a0] sm:$0xf] %v8215
    %8217 = vst [vmem:[%s627 + $0x2ac] sm:$0xf] %v7965
    %v8218 = vld [vmem:[%s627 + $0x2b8] sm:$0xf]
    %v8219 = vsel %vm1371, %v7972, %v8218
    %8220 = vst [vmem:[%s627 + $0x2b8] sm:$0xf] %v8219
    %8221 = vst [vmem:[%s627 + $0x2c4] sm:$0xf] %v7981
    %v8222 = vld [vmem:[%s627 + $0x2d0] sm:$0xf]
    %v8223 = vsel %vm1371, %v7988, %v8222
    %8224 = vst [vmem:[%s627 + $0x2d0] sm:$0xf] %v8223
    %8225 = vst [vmem:[%s627 + $0x2dc] sm:$0xf] %v7997
    %v8226 = vld [vmem:[%s627 + $0x2e8] sm:$0xf]
    %v8227 = vsel %vm1371, %v8004, %v8226
    %8228 = vst [vmem:[%s627 + $0x2e8] sm:$0xf] %v8227
    %8229 = vst [vmem:[%s627 + $0x2f4] sm:$0xf] %v8013
    %v8230 = vld [vmem:[%s627 + $0x300] sm:$0xf]
    %v8231 = vsel %vm1371, %v8020, %v8230
    %8232 = vst [vmem:[%s627 + $0x300] sm:$0xf] %v8231
    %8233 = vst [vmem:[%s627 + $0x30c] sm:$0xf] %v8029
    %v8234 = vld [vmem:[%s627 + $0x318] sm:$0xf]
    %v8235 = vsel %vm1371, %v8036, %v8234
    %8236 = vst [vmem:[%s627 + $0x318] sm:$0xf] %v8235
    %8237 = vst [vmem:[%s627 + $0x324] sm:$0xf] %v8045
    %v8238 = vrot.slane %v7535, 4
    %v8239 = vrot.slane %v7538, 5
    %v8240 = vor.u32 %v8238, %v8239
    %v8241 = vrot.slane %v8240, 4
    %v8242 = vrot.slane %v7546, 5
    %v8243 = vsel %vm1502, %v8241, %v8242
    %v8244 = vrot.slane %v7543, 4
    %v8245 = vor.u32 %v8244, %v8242
    %v8246 = vrot.slane %v8245, 4
    %v8247 = vrot.slane %v7551, 4
    %v8248 = vrot.slane %v7554, 5
    %v8249 = vor.u32 %v8247, %v8248
    %v8250 = vrot.slane %v8249, 4
    %v8251 = vrot.slane %v7562, 5
    %v8252 = vsel %vm1502, %v8250, %v8251
    %v8253 = vrot.slane %v7559, 4
    %v8254 = vor.u32 %v8253, %v8251
    %v8255 = vrot.slane %v8254, 4
    %v8256 = vrot.slane %v7567, 4
    %v8257 = vrot.slane %v7570, 5
    %v8258 = vor.u32 %v8256, %v8257
    %v8259 = vrot.slane %v8258, 4
    %v8260 = vrot.slane %v7578, 5
    %v8261 = vsel %vm1502, %v8259, %v8260
    %v8262 = vrot.slane %v7575, 4
    %v8263 = vor.u32 %v8262, %v8260
    %v8264 = vrot.slane %v8263, 4
    %v8265 = vrot.slane %v7583, 4
    %v8266 = vrot.slane %v7586, 5
    %v8267 = vor.u32 %v8265, %v8266
    %v8268 = vrot.slane %v8267, 4
    %v8269 = vrot.slane %v7594, 5
    %v8270 = vsel %vm1502, %v8268, %v8269
    %v8271 = vrot.slane %v7591, 4
    %v8272 = vor.u32 %v8271, %v8269
    %v8273 = vrot.slane %v8272, 4
    %v8274 = vrot.slane %v7599, 4
    %v8275 = vrot.slane %v7602, 5
    %v8276 = vor.u32 %v8274, %v8275
    %v8277 = vrot.slane %v8276, 4
    %v8278 = vrot.slane %v7610, 5
    %v8279 = vsel %vm1502, %v8277, %v8278
    %v8280 = vrot.slane %v7607, 4
    %v8281 = vor.u32 %v8280, %v8278
    %v8282 = vrot.slane %v8281, 4
    %v8283 = vrot.slane %v7615, 4
    %v8284 = vrot.slane %v7618, 5
    %v8285 = vor.u32 %v8283, %v8284
    %v8286 = vrot.slane %v8285, 4
    %v8287 = vrot.slane %v7626, 5
    %v8288 = vsel %vm1502, %v8286, %v8287
    %v8289 = vrot.slane %v7623, 4
    %v8290 = vor.u32 %v8289, %v8287
    %v8291 = vrot.slane %v8290, 4
    %v8292 = vrot.slane %v7631, 4
    %v8293 = vrot.slane %v7634, 5
    %v8294 = vor.u32 %v8292, %v8293
    %v8295 = vrot.slane %v8294, 4
    %v8296 = vrot.slane %v7642, 5
    %v8297 = vsel %vm1502, %v8295, %v8296
    %v8298 = vrot.slane %v7639, 4
    %v8299 = vor.u32 %v8298, %v8296
    %v8300 = vrot.slane %v8299, 4
    %v8301 = vrot.slane %v7647, 4
    %v8302 = vrot.slane %v7650, 5
    %v8303 = vor.u32 %v8301, %v8302
    %v8304 = vrot.slane %v8303, 4
    %v8305 = vrot.slane %v7658, 5
    %v8306 = vsel %vm1502, %v8304, %v8305
    %v8307 = vrot.slane %v7655, 4
    %v8308 = vor.u32 %v8307, %v8305
    %v8309 = vrot.slane %v8308, 4
    %v8310 = vrot.slane %v7663, 4
    %v8311 = vrot.slane %v7666, 5
    %v8312 = vor.u32 %v8310, %v8311
    %v8313 = vrot.slane %v8312, 4
    %v8314 = vrot.slane %v7674, 5
    %v8315 = vsel %vm1502, %v8313, %v8314
    %v8316 = vrot.slane %v7671, 4
    %v8317 = vor.u32 %v8316, %v8314
    %v8318 = vrot.slane %v8317, 4
    %v8319 = vrot.slane %v7679, 4
    %v8320 = vrot.slane %v7682, 5
    %v8321 = vor.u32 %v8319, %v8320
    %v8322 = vrot.slane %v8321, 4
    %v8323 = vrot.slane %v7690, 5
    %v8324 = vsel %vm1502, %v8322, %v8323
    %v8325 = vrot.slane %v7687, 4
    %v8326 = vor.u32 %v8325, %v8323
    %v8327 = vrot.slane %v8326, 4
    %v8328 = vrot.slane %v7695, 4
    %v8329 = vrot.slane %v7698, 5
    %v8330 = vor.u32 %v8328, %v8329
    %v8331 = vrot.slane %v8330, 4
    %v8332 = vrot.slane %v7706, 5
    %v8333 = vsel %vm1502, %v8331, %v8332
    %v8334 = vrot.slane %v7703, 4
    %v8335 = vor.u32 %v8334, %v8332
    %v8336 = vrot.slane %v8335, 4
    %v8337 = vrot.slane %v7711, 4
    %v8338 = vrot.slane %v7714, 5
    %v8339 = vor.u32 %v8337, %v8338
    %v8340 = vrot.slane %v8339, 4
    %v8341 = vrot.slane %v7722, 5
    %v8342 = vsel %vm1502, %v8340, %v8341
    %v8343 = vrot.slane %v7719, 4
    %v8344 = vor.u32 %v8343, %v8341
    %v8345 = vrot.slane %v8344, 4
    %v8346 = vrot.slane %v7727, 4
    %v8347 = vrot.slane %v7730, 5
    %v8348 = vor.u32 %v8346, %v8347
    %v8349 = vrot.slane %v8348, 4
    %v8350 = vrot.slane %v7738, 5
    %v8351 = vsel %vm1502, %v8349, %v8350
    %v8352 = vrot.slane %v7735, 4
    %v8353 = vor.u32 %v8352, %v8350
    %v8354 = vrot.slane %v8353, 4
    %v8355 = vrot.slane %v7743, 4
    %v8356 = vrot.slane %v7746, 5
    %v8357 = vor.u32 %v8355, %v8356
    %v8358 = vrot.slane %v8357, 4
    %v8359 = vrot.slane %v7754, 5
    %v8360 = vsel %vm1502, %v8358, %v8359
    %v8361 = vrot.slane %v7751, 4
    %v8362 = vor.u32 %v8361, %v8359
    %v8363 = vrot.slane %v8362, 4
    %v8364 = vrot.slane %v7759, 4
    %v8365 = vrot.slane %v7762, 5
    %v8366 = vor.u32 %v8364, %v8365
    %v8367 = vrot.slane %v8366, 4
    %v8368 = vrot.slane %v7770, 5
    %v8369 = vsel %vm1502, %v8367, %v8368
    %v8370 = vrot.slane %v7767, 4
    %v8371 = vor.u32 %v8370, %v8368
    %v8372 = vrot.slane %v8371, 4
    %v8373 = vrot.slane %v7775, 4
    %v8374 = vrot.slane %v7778, 5
    %v8375 = vor.u32 %v8373, %v8374
    %v8376 = vrot.slane %v8375, 4
    %v8377 = vrot.slane %v7786, 5
    %v8378 = vsel %vm1502, %v8376, %v8377
    %v8379 = vrot.slane %v7783, 4
    %v8380 = vor.u32 %v8379, %v8377
    %v8381 = vrot.slane %v8380, 4
    %v8382 = vrot.slane %v7791, 4
    %v8383 = vrot.slane %v7794, 5
    %v8384 = vor.u32 %v8382, %v8383
    %v8385 = vrot.slane %v8384, 4
    %v8386 = vrot.slane %v7802, 5
    %v8387 = vsel %vm1502, %v8385, %v8386
    %v8388 = vrot.slane %v7799, 4
    %v8389 = vor.u32 %v8388, %v8386
    %v8390 = vrot.slane %v8389, 4
    %v8391 = vrot.slane %v7807, 4
    %v8392 = vrot.slane %v7810, 5
    %v8393 = vor.u32 %v8391, %v8392
    %v8394 = vrot.slane %v8393, 4
    %v8395 = vrot.slane %v7818, 5
    %v8396 = vsel %vm1502, %v8394, %v8395
    %v8397 = vrot.slane %v7815, 4
    %v8398 = vor.u32 %v8397, %v8395
    %v8399 = vrot.slane %v8398, 4
    %v8400 = vrot.slane %v7823, 4
    %v8401 = vrot.slane %v7826, 5
    %v8402 = vor.u32 %v8400, %v8401
    %v8403 = vrot.slane %v8402, 4
    %v8404 = vrot.slane %v7834, 5
    %v8405 = vsel %vm1502, %v8403, %v8404
    %v8406 = vrot.slane %v7831, 4
    %v8407 = vor.u32 %v8406, %v8404
    %v8408 = vrot.slane %v8407, 4
    %v8409 = vrot.slane %v7839, 4
    %v8410 = vrot.slane %v7842, 5
    %v8411 = vor.u32 %v8409, %v8410
    %v8412 = vrot.slane %v8411, 4
    %v8413 = vrot.slane %v7850, 5
    %v8414 = vsel %vm1502, %v8412, %v8413
    %v8415 = vrot.slane %v7847, 4
    %v8416 = vor.u32 %v8415, %v8413
    %v8417 = vrot.slane %v8416, 4
    %v8418 = vrot.slane %v7855, 4
    %v8419 = vrot.slane %v7858, 5
    %v8420 = vor.u32 %v8418, %v8419
    %v8421 = vrot.slane %v8420, 4
    %v8422 = vrot.slane %v7866, 5
    %v8423 = vsel %vm1502, %v8421, %v8422
    %v8424 = vrot.slane %v7863, 4
    %v8425 = vor.u32 %v8424, %v8422
    %v8426 = vrot.slane %v8425, 4
    %v8427 = vrot.slane %v7871, 4
    %v8428 = vrot.slane %v7874, 5
    %v8429 = vor.u32 %v8427, %v8428
    %v8430 = vrot.slane %v8429, 4
    %v8431 = vrot.slane %v7882, 5
    %v8432 = vsel %vm1502, %v8430, %v8431
    %v8433 = vrot.slane %v7879, 4
    %v8434 = vor.u32 %v8433, %v8431
    %v8435 = vrot.slane %v8434, 4
    %v8436 = vrot.slane %v7887, 4
    %v8437 = vrot.slane %v7890, 5
    %v8438 = vor.u32 %v8436, %v8437
    %v8439 = vrot.slane %v8438, 4
    %v8440 = vrot.slane %v7898, 5
    %v8441 = vsel %vm1502, %v8439, %v8440
    %v8442 = vrot.slane %v7895, 4
    %v8443 = vor.u32 %v8442, %v8440
    %v8444 = vrot.slane %v8443, 4
    %v8445 = vrot.slane %v7903, 4
    %v8446 = vrot.slane %v7906, 5
    %v8447 = vor.u32 %v8445, %v8446
    %v8448 = vrot.slane %v8447, 4
    %v8449 = vrot.slane %v7914, 5
    %v8450 = vsel %vm1502, %v8448, %v8449
    %v8451 = vrot.slane %v7911, 4
    %v8452 = vor.u32 %v8451, %v8449
    %v8453 = vrot.slane %v8452, 4
    %v8454 = vrot.slane %v7919, 4
    %v8455 = vrot.slane %v7922, 5
    %v8456 = vor.u32 %v8454, %v8455
    %v8457 = vrot.slane %v8456, 4
    %v8458 = vrot.slane %v7930, 5
    %v8459 = vsel %vm1502, %v8457, %v8458
    %v8460 = vrot.slane %v7927, 4
    %v8461 = vor.u32 %v8460, %v8458
    %v8462 = vrot.slane %v8461, 4
    %v8463 = vrot.slane %v7935, 4
    %v8464 = vrot.slane %v7938, 5
    %v8465 = vor.u32 %v8463, %v8464
    %v8466 = vrot.slane %v8465, 4
    %v8467 = vrot.slane %v7946, 5
    %v8468 = vsel %vm1502, %v8466, %v8467
    %v8469 = vrot.slane %v7943, 4
    %v8470 = vor.u32 %v8469, %v8467
    %v8471 = vrot.slane %v8470, 4
    %v8472 = vrot.slane %v7951, 4
    %v8473 = vrot.slane %v7954, 5
    %v8474 = vor.u32 %v8472, %v8473
    %v8475 = vrot.slane %v8474, 4
    %v8476 = vrot.slane %v7962, 5
    %v8477 = vsel %vm1502, %v8475, %v8476
    %v8478 = vrot.slane %v7959, 4
    %v8479 = vor.u32 %v8478, %v8476
    %v8480 = vrot.slane %v8479, 4
    %v8481 = vrot.slane %v7967, 4
    %v8482 = vrot.slane %v7970, 5
    %v8483 = vor.u32 %v8481, %v8482
    %v8484 = vrot.slane %v8483, 4
    %v8485 = vrot.slane %v7978, 5
    %v8486 = vsel %vm1502, %v8484, %v8485
    %v8487 = vrot.slane %v7975, 4
    %v8488 = vor.u32 %v8487, %v8485
    %v8489 = vrot.slane %v8488, 4
    %v8490 = vrot.slane %v7983, 4
    %v8491 = vrot.slane %v7986, 5
    %v8492 = vor.u32 %v8490, %v8491
    %v8493 = vrot.slane %v8492, 4
    %v8494 = vrot.slane %v7994, 5
    %v8495 = vsel %vm1502, %v8493, %v8494
    %v8496 = vrot.slane %v7991, 4
    %v8497 = vor.u32 %v8496, %v8494
    %v8498 = vrot.slane %v8497, 4
    %v8499 = vrot.slane %v7999, 4
    %v8500 = vrot.slane %v8002, 5
    %v8501 = vor.u32 %v8499, %v8500
    %v8502 = vrot.slane %v8501, 4
    %v8503 = vrot.slane %v8010, 5
    %v8504 = vsel %vm1502, %v8502, %v8503
    %v8505 = vrot.slane %v8007, 4
    %v8506 = vor.u32 %v8505, %v8503
    %v8507 = vrot.slane %v8506, 4
    %v8508 = vrot.slane %v8015, 4
    %v8509 = vrot.slane %v8018, 5
    %v8510 = vor.u32 %v8508, %v8509
    %v8511 = vrot.slane %v8510, 4
    %v8512 = vrot.slane %v8026, 5
    %v8513 = vsel %vm1502, %v8511, %v8512
    %v8514 = vrot.slane %v8023, 4
    %v8515 = vor.u32 %v8514, %v8512
    %v8516 = vrot.slane %v8515, 4
    %v8517 = vrot.slane %v8031, 4
    %v8518 = vrot.slane %v8034, 5
    %v8519 = vor.u32 %v8517, %v8518
    %v8520 = vrot.slane %v8519, 4
    %v8521 = vrot.slane %v8042, 5
    %v8522 = vsel %vm1502, %v8520, %v8521
    %v8523 = vrot.slane %v8039, 4
    %v8524 = vor.u32 %v8523, %v8521
    %v8525 = vrot.slane %v8524, 4
    %8590 = vst [vmem:[%s627 + $0x8] sm:$0xf] %v8243
    %v8591 = vld [vmem:[%s627 + $0x14] sm:$0xf]
    %v8592 = vsel %vm1856, %v8246, %v8591
    %8593 = vst [vmem:[%s627 + $0x14] sm:$0xf] %v8592
    %8594 = vst [vmem:[%s627 + $0x20] sm:$0xf] %v8252
    %v8595 = vld [vmem:[%s627 + $0x2c] sm:$0xf]
    %v8596 = vsel %vm1856, %v8255, %v8595
    %8597 = vst [vmem:[%s627 + $0x2c] sm:$0xf] %v8596
    %8598 = vst [vmem:[%s627 + $0x38] sm:$0xf] %v8261
    %v8599 = vld [vmem:[%s627 + $0x44] sm:$0xf]
    %v8600 = vsel %vm1856, %v8264, %v8599
    %8601 = vst [vmem:[%s627 + $0x44] sm:$0xf] %v8600
    %8602 = vst [vmem:[%s627 + $0x50] sm:$0xf] %v8270
    %v8603 = vld [vmem:[%s627 + $0x5c] sm:$0xf]
    %v8604 = vsel %vm1856, %v8273, %v8603
    %8605 = vst [vmem:[%s627 + $0x5c] sm:$0xf] %v8604
    %8606 = vst [vmem:[%s627 + $0x68] sm:$0xf] %v8279
    %v8607 = vld [vmem:[%s627 + $0x74] sm:$0xf]
    %v8608 = vsel %vm1856, %v8282, %v8607
    %8609 = vst [vmem:[%s627 + $0x74] sm:$0xf] %v8608
    %8610 = vst [vmem:[%s627 + $0x80] sm:$0xf] %v8288
    %v8611 = vld [vmem:[%s627 + $0x8c] sm:$0xf]
    %v8612 = vsel %vm1856, %v8291, %v8611
    %8613 = vst [vmem:[%s627 + $0x8c] sm:$0xf] %v8612
    %8614 = vst [vmem:[%s627 + $0x98] sm:$0xf] %v8297
    %v8615 = vld [vmem:[%s627 + $0xa4] sm:$0xf]
    %v8616 = vsel %vm1856, %v8300, %v8615
    %8617 = vst [vmem:[%s627 + $0xa4] sm:$0xf] %v8616
    %8618 = vst [vmem:[%s627 + $0xb0] sm:$0xf] %v8306
    %v8619 = vld [vmem:[%s627 + $0xbc] sm:$0xf]
    %v8620 = vsel %vm1856, %v8309, %v8619
    %8621 = vst [vmem:[%s627 + $0xbc] sm:$0xf] %v8620
    %8622 = vst [vmem:[%s627 + $0xc8] sm:$0xf] %v8315
    %v8623 = vld [vmem:[%s627 + $0xd4] sm:$0xf]
    %v8624 = vsel %vm1856, %v8318, %v8623
    %8625 = vst [vmem:[%s627 + $0xd4] sm:$0xf] %v8624
    %8626 = vst [vmem:[%s627 + $0xe0] sm:$0xf] %v8324
    %v8627 = vld [vmem:[%s627 + $0xec] sm:$0xf]
    %v8628 = vsel %vm1856, %v8327, %v8627
    %8629 = vst [vmem:[%s627 + $0xec] sm:$0xf] %v8628
    %8630 = vst [vmem:[%s627 + $0xf8] sm:$0xf] %v8333
    %v8631 = vld [vmem:[%s627 + $0x104] sm:$0xf]
    %v8632 = vsel %vm1856, %v8336, %v8631
    %8633 = vst [vmem:[%s627 + $0x104] sm:$0xf] %v8632
    %8634 = vst [vmem:[%s627 + $0x110] sm:$0xf] %v8342
    %v8635 = vld [vmem:[%s627 + $0x11c] sm:$0xf]
    %v8636 = vsel %vm1856, %v8345, %v8635
    %8637 = vst [vmem:[%s627 + $0x11c] sm:$0xf] %v8636
    %8638 = vst [vmem:[%s627 + $0x128] sm:$0xf] %v8351
    %v8639 = vld [vmem:[%s627 + $0x134] sm:$0xf]
    %v8640 = vsel %vm1856, %v8354, %v8639
    %8641 = vst [vmem:[%s627 + $0x134] sm:$0xf] %v8640
    %8642 = vst [vmem:[%s627 + $0x140] sm:$0xf] %v8360
    %v8643 = vld [vmem:[%s627 + $0x14c] sm:$0xf]
    %v8644 = vsel %vm1856, %v8363, %v8643
    %8645 = vst [vmem:[%s627 + $0x14c] sm:$0xf] %v8644
    %8646 = vst [vmem:[%s627 + $0x158] sm:$0xf] %v8369
    %v8647 = vld [vmem:[%s627 + $0x164] sm:$0xf]
    %v8648 = vsel %vm1856, %v8372, %v8647
    %8649 = vst [vmem:[%s627 + $0x164] sm:$0xf] %v8648
    %8650 = vst [vmem:[%s627 + $0x170] sm:$0xf] %v8378
    %v8651 = vld [vmem:[%s627 + $0x17c] sm:$0xf]
    %v8652 = vsel %vm1856, %v8381, %v8651
    %8653 = vst [vmem:[%s627 + $0x17c] sm:$0xf] %v8652
    %8654 = vst [vmem:[%s627 + $0x1b8] sm:$0xf] %v8387
    %v8655 = vld [vmem:[%s627 + $0x1c4] sm:$0xf]
    %v8656 = vsel %vm1856, %v8390, %v8655
    %8657 = vst [vmem:[%s627 + $0x1c4] sm:$0xf] %v8656
    %8658 = vst [vmem:[%s627 + $0x1d0] sm:$0xf] %v8396
    %v8659 = vld [vmem:[%s627 + $0x1dc] sm:$0xf]
    %v8660 = vsel %vm1856, %v8399, %v8659
    %8661 = vst [vmem:[%s627 + $0x1dc] sm:$0xf] %v8660
    %8662 = vst [vmem:[%s627 + $0x1e8] sm:$0xf] %v8405
    %v8663 = vld [vmem:[%s627 + $0x1f4] sm:$0xf]
    %v8664 = vsel %vm1856, %v8408, %v8663
    %8665 = vst [vmem:[%s627 + $0x1f4] sm:$0xf] %v8664
    %8666 = vst [vmem:[%s627 + $0x200] sm:$0xf] %v8414
    %v8667 = vld [vmem:[%s627 + $0x20c] sm:$0xf]
    %v8668 = vsel %vm1856, %v8417, %v8667
    %8669 = vst [vmem:[%s627 + $0x20c] sm:$0xf] %v8668
    %8670 = vst [vmem:[%s627 + $0x218] sm:$0xf] %v8423
    %v8671 = vld [vmem:[%s627 + $0x224] sm:$0xf]
    %v8672 = vsel %vm1856, %v8426, %v8671
    %8673 = vst [vmem:[%s627 + $0x224] sm:$0xf] %v8672
    %8674 = vst [vmem:[%s627 + $0x230] sm:$0xf] %v8432
    %v8675 = vld [vmem:[%s627 + $0x23c] sm:$0xf]
    %v8676 = vsel %vm1856, %v8435, %v8675
    %8677 = vst [vmem:[%s627 + $0x23c] sm:$0xf] %v8676
    %8678 = vst [vmem:[%s627 + $0x248] sm:$0xf] %v8441
    %v8679 = vld [vmem:[%s627 + $0x254] sm:$0xf]
    %v8680 = vsel %vm1856, %v8444, %v8679
    %8681 = vst [vmem:[%s627 + $0x254] sm:$0xf] %v8680
    %8682 = vst [vmem:[%s627 + $0x260] sm:$0xf] %v8450
    %v8683 = vld [vmem:[%s627 + $0x26c] sm:$0xf]
    %v8684 = vsel %vm1856, %v8453, %v8683
    %8685 = vst [vmem:[%s627 + $0x26c] sm:$0xf] %v8684
    %8686 = vst [vmem:[%s627 + $0x278] sm:$0xf] %v8459
    %v8687 = vld [vmem:[%s627 + $0x284] sm:$0xf]
    %v8688 = vsel %vm1856, %v8462, %v8687
    %8689 = vst [vmem:[%s627 + $0x284] sm:$0xf] %v8688
    %8690 = vst [vmem:[%s627 + $0x290] sm:$0xf] %v8468
    %v8691 = vld [vmem:[%s627 + $0x29c] sm:$0xf]
    %v8692 = vsel %vm1856, %v8471, %v8691
    %8693 = vst [vmem:[%s627 + $0x29c] sm:$0xf] %v8692
    %8694 = vst [vmem:[%s627 + $0x2a8] sm:$0xf] %v8477
    %v8695 = vld [vmem:[%s627 + $0x2b4] sm:$0xf]
    %v8696 = vsel %vm1856, %v8480, %v8695
    %8697 = vst [vmem:[%s627 + $0x2b4] sm:$0xf] %v8696
    %8698 = vst [vmem:[%s627 + $0x2c0] sm:$0xf] %v8486
    %v8699 = vld [vmem:[%s627 + $0x2cc] sm:$0xf]
    %v8700 = vsel %vm1856, %v8489, %v8699
    %8701 = vst [vmem:[%s627 + $0x2cc] sm:$0xf] %v8700
    %8702 = vst [vmem:[%s627 + $0x2d8] sm:$0xf] %v8495
    %v8703 = vld [vmem:[%s627 + $0x2e4] sm:$0xf]
    %v8704 = vsel %vm1856, %v8498, %v8703
    %8705 = vst [vmem:[%s627 + $0x2e4] sm:$0xf] %v8704
    %8706 = vst [vmem:[%s627 + $0x2f0] sm:$0xf] %v8504
    %v8707 = vld [vmem:[%s627 + $0x2fc] sm:$0xf]
    %v8708 = vsel %vm1856, %v8507, %v8707
    %8709 = vst [vmem:[%s627 + $0x2fc] sm:$0xf] %v8708
    %8710 = vst [vmem:[%s627 + $0x308] sm:$0xf] %v8513
    %v8711 = vld [vmem:[%s627 + $0x314] sm:$0xf]
    %v8712 = vsel %vm1856, %v8516, %v8711
    %8713 = vst [vmem:[%s627 + $0x314] sm:$0xf] %v8712
    %8714 = vst [vmem:[%s627 + $0x320] sm:$0xf] %v8522
    %v8715 = vld [vmem:[%s627 + $0x32c] sm:$0xf]
    %v8716 = vsel %vm1856, %v8525, %v8715
    %8717 = vst [vmem:[%s627 + $0x32c] sm:$0xf] %v8716
    %v8718 = vld [vmem:[%s627 + $0x14] sm:$0x8]
    %v8719 = vsel %vm1986, 0, %v8718
    %8720 = vst [vmem:[%s627 + $0x14] sm:$0x8] %v8719
    %v8721 = vld [vmem:[%s627 + $0x2c] sm:$0x8]
    %v8722 = vsel %vm1986, 0, %v8721
    %8723 = vst [vmem:[%s627 + $0x2c] sm:$0x8] %v8722
    %v8724 = vld [vmem:[%s627 + $0x44] sm:$0x8]
    %v8725 = vsel %vm1986, 0, %v8724
    %8726 = vst [vmem:[%s627 + $0x44] sm:$0x8] %v8725
    %v8727 = vld [vmem:[%s627 + $0x5c] sm:$0x8]
    %v8728 = vsel %vm1986, 0, %v8727
    %8729 = vst [vmem:[%s627 + $0x5c] sm:$0x8] %v8728
    %v8730 = vld [vmem:[%s627 + $0x74] sm:$0x8]
    %v8731 = vsel %vm1986, 0, %v8730
    %8732 = vst [vmem:[%s627 + $0x74] sm:$0x8] %v8731
    %v8733 = vld [vmem:[%s627 + $0x8c] sm:$0x8]
    %v8734 = vsel %vm1986, 0, %v8733
    %8735 = vst [vmem:[%s627 + $0x8c] sm:$0x8] %v8734
    %v8736 = vld [vmem:[%s627 + $0xa4] sm:$0x8]
    %v8737 = vsel %vm1986, 0, %v8736
    %8738 = vst [vmem:[%s627 + $0xa4] sm:$0x8] %v8737
    %v8739 = vld [vmem:[%s627 + $0xbc] sm:$0x8]
    %v8740 = vsel %vm1986, 0, %v8739
    %8741 = vst [vmem:[%s627 + $0xbc] sm:$0x8] %v8740
    %v8742 = vld [vmem:[%s627 + $0xd4] sm:$0x8]
    %v8743 = vsel %vm1986, 0, %v8742
    %8744 = vst [vmem:[%s627 + $0xd4] sm:$0x8] %v8743
    %v8745 = vld [vmem:[%s627 + $0xec] sm:$0x8]
    %v8746 = vsel %vm1986, 0, %v8745
    %8747 = vst [vmem:[%s627 + $0xec] sm:$0x8] %v8746
    %v8748 = vld [vmem:[%s627 + $0x104] sm:$0x8]
    %v8749 = vsel %vm1986, 0, %v8748
    %8750 = vst [vmem:[%s627 + $0x104] sm:$0x8] %v8749
    %v8751 = vld [vmem:[%s627 + $0x11c] sm:$0x8]
    %v8752 = vsel %vm1986, 0, %v8751
    %8753 = vst [vmem:[%s627 + $0x11c] sm:$0x8] %v8752
    %v8754 = vld [vmem:[%s627 + $0x134] sm:$0x8]
    %v8755 = vsel %vm1986, 0, %v8754
    %8756 = vst [vmem:[%s627 + $0x134] sm:$0x8] %v8755
    %v8757 = vld [vmem:[%s627 + $0x14c] sm:$0x8]
    %v8758 = vsel %vm1986, 0, %v8757
    %8759 = vst [vmem:[%s627 + $0x14c] sm:$0x8] %v8758
    %v8760 = vld [vmem:[%s627 + $0x164] sm:$0x8]
    %v8761 = vsel %vm1986, 0, %v8760
    %8762 = vst [vmem:[%s627 + $0x164] sm:$0x8] %v8761
    %v8763 = vld [vmem:[%s627 + $0x17c] sm:$0x8]
    %v8764 = vsel %vm1986, 0, %v8763
    %8765 = vst [vmem:[%s627 + $0x17c] sm:$0x8] %v8764
    %v8766 = vld [vmem:[%s627 + $0x1c4] sm:$0x8]
    %v8767 = vsel %vm1986, 0, %v8766
    %8768 = vst [vmem:[%s627 + $0x1c4] sm:$0x8] %v8767
    %v8769 = vld [vmem:[%s627 + $0x1dc] sm:$0x8]
    %v8770 = vsel %vm1986, 0, %v8769
    %8771 = vst [vmem:[%s627 + $0x1dc] sm:$0x8] %v8770
    %v8772 = vld [vmem:[%s627 + $0x1f4] sm:$0x8]
    %v8773 = vsel %vm1986, 0, %v8772
    %8774 = vst [vmem:[%s627 + $0x1f4] sm:$0x8] %v8773
    %v8775 = vld [vmem:[%s627 + $0x20c] sm:$0x8]
    %v8776 = vsel %vm1986, 0, %v8775
    %8777 = vst [vmem:[%s627 + $0x20c] sm:$0x8] %v8776
    %v8778 = vld [vmem:[%s627 + $0x224] sm:$0x8]
    %v8779 = vsel %vm1986, 0, %v8778
    %8780 = vst [vmem:[%s627 + $0x224] sm:$0x8] %v8779
    %v8781 = vld [vmem:[%s627 + $0x23c] sm:$0x8]
    %v8782 = vsel %vm1986, 0, %v8781
    %8783 = vst [vmem:[%s627 + $0x23c] sm:$0x8] %v8782
    %v8784 = vld [vmem:[%s627 + $0x254] sm:$0x8]
    %v8785 = vsel %vm1986, 0, %v8784
    %8786 = vst [vmem:[%s627 + $0x254] sm:$0x8] %v8785
    %v8787 = vld [vmem:[%s627 + $0x26c] sm:$0x8]
    %v8788 = vsel %vm1986, 0, %v8787
    %8789 = vst [vmem:[%s627 + $0x26c] sm:$0x8] %v8788
    %v8790 = vld [vmem:[%s627 + $0x284] sm:$0x8]
    %v8791 = vsel %vm1986, 0, %v8790
    %8792 = vst [vmem:[%s627 + $0x284] sm:$0x8] %v8791
    %v8793 = vld [vmem:[%s627 + $0x29c] sm:$0x8]
    %v8794 = vsel %vm1986, 0, %v8793
    %8795 = vst [vmem:[%s627 + $0x29c] sm:$0x8] %v8794
    %v8796 = vld [vmem:[%s627 + $0x2b4] sm:$0x8]
    %v8797 = vsel %vm1986, 0, %v8796
    %8798 = vst [vmem:[%s627 + $0x2b4] sm:$0x8] %v8797
    %v8799 = vld [vmem:[%s627 + $0x2cc] sm:$0x8]
    %v8800 = vsel %vm1986, 0, %v8799
    %8801 = vst [vmem:[%s627 + $0x2cc] sm:$0x8] %v8800
    %v8802 = vld [vmem:[%s627 + $0x2e4] sm:$0x8]
    %v8803 = vsel %vm1986, 0, %v8802
    %8804 = vst [vmem:[%s627 + $0x2e4] sm:$0x8] %v8803
    %v8805 = vld [vmem:[%s627 + $0x2fc] sm:$0x8]
    %v8806 = vsel %vm1986, 0, %v8805
    %8807 = vst [vmem:[%s627 + $0x2fc] sm:$0x8] %v8806
    %v8808 = vld [vmem:[%s627 + $0x314] sm:$0x8]
    %v8809 = vsel %vm1986, 0, %v8808
    %8810 = vst [vmem:[%s627 + $0x314] sm:$0x8] %v8809
    %v8811 = vld [vmem:[%s627 + $0x32c] sm:$0x8]
    %v8812 = vsel %vm1986, 0, %v8811
    %8813 = vst [vmem:[%s627 + $0x32c] sm:$0x8] %v8812
    %v8814 = vld [vmem:[#allocation2] sm:$0xff]
    %v8815 = vld [vmem:[#allocation2 + $0x8] sm:$0xf]
    %v8816 = vld [vmem:[#allocation2 + $0xc] sm:$0xff]
    %v8817 = vld [vmem:[#allocation2 + $0x14] sm:$0xf]
    %v8818 = vld [vmem:[#allocation2 + $0x18] sm:$0xff]
    %v8819 = vld [vmem:[#allocation2 + $0x20] sm:$0xf]
    %v8820 = vld [vmem:[#allocation2 + $0x24] sm:$0xff]
    %v8821 = vld [vmem:[#allocation2 + $0x2c] sm:$0xf]
    %v8822 = vld [vmem:[#allocation2 + $0x30] sm:$0xff]
    %v8823 = vld [vmem:[#allocation2 + $0x38] sm:$0xf]
    %v8824 = vld [vmem:[#allocation2 + $0x3c] sm:$0xff]
    %v8825 = vld [vmem:[#allocation2 + $0x44] sm:$0xf]
    %v8826 = vld [vmem:[#allocation2 + $0x48] sm:$0xff]
    %v8827 = vld [vmem:[#allocation2 + $0x50] sm:$0xf]
    %v8828 = vld [vmem:[#allocation2 + $0x54] sm:$0xff]
    %v8829 = vld [vmem:[#allocation2 + $0x5c] sm:$0xf]
    %v8830 = vld [vmem:[#allocation2 + $0x60] sm:$0xff]
    %v8831 = vld [vmem:[#allocation2 + $0x68] sm:$0xf]
    %v8832 = vld [vmem:[#allocation2 + $0x6c] sm:$0xff]
    %v8833 = vld [vmem:[#allocation2 + $0x74] sm:$0xf]
    %v8834 = vld [vmem:[#allocation2 + $0x78] sm:$0xff]
    %v8835 = vld [vmem:[#allocation2 + $0x80] sm:$0xf]
    %v8836 = vld [vmem:[#allocation2 + $0x84] sm:$0xff]
    %v8837 = vld [vmem:[#allocation2 + $0x8c] sm:$0xf]
    %v8838 = vld [vmem:[#allocation2 + $0x90] sm:$0xff]
    %v8839 = vld [vmem:[#allocation2 + $0x98] sm:$0xf]
    %v8840 = vld [vmem:[#allocation2 + $0x9c] sm:$0xff]
    %v8841 = vld [vmem:[#allocation2 + $0xa4] sm:$0xf]
    %v8842 = vld [vmem:[#allocation2 + $0xa8] sm:$0xff]
    %v8843 = vld [vmem:[#allocation2 + $0xb0] sm:$0xf]
    %v8844 = vld [vmem:[#allocation2 + $0xb4] sm:$0xff]
    %v8845 = vld [vmem:[#allocation2 + $0xbc] sm:$0xf]
    %v8846 = vld [vmem:[#allocation2 + $0xc0] sm:$0xff]
    %v8847 = vld [vmem:[#allocation2 + $0xc8] sm:$0xf]
    %v8848 = vld [vmem:[#allocation2 + $0xcc] sm:$0xff]
    %v8849 = vld [vmem:[#allocation2 + $0xd4] sm:$0xf]
    %v8850 = vld [vmem:[#allocation2 + $0xd8] sm:$0xff]
    %v8851 = vld [vmem:[#allocation2 + $0xe0] sm:$0xf]
    %v8852 = vld [vmem:[#allocation2 + $0xe4] sm:$0xff]
    %v8853 = vld [vmem:[#allocation2 + $0xec] sm:$0xf]
    %v8854 = vld [vmem:[#allocation2 + $0xf0] sm:$0xff]
    %v8855 = vld [vmem:[#allocation2 + $0xf8] sm:$0xf]
    %v8856 = vld [vmem:[#allocation2 + $0xfc] sm:$0xff]
    %v8857 = vld [vmem:[#allocation2 + $0x104] sm:$0xf]
    %v8858 = vld [vmem:[#allocation2 + $0x108] sm:$0xff]
    %v8859 = vld [vmem:[#allocation2 + $0x110] sm:$0xf]
    %v8860 = vld [vmem:[#allocation2 + $0x114] sm:$0xff]
    %v8861 = vld [vmem:[#allocation2 + $0x11c] sm:$0xf]
    %v8862 = vld [vmem:[#allocation2 + $0x120] sm:$0xff]
    %v8863 = vld [vmem:[#allocation2 + $0x128] sm:$0xf]
    %v8864 = vld [vmem:[#allocation2 + $0x12c] sm:$0xff]
    %v8865 = vld [vmem:[#allocation2 + $0x134] sm:$0xf]
    %v8866 = vld [vmem:[#allocation2 + $0x138] sm:$0xff]
    %v8867 = vld [vmem:[#allocation2 + $0x140] sm:$0xf]
    %v8868 = vld [vmem:[#allocation2 + $0x144] sm:$0xff]
    %v8869 = vld [vmem:[#allocation2 + $0x14c] sm:$0xf]
    %v8870 = vld [vmem:[#allocation2 + $0x150] sm:$0xff]
    %v8871 = vld [vmem:[#allocation2 + $0x158] sm:$0xf]
    %v8872 = vld [vmem:[#allocation2 + $0x15c] sm:$0xff]
    %v8873 = vld [vmem:[#allocation2 + $0x164] sm:$0xf]
    %v8874 = vld [vmem:[#allocation2 + $0x168] sm:$0xff]
    %v8875 = vld [vmem:[#allocation2 + $0x170] sm:$0xf]
    %v8876 = vld [vmem:[#allocation2 + $0x174] sm:$0xff]
    %v8877 = vld [vmem:[#allocation2 + $0x17c] sm:$0xf]
    %v8878 = vld [vmem:[#allocation2 + $0x1b0] sm:$0xff]
    %v8879 = vld [vmem:[#allocation2 + $0x1b8] sm:$0xf]
    %v8880 = vld [vmem:[#allocation2 + $0x1bc] sm:$0xff]
    %v8881 = vld [vmem:[#allocation2 + $0x1c4] sm:$0xf]
    %v8882 = vld [vmem:[#allocation2 + $0x1c8] sm:$0xff]
    %v8883 = vld [vmem:[#allocation2 + $0x1d0] sm:$0xf]
    %v8884 = vld [vmem:[#allocation2 + $0x1d4] sm:$0xff]
    %v8885 = vld [vmem:[#allocation2 + $0x1dc] sm:$0xf]
    %v8886 = vld [vmem:[#allocation2 + $0x1e0] sm:$0xff]
    %v8887 = vld [vmem:[#allocation2 + $0x1e8] sm:$0xf]
    %v8888 = vld [vmem:[#allocation2 + $0x1ec] sm:$0xff]
    %v8889 = vld [vmem:[#allocation2 + $0x1f4] sm:$0xf]
    %v8890 = vld [vmem:[#allocation2 + $0x1f8] sm:$0xff]
    %v8891 = vld [vmem:[#allocation2 + $0x200] sm:$0xf]
    %v8892 = vld [vmem:[#allocation2 + $0x204] sm:$0xff]
    %v8893 = vld [vmem:[#allocation2 + $0x20c] sm:$0xf]
    %v8894 = vld [vmem:[#allocation2 + $0x210] sm:$0xff]
    %v8895 = vld [vmem:[#allocation2 + $0x218] sm:$0xf]
    %v8896 = vld [vmem:[#allocation2 + $0x21c] sm:$0xff]
    %v8897 = vld [vmem:[#allocation2 + $0x224] sm:$0xf]
    %v8898 = vld [vmem:[#allocation2 + $0x228] sm:$0xff]
    %v8899 = vld [vmem:[#allocation2 + $0x230] sm:$0xf]
    %v8900 = vld [vmem:[#allocation2 + $0x234] sm:$0xff]
    %v8901 = vld [vmem:[#allocation2 + $0x23c] sm:$0xf]
    %v8902 = vld [vmem:[#allocation2 + $0x240] sm:$0xff]
    %v8903 = vld [vmem:[#allocation2 + $0x248] sm:$0xf]
    %v8904 = vld [vmem:[#allocation2 + $0x24c] sm:$0xff]
    %v8905 = vld [vmem:[#allocation2 + $0x254] sm:$0xf]
    %v8906 = vld [vmem:[#allocation2 + $0x258] sm:$0xff]
    %v8907 = vld [vmem:[#allocation2 + $0x260] sm:$0xf]
    %v8908 = vld [vmem:[#allocation2 + $0x264] sm:$0xff]
    %v8909 = vld [vmem:[#allocation2 + $0x26c] sm:$0xf]
    %v8910 = vld [vmem:[#allocation2 + $0x270] sm:$0xff]
    %v8911 = vld [vmem:[#allocation2 + $0x278] sm:$0xf]
    %v8912 = vld [vmem:[#allocation2 + $0x27c] sm:$0xff]
    %v8913 = vld [vmem:[#allocation2 + $0x284] sm:$0xf]
    %v8914 = vld [vmem:[#allocation2 + $0x288] sm:$0xff]
    %v8915 = vld [vmem:[#allocation2 + $0x290] sm:$0xf]
    %v8916 = vld [vmem:[#allocation2 + $0x294] sm:$0xff]
    %v8917 = vld [vmem:[#allocation2 + $0x29c] sm:$0xf]
    %v8918 = vld [vmem:[#allocation2 + $0x2a0] sm:$0xff]
    %v8919 = vld [vmem:[#allocation2 + $0x2a8] sm:$0xf]
    %v8920 = vld [vmem:[#allocation2 + $0x2ac] sm:$0xff]
    %v8921 = vld [vmem:[#allocation2 + $0x2b4] sm:$0xf]
    %v8922 = vld [vmem:[#allocation2 + $0x2b8] sm:$0xff]
    %v8923 = vld [vmem:[#allocation2 + $0x2c0] sm:$0xf]
    %v8924 = vld [vmem:[#allocation2 + $0x2c4] sm:$0xff]
    %v8925 = vld [vmem:[#allocation2 + $0x2cc] sm:$0xf]
    %v8926 = vld [vmem:[#allocation2 + $0x2d0] sm:$0xff]
    %v8927 = vld [vmem:[#allocation2 + $0x2d8] sm:$0xf]
    %v8928 = vld [vmem:[#allocation2 + $0x2dc] sm:$0xff]
    %v8929 = vld [vmem:[#allocation2 + $0x2e4] sm:$0xf]
    %v8930 = vld [vmem:[#allocation2 + $0x2e8] sm:$0xff]
    %v8931 = vld [vmem:[#allocation2 + $0x2f0] sm:$0xf]
    %v8932 = vld [vmem:[#allocation2 + $0x2f4] sm:$0xff]
    %v8933 = vld [vmem:[#allocation2 + $0x2fc] sm:$0xf]
    %v8934 = vld [vmem:[#allocation2 + $0x300] sm:$0xff]
    %v8935 = vld [vmem:[#allocation2 + $0x308] sm:$0xf]
    %v8936 = vld [vmem:[#allocation2 + $0x30c] sm:$0xff]
    %v8937 = vld [vmem:[#allocation2 + $0x314] sm:$0xf]
    %v8938 = vld [vmem:[#allocation2 + $0x318] sm:$0xff]
    %v8939 = vld [vmem:[#allocation2 + $0x320] sm:$0xf]
    %v8940 = vld [vmem:[#allocation2 + $0x324] sm:$0xff]
    %v8941 = vld [vmem:[#allocation2 + $0x32c] sm:$0xf]
    %v8942 = vld [vmem:[%s2] sm:$0xf]
    %v8943 = vld [vmem:[%s2 + $0x4] sm:$0xf]
    %v8944 = vld [vmem:[%s2 + $0x8] sm:$0xf]
    %v8945 = vld [vmem:[%s2 + $0xc] sm:$0xf]
    %v8946 = vld [vmem:[%s2 + $0x10] sm:$0xf]
    %v8947 = vld [vmem:[%s2 + $0x14] sm:$0xf]
    %v8948 = vld [vmem:[%s2 + $0x18] sm:$0xf]
    %v8949 = vld [vmem:[%s2 + $0x1c] sm:$0xf]
    %v8950 = vld [vmem:[%s2 + $0x20] sm:$0xf]
    %v8951 = vld [vmem:[%s2 + $0x24] sm:$0xf]
    %v8952 = vld [vmem:[%s2 + $0x28] sm:$0xf]
    %v8953 = vld [vmem:[%s2 + $0x2c] sm:$0xf]
    %v8954 = vld [vmem:[%s2 + $0x30] sm:$0xf]
    %v8955 = vld [vmem:[%s2 + $0x34] sm:$0xf]
    %v8956 = vld [vmem:[%s2 + $0x38] sm:$0xf]
    %v8957 = vld [vmem:[%s2 + $0x3c] sm:$0xf]
    %v8958 = vld [vmem:[%s2 + $0x40] sm:$0xf]
    %v8959 = vld [vmem:[%s2 + $0x44] sm:$0xf]
    %v8960 = vld [vmem:[%s2 + $0x48] sm:$0xf]
    %v8961 = vld [vmem:[%s2 + $0x4c] sm:$0xf]
    %v8962 = vld [vmem:[%s2 + $0x50] sm:$0xf]
    %v8963 = vld [vmem:[%s2 + $0x54] sm:$0xf]
    %v8964 = vld [vmem:[%s2 + $0x58] sm:$0xf]
    %v8965 = vld [vmem:[%s2 + $0x5c] sm:$0xf]
    %v8966 = vld [vmem:[%s2 + $0x60] sm:$0xf]
    %v8967 = vld [vmem:[%s2 + $0x64] sm:$0xf]
    %v8968 = vld [vmem:[%s2 + $0x68] sm:$0xf]
    %v8969 = vld [vmem:[%s2 + $0x6c] sm:$0xf]
    %v8970 = vld [vmem:[%s2 + $0x70] sm:$0xf]
    %v8971 = vld [vmem:[%s2 + $0x74] sm:$0xf]
    %v8972 = vld [vmem:[%s2 + $0x78] sm:$0xf]
    %v8973 = vld [vmem:[%s2 + $0x7c] sm:$0xf]
    %v8974 = vld [vmem:[%s2 + $0x80] sm:$0xf]
    %v8975 = vld [vmem:[%s2 + $0x84] sm:$0xf]
    %v8976 = vld [vmem:[%s2 + $0x88] sm:$0xf]
    %v8977 = vld [vmem:[%s2 + $0x8c] sm:$0xf]
    %v8978 = vld [vmem:[%s2 + $0x90] sm:$0xf]
    %v8979 = vld [vmem:[%s2 + $0x94] sm:$0xf]
    %v8980 = vld [vmem:[%s2 + $0x98] sm:$0xf]
    %v8981 = vld [vmem:[%s2 + $0x9c] sm:$0xf]
    %v8982 = vld [vmem:[%s2 + $0xa0] sm:$0xf]
    %v8983 = vld [vmem:[%s2 + $0xa4] sm:$0xf]
    %v8984 = vld [vmem:[%s2 + $0xa8] sm:$0xf]
    %v8985 = vld [vmem:[%s2 + $0xac] sm:$0xf]
    %v8986 = vld [vmem:[%s2 + $0xb0] sm:$0xf]
    %v8987 = vld [vmem:[%s2 + $0xb4] sm:$0xf]
    %v8988 = vld [vmem:[%s2 + $0xb8] sm:$0xf]
    %v8989 = vld [vmem:[%s2 + $0xbc] sm:$0xf]
    %v8990 = vld [vmem:[%s627] sm:$0xff]
    %v8991 = vld [vmem:[%s627 + $0x8] sm:$0xf]
    %v8992 = vld [vmem:[%s627 + $0xc] sm:$0xff]
    %v8993 = vld [vmem:[%s627 + $0x14] sm:$0xf]
    %v8994 = vld [vmem:[%s627 + $0x18] sm:$0xff]
    %v8995 = vld [vmem:[%s627 + $0x20] sm:$0xf]
    %v8996 = vld [vmem:[%s627 + $0x24] sm:$0xff]
    %v8997 = vld [vmem:[%s627 + $0x2c] sm:$0xf]
    %v8998 = vld [vmem:[%s627 + $0x30] sm:$0xff]
    %v8999 = vld [vmem:[%s627 + $0x38] sm:$0xf]
    %v9000 = vld [vmem:[%s627 + $0x3c] sm:$0xff]
    %v9001 = vld [vmem:[%s627 + $0x44] sm:$0xf]
    %v9002 = vld [vmem:[%s627 + $0x48] sm:$0xff]
    %v9003 = vld [vmem:[%s627 + $0x50] sm:$0xf]
    %v9004 = vld [vmem:[%s627 + $0x54] sm:$0xff]
    %v9005 = vld [vmem:[%s627 + $0x5c] sm:$0xf]
    %v9006 = vld [vmem:[%s627 + $0x60] sm:$0xff]
    %v9007 = vld [vmem:[%s627 + $0x68] sm:$0xf]
    %v9008 = vld [vmem:[%s627 + $0x6c] sm:$0xff]
    %v9009 = vld [vmem:[%s627 + $0x74] sm:$0xf]
    %v9010 = vld [vmem:[%s627 + $0x78] sm:$0xff]
    %v9011 = vld [vmem:[%s627 + $0x80] sm:$0xf]
    %v9012 = vld [vmem:[%s627 + $0x84] sm:$0xff]
    %v9013 = vld [vmem:[%s627 + $0x8c] sm:$0xf]
    %v9014 = vld [vmem:[%s627 + $0x90] sm:$0xff]
    %v9015 = vld [vmem:[%s627 + $0x98] sm:$0xf]
    %v9016 = vld [vmem:[%s627 + $0x9c] sm:$0xff]
    %v9017 = vld [vmem:[%s627 + $0xa4] sm:$0xf]
    %v9018 = vld [vmem:[%s627 + $0xa8] sm:$0xff]
    %v9019 = vld [vmem:[%s627 + $0xb0] sm:$0xf]
    %v9020 = vld [vmem:[%s627 + $0xb4] sm:$0xff]
    %v9021 = vld [vmem:[%s627 + $0xbc] sm:$0xf]
    %v9022 = vld [vmem:[%s627 + $0xc0] sm:$0xff]
    %v9023 = vld [vmem:[%s627 + $0xc8] sm:$0xf]
    %v9024 = vld [vmem:[%s627 + $0xcc] sm:$0xff]
    %v9025 = vld [vmem:[%s627 + $0xd4] sm:$0xf]
    %v9026 = vld [vmem:[%s627 + $0xd8] sm:$0xff]
    %v9027 = vld [vmem:[%s627 + $0xe0] sm:$0xf]
    %v9028 = vld [vmem:[%s627 + $0xe4] sm:$0xff]
    %v9029 = vld [vmem:[%s627 + $0xec] sm:$0xf]
    %v9030 = vld [vmem:[%s627 + $0xf0] sm:$0xff]
    %v9031 = vld [vmem:[%s627 + $0xf8] sm:$0xf]
    %v9032 = vld [vmem:[%s627 + $0xfc] sm:$0xff]
    %v9033 = vld [vmem:[%s627 + $0x104] sm:$0xf]
    %v9034 = vld [vmem:[%s627 + $0x108] sm:$0xff]
    %v9035 = vld [vmem:[%s627 + $0x110] sm:$0xf]
    %v9036 = vld [vmem:[%s627 + $0x114] sm:$0xff]
    %v9037 = vld [vmem:[%s627 + $0x11c] sm:$0xf]
    %v9038 = vld [vmem:[%s627 + $0x120] sm:$0xff]
    %v9039 = vld [vmem:[%s627 + $0x128] sm:$0xf]
    %v9040 = vld [vmem:[%s627 + $0x12c] sm:$0xff]
    %v9041 = vld [vmem:[%s627 + $0x134] sm:$0xf]
    %v9042 = vld [vmem:[%s627 + $0x138] sm:$0xff]
    %v9043 = vld [vmem:[%s627 + $0x140] sm:$0xf]
    %v9044 = vld [vmem:[%s627 + $0x144] sm:$0xff]
    %v9045 = vld [vmem:[%s627 + $0x14c] sm:$0xf]
    %v9046 = vld [vmem:[%s627 + $0x150] sm:$0xff]
    %v9047 = vld [vmem:[%s627 + $0x158] sm:$0xf]
    %v9048 = vld [vmem:[%s627 + $0x15c] sm:$0xff]
    %v9049 = vld [vmem:[%s627 + $0x164] sm:$0xf]
    %v9050 = vld [vmem:[%s627 + $0x168] sm:$0xff]
    %v9051 = vld [vmem:[%s627 + $0x170] sm:$0xf]
    %v9052 = vld [vmem:[%s627 + $0x174] sm:$0xff]
    %v9053 = vld [vmem:[%s627 + $0x17c] sm:$0xf]
    %v9054 = vld [vmem:[%s627 + $0x1b0] sm:$0xff]
    %v9055 = vld [vmem:[%s627 + $0x1b8] sm:$0xf]
    %v9056 = vld [vmem:[%s627 + $0x1bc] sm:$0xff]
    %v9057 = vld [vmem:[%s627 + $0x1c4] sm:$0xf]
    %v9058 = vld [vmem:[%s627 + $0x1c8] sm:$0xff]
    %v9059 = vld [vmem:[%s627 + $0x1d0] sm:$0xf]
    %v9060 = vld [vmem:[%s627 + $0x1d4] sm:$0xff]
    %v9061 = vld [vmem:[%s627 + $0x1dc] sm:$0xf]
    %v9062 = vld [vmem:[%s627 + $0x1e0] sm:$0xff]
    %v9063 = vld [vmem:[%s627 + $0x1e8] sm:$0xf]
    %v9064 = vld [vmem:[%s627 + $0x1ec] sm:$0xff]
    %v9065 = vld [vmem:[%s627 + $0x1f4] sm:$0xf]
    %v9066 = vld [vmem:[%s627 + $0x1f8] sm:$0xff]
    %v9067 = vld [vmem:[%s627 + $0x200] sm:$0xf]
    %v9068 = vld [vmem:[%s627 + $0x204] sm:$0xff]
    %v9069 = vld [vmem:[%s627 + $0x20c] sm:$0xf]
    %v9070 = vld [vmem:[%s627 + $0x210] sm:$0xff]
    %v9071 = vld [vmem:[%s627 + $0x218] sm:$0xf]
    %v9072 = vld [vmem:[%s627 + $0x21c] sm:$0xff]
    %v9073 = vld [vmem:[%s627 + $0x224] sm:$0xf]
    %v9074 = vld [vmem:[%s627 + $0x228] sm:$0xff]
    %v9075 = vld [vmem:[%s627 + $0x230] sm:$0xf]
    %v9076 = vld [vmem:[%s627 + $0x234] sm:$0xff]
    %v9077 = vld [vmem:[%s627 + $0x23c] sm:$0xf]
    %v9078 = vld [vmem:[%s627 + $0x240] sm:$0xff]
    %v9079 = vld [vmem:[%s627 + $0x248] sm:$0xf]
    %v9080 = vld [vmem:[%s627 + $0x24c] sm:$0xff]
    %v9081 = vld [vmem:[%s627 + $0x254] sm:$0xf]
    %v9082 = vld [vmem:[%s627 + $0x258] sm:$0xff]
    %v9083 = vld [vmem:[%s627 + $0x260] sm:$0xf]
    %v9084 = vld [vmem:[%s627 + $0x264] sm:$0xff]
    %v9085 = vld [vmem:[%s627 + $0x26c] sm:$0xf]
    %v9086 = vld [vmem:[%s627 + $0x270] sm:$0xff]
    %v9087 = vld [vmem:[%s627 + $0x278] sm:$0xf]
    %v9088 = vld [vmem:[%s627 + $0x27c] sm:$0xff]
    %v9089 = vld [vmem:[%s627 + $0x284] sm:$0xf]
    %v9090 = vld [vmem:[%s627 + $0x288] sm:$0xff]
    %v9091 = vld [vmem:[%s627 + $0x290] sm:$0xf]
    %v9092 = vld [vmem:[%s627 + $0x294] sm:$0xff]
    %v9093 = vld [vmem:[%s627 + $0x29c] sm:$0xf]
    %v9094 = vld [vmem:[%s627 + $0x2a0] sm:$0xff]
    %v9095 = vld [vmem:[%s627 + $0x2a8] sm:$0xf]
    %v9096 = vld [vmem:[%s627 + $0x2ac] sm:$0xff]
    %v9097 = vld [vmem:[%s627 + $0x2b4] sm:$0xf]
    %v9098 = vld [vmem:[%s627 + $0x2b8] sm:$0xff]
    %v9099 = vld [vmem:[%s627 + $0x2c0] sm:$0xf]
    %v9100 = vld [vmem:[%s627 + $0x2c4] sm:$0xff]
    %v9101 = vld [vmem:[%s627 + $0x2cc] sm:$0xf]
    %v9102 = vld [vmem:[%s627 + $0x2d0] sm:$0xff]
    %v9103 = vld [vmem:[%s627 + $0x2d8] sm:$0xf]
    %v9104 = vld [vmem:[%s627 + $0x2dc] sm:$0xff]
    %v9105 = vld [vmem:[%s627 + $0x2e4] sm:$0xf]
    %v9106 = vld [vmem:[%s627 + $0x2e8] sm:$0xff]
    %v9107 = vld [vmem:[%s627 + $0x2f0] sm:$0xf]
    %v9108 = vld [vmem:[%s627 + $0x2f4] sm:$0xff]
    %v9109 = vld [vmem:[%s627 + $0x2fc] sm:$0xf]
    %v9110 = vld [vmem:[%s627 + $0x300] sm:$0xff]
    %v9111 = vld [vmem:[%s627 + $0x308] sm:$0xf]
    %v9112 = vld [vmem:[%s627 + $0x30c] sm:$0xff]
    %v9113 = vld [vmem:[%s627 + $0x314] sm:$0xf]
    %v9114 = vld [vmem:[%s627 + $0x318] sm:$0xff]
    %v9115 = vld [vmem:[%s627 + $0x320] sm:$0xf]
    %v9116 = vld [vmem:[%s627 + $0x324] sm:$0xff]
    %v9117 = vld [vmem:[%s627 + $0x32c] sm:$0xf]
    %s9118 = scalar_lea.vmem %s2, 192
    %v9119 = vld [vmem:[%s9118] sm:$0xf]
    %v9120 = vld [vmem:[%s9118 + $0x4] sm:$0xf]
    %v9121 = vld [vmem:[%s9118 + $0x8] sm:$0xf]
    %v9122 = vld [vmem:[%s9118 + $0xc] sm:$0xf]
    %v9123 = vld [vmem:[%s9118 + $0x10] sm:$0xf]
    %v9124 = vld [vmem:[%s9118 + $0x14] sm:$0xf]
    %v9125 = vld [vmem:[%s9118 + $0x18] sm:$0xf]
    %v9126 = vld [vmem:[%s9118 + $0x1c] sm:$0xf]
    %v9127 = vld [vmem:[%s9118 + $0x20] sm:$0xf]
    %v9128 = vld [vmem:[%s9118 + $0x24] sm:$0xf]
    %v9129 = vld [vmem:[%s9118 + $0x28] sm:$0xf]
    %v9130 = vld [vmem:[%s9118 + $0x2c] sm:$0xf]
    %v9131 = vld [vmem:[%s9118 + $0x30] sm:$0xf]
    %v9132 = vld [vmem:[%s9118 + $0x34] sm:$0xf]
    %v9133 = vld [vmem:[%s9118 + $0x38] sm:$0xf]
    %v9134 = vld [vmem:[%s9118 + $0x3c] sm:$0xf]
    %v9135 = vld [vmem:[%s9118 + $0x40] sm:$0xf]
    %v9136 = vld [vmem:[%s9118 + $0x44] sm:$0xf]
    %v9137 = vld [vmem:[%s9118 + $0x48] sm:$0xf]
    %v9138 = vld [vmem:[%s9118 + $0x4c] sm:$0xf]
    %v9139 = vld [vmem:[%s9118 + $0x50] sm:$0xf]
    %v9140 = vld [vmem:[%s9118 + $0x54] sm:$0xf]
    %v9141 = vld [vmem:[%s9118 + $0x58] sm:$0xf]
    %v9142 = vld [vmem:[%s9118 + $0x5c] sm:$0xf]
    %v9143 = vld [vmem:[%s9118 + $0x60] sm:$0xf]
    %v9144 = vld [vmem:[%s9118 + $0x64] sm:$0xf]
    %v9145 = vld [vmem:[%s9118 + $0x68] sm:$0xf]
    %v9146 = vld [vmem:[%s9118 + $0x6c] sm:$0xf]
    %v9147 = vld [vmem:[%s9118 + $0x70] sm:$0xf]
    %v9148 = vld [vmem:[%s9118 + $0x74] sm:$0xf]
    %v9149 = vld [vmem:[%s9118 + $0x78] sm:$0xf]
    %v9150 = vld [vmem:[%s9118 + $0x7c] sm:$0xf]
    %v9151 = vld [vmem:[%s9118 + $0x80] sm:$0xf]
    %v9152 = vld [vmem:[%s9118 + $0x84] sm:$0xf]
    %v9153 = vld [vmem:[%s9118 + $0x88] sm:$0xf]
    %v9154 = vld [vmem:[%s9118 + $0x8c] sm:$0xf]
    %v9155 = vld [vmem:[%s9118 + $0x90] sm:$0xf]
    %v9156 = vld [vmem:[%s9118 + $0x94] sm:$0xf]
    %v9157 = vld [vmem:[%s9118 + $0x98] sm:$0xf]
    %v9158 = vld [vmem:[%s9118 + $0x9c] sm:$0xf]
    %v9159 = vld [vmem:[%s9118 + $0xa0] sm:$0xf]
    %v9160 = vld [vmem:[%s9118 + $0xa4] sm:$0xf]
    %v9161 = vld [vmem:[%s9118 + $0xa8] sm:$0xf]
    %v9162 = vld [vmem:[%s9118 + $0xac] sm:$0xf]
    %v9163 = vld [vmem:[%s9118 + $0xb0] sm:$0xf]
    %v9164 = vld [vmem:[%s9118 + $0xb4] sm:$0xf]
    %v9165 = vld [vmem:[%s9118 + $0xb8] sm:$0xf]
    %v9166 = vld [vmem:[%s9118 + $0xbc] sm:$0xf]
    %v9295 = vunpack.c.l.b16 %v8990
    %v9296 = vunpack.c.h.b16 %v8990
    %v9297 = vunpack.c.l.b16 %v8991
    %v9298 = vunpack.c.l.b16 %v8992
    %v9299 = vunpack.c.h.b16 %v8992
    %v9300 = vunpack.c.l.b16 %v8993
    %v9301 = vunpack.c.l.b16 %v8994
    %v9302 = vunpack.c.h.b16 %v8994
    %v9303 = vunpack.c.l.b16 %v8995
    %v9304 = vunpack.c.l.b16 %v8996
    %v9305 = vunpack.c.h.b16 %v8996
    %v9306 = vunpack.c.l.b16 %v8997
    %v9307 = vunpack.c.l.b16 %v8998
    %v9308 = vunpack.c.h.b16 %v8998
    %v9309 = vunpack.c.l.b16 %v8999
    %v9310 = vunpack.c.l.b16 %v9000
    %v9311 = vunpack.c.h.b16 %v9000
    %v9312 = vunpack.c.l.b16 %v9001
    %v9313 = vunpack.c.l.b16 %v9002
    %v9314 = vunpack.c.h.b16 %v9002
    %v9315 = vunpack.c.l.b16 %v9003
    %v9316 = vunpack.c.l.b16 %v9004
    %v9317 = vunpack.c.h.b16 %v9004
    %v9318 = vunpack.c.l.b16 %v9005
    %v9319 = vunpack.c.l.b16 %v9006
    %v9320 = vunpack.c.h.b16 %v9006
    %v9321 = vunpack.c.l.b16 %v9007
    %v9322 = vunpack.c.l.b16 %v9008
    %v9323 = vunpack.c.h.b16 %v9008
    %v9324 = vunpack.c.l.b16 %v9009
    %v9325 = vunpack.c.l.b16 %v9010
    %v9326 = vunpack.c.h.b16 %v9010
    %v9327 = vunpack.c.l.b16 %v9011
    %v9328 = vunpack.c.l.b16 %v9012
    %v9329 = vunpack.c.h.b16 %v9012
    %v9330 = vunpack.c.l.b16 %v9013
    %v9331 = vunpack.c.l.b16 %v9014
    %v9332 = vunpack.c.h.b16 %v9014
    %v9333 = vunpack.c.l.b16 %v9015
    %v9334 = vunpack.c.l.b16 %v9016
    %v9335 = vunpack.c.h.b16 %v9016
    %v9336 = vunpack.c.l.b16 %v9017
    %v9337 = vunpack.c.l.b16 %v9018
    %v9338 = vunpack.c.h.b16 %v9018
    %v9339 = vunpack.c.l.b16 %v9019
    %v9340 = vunpack.c.l.b16 %v9020
    %v9341 = vunpack.c.h.b16 %v9020
    %v9342 = vunpack.c.l.b16 %v9021
    %v9343 = vunpack.c.l.b16 %v9022
    %v9344 = vunpack.c.h.b16 %v9022
    %v9345 = vunpack.c.l.b16 %v9023
    %v9346 = vunpack.c.l.b16 %v9024
    %v9347 = vunpack.c.h.b16 %v9024
    %v9348 = vunpack.c.l.b16 %v9025
    %v9349 = vunpack.c.l.b16 %v9026
    %v9350 = vunpack.c.h.b16 %v9026
    %v9351 = vunpack.c.l.b16 %v9027
    %v9352 = vunpack.c.l.b16 %v9028
    %v9353 = vunpack.c.h.b16 %v9028
    %v9354 = vunpack.c.l.b16 %v9029
    %v9355 = vunpack.c.l.b16 %v9030
    %v9356 = vunpack.c.h.b16 %v9030
    %v9357 = vunpack.c.l.b16 %v9031
    %v9358 = vunpack.c.l.b16 %v9032
    %v9359 = vunpack.c.h.b16 %v9032
    %v9360 = vunpack.c.l.b16 %v9033
    %v9361 = vunpack.c.l.b16 %v9034
    %v9362 = vunpack.c.h.b16 %v9034
    %v9363 = vunpack.c.l.b16 %v9035
    %v9364 = vunpack.c.l.b16 %v9036
    %v9365 = vunpack.c.h.b16 %v9036
    %v9366 = vunpack.c.l.b16 %v9037
    %v9367 = vunpack.c.l.b16 %v9038
    %v9368 = vunpack.c.h.b16 %v9038
    %v9369 = vunpack.c.l.b16 %v9039
    %v9370 = vunpack.c.l.b16 %v9040
    %v9371 = vunpack.c.h.b16 %v9040
    %v9372 = vunpack.c.l.b16 %v9041
    %v9373 = vunpack.c.l.b16 %v9042
    %v9374 = vunpack.c.h.b16 %v9042
    %v9375 = vunpack.c.l.b16 %v9043
    %v9376 = vunpack.c.l.b16 %v9044
    %v9377 = vunpack.c.h.b16 %v9044
    %v9378 = vunpack.c.l.b16 %v9045
    %v9379 = vunpack.c.l.b16 %v9046
    %v9380 = vunpack.c.h.b16 %v9046
    %v9381 = vunpack.c.l.b16 %v9047
    %v9382 = vunpack.c.l.b16 %v9048
    %v9383 = vunpack.c.h.b16 %v9048
    %v9384 = vunpack.c.l.b16 %v9049
    %v9385 = vunpack.c.l.b16 %v9050
    %v9386 = vunpack.c.h.b16 %v9050
    %v9387 = vunpack.c.l.b16 %v9051
    %v9388 = vunpack.c.l.b16 %v9052
    %v9389 = vunpack.c.h.b16 %v9052
    %v9390 = vunpack.c.l.b16 %v9053
    %v9391 = vunpack.c.l.b16 %v9054
    %v9392 = vunpack.c.h.b16 %v9054
    %v9393 = vunpack.c.l.b16 %v9055
    %v9394 = vunpack.c.l.b16 %v9056
    %v9395 = vunpack.c.h.b16 %v9056
    %v9396 = vunpack.c.l.b16 %v9057
    %v9397 = vunpack.c.l.b16 %v9058
    %v9398 = vunpack.c.h.b16 %v9058
    %v9399 = vunpack.c.l.b16 %v9059
    %v9400 = vunpack.c.l.b16 %v9060
    %v9401 = vunpack.c.h.b16 %v9060
    %v9402 = vunpack.c.l.b16 %v9061
    %v9403 = vunpack.c.l.b16 %v9062
    %v9404 = vunpack.c.h.b16 %v9062
    %v9405 = vunpack.c.l.b16 %v9063
    %v9406 = vunpack.c.l.b16 %v9064
    %v9407 = vunpack.c.h.b16 %v9064
    %v9408 = vunpack.c.l.b16 %v9065
    %v9409 = vunpack.c.l.b16 %v9066
    %v9410 = vunpack.c.h.b16 %v9066
    %v9411 = vunpack.c.l.b16 %v9067
    %v9412 = vunpack.c.l.b16 %v9068
    %v9413 = vunpack.c.h.b16 %v9068
    %v9414 = vunpack.c.l.b16 %v9069
    %v9415 = vunpack.c.l.b16 %v9070
    %v9416 = vunpack.c.h.b16 %v9070
    %v9417 = vunpack.c.l.b16 %v9071
    %v9418 = vunpack.c.l.b16 %v9072
    %v9419 = vunpack.c.h.b16 %v9072
    %v9420 = vunpack.c.l.b16 %v9073
    %v9421 = vunpack.c.l.b16 %v9074
    %v9422 = vunpack.c.h.b16 %v9074
    %v9423 = vunpack.c.l.b16 %v9075
    %v9424 = vunpack.c.l.b16 %v9076
    %v9425 = vunpack.c.h.b16 %v9076
    %v9426 = vunpack.c.l.b16 %v9077
    %v9427 = vunpack.c.l.b16 %v9078
    %v9428 = vunpack.c.h.b16 %v9078
    %v9429 = vunpack.c.l.b16 %v9079
    %v9430 = vunpack.c.l.b16 %v9080
    %v9431 = vunpack.c.h.b16 %v9080
    %v9432 = vunpack.c.l.b16 %v9081
    %v9433 = vunpack.c.l.b16 %v9082
    %v9434 = vunpack.c.h.b16 %v9082
    %v9435 = vunpack.c.l.b16 %v9083
    %v9436 = vunpack.c.l.b16 %v9084
    %v9437 = vunpack.c.h.b16 %v9084
    %v9438 = vunpack.c.l.b16 %v9085
    %v9439 = vunpack.c.l.b16 %v9086
    %v9440 = vunpack.c.h.b16 %v9086
    %v9441 = vunpack.c.l.b16 %v9087
    %v9442 = vunpack.c.l.b16 %v9088
    %v9443 = vunpack.c.h.b16 %v9088
    %v9444 = vunpack.c.l.b16 %v9089
    %v9445 = vunpack.c.l.b16 %v9090
    %v9446 = vunpack.c.h.b16 %v9090
    %v9447 = vunpack.c.l.b16 %v9091
    %v9448 = vunpack.c.l.b16 %v9092
    %v9449 = vunpack.c.h.b16 %v9092
    %v9450 = vunpack.c.l.b16 %v9093
    %v9451 = vunpack.c.l.b16 %v9094
    %v9452 = vunpack.c.h.b16 %v9094
    %v9453 = vunpack.c.l.b16 %v9095
    %v9454 = vunpack.c.l.b16 %v9096
    %v9455 = vunpack.c.h.b16 %v9096
    %v9456 = vunpack.c.l.b16 %v9097
    %v9457 = vunpack.c.l.b16 %v9098
    %v9458 = vunpack.c.h.b16 %v9098
    %v9459 = vunpack.c.l.b16 %v9099
    %v9460 = vunpack.c.l.b16 %v9100
    %v9461 = vunpack.c.h.b16 %v9100
    %v9462 = vunpack.c.l.b16 %v9101
    %v9463 = vunpack.c.l.b16 %v9102
    %v9464 = vunpack.c.h.b16 %v9102
    %v9465 = vunpack.c.l.b16 %v9103
    %v9466 = vunpack.c.l.b16 %v9104
    %v9467 = vunpack.c.h.b16 %v9104
    %v9468 = vunpack.c.l.b16 %v9105
    %v9469 = vunpack.c.l.b16 %v9106
    %v9470 = vunpack.c.h.b16 %v9106
    %v9471 = vunpack.c.l.b16 %v9107
    %v9472 = vunpack.c.l.b16 %v9108
    %v9473 = vunpack.c.h.b16 %v9108
    %v9474 = vunpack.c.l.b16 %v9109
    %v9475 = vunpack.c.l.b16 %v9110
    %v9476 = vunpack.c.h.b16 %v9110
    %v9477 = vunpack.c.l.b16 %v9111
    %v9478 = vunpack.c.l.b16 %v9112
    %v9479 = vunpack.c.h.b16 %v9112
    %v9480 = vunpack.c.l.b16 %v9113
    %v9481 = vunpack.c.l.b16 %v9114
    %v9482 = vunpack.c.h.b16 %v9114
    %v9483 = vunpack.c.l.b16 %v9115
    %v9484 = vunpack.c.l.b16 %v9116
    %v9485 = vunpack.c.h.b16 %v9116
    %v9486 = vunpack.c.l.b16 %v9117
    %v9487 = vpack.c.b16 %v9298, %v9295
    %v9488 = vpack.c.b16 %v9299, %v9296
    %v9489 = vpack.c.b16 %v9300, %v9297
    %v9490 = vpack.c.b16 %v9304, %v9301
    %v9491 = vpack.c.b16 %v9305, %v9302
    %v9492 = vpack.c.b16 %v9306, %v9303
    %v9493 = vpack.c.b16 %v9310, %v9307
    %v9494 = vpack.c.b16 %v9311, %v9308
    %v9495 = vpack.c.b16 %v9312, %v9309
    %v9496 = vpack.c.b16 %v9316, %v9313
    %v9497 = vpack.c.b16 %v9317, %v9314
    %v9498 = vpack.c.b16 %v9318, %v9315
    %v9499 = vpack.c.b16 %v9322, %v9319
    %v9500 = vpack.c.b16 %v9323, %v9320
    %v9501 = vpack.c.b16 %v9324, %v9321
    %v9502 = vpack.c.b16 %v9328, %v9325
    %v9503 = vpack.c.b16 %v9329, %v9326
    %v9504 = vpack.c.b16 %v9330, %v9327
    %v9505 = vpack.c.b16 %v9334, %v9331
    %v9506 = vpack.c.b16 %v9335, %v9332
    %v9507 = vpack.c.b16 %v9336, %v9333
    %v9508 = vpack.c.b16 %v9340, %v9337
    %v9509 = vpack.c.b16 %v9341, %v9338
    %v9510 = vpack.c.b16 %v9342, %v9339
    %v9511 = vpack.c.b16 %v9346, %v9343
    %v9512 = vpack.c.b16 %v9347, %v9344
    %v9513 = vpack.c.b16 %v9348, %v9345
    %v9514 = vpack.c.b16 %v9352, %v9349
    %v9515 = vpack.c.b16 %v9353, %v9350
    %v9516 = vpack.c.b16 %v9354, %v9351
    %v9517 = vpack.c.b16 %v9358, %v9355
    %v9518 = vpack.c.b16 %v9359, %v9356
    %v9519 = vpack.c.b16 %v9360, %v9357
    %v9520 = vpack.c.b16 %v9364, %v9361
    %v9521 = vpack.c.b16 %v9365, %v9362
    %v9522 = vpack.c.b16 %v9366, %v9363
    %v9523 = vpack.c.b16 %v9370, %v9367
    %v9524 = vpack.c.b16 %v9371, %v9368
    %v9525 = vpack.c.b16 %v9372, %v9369
    %v9526 = vpack.c.b16 %v9376, %v9373
    %v9527 = vpack.c.b16 %v9377, %v9374
    %v9528 = vpack.c.b16 %v9378, %v9375
    %v9529 = vpack.c.b16 %v9382, %v9379
    %v9530 = vpack.c.b16 %v9383, %v9380
    %v9531 = vpack.c.b16 %v9384, %v9381
    %v9532 = vpack.c.b16 %v9388, %v9385
    %v9533 = vpack.c.b16 %v9389, %v9386
    %v9534 = vpack.c.b16 %v9390, %v9387
    %v9535 = vpack.c.b16 %v9394, %v9391
    %v9536 = vpack.c.b16 %v9395, %v9392
    %v9537 = vpack.c.b16 %v9396, %v9393
    %v9538 = vpack.c.b16 %v9400, %v9397
    %v9539 = vpack.c.b16 %v9401, %v9398
    %v9540 = vpack.c.b16 %v9402, %v9399
    %v9541 = vpack.c.b16 %v9406, %v9403
    %v9542 = vpack.c.b16 %v9407, %v9404
    %v9543 = vpack.c.b16 %v9408, %v9405
    %v9544 = vpack.c.b16 %v9412, %v9409
    %v9545 = vpack.c.b16 %v9413, %v9410
    %v9546 = vpack.c.b16 %v9414, %v9411
    %v9547 = vpack.c.b16 %v9418, %v9415
    %v9548 = vpack.c.b16 %v9419, %v9416
    %v9549 = vpack.c.b16 %v9420, %v9417
    %v9550 = vpack.c.b16 %v9424, %v9421
    %v9551 = vpack.c.b16 %v9425, %v9422
    %v9552 = vpack.c.b16 %v9426, %v9423
    %v9553 = vpack.c.b16 %v9430, %v9427
    %v9554 = vpack.c.b16 %v9431, %v9428
    %v9555 = vpack.c.b16 %v9432, %v9429
    %v9556 = vpack.c.b16 %v9436, %v9433
    %v9557 = vpack.c.b16 %v9437, %v9434
    %v9558 = vpack.c.b16 %v9438, %v9435
    %v9559 = vpack.c.b16 %v9442, %v9439
    %v9560 = vpack.c.b16 %v9443, %v9440
    %v9561 = vpack.c.b16 %v9444, %v9441
    %v9562 = vpack.c.b16 %v9448, %v9445
    %v9563 = vpack.c.b16 %v9449, %v9446
    %v9564 = vpack.c.b16 %v9450, %v9447
    %v9565 = vpack.c.b16 %v9454, %v9451
    %v9566 = vpack.c.b16 %v9455, %v9452
    %v9567 = vpack.c.b16 %v9456, %v9453
    %v9568 = vpack.c.b16 %v9460, %v9457
    %v9569 = vpack.c.b16 %v9461, %v9458
    %v9570 = vpack.c.b16 %v9462, %v9459
    %v9571 = vpack.c.b16 %v9466, %v9463
    %v9572 = vpack.c.b16 %v9467, %v9464
    %v9573 = vpack.c.b16 %v9468, %v9465
    %v9574 = vpack.c.b16 %v9472, %v9469
    %v9575 = vpack.c.b16 %v9473, %v9470
    %v9576 = vpack.c.b16 %v9474, %v9471
    %v9577 = vpack.c.b16 %v9478, %v9475
    %v9578 = vpack.c.b16 %v9479, %v9476
    %v9579 = vpack.c.b16 %v9480, %v9477
    %v9580 = vpack.c.b16 %v9484, %v9481
    %v9581 = vpack.c.b16 %v9485, %v9482
    %v9582 = vpack.c.b16 %v9486, %v9483
    %v9727 = vunpack.c.l.b16 %v9119
    %v9728 = vunpack.c.l.b16 %v9120
    %v9729 = vunpack.c.l.b16 %v9121
    %v9730 = vunpack.c.l.b16 %v9122
    %v9731 = vunpack.c.l.b16 %v9123
    %v9732 = vunpack.c.l.b16 %v9124
    %v9733 = vunpack.c.l.b16 %v9125
    %v9734 = vunpack.c.l.b16 %v9126
    %v9735 = vunpack.c.l.b16 %v9127
    %v9736 = vunpack.c.l.b16 %v9128
    %v9737 = vunpack.c.l.b16 %v9129
    %v9738 = vunpack.c.l.b16 %v9130
    %v9739 = vunpack.c.l.b16 %v9131
    %v9740 = vunpack.c.l.b16 %v9132
    %v9741 = vunpack.c.l.b16 %v9133
    %v9742 = vunpack.c.l.b16 %v9134
    %v9743 = vunpack.c.l.b16 %v9135
    %v9744 = vunpack.c.l.b16 %v9136
    %v9745 = vunpack.c.l.b16 %v9137
    %v9746 = vunpack.c.l.b16 %v9138
    %v9747 = vunpack.c.l.b16 %v9139
    %v9748 = vunpack.c.l.b16 %v9140
    %v9749 = vunpack.c.l.b16 %v9141
    %v9750 = vunpack.c.l.b16 %v9142
    %v9751 = vunpack.c.l.b16 %v9143
    %v9752 = vunpack.c.l.b16 %v9144
    %v9753 = vunpack.c.l.b16 %v9145
    %v9754 = vunpack.c.l.b16 %v9146
    %v9755 = vunpack.c.l.b16 %v9147
    %v9756 = vunpack.c.l.b16 %v9148
    %v9757 = vunpack.c.l.b16 %v9149
    %v9758 = vunpack.c.l.b16 %v9150
    %v9759 = vunpack.c.l.b16 %v9151
    %v9760 = vunpack.c.l.b16 %v9152
    %v9761 = vunpack.c.l.b16 %v9153
    %v9762 = vunpack.c.l.b16 %v9154
    %v9763 = vunpack.c.l.b16 %v9155
    %v9764 = vunpack.c.l.b16 %v9156
    %v9765 = vunpack.c.l.b16 %v9157
    %v9766 = vunpack.c.l.b16 %v9158
    %v9767 = vunpack.c.l.b16 %v9159
    %v9768 = vunpack.c.l.b16 %v9160
    %v9769 = vunpack.c.l.b16 %v9161
    %v9770 = vunpack.c.l.b16 %v9162
    %v9771 = vunpack.c.l.b16 %v9163
    %v9772 = vunpack.c.l.b16 %v9164
    %v9773 = vunpack.c.l.b16 %v9165
    %v9774 = vunpack.c.l.b16 %v9166
    %v9775 = vpack.c.b16 %v9728, %v9727
    %v9776 = vpack.c.b16 %v9730, %v9729
    %v9777 = vpack.c.b16 %v9732, %v9731
    %v9778 = vpack.c.b16 %v9734, %v9733
    %v9779 = vpack.c.b16 %v9736, %v9735
    %v9780 = vpack.c.b16 %v9738, %v9737
    %v9781 = vpack.c.b16 %v9740, %v9739
    %v9782 = vpack.c.b16 %v9742, %v9741
    %v9783 = vpack.c.b16 %v9744, %v9743
    %v9784 = vpack.c.b16 %v9746, %v9745
    %v9785 = vpack.c.b16 %v9748, %v9747
    %v9786 = vpack.c.b16 %v9750, %v9749
    %v9787 = vpack.c.b16 %v9752, %v9751
    %v9788 = vpack.c.b16 %v9754, %v9753
    %v9789 = vpack.c.b16 %v9756, %v9755
    %v9790 = vpack.c.b16 %v9758, %v9757
    %v9791 = vpack.c.b16 %v9760, %v9759
    %v9792 = vpack.c.b16 %v9762, %v9761
    %v9793 = vpack.c.b16 %v9764, %v9763
    %v9794 = vpack.c.b16 %v9766, %v9765
    %v9795 = vpack.c.b16 %v9768, %v9767
    %v9796 = vpack.c.b16 %v9770, %v9769
    %v9797 = vpack.c.b16 %v9772, %v9771
    %v9798 = vpack.c.b16 %v9774, %v9773
    %9823 = vmatpush.bf16.msra.mxu0 %v9782
    %9824 = vmatpush.bf16.msra.mxu0 %v9781
    %9825 = vmatpush.bf16.msra.mxu0 %v9780
    %9826 = vmatpush.bf16.msra.mxu0 %v9779
    %9827 = vmatpush.bf16.msra.mxu0 %v9778
    %9828 = vmatpush.bf16.msra.mxu0 %v9777
    %9829 = vmatpush.bf16.msra.mxu0 %v9776
    %9830 = vmatpush.bf16.msra.mxu0 %v9775
    %9831 = vmatmul.bf16.gmra.mxu0 %v9487
    %v9832 = vpop.f32.mrf.mxu0
    %v9833 = vadd.f32 0.0, %v9832
    %v9834 = vpop.f32.mrf.mxu0
    %v9835 = vadd.f32 0.0, %v9834
    %9836 = vmatmul.bf16.gmra.mxu0 %v9490
    %v9837 = vpop.f32.mrf.mxu0
    %v9838 = vadd.f32 0.0, %v9837
    %v9839 = vpop.f32.mrf.mxu0
    %v9840 = vadd.f32 0.0, %v9839
    %9841 = vmatmul.bf16.gmra.mxu0 %v9493
    %v9842 = vpop.f32.mrf.mxu0
    %v9843 = vadd.f32 0.0, %v9842
    %v9844 = vpop.f32.mrf.mxu0
    %v9845 = vadd.f32 0.0, %v9844
    %9846 = vmatmul.bf16.gmra.mxu0 %v9496
    %v9847 = vpop.f32.mrf.mxu0
    %v9848 = vadd.f32 0.0, %v9847
    %v9849 = vpop.f32.mrf.mxu0
    %v9850 = vadd.f32 0.0, %v9849
    %9851 = vmatmul.bf16.gmra.mxu0 %v9499
    %v9852 = vpop.f32.mrf.mxu0
    %v9853 = vadd.f32 0.0, %v9852
    %v9854 = vpop.f32.mrf.mxu0
    %v9855 = vadd.f32 0.0, %v9854
    %9856 = vmatmul.bf16.gmra.mxu0 %v9502
    %v9857 = vpop.f32.mrf.mxu0
    %v9858 = vadd.f32 0.0, %v9857
    %v9859 = vpop.f32.mrf.mxu0
    %v9860 = vadd.f32 0.0, %v9859
    %9861 = vmatmul.bf16.gmra.mxu0 %v9505
    %v9862 = vpop.f32.mrf.mxu0
    %v9863 = vadd.f32 0.0, %v9862
    %v9864 = vpop.f32.mrf.mxu0
    %v9865 = vadd.f32 0.0, %v9864
    %9866 = vmatmul.bf16.gmra.mxu0 %v9508
    %v9867 = vpop.f32.mrf.mxu0
    %v9868 = vadd.f32 0.0, %v9867
    %v9869 = vpop.f32.mrf.mxu0
    %v9870 = vadd.f32 0.0, %v9869
    %9871 = vmatmul.bf16.gmra.mxu0 %v9511
    %v9872 = vpop.f32.mrf.mxu0
    %v9873 = vadd.f32 0.0, %v9872
    %v9874 = vpop.f32.mrf.mxu0
    %v9875 = vadd.f32 0.0, %v9874
    %9876 = vmatmul.bf16.gmra.mxu0 %v9514
    %v9877 = vpop.f32.mrf.mxu0
    %v9878 = vadd.f32 0.0, %v9877
    %v9879 = vpop.f32.mrf.mxu0
    %v9880 = vadd.f32 0.0, %v9879
    %9881 = vmatmul.bf16.gmra.mxu0 %v9517
    %v9882 = vpop.f32.mrf.mxu0
    %v9883 = vadd.f32 0.0, %v9882
    %v9884 = vpop.f32.mrf.mxu0
    %v9885 = vadd.f32 0.0, %v9884
    %9886 = vmatmul.bf16.gmra.mxu0 %v9520
    %v9887 = vpop.f32.mrf.mxu0
    %v9888 = vadd.f32 0.0, %v9887
    %v9889 = vpop.f32.mrf.mxu0
    %v9890 = vadd.f32 0.0, %v9889
    %9891 = vmatmul.bf16.gmra.mxu0 %v9523
    %v9892 = vpop.f32.mrf.mxu0
    %v9893 = vadd.f32 0.0, %v9892
    %v9894 = vpop.f32.mrf.mxu0
    %v9895 = vadd.f32 0.0, %v9894
    %9896 = vmatmul.bf16.gmra.mxu0 %v9526
    %v9897 = vpop.f32.mrf.mxu0
    %v9898 = vadd.f32 0.0, %v9897
    %v9899 = vpop.f32.mrf.mxu0
    %v9900 = vadd.f32 0.0, %v9899
    %9901 = vmatmul.bf16.gmra.mxu0 %v9529
    %v9902 = vpop.f32.mrf.mxu0
    %v9903 = vadd.f32 0.0, %v9902
    %v9904 = vpop.f32.mrf.mxu0
    %v9905 = vadd.f32 0.0, %v9904
    %9906 = vmatmul.bf16.gmra.mxu0 %v9532
    %v9907 = vpop.f32.mrf.mxu0
    %v9908 = vadd.f32 0.0, %v9907
    %v9909 = vpop.f32.mrf.mxu0
    %v9910 = vadd.f32 0.0, %v9909
    %9911 = vmatmul.bf16.gmra.mxu0 %v9535
    %v9912 = vpop.f32.mrf.mxu0
    %v9913 = vadd.f32 0.0, %v9912
    %v9914 = vpop.f32.mrf.mxu0
    %v9915 = vadd.f32 0.0, %v9914
    %9916 = vmatmul.bf16.gmra.mxu0 %v9538
    %v9917 = vpop.f32.mrf.mxu0
    %v9918 = vadd.f32 0.0, %v9917
    %v9919 = vpop.f32.mrf.mxu0
    %v9920 = vadd.f32 0.0, %v9919
    %9921 = vmatmul.bf16.gmra.mxu0 %v9541
    %v9922 = vpop.f32.mrf.mxu0
    %v9923 = vadd.f32 0.0, %v9922
    %v9924 = vpop.f32.mrf.mxu0
    %v9925 = vadd.f32 0.0, %v9924
    %9926 = vmatmul.bf16.gmra.mxu0 %v9544
    %v9927 = vpop.f32.mrf.mxu0
    %v9928 = vadd.f32 0.0, %v9927
    %v9929 = vpop.f32.mrf.mxu0
    %v9930 = vadd.f32 0.0, %v9929
    %9931 = vmatmul.bf16.gmra.mxu0 %v9547
    %v9932 = vpop.f32.mrf.mxu0
    %v9933 = vadd.f32 0.0, %v9932
    %v9934 = vpop.f32.mrf.mxu0
    %v9935 = vadd.f32 0.0, %v9934
    %9936 = vmatmul.bf16.gmra.mxu0 %v9550
    %v9937 = vpop.f32.mrf.mxu0
    %v9938 = vadd.f32 0.0, %v9937
    %v9939 = vpop.f32.mrf.mxu0
    %v9940 = vadd.f32 0.0, %v9939
    %9941 = vmatmul.bf16.gmra.mxu0 %v9553
    %v9942 = vpop.f32.mrf.mxu0
    %v9943 = vadd.f32 0.0, %v9942
    %v9944 = vpop.f32.mrf.mxu0
    %v9945 = vadd.f32 0.0, %v9944
    %9946 = vmatmul.bf16.gmra.mxu0 %v9556
    %v9947 = vpop.f32.mrf.mxu0
    %v9948 = vadd.f32 0.0, %v9947
    %v9949 = vpop.f32.mrf.mxu0
    %v9950 = vadd.f32 0.0, %v9949
    %9951 = vmatmul.bf16.gmra.mxu0 %v9559
    %v9952 = vpop.f32.mrf.mxu0
    %v9953 = vadd.f32 0.0, %v9952
    %v9954 = vpop.f32.mrf.mxu0
    %v9955 = vadd.f32 0.0, %v9954
    %9956 = vmatmul.bf16.gmra.mxu0 %v9562
    %v9957 = vpop.f32.mrf.mxu0
    %v9958 = vadd.f32 0.0, %v9957
    %v9959 = vpop.f32.mrf.mxu0
    %v9960 = vadd.f32 0.0, %v9959
    %9961 = vmatmul.bf16.gmra.mxu0 %v9565
    %v9962 = vpop.f32.mrf.mxu0
    %v9963 = vadd.f32 0.0, %v9962
    %v9964 = vpop.f32.mrf.mxu0
    %v9965 = vadd.f32 0.0, %v9964
    %9966 = vmatmul.bf16.gmra.mxu0 %v9568
    %v9967 = vpop.f32.mrf.mxu0
    %v9968 = vadd.f32 0.0, %v9967
    %v9969 = vpop.f32.mrf.mxu0
    %v9970 = vadd.f32 0.0, %v9969
    %9971 = vmatmul.bf16.gmra.mxu0 %v9571
    %v9972 = vpop.f32.mrf.mxu0
    %v9973 = vadd.f32 0.0, %v9972
    %v9974 = vpop.f32.mrf.mxu0
    %v9975 = vadd.f32 0.0, %v9974
    %9976 = vmatmul.bf16.gmra.mxu0 %v9574
    %v9977 = vpop.f32.mrf.mxu0
    %v9978 = vadd.f32 0.0, %v9977
    %v9979 = vpop.f32.mrf.mxu0
    %v9980 = vadd.f32 0.0, %v9979
    %9981 = vmatmul.bf16.gmra.mxu0 %v9577
    %v9982 = vpop.f32.mrf.mxu0
    %v9983 = vadd.f32 0.0, %v9982
    %v9984 = vpop.f32.mrf.mxu0
    %v9985 = vadd.f32 0.0, %v9984
    %9986 = vmatmul.bf16.gmra.mxu0 %v9580
    %v9987 = vpop.f32.mrf.mxu0
    %v9988 = vadd.f32 0.0, %v9987
    %v9989 = vpop.f32.mrf.mxu0
    %v9990 = vadd.f32 0.0, %v9989
    %9991 = vdwg.mxu0
    %9992 = vmatpush.bf16.msra.mxu0 %v9790
    %9993 = vmatpush.bf16.msra.mxu0 %v9789
    %9994 = vmatpush.bf16.msra.mxu0 %v9788
    %9995 = vmatpush.bf16.msra.mxu0 %v9787
    %9996 = vmatpush.bf16.msra.mxu0 %v9786
    %9997 = vmatpush.bf16.msra.mxu0 %v9785
    %9998 = vmatpush.bf16.msra.mxu0 %v9784
    %9999 = vmatpush.bf16.msra.mxu0 %v9783
    %10000 = vmatmul.bf16.gmra.mxu0 %v9488
    %v10001 = vpop.f32.mrf.mxu0
    %v10002 = vadd.f32 %v9833, %v10001
    %v10003 = vpop.f32.mrf.mxu0
    %v10004 = vadd.f32 %v9835, %v10003
    %10005 = vmatmul.bf16.gmra.mxu0 %v9491
    %v10006 = vpop.f32.mrf.mxu0
    %v10007 = vadd.f32 %v9838, %v10006
    %v10008 = vpop.f32.mrf.mxu0
    %v10009 = vadd.f32 %v9840, %v10008
    %10010 = vmatmul.bf16.gmra.mxu0 %v9494
    %v10011 = vpop.f32.mrf.mxu0
    %v10012 = vadd.f32 %v9843, %v10011
    %v10013 = vpop.f32.mrf.mxu0
    %v10014 = vadd.f32 %v9845, %v10013
    %10015 = vmatmul.bf16.gmra.mxu0 %v9497
    %v10016 = vpop.f32.mrf.mxu0
    %v10017 = vadd.f32 %v9848, %v10016
    %v10018 = vpop.f32.mrf.mxu0
    %v10019 = vadd.f32 %v9850, %v10018
    %10020 = vmatmul.bf16.gmra.mxu0 %v9500
    %v10021 = vpop.f32.mrf.mxu0
    %v10022 = vadd.f32 %v9853, %v10021
    %v10023 = vpop.f32.mrf.mxu0
    %v10024 = vadd.f32 %v9855, %v10023
    %10025 = vmatmul.bf16.gmra.mxu0 %v9503
    %v10026 = vpop.f32.mrf.mxu0
    %v10027 = vadd.f32 %v9858, %v10026
    %v10028 = vpop.f32.mrf.mxu0
    %v10029 = vadd.f32 %v9860, %v10028
    %10030 = vmatmul.bf16.gmra.mxu0 %v9506
    %v10031 = vpop.f32.mrf.mxu0
    %v10032 = vadd.f32 %v9863, %v10031
    %v10033 = vpop.f32.mrf.mxu0
    %v10034 = vadd.f32 %v9865, %v10033
    %10035 = vmatmul.bf16.gmra.mxu0 %v9509
    %v10036 = vpop.f32.mrf.mxu0
    %v10037 = vadd.f32 %v9868, %v10036
    %v10038 = vpop.f32.mrf.mxu0
    %v10039 = vadd.f32 %v9870, %v10038
    %10040 = vmatmul.bf16.gmra.mxu0 %v9512
    %v10041 = vpop.f32.mrf.mxu0
    %v10042 = vadd.f32 %v9873, %v10041
    %v10043 = vpop.f32.mrf.mxu0
    %v10044 = vadd.f32 %v9875, %v10043
    %10045 = vmatmul.bf16.gmra.mxu0 %v9515
    %v10046 = vpop.f32.mrf.mxu0
    %v10047 = vadd.f32 %v9878, %v10046
    %v10048 = vpop.f32.mrf.mxu0
    %v10049 = vadd.f32 %v9880, %v10048
    %10050 = vmatmul.bf16.gmra.mxu0 %v9518
    %v10051 = vpop.f32.mrf.mxu0
    %v10052 = vadd.f32 %v9883, %v10051
    %v10053 = vpop.f32.mrf.mxu0
    %v10054 = vadd.f32 %v9885, %v10053
    %10055 = vmatmul.bf16.gmra.mxu0 %v9521
    %v10056 = vpop.f32.mrf.mxu0
    %v10057 = vadd.f32 %v9888, %v10056
    %v10058 = vpop.f32.mrf.mxu0
    %v10059 = vadd.f32 %v9890, %v10058
    %10060 = vmatmul.bf16.gmra.mxu0 %v9524
    %v10061 = vpop.f32.mrf.mxu0
    %v10062 = vadd.f32 %v9893, %v10061
    %v10063 = vpop.f32.mrf.mxu0
    %v10064 = vadd.f32 %v9895, %v10063
    %10065 = vmatmul.bf16.gmra.mxu0 %v9527
    %v10066 = vpop.f32.mrf.mxu0
    %v10067 = vadd.f32 %v9898, %v10066
    %v10068 = vpop.f32.mrf.mxu0
    %v10069 = vadd.f32 %v9900, %v10068
    %10070 = vmatmul.bf16.gmra.mxu0 %v9530
    %v10071 = vpop.f32.mrf.mxu0
    %v10072 = vadd.f32 %v9903, %v10071
    %v10073 = vpop.f32.mrf.mxu0
    %v10074 = vadd.f32 %v9905, %v10073
    %10075 = vmatmul.bf16.gmra.mxu0 %v9533
    %v10076 = vpop.f32.mrf.mxu0
    %v10077 = vadd.f32 %v9908, %v10076
    %v10078 = vpop.f32.mrf.mxu0
    %v10079 = vadd.f32 %v9910, %v10078
    %10080 = vmatmul.bf16.gmra.mxu0 %v9536
    %v10081 = vpop.f32.mrf.mxu0
    %v10082 = vadd.f32 %v9913, %v10081
    %v10083 = vpop.f32.mrf.mxu0
    %v10084 = vadd.f32 %v9915, %v10083
    %10085 = vmatmul.bf16.gmra.mxu0 %v9539
    %v10086 = vpop.f32.mrf.mxu0
    %v10087 = vadd.f32 %v9918, %v10086
    %v10088 = vpop.f32.mrf.mxu0
    %v10089 = vadd.f32 %v9920, %v10088
    %10090 = vmatmul.bf16.gmra.mxu0 %v9542
    %v10091 = vpop.f32.mrf.mxu0
    %v10092 = vadd.f32 %v9923, %v10091
    %v10093 = vpop.f32.mrf.mxu0
    %v10094 = vadd.f32 %v9925, %v10093
    %10095 = vmatmul.bf16.gmra.mxu0 %v9545
    %v10096 = vpop.f32.mrf.mxu0
    %v10097 = vadd.f32 %v9928, %v10096
    %v10098 = vpop.f32.mrf.mxu0
    %v10099 = vadd.f32 %v9930, %v10098
    %10100 = vmatmul.bf16.gmra.mxu0 %v9548
    %v10101 = vpop.f32.mrf.mxu0
    %v10102 = vadd.f32 %v9933, %v10101
    %v10103 = vpop.f32.mrf.mxu0
    %v10104 = vadd.f32 %v9935, %v10103
    %10105 = vmatmul.bf16.gmra.mxu0 %v9551
    %v10106 = vpop.f32.mrf.mxu0
    %v10107 = vadd.f32 %v9938, %v10106
    %v10108 = vpop.f32.mrf.mxu0
    %v10109 = vadd.f32 %v9940, %v10108
    %10110 = vmatmul.bf16.gmra.mxu0 %v9554
    %v10111 = vpop.f32.mrf.mxu0
    %v10112 = vadd.f32 %v9943, %v10111
    %v10113 = vpop.f32.mrf.mxu0
    %v10114 = vadd.f32 %v9945, %v10113
    %10115 = vmatmul.bf16.gmra.mxu0 %v9557
    %v10116 = vpop.f32.mrf.mxu0
    %v10117 = vadd.f32 %v9948, %v10116
    %v10118 = vpop.f32.mrf.mxu0
    %v10119 = vadd.f32 %v9950, %v10118
    %10120 = vmatmul.bf16.gmra.mxu0 %v9560
    %v10121 = vpop.f32.mrf.mxu0
    %v10122 = vadd.f32 %v9953, %v10121
    %v10123 = vpop.f32.mrf.mxu0
    %v10124 = vadd.f32 %v9955, %v10123
    %10125 = vmatmul.bf16.gmra.mxu0 %v9563
    %v10126 = vpop.f32.mrf.mxu0
    %v10127 = vadd.f32 %v9958, %v10126
    %v10128 = vpop.f32.mrf.mxu0
    %v10129 = vadd.f32 %v9960, %v10128
    %10130 = vmatmul.bf16.gmra.mxu0 %v9566
    %v10131 = vpop.f32.mrf.mxu0
    %v10132 = vadd.f32 %v9963, %v10131
    %v10133 = vpop.f32.mrf.mxu0
    %v10134 = vadd.f32 %v9965, %v10133
    %10135 = vmatmul.bf16.gmra.mxu0 %v9569
    %v10136 = vpop.f32.mrf.mxu0
    %v10137 = vadd.f32 %v9968, %v10136
    %v10138 = vpop.f32.mrf.mxu0
    %v10139 = vadd.f32 %v9970, %v10138
    %10140 = vmatmul.bf16.gmra.mxu0 %v9572
    %v10141 = vpop.f32.mrf.mxu0
    %v10142 = vadd.f32 %v9973, %v10141
    %v10143 = vpop.f32.mrf.mxu0
    %v10144 = vadd.f32 %v9975, %v10143
    %10145 = vmatmul.bf16.gmra.mxu0 %v9575
    %v10146 = vpop.f32.mrf.mxu0
    %v10147 = vadd.f32 %v9978, %v10146
    %v10148 = vpop.f32.mrf.mxu0
    %v10149 = vadd.f32 %v9980, %v10148
    %10150 = vmatmul.bf16.gmra.mxu0 %v9578
    %v10151 = vpop.f32.mrf.mxu0
    %v10152 = vadd.f32 %v9983, %v10151
    %v10153 = vpop.f32.mrf.mxu0
    %v10154 = vadd.f32 %v9985, %v10153
    %10155 = vmatmul.bf16.gmra.mxu0 %v9581
    %v10156 = vpop.f32.mrf.mxu0
    %v10157 = vadd.f32 %v9988, %v10156
    %v10158 = vpop.f32.mrf.mxu0
    %v10159 = vadd.f32 %v9990, %v10158
    %10160 = vdwg.mxu0
    %10161 = vmatpush.bf16.msra.mxu0 %v9798
    %10162 = vmatpush.bf16.msra.mxu0 %v9797
    %10163 = vmatpush.bf16.msra.mxu0 %v9796
    %10164 = vmatpush.bf16.msra.mxu0 %v9795
    %10165 = vmatpush.bf16.msra.mxu0 %v9794
    %10166 = vmatpush.bf16.msra.mxu0 %v9793
    %10167 = vmatpush.bf16.msra.mxu0 %v9792
    %10168 = vmatpush.bf16.msra.mxu0 %v9791
    %10169 = vmatmul.bf16.gmra.mxu0 %v9489
    %v10170 = vpop.f32.mrf.mxu0
    %v10171 = vadd.f32 %v10002, %v10170
    %v10172 = vpop.f32.mrf.mxu0
    %v10173 = vadd.f32 %v10004, %v10172
    %10174 = vmatmul.bf16.gmra.mxu0 %v9492
    %v10175 = vpop.f32.mrf.mxu0
    %v10176 = vadd.f32 %v10007, %v10175
    %v10177 = vpop.f32.mrf.mxu0
    %v10178 = vadd.f32 %v10009, %v10177
    %10179 = vmatmul.bf16.gmra.mxu0 %v9495
    %v10180 = vpop.f32.mrf.mxu0
    %v10181 = vadd.f32 %v10012, %v10180
    %v10182 = vpop.f32.mrf.mxu0
    %v10183 = vadd.f32 %v10014, %v10182
    %10184 = vmatmul.bf16.gmra.mxu0 %v9498
    %v10185 = vpop.f32.mrf.mxu0
    %v10186 = vadd.f32 %v10017, %v10185
    %v10187 = vpop.f32.mrf.mxu0
    %v10188 = vadd.f32 %v10019, %v10187
    %10189 = vmatmul.bf16.gmra.mxu0 %v9501
    %v10190 = vpop.f32.mrf.mxu0
    %v10191 = vadd.f32 %v10022, %v10190
    %v10192 = vpop.f32.mrf.mxu0
    %v10193 = vadd.f32 %v10024, %v10192
    %10194 = vmatmul.bf16.gmra.mxu0 %v9504
    %v10195 = vpop.f32.mrf.mxu0
    %v10196 = vadd.f32 %v10027, %v10195
    %v10197 = vpop.f32.mrf.mxu0
    %v10198 = vadd.f32 %v10029, %v10197
    %10199 = vmatmul.bf16.gmra.mxu0 %v9507
    %v10200 = vpop.f32.mrf.mxu0
    %v10201 = vadd.f32 %v10032, %v10200
    %v10202 = vpop.f32.mrf.mxu0
    %v10203 = vadd.f32 %v10034, %v10202
    %10204 = vmatmul.bf16.gmra.mxu0 %v9510
    %v10205 = vpop.f32.mrf.mxu0
    %v10206 = vadd.f32 %v10037, %v10205
    %v10207 = vpop.f32.mrf.mxu0
    %v10208 = vadd.f32 %v10039, %v10207
    %10209 = vmatmul.bf16.gmra.mxu0 %v9513
    %v10210 = vpop.f32.mrf.mxu0
    %v10211 = vadd.f32 %v10042, %v10210
    %v10212 = vpop.f32.mrf.mxu0
    %v10213 = vadd.f32 %v10044, %v10212
    %10214 = vmatmul.bf16.gmra.mxu0 %v9516
    %v10215 = vpop.f32.mrf.mxu0
    %v10216 = vadd.f32 %v10047, %v10215
    %v10217 = vpop.f32.mrf.mxu0
    %v10218 = vadd.f32 %v10049, %v10217
    %10219 = vmatmul.bf16.gmra.mxu0 %v9519
    %v10220 = vpop.f32.mrf.mxu0
    %v10221 = vadd.f32 %v10052, %v10220
    %v10222 = vpop.f32.mrf.mxu0
    %v10223 = vadd.f32 %v10054, %v10222
    %10224 = vmatmul.bf16.gmra.mxu0 %v9522
    %v10225 = vpop.f32.mrf.mxu0
    %v10226 = vadd.f32 %v10057, %v10225
    %v10227 = vpop.f32.mrf.mxu0
    %v10228 = vadd.f32 %v10059, %v10227
    %10229 = vmatmul.bf16.gmra.mxu0 %v9525
    %v10230 = vpop.f32.mrf.mxu0
    %v10231 = vadd.f32 %v10062, %v10230
    %v10232 = vpop.f32.mrf.mxu0
    %v10233 = vadd.f32 %v10064, %v10232
    %10234 = vmatmul.bf16.gmra.mxu0 %v9528
    %v10235 = vpop.f32.mrf.mxu0
    %v10236 = vadd.f32 %v10067, %v10235
    %v10237 = vpop.f32.mrf.mxu0
    %v10238 = vadd.f32 %v10069, %v10237
    %10239 = vmatmul.bf16.gmra.mxu0 %v9531
    %v10240 = vpop.f32.mrf.mxu0
    %v10241 = vadd.f32 %v10072, %v10240
    %v10242 = vpop.f32.mrf.mxu0
    %v10243 = vadd.f32 %v10074, %v10242
    %10244 = vmatmul.bf16.gmra.mxu0 %v9534
    %v10245 = vpop.f32.mrf.mxu0
    %v10246 = vadd.f32 %v10077, %v10245
    %v10247 = vpop.f32.mrf.mxu0
    %v10248 = vadd.f32 %v10079, %v10247
    %10249 = vmatmul.bf16.gmra.mxu0 %v9537
    %v10250 = vpop.f32.mrf.mxu0
    %v10251 = vadd.f32 %v10082, %v10250
    %v10252 = vpop.f32.mrf.mxu0
    %v10253 = vadd.f32 %v10084, %v10252
    %10254 = vmatmul.bf16.gmra.mxu0 %v9540
    %v10255 = vpop.f32.mrf.mxu0
    %v10256 = vadd.f32 %v10087, %v10255
    %v10257 = vpop.f32.mrf.mxu0
    %v10258 = vadd.f32 %v10089, %v10257
    %10259 = vmatmul.bf16.gmra.mxu0 %v9543
    %v10260 = vpop.f32.mrf.mxu0
    %v10261 = vadd.f32 %v10092, %v10260
    %v10262 = vpop.f32.mrf.mxu0
    %v10263 = vadd.f32 %v10094, %v10262
    %10264 = vmatmul.bf16.gmra.mxu0 %v9546
    %v10265 = vpop.f32.mrf.mxu0
    %v10266 = vadd.f32 %v10097, %v10265
    %v10267 = vpop.f32.mrf.mxu0
    %v10268 = vadd.f32 %v10099, %v10267
    %10269 = vmatmul.bf16.gmra.mxu0 %v9549
    %v10270 = vpop.f32.mrf.mxu0
    %v10271 = vadd.f32 %v10102, %v10270
    %v10272 = vpop.f32.mrf.mxu0
    %v10273 = vadd.f32 %v10104, %v10272
    %10274 = vmatmul.bf16.gmra.mxu0 %v9552
    %v10275 = vpop.f32.mrf.mxu0
    %v10276 = vadd.f32 %v10107, %v10275
    %v10277 = vpop.f32.mrf.mxu0
    %v10278 = vadd.f32 %v10109, %v10277
    %10279 = vmatmul.bf16.gmra.mxu0 %v9555
    %v10280 = vpop.f32.mrf.mxu0
    %v10281 = vadd.f32 %v10112, %v10280
    %v10282 = vpop.f32.mrf.mxu0
    %v10283 = vadd.f32 %v10114, %v10282
    %10284 = vmatmul.bf16.gmra.mxu0 %v9558
    %v10285 = vpop.f32.mrf.mxu0
    %v10286 = vadd.f32 %v10117, %v10285
    %v10287 = vpop.f32.mrf.mxu0
    %v10288 = vadd.f32 %v10119, %v10287
    %10289 = vmatmul.bf16.gmra.mxu0 %v9561
    %v10290 = vpop.f32.mrf.mxu0
    %v10291 = vadd.f32 %v10122, %v10290
    %v10292 = vpop.f32.mrf.mxu0
    %v10293 = vadd.f32 %v10124, %v10292
    %10294 = vmatmul.bf16.gmra.mxu0 %v9564
    %v10295 = vpop.f32.mrf.mxu0
    %v10296 = vadd.f32 %v10127, %v10295
    %v10297 = vpop.f32.mrf.mxu0
    %v10298 = vadd.f32 %v10129, %v10297
    %10299 = vmatmul.bf16.gmra.mxu0 %v9567
    %v10300 = vpop.f32.mrf.mxu0
    %v10301 = vadd.f32 %v10132, %v10300
    %v10302 = vpop.f32.mrf.mxu0
    %v10303 = vadd.f32 %v10134, %v10302
    %10304 = vmatmul.bf16.gmra.mxu0 %v9570
    %v10305 = vpop.f32.mrf.mxu0
    %v10306 = vadd.f32 %v10137, %v10305
    %v10307 = vpop.f32.mrf.mxu0
    %v10308 = vadd.f32 %v10139, %v10307
    %10309 = vmatmul.bf16.gmra.mxu0 %v9573
    %v10310 = vpop.f32.mrf.mxu0
    %v10311 = vadd.f32 %v10142, %v10310
    %v10312 = vpop.f32.mrf.mxu0
    %v10313 = vadd.f32 %v10144, %v10312
    %10314 = vmatmul.bf16.gmra.mxu0 %v9576
    %v10315 = vpop.f32.mrf.mxu0
    %v10316 = vadd.f32 %v10147, %v10315
    %v10317 = vpop.f32.mrf.mxu0
    %v10318 = vadd.f32 %v10149, %v10317
    %10319 = vmatmul.bf16.gmra.mxu0 %v9579
    %v10320 = vpop.f32.mrf.mxu0
    %v10321 = vadd.f32 %v10152, %v10320
    %v10322 = vpop.f32.mrf.mxu0
    %v10323 = vadd.f32 %v10154, %v10322
    %10324 = vmatmul.bf16.gmra.mxu0 %v9582
    %v10325 = vpop.f32.mrf.mxu0
    %v10326 = vadd.f32 %v10157, %v10325
    %v10327 = vpop.f32.mrf.mxu0
    %v10328 = vadd.f32 %v10159, %v10327
    %10329 = vdwg.mxu0
    %v10458 = vunpack.c.l.b16 %v8814
    %v10459 = vunpack.c.h.b16 %v8814
    %v10460 = vunpack.c.l.b16 %v8815
    %v10461 = vunpack.c.l.b16 %v8816
    %v10462 = vunpack.c.h.b16 %v8816
    %v10463 = vunpack.c.l.b16 %v8817
    %v10464 = vunpack.c.l.b16 %v8818
    %v10465 = vunpack.c.h.b16 %v8818
    %v10466 = vunpack.c.l.b16 %v8819
    %v10467 = vunpack.c.l.b16 %v8820
    %v10468 = vunpack.c.h.b16 %v8820
    %v10469 = vunpack.c.l.b16 %v8821
    %v10470 = vunpack.c.l.b16 %v8822
    %v10471 = vunpack.c.h.b16 %v8822
    %v10472 = vunpack.c.l.b16 %v8823
    %v10473 = vunpack.c.l.b16 %v8824
    %v10474 = vunpack.c.h.b16 %v8824
    %v10475 = vunpack.c.l.b16 %v8825
    %v10476 = vunpack.c.l.b16 %v8826
    %v10477 = vunpack.c.h.b16 %v8826
    %v10478 = vunpack.c.l.b16 %v8827
    %v10479 = vunpack.c.l.b16 %v8828
    %v10480 = vunpack.c.h.b16 %v8828
    %v10481 = vunpack.c.l.b16 %v8829
    %v10482 = vunpack.c.l.b16 %v8830
    %v10483 = vunpack.c.h.b16 %v8830
    %v10484 = vunpack.c.l.b16 %v8831
    %v10485 = vunpack.c.l.b16 %v8832
    %v10486 = vunpack.c.h.b16 %v8832
    %v10487 = vunpack.c.l.b16 %v8833
    %v10488 = vunpack.c.l.b16 %v8834
    %v10489 = vunpack.c.h.b16 %v8834
    %v10490 = vunpack.c.l.b16 %v8835
    %v10491 = vunpack.c.l.b16 %v8836
    %v10492 = vunpack.c.h.b16 %v8836
    %v10493 = vunpack.c.l.b16 %v8837
    %v10494 = vunpack.c.l.b16 %v8838
    %v10495 = vunpack.c.h.b16 %v8838
    %v10496 = vunpack.c.l.b16 %v8839
    %v10497 = vunpack.c.l.b16 %v8840
    %v10498 = vunpack.c.h.b16 %v8840
    %v10499 = vunpack.c.l.b16 %v8841
    %v10500 = vunpack.c.l.b16 %v8842
    %v10501 = vunpack.c.h.b16 %v8842
    %v10502 = vunpack.c.l.b16 %v8843
    %v10503 = vunpack.c.l.b16 %v8844
    %v10504 = vunpack.c.h.b16 %v8844
    %v10505 = vunpack.c.l.b16 %v8845
    %v10506 = vunpack.c.l.b16 %v8846
    %v10507 = vunpack.c.h.b16 %v8846
    %v10508 = vunpack.c.l.b16 %v8847
    %v10509 = vunpack.c.l.b16 %v8848
    %v10510 = vunpack.c.h.b16 %v8848
    %v10511 = vunpack.c.l.b16 %v8849
    %v10512 = vunpack.c.l.b16 %v8850
    %v10513 = vunpack.c.h.b16 %v8850
    %v10514 = vunpack.c.l.b16 %v8851
    %v10515 = vunpack.c.l.b16 %v8852
    %v10516 = vunpack.c.h.b16 %v8852
    %v10517 = vunpack.c.l.b16 %v8853
    %v10518 = vunpack.c.l.b16 %v8854
    %v10519 = vunpack.c.h.b16 %v8854
    %v10520 = vunpack.c.l.b16 %v8855
    %v10521 = vunpack.c.l.b16 %v8856
    %v10522 = vunpack.c.h.b16 %v8856
    %v10523 = vunpack.c.l.b16 %v8857
    %v10524 = vunpack.c.l.b16 %v8858
    %v10525 = vunpack.c.h.b16 %v8858
    %v10526 = vunpack.c.l.b16 %v8859
    %v10527 = vunpack.c.l.b16 %v8860
    %v10528 = vunpack.c.h.b16 %v8860
    %v10529 = vunpack.c.l.b16 %v8861
    %v10530 = vunpack.c.l.b16 %v8862
    %v10531 = vunpack.c.h.b16 %v8862
    %v10532 = vunpack.c.l.b16 %v8863
    %v10533 = vunpack.c.l.b16 %v8864
    %v10534 = vunpack.c.h.b16 %v8864
    %v10535 = vunpack.c.l.b16 %v8865
    %v10536 = vunpack.c.l.b16 %v8866
    %v10537 = vunpack.c.h.b16 %v8866
    %v10538 = vunpack.c.l.b16 %v8867
    %v10539 = vunpack.c.l.b16 %v8868
    %v10540 = vunpack.c.h.b16 %v8868
    %v10541 = vunpack.c.l.b16 %v8869
    %v10542 = vunpack.c.l.b16 %v8870
    %v10543 = vunpack.c.h.b16 %v8870
    %v10544 = vunpack.c.l.b16 %v8871
    %v10545 = vunpack.c.l.b16 %v8872
    %v10546 = vunpack.c.h.b16 %v8872
    %v10547 = vunpack.c.l.b16 %v8873
    %v10548 = vunpack.c.l.b16 %v8874
    %v10549 = vunpack.c.h.b16 %v8874
    %v10550 = vunpack.c.l.b16 %v8875
    %v10551 = vunpack.c.l.b16 %v8876
    %v10552 = vunpack.c.h.b16 %v8876
    %v10553 = vunpack.c.l.b16 %v8877
    %v10554 = vunpack.c.l.b16 %v8878
    %v10555 = vunpack.c.h.b16 %v8878
    %v10556 = vunpack.c.l.b16 %v8879
    %v10557 = vunpack.c.l.b16 %v8880
    %v10558 = vunpack.c.h.b16 %v8880
    %v10559 = vunpack.c.l.b16 %v8881
    %v10560 = vunpack.c.l.b16 %v8882
    %v10561 = vunpack.c.h.b16 %v8882
    %v10562 = vunpack.c.l.b16 %v8883
    %v10563 = vunpack.c.l.b16 %v8884
    %v10564 = vunpack.c.h.b16 %v8884
    %v10565 = vunpack.c.l.b16 %v8885
    %v10566 = vunpack.c.l.b16 %v8886
    %v10567 = vunpack.c.h.b16 %v8886
    %v10568 = vunpack.c.l.b16 %v8887
    %v10569 = vunpack.c.l.b16 %v8888
    %v10570 = vunpack.c.h.b16 %v8888
    %v10571 = vunpack.c.l.b16 %v8889
    %v10572 = vunpack.c.l.b16 %v8890
    %v10573 = vunpack.c.h.b16 %v8890
    %v10574 = vunpack.c.l.b16 %v8891
    %v10575 = vunpack.c.l.b16 %v8892
    %v10576 = vunpack.c.h.b16 %v8892
    %v10577 = vunpack.c.l.b16 %v8893
    %v10578 = vunpack.c.l.b16 %v8894
    %v10579 = vunpack.c.h.b16 %v8894
    %v10580 = vunpack.c.l.b16 %v8895
    %v10581 = vunpack.c.l.b16 %v8896
    %v10582 = vunpack.c.h.b16 %v8896
    %v10583 = vunpack.c.l.b16 %v8897
    %v10584 = vunpack.c.l.b16 %v8898
    %v10585 = vunpack.c.h.b16 %v8898
    %v10586 = vunpack.c.l.b16 %v8899
    %v10587 = vunpack.c.l.b16 %v8900
    %v10588 = vunpack.c.h.b16 %v8900
    %v10589 = vunpack.c.l.b16 %v8901
    %v10590 = vunpack.c.l.b16 %v8902
    %v10591 = vunpack.c.h.b16 %v8902
    %v10592 = vunpack.c.l.b16 %v8903
    %v10593 = vunpack.c.l.b16 %v8904
    %v10594 = vunpack.c.h.b16 %v8904
    %v10595 = vunpack.c.l.b16 %v8905
    %v10596 = vunpack.c.l.b16 %v8906
    %v10597 = vunpack.c.h.b16 %v8906
    %v10598 = vunpack.c.l.b16 %v8907
    %v10599 = vunpack.c.l.b16 %v8908
    %v10600 = vunpack.c.h.b16 %v8908
    %v10601 = vunpack.c.l.b16 %v8909
    %v10602 = vunpack.c.l.b16 %v8910
    %v10603 = vunpack.c.h.b16 %v8910
    %v10604 = vunpack.c.l.b16 %v8911
    %v10605 = vunpack.c.l.b16 %v8912
    %v10606 = vunpack.c.h.b16 %v8912
    %v10607 = vunpack.c.l.b16 %v8913
    %v10608 = vunpack.c.l.b16 %v8914
    %v10609 = vunpack.c.h.b16 %v8914
    %v10610 = vunpack.c.l.b16 %v8915
    %v10611 = vunpack.c.l.b16 %v8916
    %v10612 = vunpack.c.h.b16 %v8916
    %v10613 = vunpack.c.l.b16 %v8917
    %v10614 = vunpack.c.l.b16 %v8918
    %v10615 = vunpack.c.h.b16 %v8918
    %v10616 = vunpack.c.l.b16 %v8919
    %v10617 = vunpack.c.l.b16 %v8920
    %v10618 = vunpack.c.h.b16 %v8920
    %v10619 = vunpack.c.l.b16 %v8921
    %v10620 = vunpack.c.l.b16 %v8922
    %v10621 = vunpack.c.h.b16 %v8922
    %v10622 = vunpack.c.l.b16 %v8923
    %v10623 = vunpack.c.l.b16 %v8924
    %v10624 = vunpack.c.h.b16 %v8924
    %v10625 = vunpack.c.l.b16 %v8925
    %v10626 = vunpack.c.l.b16 %v8926
    %v10627 = vunpack.c.h.b16 %v8926
    %v10628 = vunpack.c.l.b16 %v8927
    %v10629 = vunpack.c.l.b16 %v8928
    %v10630 = vunpack.c.h.b16 %v8928
    %v10631 = vunpack.c.l.b16 %v8929
    %v10632 = vunpack.c.l.b16 %v8930
    %v10633 = vunpack.c.h.b16 %v8930
    %v10634 = vunpack.c.l.b16 %v8931
    %v10635 = vunpack.c.l.b16 %v8932
    %v10636 = vunpack.c.h.b16 %v8932
    %v10637 = vunpack.c.l.b16 %v8933
    %v10638 = vunpack.c.l.b16 %v8934
    %v10639 = vunpack.c.h.b16 %v8934
    %v10640 = vunpack.c.l.b16 %v8935
    %v10641 = vunpack.c.l.b16 %v8936
    %v10642 = vunpack.c.h.b16 %v8936
    %v10643 = vunpack.c.l.b16 %v8937
    %v10644 = vunpack.c.l.b16 %v8938
    %v10645 = vunpack.c.h.b16 %v8938
    %v10646 = vunpack.c.l.b16 %v8939
    %v10647 = vunpack.c.l.b16 %v8940
    %v10648 = vunpack.c.h.b16 %v8940
    %v10649 = vunpack.c.l.b16 %v8941
    %v10650 = vpack.c.b16 %v10461, %v10458
    %v10651 = vpack.c.b16 %v10462, %v10459
    %v10652 = vpack.c.b16 %v10463, %v10460
    %v10653 = vpack.c.b16 %v10467, %v10464
    %v10654 = vpack.c.b16 %v10468, %v10465
    %v10655 = vpack.c.b16 %v10469, %v10466
    %v10656 = vpack.c.b16 %v10473, %v10470
    %v10657 = vpack.c.b16 %v10474, %v10471
    %v10658 = vpack.c.b16 %v10475, %v10472
    %v10659 = vpack.c.b16 %v10479, %v10476
    %v10660 = vpack.c.b16 %v10480, %v10477
    %v10661 = vpack.c.b16 %v10481, %v10478
    %v10662 = vpack.c.b16 %v10485, %v10482
    %v10663 = vpack.c.b16 %v10486, %v10483
    %v10664 = vpack.c.b16 %v10487, %v10484
    %v10665 = vpack.c.b16 %v10491, %v10488
    %v10666 = vpack.c.b16 %v10492, %v10489
    %v10667 = vpack.c.b16 %v10493, %v10490
    %v10668 = vpack.c.b16 %v10497, %v10494
    %v10669 = vpack.c.b16 %v10498, %v10495
    %v10670 = vpack.c.b16 %v10499, %v10496
    %v10671 = vpack.c.b16 %v10503, %v10500
    %v10672 = vpack.c.b16 %v10504, %v10501
    %v10673 = vpack.c.b16 %v10505, %v10502
    %v10674 = vpack.c.b16 %v10509, %v10506
    %v10675 = vpack.c.b16 %v10510, %v10507
    %v10676 = vpack.c.b16 %v10511, %v10508
    %v10677 = vpack.c.b16 %v10515, %v10512
    %v10678 = vpack.c.b16 %v10516, %v10513
    %v10679 = vpack.c.b16 %v10517, %v10514
    %v10680 = vpack.c.b16 %v10521, %v10518
    %v10681 = vpack.c.b16 %v10522, %v10519
    %v10682 = vpack.c.b16 %v10523, %v10520
    %v10683 = vpack.c.b16 %v10527, %v10524
    %v10684 = vpack.c.b16 %v10528, %v10525
    %v10685 = vpack.c.b16 %v10529, %v10526
    %v10686 = vpack.c.b16 %v10533, %v10530
    %v10687 = vpack.c.b16 %v10534, %v10531
    %v10688 = vpack.c.b16 %v10535, %v10532
    %v10689 = vpack.c.b16 %v10539, %v10536
    %v10690 = vpack.c.b16 %v10540, %v10537
    %v10691 = vpack.c.b16 %v10541, %v10538
    %v10692 = vpack.c.b16 %v10545, %v10542
    %v10693 = vpack.c.b16 %v10546, %v10543
    %v10694 = vpack.c.b16 %v10547, %v10544
    %v10695 = vpack.c.b16 %v10551, %v10548
    %v10696 = vpack.c.b16 %v10552, %v10549
    %v10697 = vpack.c.b16 %v10553, %v10550
    %v10698 = vpack.c.b16 %v10557, %v10554
    %v10699 = vpack.c.b16 %v10558, %v10555
    %v10700 = vpack.c.b16 %v10559, %v10556
    %v10701 = vpack.c.b16 %v10563, %v10560
    %v10702 = vpack.c.b16 %v10564, %v10561
    %v10703 = vpack.c.b16 %v10565, %v10562
    %v10704 = vpack.c.b16 %v10569, %v10566
    %v10705 = vpack.c.b16 %v10570, %v10567
    %v10706 = vpack.c.b16 %v10571, %v10568
    %v10707 = vpack.c.b16 %v10575, %v10572
    %v10708 = vpack.c.b16 %v10576, %v10573
    %v10709 = vpack.c.b16 %v10577, %v10574
    %v10710 = vpack.c.b16 %v10581, %v10578
    %v10711 = vpack.c.b16 %v10582, %v10579
    %v10712 = vpack.c.b16 %v10583, %v10580
    %v10713 = vpack.c.b16 %v10587, %v10584
    %v10714 = vpack.c.b16 %v10588, %v10585
    %v10715 = vpack.c.b16 %v10589, %v10586
    %v10716 = vpack.c.b16 %v10593, %v10590
    %v10717 = vpack.c.b16 %v10594, %v10591
    %v10718 = vpack.c.b16 %v10595, %v10592
    %v10719 = vpack.c.b16 %v10599, %v10596
    %v10720 = vpack.c.b16 %v10600, %v10597
    %v10721 = vpack.c.b16 %v10601, %v10598
    %v10722 = vpack.c.b16 %v10605, %v10602
    %v10723 = vpack.c.b16 %v10606, %v10603
    %v10724 = vpack.c.b16 %v10607, %v10604
    %v10725 = vpack.c.b16 %v10611, %v10608
    %v10726 = vpack.c.b16 %v10612, %v10609
    %v10727 = vpack.c.b16 %v10613, %v10610
    %v10728 = vpack.c.b16 %v10617, %v10614
    %v10729 = vpack.c.b16 %v10618, %v10615
    %v10730 = vpack.c.b16 %v10619, %v10616
    %v10731 = vpack.c.b16 %v10623, %v10620
    %v10732 = vpack.c.b16 %v10624, %v10621
    %v10733 = vpack.c.b16 %v10625, %v10622
    %v10734 = vpack.c.b16 %v10629, %v10626
    %v10735 = vpack.c.b16 %v10630, %v10627
    %v10736 = vpack.c.b16 %v10631, %v10628
    %v10737 = vpack.c.b16 %v10635, %v10632
    %v10738 = vpack.c.b16 %v10636, %v10633
    %v10739 = vpack.c.b16 %v10637, %v10634
    %v10740 = vpack.c.b16 %v10641, %v10638
    %v10741 = vpack.c.b16 %v10642, %v10639
    %v10742 = vpack.c.b16 %v10643, %v10640
    %v10743 = vpack.c.b16 %v10647, %v10644
    %v10744 = vpack.c.b16 %v10648, %v10645
    %v10745 = vpack.c.b16 %v10649, %v10646
    %v10890 = vunpack.c.l.b16 %v8942
    %v10891 = vunpack.c.l.b16 %v8943
    %v10892 = vunpack.c.l.b16 %v8944
    %v10893 = vunpack.c.l.b16 %v8945
    %v10894 = vunpack.c.l.b16 %v8946
    %v10895 = vunpack.c.l.b16 %v8947
    %v10896 = vunpack.c.l.b16 %v8948
    %v10897 = vunpack.c.l.b16 %v8949
    %v10898 = vunpack.c.l.b16 %v8950
    %v10899 = vunpack.c.l.b16 %v8951
    %v10900 = vunpack.c.l.b16 %v8952
    %v10901 = vunpack.c.l.b16 %v8953
    %v10902 = vunpack.c.l.b16 %v8954
    %v10903 = vunpack.c.l.b16 %v8955
    %v10904 = vunpack.c.l.b16 %v8956
    %v10905 = vunpack.c.l.b16 %v8957
    %v10906 = vunpack.c.l.b16 %v8958
    %v10907 = vunpack.c.l.b16 %v8959
    %v10908 = vunpack.c.l.b16 %v8960
    %v10909 = vunpack.c.l.b16 %v8961
    %v10910 = vunpack.c.l.b16 %v8962
    %v10911 = vunpack.c.l.b16 %v8963
    %v10912 = vunpack.c.l.b16 %v8964
    %v10913 = vunpack.c.l.b16 %v8965
    %v10914 = vunpack.c.l.b16 %v8966
    %v10915 = vunpack.c.l.b16 %v8967
    %v10916 = vunpack.c.l.b16 %v8968
    %v10917 = vunpack.c.l.b16 %v8969
    %v10918 = vunpack.c.l.b16 %v8970
    %v10919 = vunpack.c.l.b16 %v8971
    %v10920 = vunpack.c.l.b16 %v8972
    %v10921 = vunpack.c.l.b16 %v8973
    %v10922 = vunpack.c.l.b16 %v8974
    %v10923 = vunpack.c.l.b16 %v8975
    %v10924 = vunpack.c.l.b16 %v8976
    %v10925 = vunpack.c.l.b16 %v8977
    %v10926 = vunpack.c.l.b16 %v8978
    %v10927 = vunpack.c.l.b16 %v8979
    %v10928 = vunpack.c.l.b16 %v8980
    %v10929 = vunpack.c.l.b16 %v8981
    %v10930 = vunpack.c.l.b16 %v8982
    %v10931 = vunpack.c.l.b16 %v8983
    %v10932 = vunpack.c.l.b16 %v8984
    %v10933 = vunpack.c.l.b16 %v8985
    %v10934 = vunpack.c.l.b16 %v8986
    %v10935 = vunpack.c.l.b16 %v8987
    %v10936 = vunpack.c.l.b16 %v8988
    %v10937 = vunpack.c.l.b16 %v8989
    %v10938 = vpack.c.b16 %v10891, %v10890
    %v10939 = vpack.c.b16 %v10893, %v10892
    %v10940 = vpack.c.b16 %v10895, %v10894
    %v10941 = vpack.c.b16 %v10897, %v10896
    %v10942 = vpack.c.b16 %v10899, %v10898
    %v10943 = vpack.c.b16 %v10901, %v10900
    %v10944 = vpack.c.b16 %v10903, %v10902
    %v10945 = vpack.c.b16 %v10905, %v10904
    %v10946 = vpack.c.b16 %v10907, %v10906
    %v10947 = vpack.c.b16 %v10909, %v10908
    %v10948 = vpack.c.b16 %v10911, %v10910
    %v10949 = vpack.c.b16 %v10913, %v10912
    %v10950 = vpack.c.b16 %v10915, %v10914
    %v10951 = vpack.c.b16 %v10917, %v10916
    %v10952 = vpack.c.b16 %v10919, %v10918
    %v10953 = vpack.c.b16 %v10921, %v10920
    %v10954 = vpack.c.b16 %v10923, %v10922
    %v10955 = vpack.c.b16 %v10925, %v10924
    %v10956 = vpack.c.b16 %v10927, %v10926
    %v10957 = vpack.c.b16 %v10929, %v10928
    %v10958 = vpack.c.b16 %v10931, %v10930
    %v10959 = vpack.c.b16 %v10933, %v10932
    %v10960 = vpack.c.b16 %v10935, %v10934
    %v10961 = vpack.c.b16 %v10937, %v10936
    %10986 = vmatpush.bf16.msra.mxu0 %v10945
    %10987 = vmatpush.bf16.msra.mxu0 %v10944
    %10988 = vmatpush.bf16.msra.mxu0 %v10943
    %10989 = vmatpush.bf16.msra.mxu0 %v10942
    %10990 = vmatpush.bf16.msra.mxu0 %v10941
    %10991 = vmatpush.bf16.msra.mxu0 %v10940
    %10992 = vmatpush.bf16.msra.mxu0 %v10939
    %10993 = vmatpush.bf16.msra.mxu0 %v10938
    %10994 = vmatmul.bf16.gmra.mxu0 %v10650
    %v10995 = vpop.f32.mrf.mxu0
    %v10996 = vadd.f32 %v10171, %v10995
    %v10997 = vpop.f32.mrf.mxu0
    %v10998 = vadd.f32 %v10173, %v10997
    %10999 = vmatmul.bf16.gmra.mxu0 %v10653
    %v11000 = vpop.f32.mrf.mxu0
    %v11001 = vadd.f32 %v10176, %v11000
    %v11002 = vpop.f32.mrf.mxu0
    %v11003 = vadd.f32 %v10178, %v11002
    %11004 = vmatmul.bf16.gmra.mxu0 %v10656
    %v11005 = vpop.f32.mrf.mxu0
    %v11006 = vadd.f32 %v10181, %v11005
    %v11007 = vpop.f32.mrf.mxu0
    %v11008 = vadd.f32 %v10183, %v11007
    %11009 = vmatmul.bf16.gmra.mxu0 %v10659
    %v11010 = vpop.f32.mrf.mxu0
    %v11011 = vadd.f32 %v10186, %v11010
    %v11012 = vpop.f32.mrf.mxu0
    %v11013 = vadd.f32 %v10188, %v11012
    %11014 = vmatmul.bf16.gmra.mxu0 %v10662
    %v11015 = vpop.f32.mrf.mxu0
    %v11016 = vadd.f32 %v10191, %v11015
    %v11017 = vpop.f32.mrf.mxu0
    %v11018 = vadd.f32 %v10193, %v11017
    %11019 = vmatmul.bf16.gmra.mxu0 %v10665
    %v11020 = vpop.f32.mrf.mxu0
    %v11021 = vadd.f32 %v10196, %v11020
    %v11022 = vpop.f32.mrf.mxu0
    %v11023 = vadd.f32 %v10198, %v11022
    %11024 = vmatmul.bf16.gmra.mxu0 %v10668
    %v11025 = vpop.f32.mrf.mxu0
    %v11026 = vadd.f32 %v10201, %v11025
    %v11027 = vpop.f32.mrf.mxu0
    %v11028 = vadd.f32 %v10203, %v11027
    %11029 = vmatmul.bf16.gmra.mxu0 %v10671
    %v11030 = vpop.f32.mrf.mxu0
    %v11031 = vadd.f32 %v10206, %v11030
    %v11032 = vpop.f32.mrf.mxu0
    %v11033 = vadd.f32 %v10208, %v11032
    %11034 = vmatmul.bf16.gmra.mxu0 %v10674
    %v11035 = vpop.f32.mrf.mxu0
    %v11036 = vadd.f32 %v10211, %v11035
    %v11037 = vpop.f32.mrf.mxu0
    %v11038 = vadd.f32 %v10213, %v11037
    %11039 = vmatmul.bf16.gmra.mxu0 %v10677
    %v11040 = vpop.f32.mrf.mxu0
    %v11041 = vadd.f32 %v10216, %v11040
    %v11042 = vpop.f32.mrf.mxu0
    %v11043 = vadd.f32 %v10218, %v11042
    %11044 = vmatmul.bf16.gmra.mxu0 %v10680
    %v11045 = vpop.f32.mrf.mxu0
    %v11046 = vadd.f32 %v10221, %v11045
    %v11047 = vpop.f32.mrf.mxu0
    %v11048 = vadd.f32 %v10223, %v11047
    %11049 = vmatmul.bf16.gmra.mxu0 %v10683
    %v11050 = vpop.f32.mrf.mxu0
    %v11051 = vadd.f32 %v10226, %v11050
    %v11052 = vpop.f32.mrf.mxu0
    %v11053 = vadd.f32 %v10228, %v11052
    %11054 = vmatmul.bf16.gmra.mxu0 %v10686
    %v11055 = vpop.f32.mrf.mxu0
    %v11056 = vadd.f32 %v10231, %v11055
    %v11057 = vpop.f32.mrf.mxu0
    %v11058 = vadd.f32 %v10233, %v11057
    %11059 = vmatmul.bf16.gmra.mxu0 %v10689
    %v11060 = vpop.f32.mrf.mxu0
    %v11061 = vadd.f32 %v10236, %v11060
    %v11062 = vpop.f32.mrf.mxu0
    %v11063 = vadd.f32 %v10238, %v11062
    %11064 = vmatmul.bf16.gmra.mxu0 %v10692
    %v11065 = vpop.f32.mrf.mxu0
    %v11066 = vadd.f32 %v10241, %v11065
    %v11067 = vpop.f32.mrf.mxu0
    %v11068 = vadd.f32 %v10243, %v11067
    %11069 = vmatmul.bf16.gmra.mxu0 %v10695
    %v11070 = vpop.f32.mrf.mxu0
    %v11071 = vadd.f32 %v10246, %v11070
    %v11072 = vpop.f32.mrf.mxu0
    %v11073 = vadd.f32 %v10248, %v11072
    %11074 = vmatmul.bf16.gmra.mxu0 %v10698
    %v11075 = vpop.f32.mrf.mxu0
    %v11076 = vadd.f32 %v10251, %v11075
    %v11077 = vpop.f32.mrf.mxu0
    %v11078 = vadd.f32 %v10253, %v11077
    %11079 = vmatmul.bf16.gmra.mxu0 %v10701
    %v11080 = vpop.f32.mrf.mxu0
    %v11081 = vadd.f32 %v10256, %v11080
    %v11082 = vpop.f32.mrf.mxu0
    %v11083 = vadd.f32 %v10258, %v11082
    %11084 = vmatmul.bf16.gmra.mxu0 %v10704
    %v11085 = vpop.f32.mrf.mxu0
    %v11086 = vadd.f32 %v10261, %v11085
    %v11087 = vpop.f32.mrf.mxu0
    %v11088 = vadd.f32 %v10263, %v11087
    %11089 = vmatmul.bf16.gmra.mxu0 %v10707
    %v11090 = vpop.f32.mrf.mxu0
    %v11091 = vadd.f32 %v10266, %v11090
    %v11092 = vpop.f32.mrf.mxu0
    %v11093 = vadd.f32 %v10268, %v11092
    %11094 = vmatmul.bf16.gmra.mxu0 %v10710
    %v11095 = vpop.f32.mrf.mxu0
    %v11096 = vadd.f32 %v10271, %v11095
    %v11097 = vpop.f32.mrf.mxu0
    %v11098 = vadd.f32 %v10273, %v11097
    %11099 = vmatmul.bf16.gmra.mxu0 %v10713
    %v11100 = vpop.f32.mrf.mxu0
    %v11101 = vadd.f32 %v10276, %v11100
    %v11102 = vpop.f32.mrf.mxu0
    %v11103 = vadd.f32 %v10278, %v11102
    %11104 = vmatmul.bf16.gmra.mxu0 %v10716
    %v11105 = vpop.f32.mrf.mxu0
    %v11106 = vadd.f32 %v10281, %v11105
    %v11107 = vpop.f32.mrf.mxu0
    %v11108 = vadd.f32 %v10283, %v11107
    %11109 = vmatmul.bf16.gmra.mxu0 %v10719
    %v11110 = vpop.f32.mrf.mxu0
    %v11111 = vadd.f32 %v10286, %v11110
    %v11112 = vpop.f32.mrf.mxu0
    %v11113 = vadd.f32 %v10288, %v11112
    %11114 = vmatmul.bf16.gmra.mxu0 %v10722
    %v11115 = vpop.f32.mrf.mxu0
    %v11116 = vadd.f32 %v10291, %v11115
    %v11117 = vpop.f32.mrf.mxu0
    %v11118 = vadd.f32 %v10293, %v11117
    %11119 = vmatmul.bf16.gmra.mxu0 %v10725
    %v11120 = vpop.f32.mrf.mxu0
    %v11121 = vadd.f32 %v10296, %v11120
    %v11122 = vpop.f32.mrf.mxu0
    %v11123 = vadd.f32 %v10298, %v11122
    %11124 = vmatmul.bf16.gmra.mxu0 %v10728
    %v11125 = vpop.f32.mrf.mxu0
    %v11126 = vadd.f32 %v10301, %v11125
    %v11127 = vpop.f32.mrf.mxu0
    %v11128 = vadd.f32 %v10303, %v11127
    %11129 = vmatmul.bf16.gmra.mxu0 %v10731
    %v11130 = vpop.f32.mrf.mxu0
    %v11131 = vadd.f32 %v10306, %v11130
    %v11132 = vpop.f32.mrf.mxu0
    %v11133 = vadd.f32 %v10308, %v11132
    %11134 = vmatmul.bf16.gmra.mxu0 %v10734
    %v11135 = vpop.f32.mrf.mxu0
    %v11136 = vadd.f32 %v10311, %v11135
    %v11137 = vpop.f32.mrf.mxu0
    %v11138 = vadd.f32 %v10313, %v11137
    %11139 = vmatmul.bf16.gmra.mxu0 %v10737
    %v11140 = vpop.f32.mrf.mxu0
    %v11141 = vadd.f32 %v10316, %v11140
    %v11142 = vpop.f32.mrf.mxu0
    %v11143 = vadd.f32 %v10318, %v11142
    %11144 = vmatmul.bf16.gmra.mxu0 %v10740
    %v11145 = vpop.f32.mrf.mxu0
    %v11146 = vadd.f32 %v10321, %v11145
    %v11147 = vpop.f32.mrf.mxu0
    %v11148 = vadd.f32 %v10323, %v11147
    %11149 = vmatmul.bf16.gmra.mxu0 %v10743
    %v11150 = vpop.f32.mrf.mxu0
    %v11151 = vadd.f32 %v10326, %v11150
    %v11152 = vpop.f32.mrf.mxu0
    %v11153 = vadd.f32 %v10328, %v11152
    %11154 = vdwg.mxu0
    %11155 = vmatpush.bf16.msra.mxu0 %v10953
    %11156 = vmatpush.bf16.msra.mxu0 %v10952
    %11157 = vmatpush.bf16.msra.mxu0 %v10951
    %11158 = vmatpush.bf16.msra.mxu0 %v10950
    %11159 = vmatpush.bf16.msra.mxu0 %v10949
    %11160 = vmatpush.bf16.msra.mxu0 %v10948
    %11161 = vmatpush.bf16.msra.mxu0 %v10947
    %11162 = vmatpush.bf16.msra.mxu0 %v10946
    %11163 = vmatmul.bf16.gmra.mxu0 %v10651
    %v11164 = vpop.f32.mrf.mxu0
    %v11165 = vadd.f32 %v10996, %v11164
    %v11166 = vpop.f32.mrf.mxu0
    %v11167 = vadd.f32 %v10998, %v11166
    %11168 = vmatmul.bf16.gmra.mxu0 %v10654
    %v11169 = vpop.f32.mrf.mxu0
    %v11170 = vadd.f32 %v11001, %v11169
    %v11171 = vpop.f32.mrf.mxu0
    %v11172 = vadd.f32 %v11003, %v11171
    %11173 = vmatmul.bf16.gmra.mxu0 %v10657
    %v11174 = vpop.f32.mrf.mxu0
    %v11175 = vadd.f32 %v11006, %v11174
    %v11176 = vpop.f32.mrf.mxu0
    %v11177 = vadd.f32 %v11008, %v11176
    %11178 = vmatmul.bf16.gmra.mxu0 %v10660
    %v11179 = vpop.f32.mrf.mxu0
    %v11180 = vadd.f32 %v11011, %v11179
    %v11181 = vpop.f32.mrf.mxu0
    %v11182 = vadd.f32 %v11013, %v11181
    %11183 = vmatmul.bf16.gmra.mxu0 %v10663
    %v11184 = vpop.f32.mrf.mxu0
    %v11185 = vadd.f32 %v11016, %v11184
    %v11186 = vpop.f32.mrf.mxu0
    %v11187 = vadd.f32 %v11018, %v11186
    %11188 = vmatmul.bf16.gmra.mxu0 %v10666
    %v11189 = vpop.f32.mrf.mxu0
    %v11190 = vadd.f32 %v11021, %v11189
    %v11191 = vpop.f32.mrf.mxu0
    %v11192 = vadd.f32 %v11023, %v11191
    %11193 = vmatmul.bf16.gmra.mxu0 %v10669
    %v11194 = vpop.f32.mrf.mxu0
    %v11195 = vadd.f32 %v11026, %v11194
    %v11196 = vpop.f32.mrf.mxu0
    %v11197 = vadd.f32 %v11028, %v11196
    %11198 = vmatmul.bf16.gmra.mxu0 %v10672
    %v11199 = vpop.f32.mrf.mxu0
    %v11200 = vadd.f32 %v11031, %v11199
    %v11201 = vpop.f32.mrf.mxu0
    %v11202 = vadd.f32 %v11033, %v11201
    %11203 = vmatmul.bf16.gmra.mxu0 %v10675
    %v11204 = vpop.f32.mrf.mxu0
    %v11205 = vadd.f32 %v11036, %v11204
    %v11206 = vpop.f32.mrf.mxu0
    %v11207 = vadd.f32 %v11038, %v11206
    %11208 = vmatmul.bf16.gmra.mxu0 %v10678
    %v11209 = vpop.f32.mrf.mxu0
    %v11210 = vadd.f32 %v11041, %v11209
    %v11211 = vpop.f32.mrf.mxu0
    %v11212 = vadd.f32 %v11043, %v11211
    %11213 = vmatmul.bf16.gmra.mxu0 %v10681
    %v11214 = vpop.f32.mrf.mxu0
    %v11215 = vadd.f32 %v11046, %v11214
    %v11216 = vpop.f32.mrf.mxu0
    %v11217 = vadd.f32 %v11048, %v11216
    %11218 = vmatmul.bf16.gmra.mxu0 %v10684
    %v11219 = vpop.f32.mrf.mxu0
    %v11220 = vadd.f32 %v11051, %v11219
    %v11221 = vpop.f32.mrf.mxu0
    %v11222 = vadd.f32 %v11053, %v11221
    %11223 = vmatmul.bf16.gmra.mxu0 %v10687
    %v11224 = vpop.f32.mrf.mxu0
    %v11225 = vadd.f32 %v11056, %v11224
    %v11226 = vpop.f32.mrf.mxu0
    %v11227 = vadd.f32 %v11058, %v11226
    %11228 = vmatmul.bf16.gmra.mxu0 %v10690
    %v11229 = vpop.f32.mrf.mxu0
    %v11230 = vadd.f32 %v11061, %v11229
    %v11231 = vpop.f32.mrf.mxu0
    %v11232 = vadd.f32 %v11063, %v11231
    %11233 = vmatmul.bf16.gmra.mxu0 %v10693
    %v11234 = vpop.f32.mrf.mxu0
    %v11235 = vadd.f32 %v11066, %v11234
    %v11236 = vpop.f32.mrf.mxu0
    %v11237 = vadd.f32 %v11068, %v11236
    %11238 = vmatmul.bf16.gmra.mxu0 %v10696
    %v11239 = vpop.f32.mrf.mxu0
    %v11240 = vadd.f32 %v11071, %v11239
    %v11241 = vpop.f32.mrf.mxu0
    %v11242 = vadd.f32 %v11073, %v11241
    %11243 = vmatmul.bf16.gmra.mxu0 %v10699
    %v11244 = vpop.f32.mrf.mxu0
    %v11245 = vadd.f32 %v11076, %v11244
    %v11246 = vpop.f32.mrf.mxu0
    %v11247 = vadd.f32 %v11078, %v11246
    %11248 = vmatmul.bf16.gmra.mxu0 %v10702
    %v11249 = vpop.f32.mrf.mxu0
    %v11250 = vadd.f32 %v11081, %v11249
    %v11251 = vpop.f32.mrf.mxu0
    %v11252 = vadd.f32 %v11083, %v11251
    %11253 = vmatmul.bf16.gmra.mxu0 %v10705
    %v11254 = vpop.f32.mrf.mxu0
    %v11255 = vadd.f32 %v11086, %v11254
    %v11256 = vpop.f32.mrf.mxu0
    %v11257 = vadd.f32 %v11088, %v11256
    %11258 = vmatmul.bf16.gmra.mxu0 %v10708
    %v11259 = vpop.f32.mrf.mxu0
    %v11260 = vadd.f32 %v11091, %v11259
    %v11261 = vpop.f32.mrf.mxu0
    %v11262 = vadd.f32 %v11093, %v11261
    %11263 = vmatmul.bf16.gmra.mxu0 %v10711
    %v11264 = vpop.f32.mrf.mxu0
    %v11265 = vadd.f32 %v11096, %v11264
    %v11266 = vpop.f32.mrf.mxu0
    %v11267 = vadd.f32 %v11098, %v11266
    %11268 = vmatmul.bf16.gmra.mxu0 %v10714
    %v11269 = vpop.f32.mrf.mxu0
    %v11270 = vadd.f32 %v11101, %v11269
    %v11271 = vpop.f32.mrf.mxu0
    %v11272 = vadd.f32 %v11103, %v11271
    %11273 = vmatmul.bf16.gmra.mxu0 %v10717
    %v11274 = vpop.f32.mrf.mxu0
    %v11275 = vadd.f32 %v11106, %v11274
    %v11276 = vpop.f32.mrf.mxu0
    %v11277 = vadd.f32 %v11108, %v11276
    %11278 = vmatmul.bf16.gmra.mxu0 %v10720
    %v11279 = vpop.f32.mrf.mxu0
    %v11280 = vadd.f32 %v11111, %v11279
    %v11281 = vpop.f32.mrf.mxu0
    %v11282 = vadd.f32 %v11113, %v11281
    %11283 = vmatmul.bf16.gmra.mxu0 %v10723
    %v11284 = vpop.f32.mrf.mxu0
    %v11285 = vadd.f32 %v11116, %v11284
    %v11286 = vpop.f32.mrf.mxu0
    %v11287 = vadd.f32 %v11118, %v11286
    %11288 = vmatmul.bf16.gmra.mxu0 %v10726
    %v11289 = vpop.f32.mrf.mxu0
    %v11290 = vadd.f32 %v11121, %v11289
    %v11291 = vpop.f32.mrf.mxu0
    %v11292 = vadd.f32 %v11123, %v11291
    %11293 = vmatmul.bf16.gmra.mxu0 %v10729
    %v11294 = vpop.f32.mrf.mxu0
    %v11295 = vadd.f32 %v11126, %v11294
    %v11296 = vpop.f32.mrf.mxu0
    %v11297 = vadd.f32 %v11128, %v11296
    %11298 = vmatmul.bf16.gmra.mxu0 %v10732
    %v11299 = vpop.f32.mrf.mxu0
    %v11300 = vadd.f32 %v11131, %v11299
    %v11301 = vpop.f32.mrf.mxu0
    %v11302 = vadd.f32 %v11133, %v11301
    %11303 = vmatmul.bf16.gmra.mxu0 %v10735
    %v11304 = vpop.f32.mrf.mxu0
    %v11305 = vadd.f32 %v11136, %v11304
    %v11306 = vpop.f32.mrf.mxu0
    %v11307 = vadd.f32 %v11138, %v11306
    %11308 = vmatmul.bf16.gmra.mxu0 %v10738
    %v11309 = vpop.f32.mrf.mxu0
    %v11310 = vadd.f32 %v11141, %v11309
    %v11311 = vpop.f32.mrf.mxu0
    %v11312 = vadd.f32 %v11143, %v11311
    %11313 = vmatmul.bf16.gmra.mxu0 %v10741
    %v11314 = vpop.f32.mrf.mxu0
    %v11315 = vadd.f32 %v11146, %v11314
    %v11316 = vpop.f32.mrf.mxu0
    %v11317 = vadd.f32 %v11148, %v11316
    %11318 = vmatmul.bf16.gmra.mxu0 %v10744
    %v11319 = vpop.f32.mrf.mxu0
    %v11320 = vadd.f32 %v11151, %v11319
    %v11321 = vpop.f32.mrf.mxu0
    %v11322 = vadd.f32 %v11153, %v11321
    %11323 = vdwg.mxu0
    %11324 = vmatpush.bf16.msra.mxu0 %v10961
    %11325 = vmatpush.bf16.msra.mxu0 %v10960
    %11326 = vmatpush.bf16.msra.mxu0 %v10959
    %11327 = vmatpush.bf16.msra.mxu0 %v10958
    %11328 = vmatpush.bf16.msra.mxu0 %v10957
    %11329 = vmatpush.bf16.msra.mxu0 %v10956
    %11330 = vmatpush.bf16.msra.mxu0 %v10955
    %11331 = vmatpush.bf16.msra.mxu0 %v10954
    %11332 = vmatmul.bf16.gmra.mxu0 %v10652
    %v11333 = vpop.f32.mrf.mxu0
    %v11334 = vadd.f32 %v11165, %v11333
    %v11335 = vpop.f32.mrf.mxu0
    %v11336 = vadd.f32 %v11167, %v11335
    %11337 = vmatmul.bf16.gmra.mxu0 %v10655
    %v11338 = vpop.f32.mrf.mxu0
    %v11339 = vadd.f32 %v11170, %v11338
    %v11340 = vpop.f32.mrf.mxu0
    %v11341 = vadd.f32 %v11172, %v11340
    %11342 = vmatmul.bf16.gmra.mxu0 %v10658
    %v11343 = vpop.f32.mrf.mxu0
    %v11344 = vadd.f32 %v11175, %v11343
    %v11345 = vpop.f32.mrf.mxu0
    %v11346 = vadd.f32 %v11177, %v11345
    %11347 = vmatmul.bf16.gmra.mxu0 %v10661
    %v11348 = vpop.f32.mrf.mxu0
    %v11349 = vadd.f32 %v11180, %v11348
    %v11350 = vpop.f32.mrf.mxu0
    %v11351 = vadd.f32 %v11182, %v11350
    %11352 = vmatmul.bf16.gmra.mxu0 %v10664
    %v11353 = vpop.f32.mrf.mxu0
    %v11354 = vadd.f32 %v11185, %v11353
    %v11355 = vpop.f32.mrf.mxu0
    %v11356 = vadd.f32 %v11187, %v11355
    %11357 = vmatmul.bf16.gmra.mxu0 %v10667
    %v11358 = vpop.f32.mrf.mxu0
    %v11359 = vadd.f32 %v11190, %v11358
    %v11360 = vpop.f32.mrf.mxu0
    %v11361 = vadd.f32 %v11192, %v11360
    %11362 = vmatmul.bf16.gmra.mxu0 %v10670
    %v11363 = vpop.f32.mrf.mxu0
    %v11364 = vadd.f32 %v11195, %v11363
    %v11365 = vpop.f32.mrf.mxu0
    %v11366 = vadd.f32 %v11197, %v11365
    %11367 = vmatmul.bf16.gmra.mxu0 %v10673
    %v11368 = vpop.f32.mrf.mxu0
    %v11369 = vadd.f32 %v11200, %v11368
    %v11370 = vpop.f32.mrf.mxu0
    %v11371 = vadd.f32 %v11202, %v11370
    %11372 = vmatmul.bf16.gmra.mxu0 %v10676
    %v11373 = vpop.f32.mrf.mxu0
    %v11374 = vadd.f32 %v11205, %v11373
    %v11375 = vpop.f32.mrf.mxu0
    %v11376 = vadd.f32 %v11207, %v11375
    %11377 = vmatmul.bf16.gmra.mxu0 %v10679
    %v11378 = vpop.f32.mrf.mxu0
    %v11379 = vadd.f32 %v11210, %v11378
    %v11380 = vpop.f32.mrf.mxu0
    %v11381 = vadd.f32 %v11212, %v11380
    %11382 = vmatmul.bf16.gmra.mxu0 %v10682
    %v11383 = vpop.f32.mrf.mxu0
    %v11384 = vadd.f32 %v11215, %v11383
    %v11385 = vpop.f32.mrf.mxu0
    %v11386 = vadd.f32 %v11217, %v11385
    %11387 = vmatmul.bf16.gmra.mxu0 %v10685
    %v11388 = vpop.f32.mrf.mxu0
    %v11389 = vadd.f32 %v11220, %v11388
    %v11390 = vpop.f32.mrf.mxu0
    %v11391 = vadd.f32 %v11222, %v11390
    %11392 = vmatmul.bf16.gmra.mxu0 %v10688
    %v11393 = vpop.f32.mrf.mxu0
    %v11394 = vadd.f32 %v11225, %v11393
    %v11395 = vpop.f32.mrf.mxu0
    %v11396 = vadd.f32 %v11227, %v11395
    %11397 = vmatmul.bf16.gmra.mxu0 %v10691
    %v11398 = vpop.f32.mrf.mxu0
    %v11399 = vadd.f32 %v11230, %v11398
    %v11400 = vpop.f32.mrf.mxu0
    %v11401 = vadd.f32 %v11232, %v11400
    %11402 = vmatmul.bf16.gmra.mxu0 %v10694
    %v11403 = vpop.f32.mrf.mxu0
    %v11404 = vadd.f32 %v11235, %v11403
    %v11405 = vpop.f32.mrf.mxu0
    %v11406 = vadd.f32 %v11237, %v11405
    %11407 = vmatmul.bf16.gmra.mxu0 %v10697
    %v11408 = vpop.f32.mrf.mxu0
    %v11409 = vadd.f32 %v11240, %v11408
    %v11410 = vpop.f32.mrf.mxu0
    %v11411 = vadd.f32 %v11242, %v11410
    %11412 = vmatmul.bf16.gmra.mxu0 %v10700
    %v11413 = vpop.f32.mrf.mxu0
    %v11414 = vadd.f32 %v11245, %v11413
    %v11415 = vpop.f32.mrf.mxu0
    %v11416 = vadd.f32 %v11247, %v11415
    %11417 = vmatmul.bf16.gmra.mxu0 %v10703
    %v11418 = vpop.f32.mrf.mxu0
    %v11419 = vadd.f32 %v11250, %v11418
    %v11420 = vpop.f32.mrf.mxu0
    %v11421 = vadd.f32 %v11252, %v11420
    %11422 = vmatmul.bf16.gmra.mxu0 %v10706
    %v11423 = vpop.f32.mrf.mxu0
    %v11424 = vadd.f32 %v11255, %v11423
    %v11425 = vpop.f32.mrf.mxu0
    %v11426 = vadd.f32 %v11257, %v11425
    %11427 = vmatmul.bf16.gmra.mxu0 %v10709
    %v11428 = vpop.f32.mrf.mxu0
    %v11429 = vadd.f32 %v11260, %v11428
    %v11430 = vpop.f32.mrf.mxu0
    %v11431 = vadd.f32 %v11262, %v11430
    %11432 = vmatmul.bf16.gmra.mxu0 %v10712
    %v11433 = vpop.f32.mrf.mxu0
    %v11434 = vadd.f32 %v11265, %v11433
    %v11435 = vpop.f32.mrf.mxu0
    %v11436 = vadd.f32 %v11267, %v11435
    %11437 = vmatmul.bf16.gmra.mxu0 %v10715
    %v11438 = vpop.f32.mrf.mxu0
    %v11439 = vadd.f32 %v11270, %v11438
    %v11440 = vpop.f32.mrf.mxu0
    %v11441 = vadd.f32 %v11272, %v11440
    %11442 = vmatmul.bf16.gmra.mxu0 %v10718
    %v11443 = vpop.f32.mrf.mxu0
    %v11444 = vadd.f32 %v11275, %v11443
    %v11445 = vpop.f32.mrf.mxu0
    %v11446 = vadd.f32 %v11277, %v11445
    %11447 = vmatmul.bf16.gmra.mxu0 %v10721
    %v11448 = vpop.f32.mrf.mxu0
    %v11449 = vadd.f32 %v11280, %v11448
    %v11450 = vpop.f32.mrf.mxu0
    %v11451 = vadd.f32 %v11282, %v11450
    %11452 = vmatmul.bf16.gmra.mxu0 %v10724
    %v11453 = vpop.f32.mrf.mxu0
    %v11454 = vadd.f32 %v11285, %v11453
    %v11455 = vpop.f32.mrf.mxu0
    %v11456 = vadd.f32 %v11287, %v11455
    %11457 = vmatmul.bf16.gmra.mxu0 %v10727
    %v11458 = vpop.f32.mrf.mxu0
    %v11459 = vadd.f32 %v11290, %v11458
    %v11460 = vpop.f32.mrf.mxu0
    %v11461 = vadd.f32 %v11292, %v11460
    %11462 = vmatmul.bf16.gmra.mxu0 %v10730
    %v11463 = vpop.f32.mrf.mxu0
    %v11464 = vadd.f32 %v11295, %v11463
    %v11465 = vpop.f32.mrf.mxu0
    %v11466 = vadd.f32 %v11297, %v11465
    %11467 = vmatmul.bf16.gmra.mxu0 %v10733
    %v11468 = vpop.f32.mrf.mxu0
    %v11469 = vadd.f32 %v11300, %v11468
    %v11470 = vpop.f32.mrf.mxu0
    %v11471 = vadd.f32 %v11302, %v11470
    %11472 = vmatmul.bf16.gmra.mxu0 %v10736
    %v11473 = vpop.f32.mrf.mxu0
    %v11474 = vadd.f32 %v11305, %v11473
    %v11475 = vpop.f32.mrf.mxu0
    %v11476 = vadd.f32 %v11307, %v11475
    %11477 = vmatmul.bf16.gmra.mxu0 %v10739
    %v11478 = vpop.f32.mrf.mxu0
    %v11479 = vadd.f32 %v11310, %v11478
    %v11480 = vpop.f32.mrf.mxu0
    %v11481 = vadd.f32 %v11312, %v11480
    %11482 = vmatmul.bf16.gmra.mxu0 %v10742
    %v11483 = vpop.f32.mrf.mxu0
    %v11484 = vadd.f32 %v11315, %v11483
    %v11485 = vpop.f32.mrf.mxu0
    %v11486 = vadd.f32 %v11317, %v11485
    %11487 = vmatmul.bf16.gmra.mxu0 %v10745
    %v11488 = vpop.f32.mrf.mxu0
    %v11489 = vadd.f32 %v11320, %v11488
    %v11490 = vpop.f32.mrf.mxu0
    %v11491 = vadd.f32 %v11322, %v11490
    %11492 = vdwg.mxu0
    %v11493 = vld [vmem:[%s4762] sm:$0xff]
    %v11494 = vld [vmem:[%s4762 + $0x8] sm:$0xf]
    %v11495 = vld [vmem:[%s4762 + $0xc] sm:$0xff]
    %v11496 = vld [vmem:[%s4762 + $0x14] sm:$0xf]
    %v11497 = vld [vmem:[%s4762 + $0x18] sm:$0xff]
    %v11498 = vld [vmem:[%s4762 + $0x20] sm:$0xf]
    %v11499 = vld [vmem:[%s4762 + $0x24] sm:$0xff]
    %v11500 = vld [vmem:[%s4762 + $0x2c] sm:$0xf]
    %v11501 = vld [vmem:[%s4762 + $0x30] sm:$0xff]
    %v11502 = vld [vmem:[%s4762 + $0x38] sm:$0xf]
    %v11503 = vld [vmem:[%s4762 + $0x3c] sm:$0xff]
    %v11504 = vld [vmem:[%s4762 + $0x44] sm:$0xf]
    %v11505 = vld [vmem:[%s4762 + $0x48] sm:$0xff]
    %v11506 = vld [vmem:[%s4762 + $0x50] sm:$0xf]
    %v11507 = vld [vmem:[%s4762 + $0x54] sm:$0xff]
    %v11508 = vld [vmem:[%s4762 + $0x5c] sm:$0xf]
    %v11509 = vld [vmem:[%s4762 + $0x60] sm:$0xff]
    %v11510 = vld [vmem:[%s4762 + $0x68] sm:$0xf]
    %v11511 = vld [vmem:[%s4762 + $0x6c] sm:$0xff]
    %v11512 = vld [vmem:[%s4762 + $0x74] sm:$0xf]
    %v11513 = vld [vmem:[%s4762 + $0x78] sm:$0xff]
    %v11514 = vld [vmem:[%s4762 + $0x80] sm:$0xf]
    %v11515 = vld [vmem:[%s4762 + $0x84] sm:$0xff]
    %v11516 = vld [vmem:[%s4762 + $0x8c] sm:$0xf]
    %v11517 = vld [vmem:[%s4762 + $0x90] sm:$0xff]
    %v11518 = vld [vmem:[%s4762 + $0x98] sm:$0xf]
    %v11519 = vld [vmem:[%s4762 + $0x9c] sm:$0xff]
    %v11520 = vld [vmem:[%s4762 + $0xa4] sm:$0xf]
    %v11521 = vld [vmem:[%s4762 + $0xa8] sm:$0xff]
    %v11522 = vld [vmem:[%s4762 + $0xb0] sm:$0xf]
    %v11523 = vld [vmem:[%s4762 + $0xb4] sm:$0xff]
    %v11524 = vld [vmem:[%s4762 + $0xbc] sm:$0xf]
    %v11525 = vld [vmem:[%s4762 + $0xc0] sm:$0xff]
    %v11526 = vld [vmem:[%s4762 + $0xc8] sm:$0xf]
    %v11527 = vld [vmem:[%s4762 + $0xcc] sm:$0xff]
    %v11528 = vld [vmem:[%s4762 + $0xd4] sm:$0xf]
    %v11529 = vld [vmem:[%s4762 + $0xd8] sm:$0xff]
    %v11530 = vld [vmem:[%s4762 + $0xe0] sm:$0xf]
    %v11531 = vld [vmem:[%s4762 + $0xe4] sm:$0xff]
    %v11532 = vld [vmem:[%s4762 + $0xec] sm:$0xf]
    %v11533 = vld [vmem:[%s4762 + $0xf0] sm:$0xff]
    %v11534 = vld [vmem:[%s4762 + $0xf8] sm:$0xf]
    %v11535 = vld [vmem:[%s4762 + $0xfc] sm:$0xff]
    %v11536 = vld [vmem:[%s4762 + $0x104] sm:$0xf]
    %v11537 = vld [vmem:[%s4762 + $0x108] sm:$0xff]
    %v11538 = vld [vmem:[%s4762 + $0x110] sm:$0xf]
    %v11539 = vld [vmem:[%s4762 + $0x114] sm:$0xff]
    %v11540 = vld [vmem:[%s4762 + $0x11c] sm:$0xf]
    %v11541 = vld [vmem:[%s4762 + $0x120] sm:$0xff]
    %v11542 = vld [vmem:[%s4762 + $0x128] sm:$0xf]
    %v11543 = vld [vmem:[%s4762 + $0x12c] sm:$0xff]
    %v11544 = vld [vmem:[%s4762 + $0x134] sm:$0xf]
    %v11545 = vld [vmem:[%s4762 + $0x138] sm:$0xff]
    %v11546 = vld [vmem:[%s4762 + $0x140] sm:$0xf]
    %v11547 = vld [vmem:[%s4762 + $0x144] sm:$0xff]
    %v11548 = vld [vmem:[%s4762 + $0x14c] sm:$0xf]
    %v11549 = vld [vmem:[%s4762 + $0x150] sm:$0xff]
    %v11550 = vld [vmem:[%s4762 + $0x158] sm:$0xf]
    %v11551 = vld [vmem:[%s4762 + $0x15c] sm:$0xff]
    %v11552 = vld [vmem:[%s4762 + $0x164] sm:$0xf]
    %v11553 = vld [vmem:[%s4762 + $0x168] sm:$0xff]
    %v11554 = vld [vmem:[%s4762 + $0x170] sm:$0xf]
    %v11555 = vld [vmem:[%s4762 + $0x174] sm:$0xff]
    %v11556 = vld [vmem:[%s4762 + $0x17c] sm:$0xf]
    %v11557 = vld [vmem:[%s4762 + $0x1b0] sm:$0xff]
    %v11558 = vld [vmem:[%s4762 + $0x1b8] sm:$0xf]
    %v11559 = vld [vmem:[%s4762 + $0x1bc] sm:$0xff]
    %v11560 = vld [vmem:[%s4762 + $0x1c4] sm:$0xf]
    %v11561 = vld [vmem:[%s4762 + $0x1c8] sm:$0xff]
    %v11562 = vld [vmem:[%s4762 + $0x1d0] sm:$0xf]
    %v11563 = vld [vmem:[%s4762 + $0x1d4] sm:$0xff]
    %v11564 = vld [vmem:[%s4762 + $0x1dc] sm:$0xf]
    %v11565 = vld [vmem:[%s4762 + $0x1e0] sm:$0xff]
    %v11566 = vld [vmem:[%s4762 + $0x1e8] sm:$0xf]
    %v11567 = vld [vmem:[%s4762 + $0x1ec] sm:$0xff]
    %v11568 = vld [vmem:[%s4762 + $0x1f4] sm:$0xf]
    %v11569 = vld [vmem:[%s4762 + $0x1f8] sm:$0xff]
    %v11570 = vld [vmem:[%s4762 + $0x200] sm:$0xf]
    %v11571 = vld [vmem:[%s4762 + $0x204] sm:$0xff]
    %v11572 = vld [vmem:[%s4762 + $0x20c] sm:$0xf]
    %v11573 = vld [vmem:[%s4762 + $0x210] sm:$0xff]
    %v11574 = vld [vmem:[%s4762 + $0x218] sm:$0xf]
    %v11575 = vld [vmem:[%s4762 + $0x21c] sm:$0xff]
    %v11576 = vld [vmem:[%s4762 + $0x224] sm:$0xf]
    %v11577 = vld [vmem:[%s4762 + $0x228] sm:$0xff]
    %v11578 = vld [vmem:[%s4762 + $0x230] sm:$0xf]
    %v11579 = vld [vmem:[%s4762 + $0x234] sm:$0xff]
    %v11580 = vld [vmem:[%s4762 + $0x23c] sm:$0xf]
    %v11581 = vld [vmem:[%s4762 + $0x240] sm:$0xff]
    %v11582 = vld [vmem:[%s4762 + $0x248] sm:$0xf]
    %v11583 = vld [vmem:[%s4762 + $0x24c] sm:$0xff]
    %v11584 = vld [vmem:[%s4762 + $0x254] sm:$0xf]
    %v11585 = vld [vmem:[%s4762 + $0x258] sm:$0xff]
    %v11586 = vld [vmem:[%s4762 + $0x260] sm:$0xf]
    %v11587 = vld [vmem:[%s4762 + $0x264] sm:$0xff]
    %v11588 = vld [vmem:[%s4762 + $0x26c] sm:$0xf]
    %v11589 = vld [vmem:[%s4762 + $0x270] sm:$0xff]
    %v11590 = vld [vmem:[%s4762 + $0x278] sm:$0xf]
    %v11591 = vld [vmem:[%s4762 + $0x27c] sm:$0xff]
    %v11592 = vld [vmem:[%s4762 + $0x284] sm:$0xf]
    %v11593 = vld [vmem:[%s4762 + $0x288] sm:$0xff]
    %v11594 = vld [vmem:[%s4762 + $0x290] sm:$0xf]
    %v11595 = vld [vmem:[%s4762 + $0x294] sm:$0xff]
    %v11596 = vld [vmem:[%s4762 + $0x29c] sm:$0xf]
    %v11597 = vld [vmem:[%s4762 + $0x2a0] sm:$0xff]
    %v11598 = vld [vmem:[%s4762 + $0x2a8] sm:$0xf]
    %v11599 = vld [vmem:[%s4762 + $0x2ac] sm:$0xff]
    %v11600 = vld [vmem:[%s4762 + $0x2b4] sm:$0xf]
    %v11601 = vld [vmem:[%s4762 + $0x2b8] sm:$0xff]
    %v11602 = vld [vmem:[%s4762 + $0x2c0] sm:$0xf]
    %v11603 = vld [vmem:[%s4762 + $0x2c4] sm:$0xff]
    %v11604 = vld [vmem:[%s4762 + $0x2cc] sm:$0xf]
    %v11605 = vld [vmem:[%s4762 + $0x2d0] sm:$0xff]
    %v11606 = vld [vmem:[%s4762 + $0x2d8] sm:$0xf]
    %v11607 = vld [vmem:[%s4762 + $0x2dc] sm:$0xff]
    %v11608 = vld [vmem:[%s4762 + $0x2e4] sm:$0xf]
    %v11609 = vld [vmem:[%s4762 + $0x2e8] sm:$0xff]
    %v11610 = vld [vmem:[%s4762 + $0x2f0] sm:$0xf]
    %v11611 = vld [vmem:[%s4762 + $0x2f4] sm:$0xff]
    %v11612 = vld [vmem:[%s4762 + $0x2fc] sm:$0xf]
    %v11613 = vld [vmem:[%s4762 + $0x300] sm:$0xff]
    %v11614 = vld [vmem:[%s4762 + $0x308] sm:$0xf]
    %v11615 = vld [vmem:[%s4762 + $0x30c] sm:$0xff]
    %v11616 = vld [vmem:[%s4762 + $0x314] sm:$0xf]
    %v11617 = vld [vmem:[%s4762 + $0x318] sm:$0xff]
    %v11618 = vld [vmem:[%s4762 + $0x320] sm:$0xf]
    %v11619 = vld [vmem:[%s4762 + $0x324] sm:$0xff]
    %v11620 = vld [vmem:[%s4762 + $0x32c] sm:$0xf]
    %s11621 = scalar_lea.vmem %s2, 384
    %v11622 = vld [vmem:[%s11621] sm:$0xf]
    %v11623 = vld [vmem:[%s11621 + $0x4] sm:$0xf]
    %v11624 = vld [vmem:[%s11621 + $0x8] sm:$0xf]
    %v11625 = vld [vmem:[%s11621 + $0xc] sm:$0xf]
    %v11626 = vld [vmem:[%s11621 + $0x10] sm:$0xf]
    %v11627 = vld [vmem:[%s11621 + $0x14] sm:$0xf]
    %v11628 = vld [vmem:[%s11621 + $0x18] sm:$0xf]
    %v11629 = vld [vmem:[%s11621 + $0x1c] sm:$0xf]
    %v11630 = vld [vmem:[%s11621 + $0x20] sm:$0xf]
    %v11631 = vld [vmem:[%s11621 + $0x24] sm:$0xf]
    %v11632 = vld [vmem:[%s11621 + $0x28] sm:$0xf]
    %v11633 = vld [vmem:[%s11621 + $0x2c] sm:$0xf]
    %v11634 = vld [vmem:[%s11621 + $0x30] sm:$0xf]
    %v11635 = vld [vmem:[%s11621 + $0x34] sm:$0xf]
    %v11636 = vld [vmem:[%s11621 + $0x38] sm:$0xf]
    %v11637 = vld [vmem:[%s11621 + $0x3c] sm:$0xf]
    %v11638 = vld [vmem:[%s11621 + $0x40] sm:$0xf]
    %v11639 = vld [vmem:[%s11621 + $0x44] sm:$0xf]
    %v11640 = vld [vmem:[%s11621 + $0x48] sm:$0xf]
    %v11641 = vld [vmem:[%s11621 + $0x4c] sm:$0xf]
    %v11642 = vld [vmem:[%s11621 + $0x50] sm:$0xf]
    %v11643 = vld [vmem:[%s11621 + $0x54] sm:$0xf]
    %v11644 = vld [vmem:[%s11621 + $0x58] sm:$0xf]
    %v11645 = vld [vmem:[%s11621 + $0x5c] sm:$0xf]
    %v11646 = vld [vmem:[%s11621 + $0x60] sm:$0xf]
    %v11647 = vld [vmem:[%s11621 + $0x64] sm:$0xf]
    %v11648 = vld [vmem:[%s11621 + $0x68] sm:$0xf]
    %v11649 = vld [vmem:[%s11621 + $0x6c] sm:$0xf]
    %v11650 = vld [vmem:[%s11621 + $0x70] sm:$0xf]
    %v11651 = vld [vmem:[%s11621 + $0x74] sm:$0xf]
    %v11652 = vld [vmem:[%s11621 + $0x78] sm:$0xf]
    %v11653 = vld [vmem:[%s11621 + $0x7c] sm:$0xf]
    %v11654 = vld [vmem:[%s11621 + $0x80] sm:$0xf]
    %v11655 = vld [vmem:[%s11621 + $0x84] sm:$0xf]
    %v11656 = vld [vmem:[%s11621 + $0x88] sm:$0xf]
    %v11657 = vld [vmem:[%s11621 + $0x8c] sm:$0xf]
    %v11658 = vld [vmem:[%s11621 + $0x90] sm:$0xf]
    %v11659 = vld [vmem:[%s11621 + $0x94] sm:$0xf]
    %v11660 = vld [vmem:[%s11621 + $0x98] sm:$0xf]
    %v11661 = vld [vmem:[%s11621 + $0x9c] sm:$0xf]
    %v11662 = vld [vmem:[%s11621 + $0xa0] sm:$0xf]
    %v11663 = vld [vmem:[%s11621 + $0xa4] sm:$0xf]
    %v11664 = vld [vmem:[%s11621 + $0xa8] sm:$0xf]
    %v11665 = vld [vmem:[%s11621 + $0xac] sm:$0xf]
    %v11666 = vld [vmem:[%s11621 + $0xb0] sm:$0xf]
    %v11667 = vld [vmem:[%s11621 + $0xb4] sm:$0xf]
    %v11668 = vld [vmem:[%s11621 + $0xb8] sm:$0xf]
    %v11669 = vld [vmem:[%s11621 + $0xbc] sm:$0xf]
    %v11798 = vunpack.c.l.b16 %v11493
    %v11799 = vunpack.c.h.b16 %v11493
    %v11800 = vunpack.c.l.b16 %v11494
    %v11801 = vunpack.c.l.b16 %v11495
    %v11802 = vunpack.c.h.b16 %v11495
    %v11803 = vunpack.c.l.b16 %v11496
    %v11804 = vunpack.c.l.b16 %v11497
    %v11805 = vunpack.c.h.b16 %v11497
    %v11806 = vunpack.c.l.b16 %v11498
    %v11807 = vunpack.c.l.b16 %v11499
    %v11808 = vunpack.c.h.b16 %v11499
    %v11809 = vunpack.c.l.b16 %v11500
    %v11810 = vunpack.c.l.b16 %v11501
    %v11811 = vunpack.c.h.b16 %v11501
    %v11812 = vunpack.c.l.b16 %v11502
    %v11813 = vunpack.c.l.b16 %v11503
    %v11814 = vunpack.c.h.b16 %v11503
    %v11815 = vunpack.c.l.b16 %v11504
    %v11816 = vunpack.c.l.b16 %v11505
    %v11817 = vunpack.c.h.b16 %v11505
    %v11818 = vunpack.c.l.b16 %v11506
    %v11819 = vunpack.c.l.b16 %v11507
    %v11820 = vunpack.c.h.b16 %v11507
    %v11821 = vunpack.c.l.b16 %v11508
    %v11822 = vunpack.c.l.b16 %v11509
    %v11823 = vunpack.c.h.b16 %v11509
    %v11824 = vunpack.c.l.b16 %v11510
    %v11825 = vunpack.c.l.b16 %v11511
    %v11826 = vunpack.c.h.b16 %v11511
    %v11827 = vunpack.c.l.b16 %v11512
    %v11828 = vunpack.c.l.b16 %v11513
    %v11829 = vunpack.c.h.b16 %v11513
    %v11830 = vunpack.c.l.b16 %v11514
    %v11831 = vunpack.c.l.b16 %v11515
    %v11832 = vunpack.c.h.b16 %v11515
    %v11833 = vunpack.c.l.b16 %v11516
    %v11834 = vunpack.c.l.b16 %v11517
    %v11835 = vunpack.c.h.b16 %v11517
    %v11836 = vunpack.c.l.b16 %v11518
    %v11837 = vunpack.c.l.b16 %v11519
    %v11838 = vunpack.c.h.b16 %v11519
    %v11839 = vunpack.c.l.b16 %v11520
    %v11840 = vunpack.c.l.b16 %v11521
    %v11841 = vunpack.c.h.b16 %v11521
    %v11842 = vunpack.c.l.b16 %v11522
    %v11843 = vunpack.c.l.b16 %v11523
    %v11844 = vunpack.c.h.b16 %v11523
    %v11845 = vunpack.c.l.b16 %v11524
    %v11846 = vunpack.c.l.b16 %v11525
    %v11847 = vunpack.c.h.b16 %v11525
    %v11848 = vunpack.c.l.b16 %v11526
    %v11849 = vunpack.c.l.b16 %v11527
    %v11850 = vunpack.c.h.b16 %v11527
    %v11851 = vunpack.c.l.b16 %v11528
    %v11852 = vunpack.c.l.b16 %v11529
    %v11853 = vunpack.c.h.b16 %v11529
    %v11854 = vunpack.c.l.b16 %v11530
    %v11855 = vunpack.c.l.b16 %v11531
    %v11856 = vunpack.c.h.b16 %v11531
    %v11857 = vunpack.c.l.b16 %v11532
    %v11858 = vunpack.c.l.b16 %v11533
    %v11859 = vunpack.c.h.b16 %v11533
    %v11860 = vunpack.c.l.b16 %v11534
    %v11861 = vunpack.c.l.b16 %v11535
    %v11862 = vunpack.c.h.b16 %v11535
    %v11863 = vunpack.c.l.b16 %v11536
    %v11864 = vunpack.c.l.b16 %v11537
    %v11865 = vunpack.c.h.b16 %v11537
    %v11866 = vunpack.c.l.b16 %v11538
    %v11867 = vunpack.c.l.b16 %v11539
    %v11868 = vunpack.c.h.b16 %v11539
    %v11869 = vunpack.c.l.b16 %v11540
    %v11870 = vunpack.c.l.b16 %v11541
    %v11871 = vunpack.c.h.b16 %v11541
    %v11872 = vunpack.c.l.b16 %v11542
    %v11873 = vunpack.c.l.b16 %v11543
    %v11874 = vunpack.c.h.b16 %v11543
    %v11875 = vunpack.c.l.b16 %v11544
    %v11876 = vunpack.c.l.b16 %v11545
    %v11877 = vunpack.c.h.b16 %v11545
    %v11878 = vunpack.c.l.b16 %v11546
    %v11879 = vunpack.c.l.b16 %v11547
    %v11880 = vunpack.c.h.b16 %v11547
    %v11881 = vunpack.c.l.b16 %v11548
    %v11882 = vunpack.c.l.b16 %v11549
    %v11883 = vunpack.c.h.b16 %v11549
    %v11884 = vunpack.c.l.b16 %v11550
    %v11885 = vunpack.c.l.b16 %v11551
    %v11886 = vunpack.c.h.b16 %v11551
    %v11887 = vunpack.c.l.b16 %v11552
    %v11888 = vunpack.c.l.b16 %v11553
    %v11889 = vunpack.c.h.b16 %v11553
    %v11890 = vunpack.c.l.b16 %v11554
    %v11891 = vunpack.c.l.b16 %v11555
    %v11892 = vunpack.c.h.b16 %v11555
    %v11893 = vunpack.c.l.b16 %v11556
    %v11894 = vunpack.c.l.b16 %v11557
    %v11895 = vunpack.c.h.b16 %v11557
    %v11896 = vunpack.c.l.b16 %v11558
    %v11897 = vunpack.c.l.b16 %v11559
    %v11898 = vunpack.c.h.b16 %v11559
    %v11899 = vunpack.c.l.b16 %v11560
    %v11900 = vunpack.c.l.b16 %v11561
    %v11901 = vunpack.c.h.b16 %v11561
    %v11902 = vunpack.c.l.b16 %v11562
    %v11903 = vunpack.c.l.b16 %v11563
    %v11904 = vunpack.c.h.b16 %v11563
    %v11905 = vunpack.c.l.b16 %v11564
    %v11906 = vunpack.c.l.b16 %v11565
    %v11907 = vunpack.c.h.b16 %v11565
    %v11908 = vunpack.c.l.b16 %v11566
    %v11909 = vunpack.c.l.b16 %v11567
    %v11910 = vunpack.c.h.b16 %v11567
    %v11911 = vunpack.c.l.b16 %v11568
    %v11912 = vunpack.c.l.b16 %v11569
    %v11913 = vunpack.c.h.b16 %v11569
    %v11914 = vunpack.c.l.b16 %v11570
    %v11915 = vunpack.c.l.b16 %v11571
    %v11916 = vunpack.c.h.b16 %v11571
    %v11917 = vunpack.c.l.b16 %v11572
    %v11918 = vunpack.c.l.b16 %v11573
    %v11919 = vunpack.c.h.b16 %v11573
    %v11920 = vunpack.c.l.b16 %v11574
    %v11921 = vunpack.c.l.b16 %v11575
    %v11922 = vunpack.c.h.b16 %v11575
    %v11923 = vunpack.c.l.b16 %v11576
    %v11924 = vunpack.c.l.b16 %v11577
    %v11925 = vunpack.c.h.b16 %v11577
    %v11926 = vunpack.c.l.b16 %v11578
    %v11927 = vunpack.c.l.b16 %v11579
    %v11928 = vunpack.c.h.b16 %v11579
    %v11929 = vunpack.c.l.b16 %v11580
    %v11930 = vunpack.c.l.b16 %v11581
    %v11931 = vunpack.c.h.b16 %v11581
    %v11932 = vunpack.c.l.b16 %v11582
    %v11933 = vunpack.c.l.b16 %v11583
    %v11934 = vunpack.c.h.b16 %v11583
    %v11935 = vunpack.c.l.b16 %v11584
    %v11936 = vunpack.c.l.b16 %v11585
    %v11937 = vunpack.c.h.b16 %v11585
    %v11938 = vunpack.c.l.b16 %v11586
    %v11939 = vunpack.c.l.b16 %v11587
    %v11940 = vunpack.c.h.b16 %v11587
    %v11941 = vunpack.c.l.b16 %v11588
    %v11942 = vunpack.c.l.b16 %v11589
    %v11943 = vunpack.c.h.b16 %v11589
    %v11944 = vunpack.c.l.b16 %v11590
    %v11945 = vunpack.c.l.b16 %v11591
    %v11946 = vunpack.c.h.b16 %v11591
    %v11947 = vunpack.c.l.b16 %v11592
    %v11948 = vunpack.c.l.b16 %v11593
    %v11949 = vunpack.c.h.b16 %v11593
    %v11950 = vunpack.c.l.b16 %v11594
    %v11951 = vunpack.c.l.b16 %v11595
    %v11952 = vunpack.c.h.b16 %v11595
    %v11953 = vunpack.c.l.b16 %v11596
    %v11954 = vunpack.c.l.b16 %v11597
    %v11955 = vunpack.c.h.b16 %v11597
    %v11956 = vunpack.c.l.b16 %v11598
    %v11957 = vunpack.c.l.b16 %v11599
    %v11958 = vunpack.c.h.b16 %v11599
    %v11959 = vunpack.c.l.b16 %v11600
    %v11960 = vunpack.c.l.b16 %v11601
    %v11961 = vunpack.c.h.b16 %v11601
    %v11962 = vunpack.c.l.b16 %v11602
    %v11963 = vunpack.c.l.b16 %v11603
    %v11964 = vunpack.c.h.b16 %v11603
    %v11965 = vunpack.c.l.b16 %v11604
    %v11966 = vunpack.c.l.b16 %v11605
    %v11967 = vunpack.c.h.b16 %v11605
    %v11968 = vunpack.c.l.b16 %v11606
    %v11969 = vunpack.c.l.b16 %v11607
    %v11970 = vunpack.c.h.b16 %v11607
    %v11971 = vunpack.c.l.b16 %v11608
    %v11972 = vunpack.c.l.b16 %v11609
    %v11973 = vunpack.c.h.b16 %v11609
    %v11974 = vunpack.c.l.b16 %v11610
    %v11975 = vunpack.c.l.b16 %v11611
    %v11976 = vunpack.c.h.b16 %v11611
    %v11977 = vunpack.c.l.b16 %v11612
    %v11978 = vunpack.c.l.b16 %v11613
    %v11979 = vunpack.c.h.b16 %v11613
    %v11980 = vunpack.c.l.b16 %v11614
    %v11981 = vunpack.c.l.b16 %v11615
    %v11982 = vunpack.c.h.b16 %v11615
    %v11983 = vunpack.c.l.b16 %v11616
    %v11984 = vunpack.c.l.b16 %v11617
    %v11985 = vunpack.c.h.b16 %v11617
    %v11986 = vunpack.c.l.b16 %v11618
    %v11987 = vunpack.c.l.b16 %v11619
    %v11988 = vunpack.c.h.b16 %v11619
    %v11989 = vunpack.c.l.b16 %v11620
    %v11990 = vpack.c.b16 %v11801, %v11798
    %v11991 = vpack.c.b16 %v11802, %v11799
    %v11992 = vpack.c.b16 %v11803, %v11800
    %v11993 = vpack.c.b16 %v11807, %v11804
    %v11994 = vpack.c.b16 %v11808, %v11805
    %v11995 = vpack.c.b16 %v11809, %v11806
    %v11996 = vpack.c.b16 %v11813, %v11810
    %v11997 = vpack.c.b16 %v11814, %v11811
    %v11998 = vpack.c.b16 %v11815, %v11812
    %v11999 = vpack.c.b16 %v11819, %v11816
    %v12000 = vpack.c.b16 %v11820, %v11817
    %v12001 = vpack.c.b16 %v11821, %v11818
    %v12002 = vpack.c.b16 %v11825, %v11822
    %v12003 = vpack.c.b16 %v11826, %v11823
    %v12004 = vpack.c.b16 %v11827, %v11824
    %v12005 = vpack.c.b16 %v11831, %v11828
    %v12006 = vpack.c.b16 %v11832, %v11829
    %v12007 = vpack.c.b16 %v11833, %v11830
    %v12008 = vpack.c.b16 %v11837, %v11834
    %v12009 = vpack.c.b16 %v11838, %v11835
    %v12010 = vpack.c.b16 %v11839, %v11836
    %v12011 = vpack.c.b16 %v11843, %v11840
    %v12012 = vpack.c.b16 %v11844, %v11841
    %v12013 = vpack.c.b16 %v11845, %v11842
    %v12014 = vpack.c.b16 %v11849, %v11846
    %v12015 = vpack.c.b16 %v11850, %v11847
    %v12016 = vpack.c.b16 %v11851, %v11848
    %v12017 = vpack.c.b16 %v11855, %v11852
    %v12018 = vpack.c.b16 %v11856, %v11853
    %v12019 = vpack.c.b16 %v11857, %v11854
    %v12020 = vpack.c.b16 %v11861, %v11858
    %v12021 = vpack.c.b16 %v11862, %v11859
    %v12022 = vpack.c.b16 %v11863, %v11860
    %v12023 = vpack.c.b16 %v11867, %v11864
    %v12024 = vpack.c.b16 %v11868, %v11865
    %v12025 = vpack.c.b16 %v11869, %v11866
    %v12026 = vpack.c.b16 %v11873, %v11870
    %v12027 = vpack.c.b16 %v11874, %v11871
    %v12028 = vpack.c.b16 %v11875, %v11872
    %v12029 = vpack.c.b16 %v11879, %v11876
    %v12030 = vpack.c.b16 %v11880, %v11877
    %v12031 = vpack.c.b16 %v11881, %v11878
    %v12032 = vpack.c.b16 %v11885, %v11882
    %v12033 = vpack.c.b16 %v11886, %v11883
    %v12034 = vpack.c.b16 %v11887, %v11884
    %v12035 = vpack.c.b16 %v11891, %v11888
    %v12036 = vpack.c.b16 %v11892, %v11889
    %v12037 = vpack.c.b16 %v11893, %v11890
    %v12038 = vpack.c.b16 %v11897, %v11894
    %v12039 = vpack.c.b16 %v11898, %v11895
    %v12040 = vpack.c.b16 %v11899, %v11896
    %v12041 = vpack.c.b16 %v11903, %v11900
    %v12042 = vpack.c.b16 %v11904, %v11901
    %v12043 = vpack.c.b16 %v11905, %v11902
    %v12044 = vpack.c.b16 %v11909, %v11906
    %v12045 = vpack.c.b16 %v11910, %v11907
    %v12046 = vpack.c.b16 %v11911, %v11908
    %v12047 = vpack.c.b16 %v11915, %v11912
    %v12048 = vpack.c.b16 %v11916, %v11913
    %v12049 = vpack.c.b16 %v11917, %v11914
    %v12050 = vpack.c.b16 %v11921, %v11918
    %v12051 = vpack.c.b16 %v11922, %v11919
    %v12052 = vpack.c.b16 %v11923, %v11920
    %v12053 = vpack.c.b16 %v11927, %v11924
    %v12054 = vpack.c.b16 %v11928, %v11925
    %v12055 = vpack.c.b16 %v11929, %v11926
    %v12056 = vpack.c.b16 %v11933, %v11930
    %v12057 = vpack.c.b16 %v11934, %v11931
    %v12058 = vpack.c.b16 %v11935, %v11932
    %v12059 = vpack.c.b16 %v11939, %v11936
    %v12060 = vpack.c.b16 %v11940, %v11937
    %v12061 = vpack.c.b16 %v11941, %v11938
    %v12062 = vpack.c.b16 %v11945, %v11942
    %v12063 = vpack.c.b16 %v11946, %v11943
    %v12064 = vpack.c.b16 %v11947, %v11944
    %v12065 = vpack.c.b16 %v11951, %v11948
    %v12066 = vpack.c.b16 %v11952, %v11949
    %v12067 = vpack.c.b16 %v11953, %v11950
    %v12068 = vpack.c.b16 %v11957, %v11954
    %v12069 = vpack.c.b16 %v11958, %v11955
    %v12070 = vpack.c.b16 %v11959, %v11956
    %v12071 = vpack.c.b16 %v11963, %v11960
    %v12072 = vpack.c.b16 %v11964, %v11961
    %v12073 = vpack.c.b16 %v11965, %v11962
    %v12074 = vpack.c.b16 %v11969, %v11966
    %v12075 = vpack.c.b16 %v11970, %v11967
    %v12076 = vpack.c.b16 %v11971, %v11968
    %v12077 = vpack.c.b16 %v11975, %v11972
    %v12078 = vpack.c.b16 %v11976, %v11973
    %v12079 = vpack.c.b16 %v11977, %v11974
    %v12080 = vpack.c.b16 %v11981, %v11978
    %v12081 = vpack.c.b16 %v11982, %v11979
    %v12082 = vpack.c.b16 %v11983, %v11980
    %v12083 = vpack.c.b16 %v11987, %v11984
    %v12084 = vpack.c.b16 %v11988, %v11985
    %v12085 = vpack.c.b16 %v11989, %v11986
    %v12230 = vunpack.c.l.b16 %v11622
    %v12231 = vunpack.c.l.b16 %v11623
    %v12232 = vunpack.c.l.b16 %v11624
    %v12233 = vunpack.c.l.b16 %v11625
    %v12234 = vunpack.c.l.b16 %v11626
    %v12235 = vunpack.c.l.b16 %v11627
    %v12236 = vunpack.c.l.b16 %v11628
    %v12237 = vunpack.c.l.b16 %v11629
    %v12238 = vunpack.c.l.b16 %v11630
    %v12239 = vunpack.c.l.b16 %v11631
    %v12240 = vunpack.c.l.b16 %v11632
    %v12241 = vunpack.c.l.b16 %v11633
    %v12242 = vunpack.c.l.b16 %v11634
    %v12243 = vunpack.c.l.b16 %v11635
    %v12244 = vunpack.c.l.b16 %v11636
    %v12245 = vunpack.c.l.b16 %v11637
    %v12246 = vunpack.c.l.b16 %v11638
    %v12247 = vunpack.c.l.b16 %v11639
    %v12248 = vunpack.c.l.b16 %v11640
    %v12249 = vunpack.c.l.b16 %v11641
    %v12250 = vunpack.c.l.b16 %v11642
    %v12251 = vunpack.c.l.b16 %v11643
    %v12252 = vunpack.c.l.b16 %v11644
    %v12253 = vunpack.c.l.b16 %v11645
    %v12254 = vunpack.c.l.b16 %v11646
    %v12255 = vunpack.c.l.b16 %v11647
    %v12256 = vunpack.c.l.b16 %v11648
    %v12257 = vunpack.c.l.b16 %v11649
    %v12258 = vunpack.c.l.b16 %v11650
    %v12259 = vunpack.c.l.b16 %v11651
    %v12260 = vunpack.c.l.b16 %v11652
    %v12261 = vunpack.c.l.b16 %v11653
    %v12262 = vunpack.c.l.b16 %v11654
    %v12263 = vunpack.c.l.b16 %v11655
    %v12264 = vunpack.c.l.b16 %v11656
    %v12265 = vunpack.c.l.b16 %v11657
    %v12266 = vunpack.c.l.b16 %v11658
    %v12267 = vunpack.c.l.b16 %v11659
    %v12268 = vunpack.c.l.b16 %v11660
    %v12269 = vunpack.c.l.b16 %v11661
    %v12270 = vunpack.c.l.b16 %v11662
    %v12271 = vunpack.c.l.b16 %v11663
    %v12272 = vunpack.c.l.b16 %v11664
    %v12273 = vunpack.c.l.b16 %v11665
    %v12274 = vunpack.c.l.b16 %v11666
    %v12275 = vunpack.c.l.b16 %v11667
    %v12276 = vunpack.c.l.b16 %v11668
    %v12277 = vunpack.c.l.b16 %v11669
    %v12278 = vpack.c.b16 %v12231, %v12230
    %v12279 = vpack.c.b16 %v12233, %v12232
    %v12280 = vpack.c.b16 %v12235, %v12234
    %v12281 = vpack.c.b16 %v12237, %v12236
    %v12282 = vpack.c.b16 %v12239, %v12238
    %v12283 = vpack.c.b16 %v12241, %v12240
    %v12284 = vpack.c.b16 %v12243, %v12242
    %v12285 = vpack.c.b16 %v12245, %v12244
    %v12286 = vpack.c.b16 %v12247, %v12246
    %v12287 = vpack.c.b16 %v12249, %v12248
    %v12288 = vpack.c.b16 %v12251, %v12250
    %v12289 = vpack.c.b16 %v12253, %v12252
    %v12290 = vpack.c.b16 %v12255, %v12254
    %v12291 = vpack.c.b16 %v12257, %v12256
    %v12292 = vpack.c.b16 %v12259, %v12258
    %v12293 = vpack.c.b16 %v12261, %v12260
    %v12294 = vpack.c.b16 %v12263, %v12262
    %v12295 = vpack.c.b16 %v12265, %v12264
    %v12296 = vpack.c.b16 %v12267, %v12266
    %v12297 = vpack.c.b16 %v12269, %v12268
    %v12298 = vpack.c.b16 %v12271, %v12270
    %v12299 = vpack.c.b16 %v12273, %v12272
    %v12300 = vpack.c.b16 %v12275, %v12274
    %v12301 = vpack.c.b16 %v12277, %v12276
    %12326 = vmatpush.bf16.msra.mxu0 %v12285
    %12327 = vmatpush.bf16.msra.mxu0 %v12284
    %12328 = vmatpush.bf16.msra.mxu0 %v12283
    %12329 = vmatpush.bf16.msra.mxu0 %v12282
    %12330 = vmatpush.bf16.msra.mxu0 %v12281
    %12331 = vmatpush.bf16.msra.mxu0 %v12280
    %12332 = vmatpush.bf16.msra.mxu0 %v12279
    %12333 = vmatpush.bf16.msra.mxu0 %v12278
    %12334 = vmatmul.bf16.gmra.mxu0 %v11990
    %v12335 = vpop.f32.mrf.mxu0
    %v12336 = vadd.f32 0.0, %v12335
    %v12337 = vpop.f32.mrf.mxu0
    %v12338 = vadd.f32 0.0, %v12337
    %12339 = vmatmul.bf16.gmra.mxu0 %v11993
    %v12340 = vpop.f32.mrf.mxu0
    %v12341 = vadd.f32 0.0, %v12340
    %v12342 = vpop.f32.mrf.mxu0
    %v12343 = vadd.f32 0.0, %v12342
    %12344 = vmatmul.bf16.gmra.mxu0 %v11996
    %v12345 = vpop.f32.mrf.mxu0
    %v12346 = vadd.f32 0.0, %v12345
    %v12347 = vpop.f32.mrf.mxu0
    %v12348 = vadd.f32 0.0, %v12347
    %12349 = vmatmul.bf16.gmra.mxu0 %v11999
    %v12350 = vpop.f32.mrf.mxu0
    %v12351 = vadd.f32 0.0, %v12350
    %v12352 = vpop.f32.mrf.mxu0
    %v12353 = vadd.f32 0.0, %v12352
    %12354 = vmatmul.bf16.gmra.mxu0 %v12002
    %v12355 = vpop.f32.mrf.mxu0
    %v12356 = vadd.f32 0.0, %v12355
    %v12357 = vpop.f32.mrf.mxu0
    %v12358 = vadd.f32 0.0, %v12357
    %12359 = vmatmul.bf16.gmra.mxu0 %v12005
    %v12360 = vpop.f32.mrf.mxu0
    %v12361 = vadd.f32 0.0, %v12360
    %v12362 = vpop.f32.mrf.mxu0
    %v12363 = vadd.f32 0.0, %v12362
    %12364 = vmatmul.bf16.gmra.mxu0 %v12008
    %v12365 = vpop.f32.mrf.mxu0
    %v12366 = vadd.f32 0.0, %v12365
    %v12367 = vpop.f32.mrf.mxu0
    %v12368 = vadd.f32 0.0, %v12367
    %12369 = vmatmul.bf16.gmra.mxu0 %v12011
    %v12370 = vpop.f32.mrf.mxu0
    %v12371 = vadd.f32 0.0, %v12370
    %v12372 = vpop.f32.mrf.mxu0
    %v12373 = vadd.f32 0.0, %v12372
    %12374 = vmatmul.bf16.gmra.mxu0 %v12014
    %v12375 = vpop.f32.mrf.mxu0
    %v12376 = vadd.f32 0.0, %v12375
    %v12377 = vpop.f32.mrf.mxu0
    %v12378 = vadd.f32 0.0, %v12377
    %12379 = vmatmul.bf16.gmra.mxu0 %v12017
    %v12380 = vpop.f32.mrf.mxu0
    %v12381 = vadd.f32 0.0, %v12380
    %v12382 = vpop.f32.mrf.mxu0
    %v12383 = vadd.f32 0.0, %v12382
    %12384 = vmatmul.bf16.gmra.mxu0 %v12020
    %v12385 = vpop.f32.mrf.mxu0
    %v12386 = vadd.f32 0.0, %v12385
    %v12387 = vpop.f32.mrf.mxu0
    %v12388 = vadd.f32 0.0, %v12387
    %12389 = vmatmul.bf16.gmra.mxu0 %v12023
    %v12390 = vpop.f32.mrf.mxu0
    %v12391 = vadd.f32 0.0, %v12390
    %v12392 = vpop.f32.mrf.mxu0
    %v12393 = vadd.f32 0.0, %v12392
    %12394 = vmatmul.bf16.gmra.mxu0 %v12026
    %v12395 = vpop.f32.mrf.mxu0
    %v12396 = vadd.f32 0.0, %v12395
    %v12397 = vpop.f32.mrf.mxu0
    %v12398 = vadd.f32 0.0, %v12397
    %12399 = vmatmul.bf16.gmra.mxu0 %v12029
    %v12400 = vpop.f32.mrf.mxu0
    %v12401 = vadd.f32 0.0, %v12400
    %v12402 = vpop.f32.mrf.mxu0
    %v12403 = vadd.f32 0.0, %v12402
    %12404 = vmatmul.bf16.gmra.mxu0 %v12032
    %v12405 = vpop.f32.mrf.mxu0
    %v12406 = vadd.f32 0.0, %v12405
    %v12407 = vpop.f32.mrf.mxu0
    %v12408 = vadd.f32 0.0, %v12407
    %12409 = vmatmul.bf16.gmra.mxu0 %v12035
    %v12410 = vpop.f32.mrf.mxu0
    %v12411 = vadd.f32 0.0, %v12410
    %v12412 = vpop.f32.mrf.mxu0
    %v12413 = vadd.f32 0.0, %v12412
    %12414 = vmatmul.bf16.gmra.mxu0 %v12038
    %v12415 = vpop.f32.mrf.mxu0
    %v12416 = vadd.f32 0.0, %v12415
    %v12417 = vpop.f32.mrf.mxu0
    %v12418 = vadd.f32 0.0, %v12417
    %12419 = vmatmul.bf16.gmra.mxu0 %v12041
    %v12420 = vpop.f32.mrf.mxu0
    %v12421 = vadd.f32 0.0, %v12420
    %v12422 = vpop.f32.mrf.mxu0
    %v12423 = vadd.f32 0.0, %v12422
    %12424 = vmatmul.bf16.gmra.mxu0 %v12044
    %v12425 = vpop.f32.mrf.mxu0
    %v12426 = vadd.f32 0.0, %v12425
    %v12427 = vpop.f32.mrf.mxu0
    %v12428 = vadd.f32 0.0, %v12427
    %12429 = vmatmul.bf16.gmra.mxu0 %v12047
    %v12430 = vpop.f32.mrf.mxu0
    %v12431 = vadd.f32 0.0, %v12430
    %v12432 = vpop.f32.mrf.mxu0
    %v12433 = vadd.f32 0.0, %v12432
    %12434 = vmatmul.bf16.gmra.mxu0 %v12050
    %v12435 = vpop.f32.mrf.mxu0
    %v12436 = vadd.f32 0.0, %v12435
    %v12437 = vpop.f32.mrf.mxu0
    %v12438 = vadd.f32 0.0, %v12437
    %12439 = vmatmul.bf16.gmra.mxu0 %v12053
    %v12440 = vpop.f32.mrf.mxu0
    %v12441 = vadd.f32 0.0, %v12440
    %v12442 = vpop.f32.mrf.mxu0
    %v12443 = vadd.f32 0.0, %v12442
    %12444 = vmatmul.bf16.gmra.mxu0 %v12056
    %v12445 = vpop.f32.mrf.mxu0
    %v12446 = vadd.f32 0.0, %v12445
    %v12447 = vpop.f32.mrf.mxu0
    %v12448 = vadd.f32 0.0, %v12447
    %12449 = vmatmul.bf16.gmra.mxu0 %v12059
    %v12450 = vpop.f32.mrf.mxu0
    %v12451 = vadd.f32 0.0, %v12450
    %v12452 = vpop.f32.mrf.mxu0
    %v12453 = vadd.f32 0.0, %v12452
    %12454 = vmatmul.bf16.gmra.mxu0 %v12062
    %v12455 = vpop.f32.mrf.mxu0
    %v12456 = vadd.f32 0.0, %v12455
    %v12457 = vpop.f32.mrf.mxu0
    %v12458 = vadd.f32 0.0, %v12457
    %12459 = vmatmul.bf16.gmra.mxu0 %v12065
    %v12460 = vpop.f32.mrf.mxu0
    %v12461 = vadd.f32 0.0, %v12460
    %v12462 = vpop.f32.mrf.mxu0
    %v12463 = vadd.f32 0.0, %v12462
    %12464 = vmatmul.bf16.gmra.mxu0 %v12068
    %v12465 = vpop.f32.mrf.mxu0
    %v12466 = vadd.f32 0.0, %v12465
    %v12467 = vpop.f32.mrf.mxu0
    %v12468 = vadd.f32 0.0, %v12467
    %12469 = vmatmul.bf16.gmra.mxu0 %v12071
    %v12470 = vpop.f32.mrf.mxu0
    %v12471 = vadd.f32 0.0, %v12470
    %v12472 = vpop.f32.mrf.mxu0
    %v12473 = vadd.f32 0.0, %v12472
    %12474 = vmatmul.bf16.gmra.mxu0 %v12074
    %v12475 = vpop.f32.mrf.mxu0
    %v12476 = vadd.f32 0.0, %v12475
    %v12477 = vpop.f32.mrf.mxu0
    %v12478 = vadd.f32 0.0, %v12477
    %12479 = vmatmul.bf16.gmra.mxu0 %v12077
    %v12480 = vpop.f32.mrf.mxu0
    %v12481 = vadd.f32 0.0, %v12480
    %v12482 = vpop.f32.mrf.mxu0
    %v12483 = vadd.f32 0.0, %v12482
    %12484 = vmatmul.bf16.gmra.mxu0 %v12080
    %v12485 = vpop.f32.mrf.mxu0
    %v12486 = vadd.f32 0.0, %v12485
    %v12487 = vpop.f32.mrf.mxu0
    %v12488 = vadd.f32 0.0, %v12487
    %12489 = vmatmul.bf16.gmra.mxu0 %v12083
    %v12490 = vpop.f32.mrf.mxu0
    %v12491 = vadd.f32 0.0, %v12490
    %v12492 = vpop.f32.mrf.mxu0
    %v12493 = vadd.f32 0.0, %v12492
    %12494 = vdwg.mxu0
    %12495 = vmatpush.bf16.msra.mxu0 %v12293
    %12496 = vmatpush.bf16.msra.mxu0 %v12292
    %12497 = vmatpush.bf16.msra.mxu0 %v12291
    %12498 = vmatpush.bf16.msra.mxu0 %v12290
    %12499 = vmatpush.bf16.msra.mxu0 %v12289
    %12500 = vmatpush.bf16.msra.mxu0 %v12288
    %12501 = vmatpush.bf16.msra.mxu0 %v12287
    %12502 = vmatpush.bf16.msra.mxu0 %v12286
    %12503 = vmatmul.bf16.gmra.mxu0 %v11991
    %v12504 = vpop.f32.mrf.mxu0
    %v12505 = vadd.f32 %v12336, %v12504
    %v12506 = vpop.f32.mrf.mxu0
    %v12507 = vadd.f32 %v12338, %v12506
    %12508 = vmatmul.bf16.gmra.mxu0 %v11994
    %v12509 = vpop.f32.mrf.mxu0
    %v12510 = vadd.f32 %v12341, %v12509
    %v12511 = vpop.f32.mrf.mxu0
    %v12512 = vadd.f32 %v12343, %v12511
    %12513 = vmatmul.bf16.gmra.mxu0 %v11997
    %v12514 = vpop.f32.mrf.mxu0
    %v12515 = vadd.f32 %v12346, %v12514
    %v12516 = vpop.f32.mrf.mxu0
    %v12517 = vadd.f32 %v12348, %v12516
    %12518 = vmatmul.bf16.gmra.mxu0 %v12000
    %v12519 = vpop.f32.mrf.mxu0
    %v12520 = vadd.f32 %v12351, %v12519
    %v12521 = vpop.f32.mrf.mxu0
    %v12522 = vadd.f32 %v12353, %v12521
    %12523 = vmatmul.bf16.gmra.mxu0 %v12003
    %v12524 = vpop.f32.mrf.mxu0
    %v12525 = vadd.f32 %v12356, %v12524
    %v12526 = vpop.f32.mrf.mxu0
    %v12527 = vadd.f32 %v12358, %v12526
    %12528 = vmatmul.bf16.gmra.mxu0 %v12006
    %v12529 = vpop.f32.mrf.mxu0
    %v12530 = vadd.f32 %v12361, %v12529
    %v12531 = vpop.f32.mrf.mxu0
    %v12532 = vadd.f32 %v12363, %v12531
    %12533 = vmatmul.bf16.gmra.mxu0 %v12009
    %v12534 = vpop.f32.mrf.mxu0
    %v12535 = vadd.f32 %v12366, %v12534
    %v12536 = vpop.f32.mrf.mxu0
    %v12537 = vadd.f32 %v12368, %v12536
    %12538 = vmatmul.bf16.gmra.mxu0 %v12012
    %v12539 = vpop.f32.mrf.mxu0
    %v12540 = vadd.f32 %v12371, %v12539
    %v12541 = vpop.f32.mrf.mxu0
    %v12542 = vadd.f32 %v12373, %v12541
    %12543 = vmatmul.bf16.gmra.mxu0 %v12015
    %v12544 = vpop.f32.mrf.mxu0
    %v12545 = vadd.f32 %v12376, %v12544
    %v12546 = vpop.f32.mrf.mxu0
    %v12547 = vadd.f32 %v12378, %v12546
    %12548 = vmatmul.bf16.gmra.mxu0 %v12018
    %v12549 = vpop.f32.mrf.mxu0
    %v12550 = vadd.f32 %v12381, %v12549
    %v12551 = vpop.f32.mrf.mxu0
    %v12552 = vadd.f32 %v12383, %v12551
    %12553 = vmatmul.bf16.gmra.mxu0 %v12021
    %v12554 = vpop.f32.mrf.mxu0
    %v12555 = vadd.f32 %v12386, %v12554
    %v12556 = vpop.f32.mrf.mxu0
    %v12557 = vadd.f32 %v12388, %v12556
    %12558 = vmatmul.bf16.gmra.mxu0 %v12024
    %v12559 = vpop.f32.mrf.mxu0
    %v12560 = vadd.f32 %v12391, %v12559
    %v12561 = vpop.f32.mrf.mxu0
    %v12562 = vadd.f32 %v12393, %v12561
    %12563 = vmatmul.bf16.gmra.mxu0 %v12027
    %v12564 = vpop.f32.mrf.mxu0
    %v12565 = vadd.f32 %v12396, %v12564
    %v12566 = vpop.f32.mrf.mxu0
    %v12567 = vadd.f32 %v12398, %v12566
    %12568 = vmatmul.bf16.gmra.mxu0 %v12030
    %v12569 = vpop.f32.mrf.mxu0
    %v12570 = vadd.f32 %v12401, %v12569
    %v12571 = vpop.f32.mrf.mxu0
    %v12572 = vadd.f32 %v12403, %v12571
    %12573 = vmatmul.bf16.gmra.mxu0 %v12033
    %v12574 = vpop.f32.mrf.mxu0
    %v12575 = vadd.f32 %v12406, %v12574
    %v12576 = vpop.f32.mrf.mxu0
    %v12577 = vadd.f32 %v12408, %v12576
    %12578 = vmatmul.bf16.gmra.mxu0 %v12036
    %v12579 = vpop.f32.mrf.mxu0
    %v12580 = vadd.f32 %v12411, %v12579
    %v12581 = vpop.f32.mrf.mxu0
    %v12582 = vadd.f32 %v12413, %v12581
    %12583 = vmatmul.bf16.gmra.mxu0 %v12039
    %v12584 = vpop.f32.mrf.mxu0
    %v12585 = vadd.f32 %v12416, %v12584
    %v12586 = vpop.f32.mrf.mxu0
    %v12587 = vadd.f32 %v12418, %v12586
    %12588 = vmatmul.bf16.gmra.mxu0 %v12042
    %v12589 = vpop.f32.mrf.mxu0
    %v12590 = vadd.f32 %v12421, %v12589
    %v12591 = vpop.f32.mrf.mxu0
    %v12592 = vadd.f32 %v12423, %v12591
    %12593 = vmatmul.bf16.gmra.mxu0 %v12045
    %v12594 = vpop.f32.mrf.mxu0
    %v12595 = vadd.f32 %v12426, %v12594
    %v12596 = vpop.f32.mrf.mxu0
    %v12597 = vadd.f32 %v12428, %v12596
    %12598 = vmatmul.bf16.gmra.mxu0 %v12048
    %v12599 = vpop.f32.mrf.mxu0
    %v12600 = vadd.f32 %v12431, %v12599
    %v12601 = vpop.f32.mrf.mxu0
    %v12602 = vadd.f32 %v12433, %v12601
    %12603 = vmatmul.bf16.gmra.mxu0 %v12051
    %v12604 = vpop.f32.mrf.mxu0
    %v12605 = vadd.f32 %v12436, %v12604
    %v12606 = vpop.f32.mrf.mxu0
    %v12607 = vadd.f32 %v12438, %v12606
    %12608 = vmatmul.bf16.gmra.mxu0 %v12054
    %v12609 = vpop.f32.mrf.mxu0
    %v12610 = vadd.f32 %v12441, %v12609
    %v12611 = vpop.f32.mrf.mxu0
    %v12612 = vadd.f32 %v12443, %v12611
    %12613 = vmatmul.bf16.gmra.mxu0 %v12057
    %v12614 = vpop.f32.mrf.mxu0
    %v12615 = vadd.f32 %v12446, %v12614
    %v12616 = vpop.f32.mrf.mxu0
    %v12617 = vadd.f32 %v12448, %v12616
    %12618 = vmatmul.bf16.gmra.mxu0 %v12060
    %v12619 = vpop.f32.mrf.mxu0
    %v12620 = vadd.f32 %v12451, %v12619
    %v12621 = vpop.f32.mrf.mxu0
    %v12622 = vadd.f32 %v12453, %v12621
    %12623 = vmatmul.bf16.gmra.mxu0 %v12063
    %v12624 = vpop.f32.mrf.mxu0
    %v12625 = vadd.f32 %v12456, %v12624
    %v12626 = vpop.f32.mrf.mxu0
    %v12627 = vadd.f32 %v12458, %v12626
    %12628 = vmatmul.bf16.gmra.mxu0 %v12066
    %v12629 = vpop.f32.mrf.mxu0
    %v12630 = vadd.f32 %v12461, %v12629
    %v12631 = vpop.f32.mrf.mxu0
    %v12632 = vadd.f32 %v12463, %v12631
    %12633 = vmatmul.bf16.gmra.mxu0 %v12069
    %v12634 = vpop.f32.mrf.mxu0
    %v12635 = vadd.f32 %v12466, %v12634
    %v12636 = vpop.f32.mrf.mxu0
    %v12637 = vadd.f32 %v12468, %v12636
    %12638 = vmatmul.bf16.gmra.mxu0 %v12072
    %v12639 = vpop.f32.mrf.mxu0
    %v12640 = vadd.f32 %v12471, %v12639
    %v12641 = vpop.f32.mrf.mxu0
    %v12642 = vadd.f32 %v12473, %v12641
    %12643 = vmatmul.bf16.gmra.mxu0 %v12075
    %v12644 = vpop.f32.mrf.mxu0
    %v12645 = vadd.f32 %v12476, %v12644
    %v12646 = vpop.f32.mrf.mxu0
    %v12647 = vadd.f32 %v12478, %v12646
    %12648 = vmatmul.bf16.gmra.mxu0 %v12078
    %v12649 = vpop.f32.mrf.mxu0
    %v12650 = vadd.f32 %v12481, %v12649
    %v12651 = vpop.f32.mrf.mxu0
    %v12652 = vadd.f32 %v12483, %v12651
    %12653 = vmatmul.bf16.gmra.mxu0 %v12081
    %v12654 = vpop.f32.mrf.mxu0
    %v12655 = vadd.f32 %v12486, %v12654
    %v12656 = vpop.f32.mrf.mxu0
    %v12657 = vadd.f32 %v12488, %v12656
    %12658 = vmatmul.bf16.gmra.mxu0 %v12084
    %v12659 = vpop.f32.mrf.mxu0
    %v12660 = vadd.f32 %v12491, %v12659
    %v12661 = vpop.f32.mrf.mxu0
    %v12662 = vadd.f32 %v12493, %v12661
    %12663 = vdwg.mxu0
    %12664 = vmatpush.bf16.msra.mxu0 %v12301
    %12665 = vmatpush.bf16.msra.mxu0 %v12300
    %12666 = vmatpush.bf16.msra.mxu0 %v12299
    %12667 = vmatpush.bf16.msra.mxu0 %v12298
    %12668 = vmatpush.bf16.msra.mxu0 %v12297
    %12669 = vmatpush.bf16.msra.mxu0 %v12296
    %12670 = vmatpush.bf16.msra.mxu0 %v12295
    %12671 = vmatpush.bf16.msra.mxu0 %v12294
    %12672 = vmatmul.bf16.gmra.mxu0 %v11992
    %v12673 = vpop.f32.mrf.mxu0
    %v12674 = vadd.f32 %v12505, %v12673
    %v12675 = vpop.f32.mrf.mxu0
    %v12676 = vadd.f32 %v12507, %v12675
    %12677 = vmatmul.bf16.gmra.mxu0 %v11995
    %v12678 = vpop.f32.mrf.mxu0
    %v12679 = vadd.f32 %v12510, %v12678
    %v12680 = vpop.f32.mrf.mxu0
    %v12681 = vadd.f32 %v12512, %v12680
    %12682 = vmatmul.bf16.gmra.mxu0 %v11998
    %v12683 = vpop.f32.mrf.mxu0
    %v12684 = vadd.f32 %v12515, %v12683
    %v12685 = vpop.f32.mrf.mxu0
    %v12686 = vadd.f32 %v12517, %v12685
    %12687 = vmatmul.bf16.gmra.mxu0 %v12001
    %v12688 = vpop.f32.mrf.mxu0
    %v12689 = vadd.f32 %v12520, %v12688
    %v12690 = vpop.f32.mrf.mxu0
    %v12691 = vadd.f32 %v12522, %v12690
    %12692 = vmatmul.bf16.gmra.mxu0 %v12004
    %v12693 = vpop.f32.mrf.mxu0
    %v12694 = vadd.f32 %v12525, %v12693
    %v12695 = vpop.f32.mrf.mxu0
    %v12696 = vadd.f32 %v12527, %v12695
    %12697 = vmatmul.bf16.gmra.mxu0 %v12007
    %v12698 = vpop.f32.mrf.mxu0
    %v12699 = vadd.f32 %v12530, %v12698
    %v12700 = vpop.f32.mrf.mxu0
    %v12701 = vadd.f32 %v12532, %v12700
    %12702 = vmatmul.bf16.gmra.mxu0 %v12010
    %v12703 = vpop.f32.mrf.mxu0
    %v12704 = vadd.f32 %v12535, %v12703
    %v12705 = vpop.f32.mrf.mxu0
    %v12706 = vadd.f32 %v12537, %v12705
    %12707 = vmatmul.bf16.gmra.mxu0 %v12013
    %v12708 = vpop.f32.mrf.mxu0
    %v12709 = vadd.f32 %v12540, %v12708
    %v12710 = vpop.f32.mrf.mxu0
    %v12711 = vadd.f32 %v12542, %v12710
    %12712 = vmatmul.bf16.gmra.mxu0 %v12016
    %v12713 = vpop.f32.mrf.mxu0
    %v12714 = vadd.f32 %v12545, %v12713
    %v12715 = vpop.f32.mrf.mxu0
    %v12716 = vadd.f32 %v12547, %v12715
    %12717 = vmatmul.bf16.gmra.mxu0 %v12019
    %v12718 = vpop.f32.mrf.mxu0
    %v12719 = vadd.f32 %v12550, %v12718
    %v12720 = vpop.f32.mrf.mxu0
    %v12721 = vadd.f32 %v12552, %v12720
    %12722 = vmatmul.bf16.gmra.mxu0 %v12022
    %v12723 = vpop.f32.mrf.mxu0
    %v12724 = vadd.f32 %v12555, %v12723
    %v12725 = vpop.f32.mrf.mxu0
    %v12726 = vadd.f32 %v12557, %v12725
    %12727 = vmatmul.bf16.gmra.mxu0 %v12025
    %v12728 = vpop.f32.mrf.mxu0
    %v12729 = vadd.f32 %v12560, %v12728
    %v12730 = vpop.f32.mrf.mxu0
    %v12731 = vadd.f32 %v12562, %v12730
    %12732 = vmatmul.bf16.gmra.mxu0 %v12028
    %v12733 = vpop.f32.mrf.mxu0
    %v12734 = vadd.f32 %v12565, %v12733
    %v12735 = vpop.f32.mrf.mxu0
    %v12736 = vadd.f32 %v12567, %v12735
    %12737 = vmatmul.bf16.gmra.mxu0 %v12031
    %v12738 = vpop.f32.mrf.mxu0
    %v12739 = vadd.f32 %v12570, %v12738
    %v12740 = vpop.f32.mrf.mxu0
    %v12741 = vadd.f32 %v12572, %v12740
    %12742 = vmatmul.bf16.gmra.mxu0 %v12034
    %v12743 = vpop.f32.mrf.mxu0
    %v12744 = vadd.f32 %v12575, %v12743
    %v12745 = vpop.f32.mrf.mxu0
    %v12746 = vadd.f32 %v12577, %v12745
    %12747 = vmatmul.bf16.gmra.mxu0 %v12037
    %v12748 = vpop.f32.mrf.mxu0
    %v12749 = vadd.f32 %v12580, %v12748
    %v12750 = vpop.f32.mrf.mxu0
    %v12751 = vadd.f32 %v12582, %v12750
    %12752 = vmatmul.bf16.gmra.mxu0 %v12040
    %v12753 = vpop.f32.mrf.mxu0
    %v12754 = vadd.f32 %v12585, %v12753
    %v12755 = vpop.f32.mrf.mxu0
    %v12756 = vadd.f32 %v12587, %v12755
    %12757 = vmatmul.bf16.gmra.mxu0 %v12043
    %v12758 = vpop.f32.mrf.mxu0
    %v12759 = vadd.f32 %v12590, %v12758
    %v12760 = vpop.f32.mrf.mxu0
    %v12761 = vadd.f32 %v12592, %v12760
    %12762 = vmatmul.bf16.gmra.mxu0 %v12046
    %v12763 = vpop.f32.mrf.mxu0
    %v12764 = vadd.f32 %v12595, %v12763
    %v12765 = vpop.f32.mrf.mxu0
    %v12766 = vadd.f32 %v12597, %v12765
    %12767 = vmatmul.bf16.gmra.mxu0 %v12049
    %v12768 = vpop.f32.mrf.mxu0
    %v12769 = vadd.f32 %v12600, %v12768
    %v12770 = vpop.f32.mrf.mxu0
    %v12771 = vadd.f32 %v12602, %v12770
    %12772 = vmatmul.bf16.gmra.mxu0 %v12052
    %v12773 = vpop.f32.mrf.mxu0
    %v12774 = vadd.f32 %v12605, %v12773
    %v12775 = vpop.f32.mrf.mxu0
    %v12776 = vadd.f32 %v12607, %v12775
    %12777 = vmatmul.bf16.gmra.mxu0 %v12055
    %v12778 = vpop.f32.mrf.mxu0
    %v12779 = vadd.f32 %v12610, %v12778
    %v12780 = vpop.f32.mrf.mxu0
    %v12781 = vadd.f32 %v12612, %v12780
    %12782 = vmatmul.bf16.gmra.mxu0 %v12058
    %v12783 = vpop.f32.mrf.mxu0
    %v12784 = vadd.f32 %v12615, %v12783
    %v12785 = vpop.f32.mrf.mxu0
    %v12786 = vadd.f32 %v12617, %v12785
    %12787 = vmatmul.bf16.gmra.mxu0 %v12061
    %v12788 = vpop.f32.mrf.mxu0
    %v12789 = vadd.f32 %v12620, %v12788
    %v12790 = vpop.f32.mrf.mxu0
    %v12791 = vadd.f32 %v12622, %v12790
    %12792 = vmatmul.bf16.gmra.mxu0 %v12064
    %v12793 = vpop.f32.mrf.mxu0
    %v12794 = vadd.f32 %v12625, %v12793
    %v12795 = vpop.f32.mrf.mxu0
    %v12796 = vadd.f32 %v12627, %v12795
    %12797 = vmatmul.bf16.gmra.mxu0 %v12067
    %v12798 = vpop.f32.mrf.mxu0
    %v12799 = vadd.f32 %v12630, %v12798
    %v12800 = vpop.f32.mrf.mxu0
    %v12801 = vadd.f32 %v12632, %v12800
    %12802 = vmatmul.bf16.gmra.mxu0 %v12070
    %v12803 = vpop.f32.mrf.mxu0
    %v12804 = vadd.f32 %v12635, %v12803
    %v12805 = vpop.f32.mrf.mxu0
    %v12806 = vadd.f32 %v12637, %v12805
    %12807 = vmatmul.bf16.gmra.mxu0 %v12073
    %v12808 = vpop.f32.mrf.mxu0
    %v12809 = vadd.f32 %v12640, %v12808
    %v12810 = vpop.f32.mrf.mxu0
    %v12811 = vadd.f32 %v12642, %v12810
    %12812 = vmatmul.bf16.gmra.mxu0 %v12076
    %v12813 = vpop.f32.mrf.mxu0
    %v12814 = vadd.f32 %v12645, %v12813
    %v12815 = vpop.f32.mrf.mxu0
    %v12816 = vadd.f32 %v12647, %v12815
    %12817 = vmatmul.bf16.gmra.mxu0 %v12079
    %v12818 = vpop.f32.mrf.mxu0
    %v12819 = vadd.f32 %v12650, %v12818
    %v12820 = vpop.f32.mrf.mxu0
    %v12821 = vadd.f32 %v12652, %v12820
    %12822 = vmatmul.bf16.gmra.mxu0 %v12082
    %v12823 = vpop.f32.mrf.mxu0
    %v12824 = vadd.f32 %v12655, %v12823
    %v12825 = vpop.f32.mrf.mxu0
    %v12826 = vadd.f32 %v12657, %v12825
    %12827 = vmatmul.bf16.gmra.mxu0 %v12085
    %v12828 = vpop.f32.mrf.mxu0
    %v12829 = vadd.f32 %v12660, %v12828
    %v12830 = vpop.f32.mrf.mxu0
    %v12831 = vadd.f32 %v12662, %v12830
    %12832 = vdwg.mxu0
    %v12833 = vadd.f32 %v11334, %v12674
    %v12834 = vadd.f32 %v11336, %v12676
    %v12835 = vadd.f32 %v11339, %v12679
    %v12836 = vadd.f32 %v11341, %v12681
    %v12837 = vadd.f32 %v11344, %v12684
    %v12838 = vadd.f32 %v11346, %v12686
    %v12839 = vadd.f32 %v11349, %v12689
    %v12840 = vadd.f32 %v11351, %v12691
    %v12841 = vadd.f32 %v11354, %v12694
    %v12842 = vadd.f32 %v11356, %v12696
    %v12843 = vadd.f32 %v11359, %v12699
    %v12844 = vadd.f32 %v11361, %v12701
    %v12845 = vadd.f32 %v11364, %v12704
    %v12846 = vadd.f32 %v11366, %v12706
    %v12847 = vadd.f32 %v11369, %v12709
    %v12848 = vadd.f32 %v11371, %v12711
    %v12849 = vadd.f32 %v11374, %v12714
    %v12850 = vadd.f32 %v11376, %v12716
    %v12851 = vadd.f32 %v11379, %v12719
    %v12852 = vadd.f32 %v11381, %v12721
    %v12853 = vadd.f32 %v11384, %v12724
    %v12854 = vadd.f32 %v11386, %v12726
    %v12855 = vadd.f32 %v11389, %v12729
    %v12856 = vadd.f32 %v11391, %v12731
    %v12857 = vadd.f32 %v11394, %v12734
    %v12858 = vadd.f32 %v11396, %v12736
    %v12859 = vadd.f32 %v11399, %v12739
    %v12860 = vadd.f32 %v11401, %v12741
    %v12861 = vadd.f32 %v11404, %v12744
    %v12862 = vadd.f32 %v11406, %v12746
    %v12863 = vadd.f32 %v11409, %v12749
    %v12864 = vadd.f32 %v11411, %v12751
    %v12865 = vadd.f32 %v11414, %v12754
    %v12866 = vadd.f32 %v11416, %v12756
    %v12867 = vadd.f32 %v11419, %v12759
    %v12868 = vadd.f32 %v11421, %v12761
    %v12869 = vadd.f32 %v11424, %v12764
    %v12870 = vadd.f32 %v11426, %v12766
    %v12871 = vadd.f32 %v11429, %v12769
    %v12872 = vadd.f32 %v11431, %v12771
    %v12873 = vadd.f32 %v11434, %v12774
    %v12874 = vadd.f32 %v11436, %v12776
    %v12875 = vadd.f32 %v11439, %v12779
    %v12876 = vadd.f32 %v11441, %v12781
    %v12877 = vadd.f32 %v11444, %v12784
    %v12878 = vadd.f32 %v11446, %v12786
    %v12879 = vadd.f32 %v11449, %v12789
    %v12880 = vadd.f32 %v11451, %v12791
    %v12881 = vadd.f32 %v11454, %v12794
    %v12882 = vadd.f32 %v11456, %v12796
    %v12883 = vadd.f32 %v11459, %v12799
    %v12884 = vadd.f32 %v11461, %v12801
    %v12885 = vadd.f32 %v11464, %v12804
    %v12886 = vadd.f32 %v11466, %v12806
    %v12887 = vadd.f32 %v11469, %v12809
    %v12888 = vadd.f32 %v11471, %v12811
    %v12889 = vadd.f32 %v11474, %v12814
    %v12890 = vadd.f32 %v11476, %v12816
    %v12891 = vadd.f32 %v11479, %v12819
    %v12892 = vadd.f32 %v11481, %v12821
    %v12893 = vadd.f32 %v11484, %v12824
    %v12894 = vadd.f32 %v11486, %v12826
    %v12895 = vadd.f32 %v11489, %v12829
    %v12896 = vadd.f32 %v11491, %v12831
    %v12897 = vld [vmem:[%s5] sm:$0x1]
    %v12898 = vld [vmem:[%s6] sm:$0x1]
    %v12899 = vsel %vm320, %v12833, 0.0
    %v12900 = vsel %vm320, %v12834, 0.0
    %v12901 = vadd.f32 %v12899, %v12900
    %v12902 = vsel %vm320, %v12835, 0.0
    %v12903 = vadd.f32 %v12901, %v12902
    %v12904 = vsel %vm320, %v12836, 0.0
    %v12905 = vadd.f32 %v12903, %v12904
    %v12906 = vsel %vm320, %v12837, 0.0
    %v12907 = vadd.f32 %v12905, %v12906
    %v12908 = vsel %vm320, %v12838, 0.0
    %v12909 = vadd.f32 %v12907, %v12908
    %v12910 = vsel %vm320, %v12839, 0.0
    %v12911 = vadd.f32 %v12909, %v12910
    %v12912 = vsel %vm320, %v12840, 0.0
    %v12913 = vadd.f32 %v12911, %v12912
    %v12914 = vsel %vm320, %v12841, 0.0
    %v12915 = vadd.f32 %v12913, %v12914
    %v12916 = vsel %vm320, %v12842, 0.0
    %v12917 = vadd.f32 %v12915, %v12916
    %v12918 = vsel %vm320, %v12843, 0.0
    %v12919 = vadd.f32 %v12917, %v12918
    %v12920 = vsel %vm320, %v12844, 0.0
    %v12921 = vadd.f32 %v12919, %v12920
    %v12922 = vsel %vm320, %v12845, 0.0
    %v12923 = vadd.f32 %v12921, %v12922
    %v12924 = vsel %vm320, %v12846, 0.0
    %v12925 = vadd.f32 %v12923, %v12924
    %v12926 = vsel %vm320, %v12847, 0.0
    %v12927 = vadd.f32 %v12925, %v12926
    %v12928 = vsel %vm320, %v12848, 0.0
    %v12929 = vadd.f32 %v12927, %v12928
    %v12930 = vsel %vm320, %v12849, 0.0
    %v12931 = vadd.f32 %v12929, %v12930
    %v12932 = vsel %vm320, %v12850, 0.0
    %v12933 = vadd.f32 %v12931, %v12932
    %v12934 = vsel %vm320, %v12851, 0.0
    %v12935 = vadd.f32 %v12933, %v12934
    %v12936 = vsel %vm320, %v12852, 0.0
    %v12937 = vadd.f32 %v12935, %v12936
    %v12938 = vsel %vm320, %v12853, 0.0
    %v12939 = vadd.f32 %v12937, %v12938
    %v12940 = vsel %vm320, %v12854, 0.0
    %v12941 = vadd.f32 %v12939, %v12940
    %v12942 = vsel %vm320, %v12855, 0.0
    %v12943 = vadd.f32 %v12941, %v12942
    %v12944 = vsel %vm320, %v12856, 0.0
    %v12945 = vadd.f32 %v12943, %v12944
    %v12946 = vsel %vm320, %v12857, 0.0
    %v12947 = vadd.f32 %v12945, %v12946
    %v12948 = vsel %vm320, %v12858, 0.0
    %v12949 = vadd.f32 %v12947, %v12948
    %v12950 = vsel %vm320, %v12859, 0.0
    %v12951 = vadd.f32 %v12949, %v12950
    %v12952 = vsel %vm320, %v12860, 0.0
    %v12953 = vadd.f32 %v12951, %v12952
    %v12954 = vsel %vm320, %v12861, 0.0
    %v12955 = vadd.f32 %v12953, %v12954
    %v12956 = vsel %vm320, %v12862, 0.0
    %v12957 = vadd.f32 %v12955, %v12956
    %v12958 = vsel %vm320, %v12863, 0.0
    %v12959 = vadd.f32 %v12957, %v12958
    %v12960 = vsel %vm320, %v12864, 0.0
    %v12961 = vadd.f32 %v12959, %v12960
    %v12962 = vsel %vm320, %v12865, 0.0
    %v12963 = vadd.f32 %v12961, %v12962
    %v12964 = vsel %vm320, %v12866, 0.0
    %v12965 = vadd.f32 %v12963, %v12964
    %v12966 = vsel %vm320, %v12867, 0.0
    %v12967 = vadd.f32 %v12965, %v12966
    %v12968 = vsel %vm320, %v12868, 0.0
    %v12969 = vadd.f32 %v12967, %v12968
    %v12970 = vsel %vm320, %v12869, 0.0
    %v12971 = vadd.f32 %v12969, %v12970
    %v12972 = vsel %vm320, %v12870, 0.0
    %v12973 = vadd.f32 %v12971, %v12972
    %v12974 = vsel %vm320, %v12871, 0.0
    %v12975 = vadd.f32 %v12973, %v12974
    %v12976 = vsel %vm320, %v12872, 0.0
    %v12977 = vadd.f32 %v12975, %v12976
    %v12978 = vsel %vm320, %v12873, 0.0
    %v12979 = vadd.f32 %v12977, %v12978
    %v12980 = vsel %vm320, %v12874, 0.0
    %v12981 = vadd.f32 %v12979, %v12980
    %v12982 = vsel %vm320, %v12875, 0.0
    %v12983 = vadd.f32 %v12981, %v12982
    %v12984 = vsel %vm320, %v12876, 0.0
    %v12985 = vadd.f32 %v12983, %v12984
    %v12986 = vsel %vm320, %v12877, 0.0
    %v12987 = vadd.f32 %v12985, %v12986
    %v12988 = vsel %vm320, %v12878, 0.0
    %v12989 = vadd.f32 %v12987, %v12988
    %v12990 = vsel %vm320, %v12879, 0.0
    %v12991 = vadd.f32 %v12989, %v12990
    %v12992 = vsel %vm320, %v12880, 0.0
    %v12993 = vadd.f32 %v12991, %v12992
    %v12994 = vsel %vm320, %v12881, 0.0
    %v12995 = vadd.f32 %v12993, %v12994
    %v12996 = vsel %vm320, %v12882, 0.0
    %v12997 = vadd.f32 %v12995, %v12996
    %v12998 = vsel %vm320, %v12883, 0.0
    %v12999 = vadd.f32 %v12997, %v12998
    %v13000 = vsel %vm320, %v12884, 0.0
    %v13001 = vadd.f32 %v12999, %v13000
    %v13002 = vsel %vm320, %v12885, 0.0
    %v13003 = vadd.f32 %v13001, %v13002
    %v13004 = vsel %vm320, %v12886, 0.0
    %v13005 = vadd.f32 %v13003, %v13004
    %v13006 = vsel %vm320, %v12887, 0.0
    %v13007 = vadd.f32 %v13005, %v13006
    %v13008 = vsel %vm320, %v12888, 0.0
    %v13009 = vadd.f32 %v13007, %v13008
    %v13010 = vsel %vm320, %v12889, 0.0
    %v13011 = vadd.f32 %v13009, %v13010
    %v13012 = vsel %vm320, %v12890, 0.0
    %v13013 = vadd.f32 %v13011, %v13012
    %v13014 = vsel %vm320, %v12891, 0.0
    %v13015 = vadd.f32 %v13013, %v13014
    %v13016 = vsel %vm320, %v12892, 0.0
    %v13017 = vadd.f32 %v13015, %v13016
    %v13018 = vsel %vm320, %v12893, 0.0
    %v13019 = vadd.f32 %v13017, %v13018
    %v13020 = vsel %vm320, %v12894, 0.0
    %v13021 = vadd.f32 %v13019, %v13020
    %v13022 = vsel %vm320, %v12895, 0.0
    %v13023 = vadd.f32 %v13021, %v13022
    %v13024 = vsel %vm320, %v12896, 0.0
    %v13025 = vadd.f32 %v13023, %v13024
    %v13026 = vrot.slane %v13025, 4
    %v13027 = vadd.f32 %v13025, %v13026
    %v13028 = vrot.slane %v13027, 2
    %v13029 = vadd.f32 %v13027, %v13028
    %v13030 = vrot.slane %v13029, 1
    %v13031 = vadd.f32 %v13029, %v13030
    %v13032 = vmul.f32 %v12833, %v12833
    %v13033 = vmul.f32 %v12834, %v12834
    %v13034 = vmul.f32 %v12835, %v12835
    %v13035 = vmul.f32 %v12836, %v12836
    %v13036 = vmul.f32 %v12837, %v12837
    %v13037 = vmul.f32 %v12838, %v12838
    %v13038 = vmul.f32 %v12839, %v12839
    %v13039 = vmul.f32 %v12840, %v12840
    %v13040 = vmul.f32 %v12841, %v12841
    %v13041 = vmul.f32 %v12842, %v12842
    %v13042 = vmul.f32 %v12843, %v12843
    %v13043 = vmul.f32 %v12844, %v12844
    %v13044 = vmul.f32 %v12845, %v12845
    %v13045 = vmul.f32 %v12846, %v12846
    %v13046 = vmul.f32 %v12847, %v12847
    %v13047 = vmul.f32 %v12848, %v12848
    %v13048 = vmul.f32 %v12849, %v12849
    %v13049 = vmul.f32 %v12850, %v12850
    %v13050 = vmul.f32 %v12851, %v12851
    %v13051 = vmul.f32 %v12852, %v12852
    %v13052 = vmul.f32 %v12853, %v12853
    %v13053 = vmul.f32 %v12854, %v12854
    %v13054 = vmul.f32 %v12855, %v12855
    %v13055 = vmul.f32 %v12856, %v12856
    %v13056 = vmul.f32 %v12857, %v12857
    %v13057 = vmul.f32 %v12858, %v12858
    %v13058 = vmul.f32 %v12859, %v12859
    %v13059 = vmul.f32 %v12860, %v12860
    %v13060 = vmul.f32 %v12861, %v12861
    %v13061 = vmul.f32 %v12862, %v12862
    %v13062 = vmul.f32 %v12863, %v12863
    %v13063 = vmul.f32 %v12864, %v12864
    %v13064 = vmul.f32 %v12865, %v12865
    %v13065 = vmul.f32 %v12866, %v12866
    %v13066 = vmul.f32 %v12867, %v12867
    %v13067 = vmul.f32 %v12868, %v12868
    %v13068 = vmul.f32 %v12869, %v12869
    %v13069 = vmul.f32 %v12870, %v12870
    %v13070 = vmul.f32 %v12871, %v12871
    %v13071 = vmul.f32 %v12872, %v12872
    %v13072 = vmul.f32 %v12873, %v12873
    %v13073 = vmul.f32 %v12874, %v12874
    %v13074 = vmul.f32 %v12875, %v12875
    %v13075 = vmul.f32 %v12876, %v12876
    %v13076 = vmul.f32 %v12877, %v12877
    %v13077 = vmul.f32 %v12878, %v12878
    %v13078 = vmul.f32 %v12879, %v12879
    %v13079 = vmul.f32 %v12880, %v12880
    %v13080 = vmul.f32 %v12881, %v12881
    %v13081 = vmul.f32 %v12882, %v12882
    %v13082 = vmul.f32 %v12883, %v12883
    %v13083 = vmul.f32 %v12884, %v12884
    %v13084 = vmul.f32 %v12885, %v12885
    %v13085 = vmul.f32 %v12886, %v12886
    %v13086 = vmul.f32 %v12887, %v12887
    %v13087 = vmul.f32 %v12888, %v12888
    %v13088 = vmul.f32 %v12889, %v12889
    %v13089 = vmul.f32 %v12890, %v12890
    %v13090 = vmul.f32 %v12891, %v12891
    %v13091 = vmul.f32 %v12892, %v12892
    %v13092 = vmul.f32 %v12893, %v12893
    %v13093 = vmul.f32 %v12894, %v12894
    %v13094 = vmul.f32 %v12895, %v12895
    %v13095 = vmul.f32 %v12896, %v12896
    %v13096 = vsel %vm320, %v13032, 0.0
    %v13097 = vsel %vm320, %v13033, 0.0
    %v13098 = vadd.f32 %v13096, %v13097
    %v13099 = vsel %vm320, %v13034, 0.0
    %v13100 = vadd.f32 %v13098, %v13099
    %v13101 = vsel %vm320, %v13035, 0.0
    %v13102 = vadd.f32 %v13100, %v13101
    %v13103 = vsel %vm320, %v13036, 0.0
    %v13104 = vadd.f32 %v13102, %v13103
    %v13105 = vsel %vm320, %v13037, 0.0
    %v13106 = vadd.f32 %v13104, %v13105
    %v13107 = vsel %vm320, %v13038, 0.0
    %v13108 = vadd.f32 %v13106, %v13107
    %v13109 = vsel %vm320, %v13039, 0.0
    %v13110 = vadd.f32 %v13108, %v13109
    %v13111 = vsel %vm320, %v13040, 0.0
    %v13112 = vadd.f32 %v13110, %v13111
    %v13113 = vsel %vm320, %v13041, 0.0
    %v13114 = vadd.f32 %v13112, %v13113
    %v13115 = vsel %vm320, %v13042, 0.0
    %v13116 = vadd.f32 %v13114, %v13115
    %v13117 = vsel %vm320, %v13043, 0.0
    %v13118 = vadd.f32 %v13116, %v13117
    %v13119 = vsel %vm320, %v13044, 0.0
    %v13120 = vadd.f32 %v13118, %v13119
    %v13121 = vsel %vm320, %v13045, 0.0
    %v13122 = vadd.f32 %v13120, %v13121
    %v13123 = vsel %vm320, %v13046, 0.0
    %v13124 = vadd.f32 %v13122, %v13123
    %v13125 = vsel %vm320, %v13047, 0.0
    %v13126 = vadd.f32 %v13124, %v13125
    %v13127 = vsel %vm320, %v13048, 0.0
    %v13128 = vadd.f32 %v13126, %v13127
    %v13129 = vsel %vm320, %v13049, 0.0
    %v13130 = vadd.f32 %v13128, %v13129
    %v13131 = vsel %vm320, %v13050, 0.0
    %v13132 = vadd.f32 %v13130, %v13131
    %v13133 = vsel %vm320, %v13051, 0.0
    %v13134 = vadd.f32 %v13132, %v13133
    %v13135 = vsel %vm320, %v13052, 0.0
    %v13136 = vadd.f32 %v13134, %v13135
    %v13137 = vsel %vm320, %v13053, 0.0
    %v13138 = vadd.f32 %v13136, %v13137
    %v13139 = vsel %vm320, %v13054, 0.0
    %v13140 = vadd.f32 %v13138, %v13139
    %v13141 = vsel %vm320, %v13055, 0.0
    %v13142 = vadd.f32 %v13140, %v13141
    %v13143 = vsel %vm320, %v13056, 0.0
    %v13144 = vadd.f32 %v13142, %v13143
    %v13145 = vsel %vm320, %v13057, 0.0
    %v13146 = vadd.f32 %v13144, %v13145
    %v13147 = vsel %vm320, %v13058, 0.0
    %v13148 = vadd.f32 %v13146, %v13147
    %v13149 = vsel %vm320, %v13059, 0.0
    %v13150 = vadd.f32 %v13148, %v13149
    %v13151 = vsel %vm320, %v13060, 0.0
    %v13152 = vadd.f32 %v13150, %v13151
    %v13153 = vsel %vm320, %v13061, 0.0
    %v13154 = vadd.f32 %v13152, %v13153
    %v13155 = vsel %vm320, %v13062, 0.0
    %v13156 = vadd.f32 %v13154, %v13155
    %v13157 = vsel %vm320, %v13063, 0.0
    %v13158 = vadd.f32 %v13156, %v13157
    %v13159 = vsel %vm320, %v13064, 0.0
    %v13160 = vadd.f32 %v13158, %v13159
    %v13161 = vsel %vm320, %v13065, 0.0
    %v13162 = vadd.f32 %v13160, %v13161
    %v13163 = vsel %vm320, %v13066, 0.0
    %v13164 = vadd.f32 %v13162, %v13163
    %v13165 = vsel %vm320, %v13067, 0.0
    %v13166 = vadd.f32 %v13164, %v13165
    %v13167 = vsel %vm320, %v13068, 0.0
    %v13168 = vadd.f32 %v13166, %v13167
    %v13169 = vsel %vm320, %v13069, 0.0
    %v13170 = vadd.f32 %v13168, %v13169
    %v13171 = vsel %vm320, %v13070, 0.0
    %v13172 = vadd.f32 %v13170, %v13171
    %v13173 = vsel %vm320, %v13071, 0.0
    %v13174 = vadd.f32 %v13172, %v13173
    %v13175 = vsel %vm320, %v13072, 0.0
    %v13176 = vadd.f32 %v13174, %v13175
    %v13177 = vsel %vm320, %v13073, 0.0
    %v13178 = vadd.f32 %v13176, %v13177
    %v13179 = vsel %vm320, %v13074, 0.0
    %v13180 = vadd.f32 %v13178, %v13179
    %v13181 = vsel %vm320, %v13075, 0.0
    %v13182 = vadd.f32 %v13180, %v13181
    %v13183 = vsel %vm320, %v13076, 0.0
    %v13184 = vadd.f32 %v13182, %v13183
    %v13185 = vsel %vm320, %v13077, 0.0
    %v13186 = vadd.f32 %v13184, %v13185
    %v13187 = vsel %vm320, %v13078, 0.0
    %v13188 = vadd.f32 %v13186, %v13187
    %v13189 = vsel %vm320, %v13079, 0.0
    %v13190 = vadd.f32 %v13188, %v13189
    %v13191 = vsel %vm320, %v13080, 0.0
    %v13192 = vadd.f32 %v13190, %v13191
    %v13193 = vsel %vm320, %v13081, 0.0
    %v13194 = vadd.f32 %v13192, %v13193
    %v13195 = vsel %vm320, %v13082, 0.0
    %v13196 = vadd.f32 %v13194, %v13195
    %v13197 = vsel %vm320, %v13083, 0.0
    %v13198 = vadd.f32 %v13196, %v13197
    %v13199 = vsel %vm320, %v13084, 0.0
    %v13200 = vadd.f32 %v13198, %v13199
    %v13201 = vsel %vm320, %v13085, 0.0
    %v13202 = vadd.f32 %v13200, %v13201
    %v13203 = vsel %vm320, %v13086, 0.0
    %v13204 = vadd.f32 %v13202, %v13203
    %v13205 = vsel %vm320, %v13087, 0.0
    %v13206 = vadd.f32 %v13204, %v13205
    %v13207 = vsel %vm320, %v13088, 0.0
    %v13208 = vadd.f32 %v13206, %v13207
    %v13209 = vsel %vm320, %v13089, 0.0
    %v13210 = vadd.f32 %v13208, %v13209
    %v13211 = vsel %vm320, %v13090, 0.0
    %v13212 = vadd.f32 %v13210, %v13211
    %v13213 = vsel %vm320, %v13091, 0.0
    %v13214 = vadd.f32 %v13212, %v13213
    %v13215 = vsel %vm320, %v13092, 0.0
    %v13216 = vadd.f32 %v13214, %v13215
    %v13217 = vsel %vm320, %v13093, 0.0
    %v13218 = vadd.f32 %v13216, %v13217
    %v13219 = vsel %vm320, %v13094, 0.0
    %v13220 = vadd.f32 %v13218, %v13219
    %v13221 = vsel %vm320, %v13095, 0.0
    %v13222 = vadd.f32 %v13220, %v13221
    %v13223 = vrot.slane %v13222, 4
    %v13224 = vadd.f32 %v13222, %v13223
    %v13225 = vrot.slane %v13224, 2
    %v13226 = vadd.f32 %v13224, %v13225
    %v13227 = vrot.slane %v13226, 1
    %v13228 = vadd.f32 %v13226, %v13227
    %v13229 = vmul.f32 %v13031, 0.001953125
    %v13230 = vmul.f32 %v13228, 0.001953125
    %v13231 = vmul.f32 %v13229, %v13229
    %v13232 = vsub.f32 %v13230, %v13231
    %v13233 = vmax.f32 %v13232, 0.0
    %v13234 = vadd.f32 %v13233, 1e-05
    %v13235 = vrsqrt.pop %v13234
    %v13236 = vmul.f32 %v13235, %v13234
    %v13237 = vmul.f32 %v13236, %v13235
    %v13238 = vmul.f32 0.5, %v13237
    %v13239 = vsub.f32 1.5, %v13238
    %v13240 = vmul.f32 %v13235, %v13239
    %vm13241 = vweird.f32 %v13234
    %vm13242 = vweird.f32 %v13235
    %vm13243 = vmor %vm13241, %vm13242
    %v13244 = vsel %vm13243, %v13235, %v13240
    %v13245 = vmul.f32 %v12897, %v13244
    %v13247 = vperm.slane %v13245, 0
    %v13249 = vmul.f32 %v12833, %v13247
    %v13250 = vmul.f32 %v12834, %v13247
    %v13251 = vmul.f32 %v12835, %v13247
    %v13252 = vmul.f32 %v12836, %v13247
    %v13253 = vmul.f32 %v12837, %v13247
    %v13254 = vmul.f32 %v12838, %v13247
    %v13255 = vmul.f32 %v12839, %v13247
    %v13256 = vmul.f32 %v12840, %v13247
    %v13257 = vmul.f32 %v12841, %v13247
    %v13258 = vmul.f32 %v12842, %v13247
    %v13259 = vmul.f32 %v12843, %v13247
    %v13260 = vmul.f32 %v12844, %v13247
    %v13261 = vmul.f32 %v12845, %v13247
    %v13262 = vmul.f32 %v12846, %v13247
    %v13263 = vmul.f32 %v12847, %v13247
    %v13264 = vmul.f32 %v12848, %v13247
    %v13265 = vmul.f32 %v12849, %v13247
    %v13266 = vmul.f32 %v12850, %v13247
    %v13267 = vmul.f32 %v12851, %v13247
    %v13268 = vmul.f32 %v12852, %v13247
    %v13269 = vmul.f32 %v12853, %v13247
    %v13270 = vmul.f32 %v12854, %v13247
    %v13271 = vmul.f32 %v12855, %v13247
    %v13272 = vmul.f32 %v12856, %v13247
    %v13273 = vmul.f32 %v12857, %v13247
    %v13274 = vmul.f32 %v12858, %v13247
    %v13275 = vmul.f32 %v12859, %v13247
    %v13276 = vmul.f32 %v12860, %v13247
    %v13277 = vmul.f32 %v12861, %v13247
    %v13278 = vmul.f32 %v12862, %v13247
    %v13279 = vmul.f32 %v12863, %v13247
    %v13280 = vmul.f32 %v12864, %v13247
    %v13281 = vmul.f32 %v12865, %v13247
    %v13282 = vmul.f32 %v12866, %v13247
    %v13283 = vmul.f32 %v12867, %v13247
    %v13284 = vmul.f32 %v12868, %v13247
    %v13285 = vmul.f32 %v12869, %v13247
    %v13286 = vmul.f32 %v12870, %v13247
    %v13287 = vmul.f32 %v12871, %v13247
    %v13288 = vmul.f32 %v12872, %v13247
    %v13289 = vmul.f32 %v12873, %v13247
    %v13290 = vmul.f32 %v12874, %v13247
    %v13291 = vmul.f32 %v12875, %v13247
    %v13292 = vmul.f32 %v12876, %v13247
    %v13293 = vmul.f32 %v12877, %v13247
    %v13294 = vmul.f32 %v12878, %v13247
    %v13295 = vmul.f32 %v12879, %v13247
    %v13296 = vmul.f32 %v12880, %v13247
    %v13297 = vmul.f32 %v12881, %v13247
    %v13298 = vmul.f32 %v12882, %v13247
    %v13299 = vmul.f32 %v12883, %v13247
    %v13300 = vmul.f32 %v12884, %v13247
    %v13301 = vmul.f32 %v12885, %v13247
    %v13302 = vmul.f32 %v12886, %v13247
    %v13303 = vmul.f32 %v12887, %v13247
    %v13304 = vmul.f32 %v12888, %v13247
    %v13305 = vmul.f32 %v12889, %v13247
    %v13306 = vmul.f32 %v12890, %v13247
    %v13307 = vmul.f32 %v12891, %v13247
    %v13308 = vmul.f32 %v12892, %v13247
    %v13309 = vmul.f32 %v12893, %v13247
    %v13310 = vmul.f32 %v12894, %v13247
    %v13311 = vmul.f32 %v12895, %v13247
    %v13312 = vmul.f32 %v12896, %v13247
    %v13313 = vmul.f32 %v13229, %v13245
    %v13314 = vsub.f32 %v12898, %v13313
    %v13316 = vperm.slane %v13314, 0
    %v13318 = vadd.f32 %v13249, %v13316
    %v13319 = vadd.f32 %v13250, %v13316
    %v13320 = vadd.f32 %v13251, %v13316
    %v13321 = vadd.f32 %v13252, %v13316
    %v13322 = vadd.f32 %v13253, %v13316
    %v13323 = vadd.f32 %v13254, %v13316
    %v13324 = vadd.f32 %v13255, %v13316
    %v13325 = vadd.f32 %v13256, %v13316
    %v13326 = vadd.f32 %v13257, %v13316
    %v13327 = vadd.f32 %v13258, %v13316
    %v13328 = vadd.f32 %v13259, %v13316
    %v13329 = vadd.f32 %v13260, %v13316
    %v13330 = vadd.f32 %v13261, %v13316
    %v13331 = vadd.f32 %v13262, %v13316
    %v13332 = vadd.f32 %v13263, %v13316
    %v13333 = vadd.f32 %v13264, %v13316
    %v13334 = vadd.f32 %v13265, %v13316
    %v13335 = vadd.f32 %v13266, %v13316
    %v13336 = vadd.f32 %v13267, %v13316
    %v13337 = vadd.f32 %v13268, %v13316
    %v13338 = vadd.f32 %v13269, %v13316
    %v13339 = vadd.f32 %v13270, %v13316
    %v13340 = vadd.f32 %v13271, %v13316
    %v13341 = vadd.f32 %v13272, %v13316
    %v13342 = vadd.f32 %v13273, %v13316
    %v13343 = vadd.f32 %v13274, %v13316
    %v13344 = vadd.f32 %v13275, %v13316
    %v13345 = vadd.f32 %v13276, %v13316
    %v13346 = vadd.f32 %v13277, %v13316
    %v13347 = vadd.f32 %v13278, %v13316
    %v13348 = vadd.f32 %v13279, %v13316
    %v13349 = vadd.f32 %v13280, %v13316
    %v13350 = vadd.f32 %v13281, %v13316
    %v13351 = vadd.f32 %v13282, %v13316
    %v13352 = vadd.f32 %v13283, %v13316
    %v13353 = vadd.f32 %v13284, %v13316
    %v13354 = vadd.f32 %v13285, %v13316
    %v13355 = vadd.f32 %v13286, %v13316
    %v13356 = vadd.f32 %v13287, %v13316
    %v13357 = vadd.f32 %v13288, %v13316
    %v13358 = vadd.f32 %v13289, %v13316
    %v13359 = vadd.f32 %v13290, %v13316
    %v13360 = vadd.f32 %v13291, %v13316
    %v13361 = vadd.f32 %v13292, %v13316
    %v13362 = vadd.f32 %v13293, %v13316
    %v13363 = vadd.f32 %v13294, %v13316
    %v13364 = vadd.f32 %v13295, %v13316
    %v13365 = vadd.f32 %v13296, %v13316
    %v13366 = vadd.f32 %v13297, %v13316
    %v13367 = vadd.f32 %v13298, %v13316
    %v13368 = vadd.f32 %v13299, %v13316
    %v13369 = vadd.f32 %v13300, %v13316
    %v13370 = vadd.f32 %v13301, %v13316
    %v13371 = vadd.f32 %v13302, %v13316
    %v13372 = vadd.f32 %v13303, %v13316
    %v13373 = vadd.f32 %v13304, %v13316
    %v13374 = vadd.f32 %v13305, %v13316
    %v13375 = vadd.f32 %v13306, %v13316
    %v13376 = vadd.f32 %v13307, %v13316
    %v13377 = vadd.f32 %v13308, %v13316
    %v13378 = vadd.f32 %v13309, %v13316
    %v13379 = vadd.f32 %v13310, %v13316
    %v13380 = vadd.f32 %v13311, %v13316
    %v13381 = vadd.f32 %v13312, %v13316
    %v13382 = vld [vmem:[%s0] sm:$0xff]
    %v13383 = vld [vmem:[%s0 + $0x8] sm:$0xff]
    %v13384 = vld [vmem:[%s0 + $0x10] sm:$0xff]
    %v13385 = vld [vmem:[%s0 + $0x18] sm:$0xff]
    %v13386 = vld [vmem:[%s0 + $0x20] sm:$0xff]
    %v13387 = vld [vmem:[%s0 + $0x28] sm:$0xff]
    %v13388 = vld [vmem:[%s0 + $0x30] sm:$0xff]
    %v13389 = vld [vmem:[%s0 + $0x38] sm:$0xff]
    %v13390 = vld [vmem:[%s0 + $0x40] sm:$0xff]
    %v13391 = vld [vmem:[%s0 + $0x48] sm:$0xff]
    %v13392 = vld [vmem:[%s0 + $0x50] sm:$0xff]
    %v13393 = vld [vmem:[%s0 + $0x58] sm:$0xff]
    %v13394 = vld [vmem:[%s0 + $0x60] sm:$0xff]
    %v13395 = vld [vmem:[%s0 + $0x68] sm:$0xff]
    %v13396 = vld [vmem:[%s0 + $0x70] sm:$0xff]
    %v13397 = vld [vmem:[%s0 + $0x78] sm:$0xff]
    %v13398 = vld [vmem:[%s0 + $0x80] sm:$0xff]
    %v13399 = vld [vmem:[%s0 + $0x88] sm:$0xff]
    %v13400 = vld [vmem:[%s0 + $0x90] sm:$0xff]
    %v13401 = vld [vmem:[%s0 + $0x98] sm:$0xff]
    %v13402 = vld [vmem:[%s0 + $0xa0] sm:$0xff]
    %v13403 = vld [vmem:[%s0 + $0xa8] sm:$0xff]
    %v13404 = vld [vmem:[%s0 + $0xb0] sm:$0xff]
    %v13405 = vld [vmem:[%s0 + $0xb8] sm:$0xff]
    %v13406 = vld [vmem:[%s0 + $0xc0] sm:$0xff]
    %v13407 = vld [vmem:[%s0 + $0xc8] sm:$0xff]
    %v13408 = vld [vmem:[%s0 + $0xd0] sm:$0xff]
    %v13409 = vld [vmem:[%s0 + $0xd8] sm:$0xff]
    %v13410 = vld [vmem:[%s0 + $0xe0] sm:$0xff]
    %v13411 = vld [vmem:[%s0 + $0xe8] sm:$0xff]
    %v13412 = vld [vmem:[%s0 + $0xf0] sm:$0xff]
    %v13413 = vld [vmem:[%s0 + $0xf8] sm:$0xff]
    %v13414 = vld [vmem:[%s0 + $0x100] sm:$0xff]
    %v13415 = vld [vmem:[%s0 + $0x108] sm:$0xff]
    %v13416 = vld [vmem:[%s0 + $0x110] sm:$0xff]
    %v13417 = vld [vmem:[%s0 + $0x118] sm:$0xff]
    %v13418 = vld [vmem:[%s0 + $0x120] sm:$0xff]
    %v13419 = vld [vmem:[%s0 + $0x128] sm:$0xff]
    %v13420 = vld [vmem:[%s0 + $0x130] sm:$0xff]
    %v13421 = vld [vmem:[%s0 + $0x138] sm:$0xff]
    %v13422 = vld [vmem:[%s0 + $0x140] sm:$0xff]
    %v13423 = vld [vmem:[%s0 + $0x148] sm:$0xff]
    %v13424 = vld [vmem:[%s0 + $0x150] sm:$0xff]
    %v13425 = vld [vmem:[%s0 + $0x158] sm:$0xff]
    %v13426 = vld [vmem:[%s0 + $0x160] sm:$0xff]
    %v13427 = vld [vmem:[%s0 + $0x168] sm:$0xff]
    %v13428 = vld [vmem:[%s0 + $0x170] sm:$0xff]
    %v13429 = vld [vmem:[%s0 + $0x178] sm:$0xff]
    %v13430 = vld [vmem:[%s0 + $0x180] sm:$0xff]
    %v13431 = vld [vmem:[%s0 + $0x188] sm:$0xff]
    %v13432 = vld [vmem:[%s0 + $0x190] sm:$0xff]
    %v13433 = vld [vmem:[%s0 + $0x198] sm:$0xff]
    %v13434 = vld [vmem:[%s0 + $0x1a0] sm:$0xff]
    %v13435 = vld [vmem:[%s0 + $0x1a8] sm:$0xff]
    %v13436 = vld [vmem:[%s0 + $0x1b0] sm:$0xff]
    %v13437 = vld [vmem:[%s0 + $0x1b8] sm:$0xff]
    %v13438 = vld [vmem:[%s0 + $0x1c0] sm:$0xff]
    %v13439 = vld [vmem:[%s0 + $0x1c8] sm:$0xff]
    %v13440 = vld [vmem:[%s0 + $0x1d0] sm:$0xff]
    %v13441 = vld [vmem:[%s0 + $0x1d8] sm:$0xff]
    %v13442 = vld [vmem:[%s0 + $0x1e0] sm:$0xff]
    %v13443 = vld [vmem:[%s0 + $0x1e8] sm:$0xff]
    %v13444 = vld [vmem:[%s0 + $0x1f0] sm:$0xff]
    %v13445 = vld [vmem:[%s0 + $0x1f8] sm:$0xff]
    %v13446 = vadd.f32 %v13318, %v13382
    %v13447 = vadd.f32 %v13319, %v13383
    %v13448 = vadd.f32 %v13320, %v13384
    %v13449 = vadd.f32 %v13321, %v13385
    %v13450 = vadd.f32 %v13322, %v13386
    %v13451 = vadd.f32 %v13323, %v13387
    %v13452 = vadd.f32 %v13324, %v13388
    %v13453 = vadd.f32 %v13325, %v13389
    %v13454 = vadd.f32 %v13326, %v13390
    %v13455 = vadd.f32 %v13327, %v13391
    %v13456 = vadd.f32 %v13328, %v13392
    %v13457 = vadd.f32 %v13329, %v13393
    %v13458 = vadd.f32 %v13330, %v13394
    %v13459 = vadd.f32 %v13331, %v13395
    %v13460 = vadd.f32 %v13332, %v13396
    %v13461 = vadd.f32 %v13333, %v13397
    %v13462 = vadd.f32 %v13334, %v13398
    %v13463 = vadd.f32 %v13335, %v13399
    %v13464 = vadd.f32 %v13336, %v13400
    %v13465 = vadd.f32 %v13337, %v13401
    %v13466 = vadd.f32 %v13338, %v13402
    %v13467 = vadd.f32 %v13339, %v13403
    %v13468 = vadd.f32 %v13340, %v13404
    %v13469 = vadd.f32 %v13341, %v13405
    %v13470 = vadd.f32 %v13342, %v13406
    %v13471 = vadd.f32 %v13343, %v13407
    %v13472 = vadd.f32 %v13344, %v13408
    %v13473 = vadd.f32 %v13345, %v13409
    %v13474 = vadd.f32 %v13346, %v13410
    %v13475 = vadd.f32 %v13347, %v13411
    %v13476 = vadd.f32 %v13348, %v13412
    %v13477 = vadd.f32 %v13349, %v13413
    %v13478 = vadd.f32 %v13350, %v13414
    %v13479 = vadd.f32 %v13351, %v13415
    %v13480 = vadd.f32 %v13352, %v13416
    %v13481 = vadd.f32 %v13353, %v13417
    %v13482 = vadd.f32 %v13354, %v13418
    %v13483 = vadd.f32 %v13355, %v13419
    %v13484 = vadd.f32 %v13356, %v13420
    %v13485 = vadd.f32 %v13357, %v13421
    %v13486 = vadd.f32 %v13358, %v13422
    %v13487 = vadd.f32 %v13359, %v13423
    %v13488 = vadd.f32 %v13360, %v13424
    %v13489 = vadd.f32 %v13361, %v13425
    %v13490 = vadd.f32 %v13362, %v13426
    %v13491 = vadd.f32 %v13363, %v13427
    %v13492 = vadd.f32 %v13364, %v13428
    %v13493 = vadd.f32 %v13365, %v13429
    %v13494 = vadd.f32 %v13366, %v13430
    %v13495 = vadd.f32 %v13367, %v13431
    %v13496 = vadd.f32 %v13368, %v13432
    %v13497 = vadd.f32 %v13369, %v13433
    %v13498 = vadd.f32 %v13370, %v13434
    %v13499 = vadd.f32 %v13371, %v13435
    %v13500 = vadd.f32 %v13372, %v13436
    %v13501 = vadd.f32 %v13373, %v13437
    %v13502 = vadd.f32 %v13374, %v13438
    %v13503 = vadd.f32 %v13375, %v13439
    %v13504 = vadd.f32 %v13376, %v13440
    %v13505 = vadd.f32 %v13377, %v13441
    %v13506 = vadd.f32 %v13378, %v13442
    %v13507 = vadd.f32 %v13379, %v13443
    %v13508 = vadd.f32 %v13380, %v13444
    %v13509 = vadd.f32 %v13381, %v13445
    %13510 = vst.msk [vmem:[#allocation4] sm:$0xff] %vm320, %v13446
    %13511 = vst.msk [vmem:[#allocation4 + $0x8] sm:$0xff] %vm320, %v13447
    %13512 = vst.msk [vmem:[#allocation4 + $0x10] sm:$0xff] %vm320, %v13448
    %13513 = vst.msk [vmem:[#allocation4 + $0x18] sm:$0xff] %vm320, %v13449
    %13514 = vst.msk [vmem:[#allocation4 + $0x20] sm:$0xff] %vm320, %v13450
    %13515 = vst.msk [vmem:[#allocation4 + $0x28] sm:$0xff] %vm320, %v13451
    %13516 = vst.msk [vmem:[#allocation4 + $0x30] sm:$0xff] %vm320, %v13452
    %13517 = vst.msk [vmem:[#allocation4 + $0x38] sm:$0xff] %vm320, %v13453
    %13518 = vst.msk [vmem:[#allocation4 + $0x40] sm:$0xff] %vm320, %v13454
    %13519 = vst.msk [vmem:[#allocation4 + $0x48] sm:$0xff] %vm320, %v13455
    %13520 = vst.msk [vmem:[#allocation4 + $0x50] sm:$0xff] %vm320, %v13456
    %13521 = vst.msk [vmem:[#allocation4 + $0x58] sm:$0xff] %vm320, %v13457
    %13522 = vst.msk [vmem:[#allocation4 + $0x60] sm:$0xff] %vm320, %v13458
    %13523 = vst.msk [vmem:[#allocation4 + $0x68] sm:$0xff] %vm320, %v13459
    %13524 = vst.msk [vmem:[#allocation4 + $0x70] sm:$0xff] %vm320, %v13460
    %13525 = vst.msk [vmem:[#allocation4 + $0x78] sm:$0xff] %vm320, %v13461
    %13526 = vst.msk [vmem:[#allocation4 + $0x80] sm:$0xff] %vm320, %v13462
    %13527 = vst.msk [vmem:[#allocation4 + $0x88] sm:$0xff] %vm320, %v13463
    %13528 = vst.msk [vmem:[#allocation4 + $0x90] sm:$0xff] %vm320, %v13464
    %13529 = vst.msk [vmem:[#allocation4 + $0x98] sm:$0xff] %vm320, %v13465
    %13530 = vst.msk [vmem:[#allocation4 + $0xa0] sm:$0xff] %vm320, %v13466
    %13531 = vst.msk [vmem:[#allocation4 + $0xa8] sm:$0xff] %vm320, %v13467
    %13532 = vst.msk [vmem:[#allocation4 + $0xb0] sm:$0xff] %vm320, %v13468
    %13533 = vst.msk [vmem:[#allocation4 + $0xb8] sm:$0xff] %vm320, %v13469
    %13534 = vst.msk [vmem:[#allocation4 + $0xc0] sm:$0xff] %vm320, %v13470
    %13535 = vst.msk [vmem:[#allocation4 + $0xc8] sm:$0xff] %vm320, %v13471
    %13536 = vst.msk [vmem:[#allocation4 + $0xd0] sm:$0xff] %vm320, %v13472
    %13537 = vst.msk [vmem:[#allocation4 + $0xd8] sm:$0xff] %vm320, %v13473
    %13538 = vst.msk [vmem:[#allocation4 + $0xe0] sm:$0xff] %vm320, %v13474
    %13539 = vst.msk [vmem:[#allocation4 + $0xe8] sm:$0xff] %vm320, %v13475
    %13540 = vst.msk [vmem:[#allocation4 + $0xf0] sm:$0xff] %vm320, %v13476
    %13541 = vst.msk [vmem:[#allocation4 + $0xf8] sm:$0xff] %vm320, %v13477
    %13542 = vst.msk [vmem:[#allocation4 + $0x100] sm:$0xff] %vm320, %v13478
    %13543 = vst.msk [vmem:[#allocation4 + $0x108] sm:$0xff] %vm320, %v13479
    %13544 = vst.msk [vmem:[#allocation4 + $0x110] sm:$0xff] %vm320, %v13480
    %13545 = vst.msk [vmem:[#allocation4 + $0x118] sm:$0xff] %vm320, %v13481
    %13546 = vst.msk [vmem:[#allocation4 + $0x120] sm:$0xff] %vm320, %v13482
    %13547 = vst.msk [vmem:[#allocation4 + $0x128] sm:$0xff] %vm320, %v13483
    %13548 = vst.msk [vmem:[#allocation4 + $0x130] sm:$0xff] %vm320, %v13484
    %13549 = vst.msk [vmem:[#allocation4 + $0x138] sm:$0xff] %vm320, %v13485
    %13550 = vst.msk [vmem:[#allocation4 + $0x140] sm:$0xff] %vm320, %v13486
    %13551 = vst.msk [vmem:[#allocation4 + $0x148] sm:$0xff] %vm320, %v13487
    %13552 = vst.msk [vmem:[#allocation4 + $0x150] sm:$0xff] %vm320, %v13488
    %13553 = vst.msk [vmem:[#allocation4 + $0x158] sm:$0xff] %vm320, %v13489
    %13554 = vst.msk [vmem:[#allocation4 + $0x160] sm:$0xff] %vm320, %v13490
    %13555 = vst.msk [vmem:[#allocation4 + $0x168] sm:$0xff] %vm320, %v13491
    %13556 = vst.msk [vmem:[#allocation4 + $0x170] sm:$0xff] %vm320, %v13492
    %13557 = vst.msk [vmem:[#allocation4 + $0x178] sm:$0xff] %vm320, %v13493
    %13558 = vst.msk [vmem:[#allocation4 + $0x180] sm:$0xff] %vm320, %v13494
    %13559 = vst.msk [vmem:[#allocation4 + $0x188] sm:$0xff] %vm320, %v13495
    %13560 = vst.msk [vmem:[#allocation4 + $0x190] sm:$0xff] %vm320, %v13496
    %13561 = vst.msk [vmem:[#allocation4 + $0x198] sm:$0xff] %vm320, %v13497
    %13562 = vst.msk [vmem:[#allocation4 + $0x1a0] sm:$0xff] %vm320, %v13498
    %13563 = vst.msk [vmem:[#allocation4 + $0x1a8] sm:$0xff] %vm320, %v13499
    %13564 = vst.msk [vmem:[#allocation4 + $0x1b0] sm:$0xff] %vm320, %v13500
    %13565 = vst.msk [vmem:[#allocation4 + $0x1b8] sm:$0xff] %vm320, %v13501
    %13566 = vst.msk [vmem:[#allocation4 + $0x1c0] sm:$0xff] %vm320, %v13502
    %13567 = vst.msk [vmem:[#allocation4 + $0x1c8] sm:$0xff] %vm320, %v13503
    %13568 = vst.msk [vmem:[#allocation4 + $0x1d0] sm:$0xff] %vm320, %v13504
    %13569 = vst.msk [vmem:[#allocation4 + $0x1d8] sm:$0xff] %vm320, %v13505
    %13570 = vst.msk [vmem:[#allocation4 + $0x1e0] sm:$0xff] %vm320, %v13506
    %13571 = vst.msk [vmem:[#allocation4 + $0x1e8] sm:$0xff] %vm320, %v13507
    %13572 = vst.msk [vmem:[#allocation4 + $0x1f0] sm:$0xff] %vm320, %v13508
    %13573 = vst.msk [vmem:[#allocation4 + $0x1f8] sm:$0xff] %vm320, %v13509
    // Predicated region
    $region34: #{tpu_custom_call.1} parent=1 // pred_check
      _
    $region35: #{tpu_custom_call.1} parent=1 // pred_check_branch
      %13575 = sbr.rel (0) target = $region37
    $region36: #{tpu_custom_call.1} parent=1 // pred_region
      %13577 = vsyncadd [#allocation5], 0
      %s13578 = sshll.u32 [#allocation4], 4
      %s13579 = int_to_ptr.vmem [resolvable:$true] %s13578
      %s13580 = sshll.u32 %s8, 4
      %s13581 = int_to_ptr.hbm [resolvable:$true] %s13580
      %13586 = dma.vmem_to_hbm [thread:$0]  %s13579, 8192, %s13581, [#allocation5], 128, 128, 8
    $region37: #{tpu_custom_call.1} parent=1 // pred_fallthru
      _
    // Predicated region
    $region38: #{tpu_custom_call.1} parent=1 // pred_check
      _
    $region39: #{tpu_custom_call.1} parent=1 // pred_check_branch
      %13588 = sbr.rel (0) target = $region41
    $region40: #{tpu_custom_call.1} parent=1 // pred_region
      %13590 = dma.done [#allocation5], 8192
    $region41: #{tpu_custom_call.1} parent=1 // pred_fallthru
      _
    %13591 = vsyncpa [#allocation5], 1

</llo_original>
